<compile_context>
chip_gen: v7x
topology: tpu7x:2x2x1
jax: 0.10.0
libtpu: 0.0.40
codegen_flags: <defaults>
</compile_context>

<pallas_src>
import functools
import math

import jax
import jax.numpy as jnp
from jax.experimental import pallas as pl
from jax.experimental.pallas import tpu as pltpu

F32 = jnp.float32
BF16 = jnp.bfloat16
LANE = 128  # TPU lane width; every stacked gate is padded to one full lane tile


def _vmem():
    return pl.BlockSpec(memory_space=pltpu.MemorySpace.VMEM)


# ----------------------------------------------------------------------------
# Kernel 1: fused graph branch
#   edge MLP  +  lin0  +  3 x (NNConv mean-aggregation + GRU)  +  Set2Set
# ----------------------------------------------------------------------------
def _graph_encoder_kernel(D, steps,
                          eattr_ref, mlp1_w_ref, mlp1_b_ref, mlp2_w_ref, mlp2_b_ref,
                          rep_ref, red_ref,
                          x_ref, lin0_w_ref, lin0_b_ref,
                          ssrc_ref, sdst_ref, invdeg_ref, convb_ref,
                          gru_wih_ref, gru_whh_ref, gru_bih_ref, gru_bhh_ref,
                          s_ref, st_ref, s2s_wa_ref, s2s_wb_ref, s2s_b_ref,
                          enc1_ref,
                          wedge_scr):
    P = LANE

    # ---- edge network: Linear(5,128) -> ReLU -> Linear(128, D*D) ------------
    # The per-edge weights live in a VMEM scratch for the whole kernel (no HBM
    # round trip); columns are in transposed (k, d) order.
    h1 = jnp.maximum(
        jnp.dot(eattr_ref[...], mlp1_w_ref[...], preferred_element_type=F32)
        + mlp1_b_ref[...], 0.0)                                          # [E, 128]
    wedge_scr[...] = (
        jnp.dot(h1, mlp2_w_ref[...], preferred_element_type=F32) + mlp2_b_ref[...])

    # ---- lin0 + ReLU (node state zero-padded to LANE lanes) -----------------
    out = jnp.maximum(
        jnp.dot(x_ref[...], lin0_w_ref[...], preferred_element_type=F32)
        + lin0_b_ref[...], 0.0)                                          # [N, P]
    h = out

    # ---- 3 x (NNConv mean aggregation + GRU cell) ----------------------------
    for _ in range(steps):
        # re-read the large resident operands every step (bounds live ranges)
        ssrc = ssrc_ref[...]          # [E, N] bf16 one-hot (edge source)
        sdst = sdst_ref[...]          # [N, E] bf16 one-hot (edge destination)
        wedge = wedge_scr[...]        # [E, D*D] per-edge weights, (k, d) cols

        # gather source-node features on the MXU (bf16 x bf16, f32 accumulate)
        x_src = jnp.dot(ssrc, out[:, :D].astype(BF16),
                        preferred_element_type=F32)                      # [E, D]
        # per-edge message msg[e,k] = sum_d x_src[e,d] * W_e[d,k], done as two
        # constant 0/1 matmuls (lane replicate + per-group reduce) so the
        # reduction runs on the MXU - no 3-D reshape / lane->sublane relayout.
        x_rep = jnp.dot(x_src, rep_ref[...], preferred_element_type=F32)  # [E, D*D]
        msg = jnp.dot(x_rep * wedge, red_ref[...],
                      preferred_element_type=F32)                        # [E, D]
        # mean aggregation (exact f32 1/deg scaling) + conv bias + ReLU
        m = jnp.maximum(
            jnp.dot(sdst, msg.astype(BF16), preferred_element_type=F32)
            * invdeg_ref[...] + convb_ref[...], 0.0)                     # [N, D]

        # GRU cell: stacked gates r|z|n, each padded to a full 128-lane tile
        gi = jnp.dot(m.astype(BF16), gru_wih_ref[...],
                     preferred_element_type=F32) + gru_bih_ref[...]      # [N, 3P]
        gh = jnp.dot(h.astype(BF16), gru_whh_ref[...],
                     preferred_element_type=F32) + gru_bhh_ref[...]      # [N, 3P]
        r = jax.nn.sigmoid(gi[:, 0 * P:1 * P] + gh[:, 0 * P:1 * P])
        z = jax.nn.sigmoid(gi[:, 1 * P:2 * P] + gh[:, 1 * P:2 * P])
        n = jnp.tanh(gi[:, 2 * P:3 * P] + r * gh[:, 2 * P:3 * P])
        out = (1.0 - z) * n + z * h                                      # pads stay 0
        h = out

    # ---- Set2Set readout (3 processing steps) --------------------------------
    B = s_ref.shape[0]
    hh = jnp.zeros((B, P), F32)
    cc = jnp.zeros((B, P), F32)
    rr = jnp.zeros((B, P), F32)
    for _ in range(steps):
        # LSTM cell on q* = [hh, rr]; weights pre-folded, no per-step concat,
        # gates i|f|g|o each padded to a full lane tile.
        gates = (jnp.dot(hh.astype(BF16), s2s_wa_ref[...], preferred_element_type=F32)
                 + jnp.dot(rr.astype(BF16), s2s_wb_ref[...], preferred_element_type=F32)
                 + s2s_b_ref[...])                                       # [B, 4P]
        i_g = jax.nn.sigmoid(gates[:, 0 * P:1 * P])
        f_g = jax.nn.sigmoid(gates[:, 1 * P:2 * P])
        g_g = jnp.tanh(gates[:, 2 * P:3 * P])
        o_g = jax.nn.sigmoid(gates[:, 3 * P:4 * P])
        cc = f_g * cc + i_g * g_g
        hh = o_g * jnp.tanh(cc)                                          # pads stay 0

        # segment-softmax attention + segment-sum readout
        s = s_ref[...]                 # [B, N] bf16 one-hot graph membership
        st = st_ref[...]               # [N, B] bf16
        stf = st.astype(F32)
        qn = jnp.dot(st, hh.astype(BF16), preferred_element_type=F32)    # [N, P]
        e = jnp.sum(out * qn, axis=1, keepdims=True)                     # [N, 1]
        masked = jnp.where(stf > 0.5, e, -1e30)                          # [N, B]
        mseg = jnp.max(masked, axis=0, keepdims=True)                    # [1, B]
        mn = jnp.sum(stf * mseg, axis=1, keepdims=True)                  # [N, 1]
        a_un = jnp.exp(e - mn)                                           # [N, 1]
        den = jnp.sum(stf * a_un, axis=0, keepdims=True) + 1e-16         # [1, B]
        dn = jnp.sum(stf * den, axis=1, keepdims=True)                   # [N, 1]
        a = a_un / dn
        rr = jnp.dot(s, (a * out).astype(BF16), preferred_element_type=F32)  # [B, P]

    enc1_ref[...] = jnp.concatenate([hh[:, :D], rr[:, :D]], axis=1)      # [B, 2D]


def graph_encoder(eattr, mlp1_w, mlp1_b, mlp2_w, mlp2_b, rep, red,
                  x, lin0_w, lin0_b, s_src, s_dst, inv_deg, conv_b,
                  gru_wih, gru_whh, gru_bih, gru_bhh,
                  s_g, st_g, s2s_wa, s2s_wb, s2s_b, *, D, steps=3):
    E = eattr.shape[0]
    B = s_g.shape[0]
    return pl.pallas_call(
        functools.partial(_graph_encoder_kernel, D, steps),
        out_shape=jax.ShapeDtypeStruct((B, 2 * D), F32),
        in_specs=[_vmem()] * 23,
        out_specs=_vmem(),
        scratch_shapes=[pltpu.VMEM((E, D * D), F32)],
        compiler_params=pltpu.CompilerParams(vmem_limit_bytes=32 * 1024 * 1024),
    )(eattr, mlp1_w, mlp1_b, mlp2_w, mlp2_b, rep, red,
      x, lin0_w, lin0_b, s_src, s_dst, inv_deg, conv_b,
      gru_wih, gru_whh, gru_bih, gru_bhh,
      s_g, st_g, s2s_wa, s2s_wb, s2s_b)


# ----------------------------------------------------------------------------
# Kernel 2: SMILES LSTM over the full sequence, output = h at last timestep
# ----------------------------------------------------------------------------
def _smiles_lstm_kernel(H, T, emb_ref, wih_ref, whh_ref, b_ref, o_ref):
    P = LANE
    B = emb_ref.shape[1]
    h = jnp.zeros((B, P), F32)
    c = jnp.zeros((B, P), F32)
    # T is small here; for long sequences stream the embedding slab through a
    # grid axis over T instead of keeping it resident (see module TODO).
    for t in range(T):
        x_t = emb_ref[t]                                                 # [B, emb]
        gates = (jnp.dot(x_t.astype(BF16), wih_ref[...], preferred_element_type=F32)
                 + jnp.dot(h.astype(BF16), whh_ref[...], preferred_element_type=F32)
                 + b_ref[...])                                           # [B, 4P]
        i_g = jax.nn.sigmoid(gates[:, 0 * P:1 * P])
        f_g = jax.nn.sigmoid(gates[:, 1 * P:2 * P])
        g_g = jnp.tanh(gates[:, 2 * P:3 * P])
        o_g = jax.nn.sigmoid(gates[:, 3 * P:4 * P])
        c = f_g * c + i_g * g_g
        h = o_g * jnp.tanh(c)
    o_ref[...] = h[:, :H]


def smiles_lstm(emb_tbf, wih, whh, b, H, T):
    B = emb_tbf.shape[1]
    return pl.pallas_call(
        functools.partial(_smiles_lstm_kernel, H, T),
        out_shape=jax.ShapeDtypeStruct((B, H), F32),
        in_specs=[_vmem()] * 4,
        out_specs=_vmem(),
        compiler_params=pltpu.CompilerParams(vmem_limit_bytes=32 * 1024 * 1024),
    )(emb_tbf, wih, whh, b)


# ----------------------------------------------------------------------------
# Kernel 3: shared projection head applied to BOTH encoder outputs stacked
#   Linear -> BatchNorm1d (training-mode stats, per encoder half) -> ReLU
#   -> Linear(no bias) -> L2 normalize
# ----------------------------------------------------------------------------
def _proj_head_kernel(B, x1_ref, x2_ref, w1_ref, b1_ref, g_ref, be_ref, w2_ref,
                      o1_ref, o2_ref):
    xs = jnp.concatenate([x1_ref[...], x2_ref[...]], axis=0)             # [2B, 2D]
    hpre = jnp.dot(xs, w1_ref[...], preferred_element_type=F32) + b1_ref[...]

    def bn(hm):  # training-mode BatchNorm statistics for one encoder's rows
        mean = jnp.mean(hm, axis=0, keepdims=True)
        var = jnp.mean((hm - mean) ** 2, axis=0, keepdims=True)
        return (hm - mean) * jax.lax.rsqrt(var + 1e-5)

    hn = (jnp.concatenate([bn(hpre[:B]), bn(hpre[B:]) ], axis=0)
          * g_ref[...] + be_ref[...])
    hr = jnp.maximum(hn, 0.0)
    z = jnp.dot(hr, w2_ref[...], preferred_element_type=F32)             # [2B, 6D]
    nrm = jnp.sqrt(jnp.sum(z * z, axis=1, keepdims=True))
    z = z / jnp.maximum(nrm, 1e-12)
    o1_ref[...] = z[:B]
    o2_ref[...] = z[B:]


def proj_head_pair(x1, x2, w1, b1, gamma, beta, w2, B):
    P_out = w2.shape[1]
    return pl.pallas_call(
        functools.partial(_proj_head_kernel, B),
        out_shape=(jax.ShapeDtypeStruct((B, P_out), F32),
                   jax.ShapeDtypeStruct((B, P_out), F32)),
        in_specs=[_vmem()] * 7,
        out_specs=(_vmem(), _vmem()),
    )(x1, x2, w1, b1, gamma, beta, w2)


# ----------------------------------------------------------------------------
# Host-side weight re-layout helpers
# ----------------------------------------------------------------------------
def _pad_gate_cols(w, width, num_gates):
    """Zero-pad each stacked gate block (true width `width`) to a full 128-lane
    tile so in-kernel gate slices are tile-aligned."""
    blocks = [jnp.pad(w[:, g * width:(g + 1) * width],
                      ((0, 0), (0, LANE - width))) for g in range(num_gates)]
    return jnp.concatenate(blocks, axis=1)


def _pad_rows(w, rows):
    return jnp.pad(w, ((0, rows - w.shape[0]), (0, 0)))


# ----------------------------------------------------------------------------
# Parameter initialization (deterministic, synthetic; PyTorch-layout shapes)
# ----------------------------------------------------------------------------
def init_params(key, num_features, dim, vocab_size, embedding_dim, padding_idx):
    keys = iter(jax.random.split(key, 32))
    D = dim
    p = {}

    def xavier(fi, fo):
        b = math.sqrt(6.0 / (fi + fo))
        return jax.random.uniform(next(keys), (fi, fo), F32, -b, b)

    def unif(shape, k):
        return jax.random.uniform(next(keys), shape, F32, -k, k)

    # MPNN encoder
    p['lin0_w'] = xavier(num_features, D)
    p['lin0_b'] = jnp.zeros((1, D), F32)
    p['mlp1_w'] = xavier(5, 128)
    p['mlp1_b'] = jnp.zeros((1, 128), F32)
    p['mlp2_w'] = xavier(128, D * D)
    p['mlp2_b'] = jnp.zeros((1, D * D), F32)
    p['conv_b'] = jnp.zeros((1, D), F32)              # NNConv bias (root_weight=False)
    kg = 1.0 / math.sqrt(D)
    p['gru_wih'] = unif((D, 3 * D), kg)               # stacked gates: r | z | n
    p['gru_whh'] = unif((D, 3 * D), kg)
    p['gru_bih'] = unif((1, 3 * D), kg)
    p['gru_bhh'] = unif((1, 3 * D), kg)
    # Set2Set LSTM (input 2D, hidden D), stacked gates: i | f | g | o
    p['s2s_wih'] = unif((2 * D, 4 * D), kg)
    p['s2s_whh'] = unif((D, 4 * D), kg)
    p['s2s_bih'] = unif((1, 4 * D), kg)
    p['s2s_bhh'] = unif((1, 4 * D), kg)
    # SMILES encoder: Embedding + LSTM(embedding_dim -> 2D), stacked gates i|f|g|o
    emb = jax.random.normal(next(keys), (vocab_size, embedding_dim), F32)
    p['embed'] = emb.at[padding_idx].set(0.0)
    H = 2 * D
    kl = 1.0 / math.sqrt(H)
    p['smi_wih'] = unif((embedding_dim, 4 * H), kl)
    p['smi_whh'] = unif((H, 4 * H), kl)
    p['smi_bih'] = unif((1, 4 * H), kl)
    p['smi_bhh'] = unif((1, 4 * H), kl)
    # projection head g: Linear(2D,4D) -> BN -> ReLU -> Linear(4D,6D, no bias)
    p['g_w1'] = xavier(2 * D, 4 * D)
    p['g_b1'] = jnp.zeros((1, 4 * D), F32)
    p['g_gamma'] = jnp.ones((1, 4 * D), F32)
    p['g_beta'] = jnp.zeros((1, 4 * D), F32)
    p['g_w2'] = xavier(4 * D, 6 * D)
    return p


# ----------------------------------------------------------------------------
# Forward pass (index glue / weight re-layout in XLA, dense compute in Pallas)
# ----------------------------------------------------------------------------
def net_forward(params, x, edge_index, edge_attr, batch, smi,
                num_graphs, dim, max_len):
    p = params
    N = x.shape[0]
    B = num_graphs
    D = dim
    H = 2 * D

    # ---- index glue: bf16 one-hot selectors (exact 0/1), f32 1/deg ----------
    src, dst = edge_index[0], edge_index[1]
    node_ids = jnp.arange(N, dtype=jnp.int32)
    s_src = (node_ids[None, :] == src[:, None]).astype(BF16)             # [E, N]
    dst_onehot = (dst[None, :] == node_ids[:, None])                     # [N, E]
    s_dst = dst_onehot.astype(BF16)
    deg = jnp.sum(dst_onehot.astype(F32), axis=1, keepdims=True)
    inv_deg = 1.0 / jnp.maximum(deg, 1.0)                                # [N, 1]
    graph_ids = jnp.arange(B, dtype=jnp.int32)
    s_g = (batch[None, :] == graph_ids[:, None]).astype(BF16)            # [B, N]
    st_g = (batch[:, None] == graph_ids[None, :]).astype(BF16)           # [N, B]

    # ---- constant replicate / group-reduce matrices for the NNConv message --
    j = jnp.arange(D * D)
    rep = (j[None, :] % D == jnp.arange(D)[:, None]).astype(F32)         # [D, D*D]
    red = (j[:, None] // D == jnp.arange(D)[None, :]).astype(F32)        # [D*D, D]

    # ---- emit edge-MLP output weights in transposed (k, d) column order -----
    perm = jnp.arange(D * D).reshape(D, D).T.reshape(-1)                 # k*D+d <- d*D+k
    mlp2_w = p['mlp2_w'][:, perm]
    mlp2_b = p['mlp2_b'][:, perm]

    # ---- pad node-state / gate weights to full lane tiles, cast to bf16 -----
    lin0_w = jnp.pad(p['lin0_w'], ((0, 0), (0, LANE - D)))
    lin0_b = jnp.pad(p['lin0_b'], ((0, 0), (0, LANE - D)))
    gru_wih = _pad_gate_cols(p['gru_wih'], D, 3).astype(BF16)
    gru_whh = _pad_rows(_pad_gate_cols(p['gru_whh'], D, 3), LANE).astype(BF16)
    gru_bih = _pad_gate_cols(p['gru_bih'], D, 3)
    gru_bhh = _pad_gate_cols(p['gru_bhh'], D, 3)
    # Set2Set LSTM: q* = [h, r]  =>  gates = h @ (Wih[:D] + Whh) + r @ Wih[D:] + b
    s2s_wa = _pad_rows(_pad_gate_cols(p['s2s_wih'][:D] + p['s2s_whh'], D, 4),
                       LANE).astype(BF16)
    s2s_wb = _pad_rows(_pad_gate_cols(p['s2s_wih'][D:2 * D], D, 4),
                       LANE).astype(BF16)
    s2s_b = _pad_gate_cols(p['s2s_bih'] + p['s2s_bhh'], D, 4)
    smi_wih = _pad_gate_cols(p['smi_wih'], H, 4).astype(BF16)
    smi_whh = _pad_rows(_pad_gate_cols(p['smi_whh'], H, 4), LANE).astype(BF16)
    smi_b = _pad_gate_cols(p['smi_bih'] + p['smi_bhh'], H, 4)

    # ---- fused graph branch: edge MLP + lin0 + 3x(NNConv+GRU) + Set2Set -----
    enc1 = graph_encoder(edge_attr, p['mlp1_w'], p['mlp1_b'], mlp2_w, mlp2_b,
                         rep, red, x, lin0_w, lin0_b, s_src, s_dst, inv_deg,
                         p['conv_b'], gru_wih, gru_whh, gru_bih, gru_bhh,
                         s_g, st_g, s2s_wa, s2s_wb, s2s_b, D=D, steps=3)  # [B, 2D]

    # ---- SMILES branch: embedding gather (XLA glue) + fused LSTM kernel -----
    emb = jnp.take(p['embed'], smi, axis=0)                              # [B, T, emb]
    emb_t = jnp.transpose(emb, (1, 0, 2))                                # [T, B, emb]
    enc2 = smiles_lstm(emb_t, smi_wih, smi_whh, smi_b, H, max_len)       # [B, 2D]

    # ---- shared projection head + L2 normalize (one call for both inputs) ---
    out1, out2 = proj_head_pair(enc1, enc2, p['g_w1'], p['g_b1'],
                                p['g_gamma'], p['g_beta'], p['g_w2'], B)
    return out1, out2


# ----------------------------------------------------------------------------
if __name__ == "__main__":
    key = jax.random.PRNGKey(0)
    k_param, k_x, k_e, k_smi = jax.random.split(key, 4)

    num_features, dim = 8, 16
    vocab_size, max_len, padding_idx, embedding_dim = 20, 8, 0, 16
    num_graphs, N = 2, 8

    # two 4-node ring graphs (both edge directions)
    src = [0, 1, 1, 2, 2, 3, 3, 0, 4, 5, 5, 6, 6, 7, 7, 4]
    dst = [1, 0, 2, 1, 3, 2, 0, 3, 5, 4, 6, 5, 7, 6, 4, 7]
    edge_index = jnp.array([src, dst], dtype=jnp.int32)                  # [2, 16]
    E = edge_index.shape[1]

    x = jax.random.normal(k_x, (N, num_features), F32)
    edge_attr = jax.random.normal(k_e, (E, 5), F32)
    batch = jnp.array([0, 0, 0, 0, 1, 1, 1, 1], dtype=jnp.int32)
    smi = jax.random.randint(k_smi, (num_graphs, max_len), 0, vocab_size,
                             dtype=jnp.int32)

    params = init_params(k_param, num_features, dim, vocab_size,
                         embedding_dim, padding_idx)

    fwd = jax.jit(net_forward, static_argnums=(6, 7, 8))
    out1, out2 = fwd(params, x, edge_index, edge_attr, batch, smi,
                     num_graphs, dim, max_len)
    jax.block_until_ready((out1, out2))

    assert out1.shape == (num_graphs, 6 * dim)
    assert out2.shape == (num_graphs, 6 * dim)
    print("KERNEL_OK")
</pallas_src>

<mosaic_0001>
module attributes {stable_mosaic.version = 11 : i64} {
  func.func @_graph_encoder_kernel(%arg0: memref<16x5xf32, #tpu.memory_space<vmem>>, %arg1: memref<5x128xf32, #tpu.memory_space<vmem>>, %arg2: memref<1x128xf32, #tpu.memory_space<vmem>>, %arg3: memref<128x256xf32, #tpu.memory_space<vmem>>, %arg4: memref<1x256xf32, #tpu.memory_space<vmem>>, %arg5: memref<16x256xf32, #tpu.memory_space<vmem>>, %arg6: memref<256x16xf32, #tpu.memory_space<vmem>>, %arg7: memref<8x8xf32, #tpu.memory_space<vmem>>, %arg8: memref<8x128xf32, #tpu.memory_space<vmem>>, %arg9: memref<1x128xf32, #tpu.memory_space<vmem>>, %arg10: memref<16x8xbf16, #tpu.memory_space<vmem>>, %arg11: memref<8x16xbf16, #tpu.memory_space<vmem>>, %arg12: memref<8x1xf32, #tpu.memory_space<vmem>>, %arg13: memref<1x16xf32, #tpu.memory_space<vmem>>, %arg14: memref<16x384xbf16, #tpu.memory_space<vmem>>, %arg15: memref<128x384xbf16, #tpu.memory_space<vmem>>, %arg16: memref<1x384xf32, #tpu.memory_space<vmem>>, %arg17: memref<1x384xf32, #tpu.memory_space<vmem>>, %arg18: memref<2x8xbf16, #tpu.memory_space<vmem>>, %arg19: memref<8x2xbf16, #tpu.memory_space<vmem>>, %arg20: memref<128x512xbf16, #tpu.memory_space<vmem>>, %arg21: memref<128x512xbf16, #tpu.memory_space<vmem>>, %arg22: memref<1x512xf32, #tpu.memory_space<vmem>>, %arg23: memref<2x32xf32, #tpu.memory_space<vmem>>, %arg24: memref<16x256xf32, #tpu.memory_space<vmem>>) attributes {dimension_semantics = [], scalar_prefetch = 0 : i64, scratch_operands = 1 : i64, tpu.core_type = #tpu.core_type<tc>} {
    %c0 = arith.constant 0 : index
    %c0_0 = arith.constant 0 : index
    %0 = vector.load %arg0[%c0, %c0_0] : memref<16x5xf32, #tpu.memory_space<vmem>>, vector<16x5xf32>
    %c0_1 = arith.constant 0 : index
    %c0_2 = arith.constant 0 : index
    %1 = vector.load %arg1[%c0_1, %c0_2] : memref<5x128xf32, #tpu.memory_space<vmem>>, vector<5x128xf32>
    %cst = arith.constant dense<0.000000e+00> : vector<16x128xf32>
    %2 = tpu.matmul %0, %1, %cst {dimension_numbers = #tpu.dot_dimension_numbers<[1], [0], [0], [1], [0, 0, 1, 1], [], []>} : vector<16x5xf32>, vector<5x128xf32>, vector<16x128xf32> -> vector<16x128xf32>
    %c0_3 = arith.constant 0 : index
    %c0_4 = arith.constant 0 : index
    %3 = vector.load %arg2[%c0_3, %c0_4] : memref<1x128xf32, #tpu.memory_space<vmem>>, vector<1x128xf32>
    %4 = vector.broadcast %3 : vector<1x128xf32> to vector<16x128xf32>
    %5 = arith.addf %2, %4 : vector<16x128xf32>
    %cst_5 = arith.constant 0.000000e+00 : f32
    %6 = vector.broadcast %cst_5 : f32 to vector<16x128xf32>
    %7 = arith.maximumf %5, %6 : vector<16x128xf32>
    %c0_6 = arith.constant 0 : index
    %c0_7 = arith.constant 0 : index
    %8 = vector.load %arg3[%c0_6, %c0_7] : memref<128x256xf32, #tpu.memory_space<vmem>>, vector<128x256xf32>
    %cst_8 = arith.constant dense<0.000000e+00> : vector<16x256xf32>
    %9 = tpu.matmul %7, %8, %cst_8 {dimension_numbers = #tpu.dot_dimension_numbers<[1], [0], [0], [1], [0, 0, 1, 1], [], []>} : vector<16x128xf32>, vector<128x256xf32>, vector<16x256xf32> -> vector<16x256xf32>
    %c0_9 = arith.constant 0 : index
    %c0_10 = arith.constant 0 : index
    %10 = vector.load %arg4[%c0_9, %c0_10] : memref<1x256xf32, #tpu.memory_space<vmem>>, vector<1x256xf32>
    %11 = vector.broadcast %10 : vector<1x256xf32> to vector<16x256xf32>
    %12 = arith.addf %9, %11 : vector<16x256xf32>
    %c0_11 = arith.constant 0 : index
    %c0_12 = arith.constant 0 : index
    %13 = vector.load %arg24[%c0_11, %c0_12] : memref<16x256xf32, #tpu.memory_space<vmem>>, vector<16x256xf32>
    tpu.vector_store %arg24[%c0_11, %c0_12], %12 {strides = array<i32>} : memref<16x256xf32, #tpu.memory_space<vmem>>, vector<16x256xf32>,
    %c0_13 = arith.constant 0 : index
    %c0_14 = arith.constant 0 : index
    %14 = vector.load %arg7[%c0_13, %c0_14] : memref<8x8xf32, #tpu.memory_space<vmem>>, vector<8x8xf32>
    %c0_15 = arith.constant 0 : index
    %c0_16 = arith.constant 0 : index
    %15 = vector.load %arg8[%c0_15, %c0_16] : memref<8x128xf32, #tpu.memory_space<vmem>>, vector<8x128xf32>
    %cst_17 = arith.constant dense<0.000000e+00> : vector<8x128xf32>
    %16 = tpu.matmul %14, %15, %cst_17 {dimension_numbers = #tpu.dot_dimension_numbers<[1], [0], [0], [1], [0, 0, 1, 1], [], []>} : vector<8x8xf32>, vector<8x128xf32>, vector<8x128xf32> -> vector<8x128xf32>
    %c0_18 = arith.constant 0 : index
    %c0_19 = arith.constant 0 : index
    %17 = vector.load %arg9[%c0_18, %c0_19] : memref<1x128xf32, #tpu.memory_space<vmem>>, vector<1x128xf32>
    %18 = vector.broadcast %17 : vector<1x128xf32> to vector<8x128xf32>
    %19 = arith.addf %16, %18 : vector<8x128xf32>
    %cst_20 = arith.constant 0.000000e+00 : f32
    %20 = vector.broadcast %cst_20 : f32 to vector<8x128xf32>
    %21 = arith.maximumf %19, %20 : vector<8x128xf32>
    %c0_21 = arith.constant 0 : index
    %c0_22 = arith.constant 0 : index
    %22 = vector.load %arg10[%c0_21, %c0_22] : memref<16x8xbf16, #tpu.memory_space<vmem>>, vector<16x8xbf16>
    %c0_23 = arith.constant 0 : index
    %c0_24 = arith.constant 0 : index
    %23 = vector.load %arg11[%c0_23, %c0_24] : memref<8x16xbf16, #tpu.memory_space<vmem>>, vector<8x16xbf16>
    %c0_25 = arith.constant 0 : index
    %c0_26 = arith.constant 0 : index
    %24 = vector.load %arg24[%c0_25, %c0_26] : memref<16x256xf32, #tpu.memory_space<vmem>>, vector<16x256xf32>
    %25 = vector.extract_strided_slice %21 {offsets = [0, 0], sizes = [8, 16], strides = [1, 1]} : vector<8x128xf32> to vector<8x16xf32>
    %26 = arith.truncf %25 : vector<8x16xf32> to vector<8x16xbf16>
    %cst_27 = arith.constant dense<0.000000e+00> : vector<16x16xf32>
    %27 = tpu.matmul %22, %26, %cst_27 {dimension_numbers = #tpu.dot_dimension_numbers<[1], [0], [0], [1], [0, 0, 1, 1], [], []>} : vector<16x8xbf16>, vector<8x16xbf16>, vector<16x16xf32> -> vector<16x16xf32>
    %c0_28 = arith.constant 0 : index
    %c0_29 = arith.constant 0 : index
    %28 = vector.load %arg5[%c0_28, %c0_29] : memref<16x256xf32, #tpu.memory_space<vmem>>, vector<16x256xf32>
    %cst_30 = arith.constant dense<0.000000e+00> : vector<16x256xf32>
    %29 = tpu.matmul %27, %28, %cst_30 {dimension_numbers = #tpu.dot_dimension_numbers<[1], [0], [0], [1], [0, 0, 1, 1], [], []>} : vector<16x16xf32>, vector<16x256xf32>, vector<16x256xf32> -> vector<16x256xf32>
    %30 = arith.mulf %29, %24 : vector<16x256xf32>
    %c0_31 = arith.constant 0 : index
    %c0_32 = arith.constant 0 : index
    %31 = vector.load %arg6[%c0_31, %c0_32] : memref<256x16xf32, #tpu.memory_space<vmem>>, vector<256x16xf32>
    %cst_33 = arith.constant dense<0.000000e+00> : vector<16x16xf32>
    %32 = tpu.matmul %30, %31, %cst_33 {dimension_numbers = #tpu.dot_dimension_numbers<[1], [0], [0], [1], [0, 0, 1, 1], [], []>} : vector<16x256xf32>, vector<256x16xf32>, vector<16x16xf32> -> vector<16x16xf32>
    %33 = arith.truncf %32 : vector<16x16xf32> to vector<16x16xbf16>
    %cst_34 = arith.constant dense<0.000000e+00> : vector<8x16xf32>
    %34 = tpu.matmul %23, %33, %cst_34 {dimension_numbers = #tpu.dot_dimension_numbers<[1], [0], [0], [1], [0, 0, 1, 1], [], []>} : vector<8x16xbf16>, vector<16x16xbf16>, vector<8x16xf32> -> vector<8x16xf32>
    %c0_35 = arith.constant 0 : index
    %c0_36 = arith.constant 0 : index
    %35 = vector.load %arg12[%c0_35, %c0_36] : memref<8x1xf32, #tpu.memory_space<vmem>>, vector<8x1xf32>
    %36 = vector.broadcast %35 : vector<8x1xf32> to vector<8x16xf32>
    %37 = arith.mulf %34, %36 : vector<8x16xf32>
    %c0_37 = arith.constant 0 : index
    %c0_38 = arith.constant 0 : index
    %38 = vector.load %arg13[%c0_37, %c0_38] : memref<1x16xf32, #tpu.memory_space<vmem>>, vector<1x16xf32>
    %39 = vector.broadcast %38 : vector<1x16xf32> to vector<8x16xf32>
    %40 = arith.addf %37, %39 : vector<8x16xf32>
    %cst_39 = arith.constant 0.000000e+00 : f32
    %41 = vector.broadcast %cst_39 : f32 to vector<8x16xf32>
    %42 = arith.maximumf %40, %41 : vector<8x16xf32>
    %43 = arith.truncf %42 : vector<8x16xf32> to vector<8x16xbf16>
    %c0_40 = arith.constant 0 : index
    %c0_41 = arith.constant 0 : index
    %44 = vector.load %arg14[%c0_40, %c0_41] : memref<16x384xbf16, #tpu.memory_space<vmem>>, vector<16x384xbf16>
    %cst_42 = arith.constant dense<0.000000e+00> : vector<8x384xf32>
    %45 = tpu.matmul %43, %44, %cst_42 {dimension_numbers = #tpu.dot_dimension_numbers<[1], [0], [0], [1], [0, 0, 1, 1], [], []>} : vector<8x16xbf16>, vector<16x384xbf16>, vector<8x384xf32> -> vector<8x384xf32>
    %c0_43 = arith.constant 0 : index
    %c0_44 = arith.constant 0 : index
    %46 = vector.load %arg16[%c0_43, %c0_44] : memref<1x384xf32, #tpu.memory_space<vmem>>, vector<1x384xf32>
    %47 = vector.broadcast %46 : vector<1x384xf32> to vector<8x384xf32>
    %48 = arith.addf %45, %47 : vector<8x384xf32>
    %49 = arith.truncf %21 : vector<8x128xf32> to vector<8x128xbf16>
    %c0_45 = arith.constant 0 : index
    %c0_46 = arith.constant 0 : index
    %50 = vector.load %arg15[%c0_45, %c0_46] : memref<128x384xbf16, #tpu.memory_space<vmem>>, vector<128x384xbf16>
    %cst_47 = arith.constant dense<0.000000e+00> : vector<8x384xf32>
    %51 = tpu.matmul %49, %50, %cst_47 {dimension_numbers = #tpu.dot_dimension_numbers<[1], [0], [0], [1], [0, 0, 1, 1], [], []>} : vector<8x128xbf16>, vector<128x384xbf16>, vector<8x384xf32> -> vector<8x384xf32>
    %c0_48 = arith.constant 0 : index
    %c0_49 = arith.constant 0 : index
    %52 = vector.load %arg17[%c0_48, %c0_49] : memref<1x384xf32, #tpu.memory_space<vmem>>, vector<1x384xf32>
    %53 = vector.broadcast %52 : vector<1x384xf32> to vector<8x384xf32>
    %54 = arith.addf %51, %53 : vector<8x384xf32>
    %55 = vector.extract_strided_slice %48 {offsets = [0, 0], sizes = [8, 128], strides = [1, 1]} : vector<8x384xf32> to vector<8x128xf32>
    %56 = vector.extract_strided_slice %54 {offsets = [0, 0], sizes = [8, 128], strides = [1, 1]} : vector<8x384xf32> to vector<8x128xf32>
    %57 = arith.addf %55, %56 : vector<8x128xf32>
    %58 = arith.negf %57 : vector<8x128xf32>
    %59 = math.exp %58 : vector<8x128xf32>
    %cst_50 = arith.constant 1.000000e+00 : f32
    %60 = vector.broadcast %cst_50 : f32 to vector<8x128xf32>
    %61 = arith.addf %60, %59 : vector<8x128xf32>
    %62 = arith.divf %60, %61 : vector<8x128xf32>
    %63 = vector.extract_strided_slice %48 {offsets = [0, 128], sizes = [8, 128], strides = [1, 1]} : vector<8x384xf32> to vector<8x128xf32>
    %64 = vector.extract_strided_slice %54 {offsets = [0, 128], sizes = [8, 128], strides = [1, 1]} : vector<8x384xf32> to vector<8x128xf32>
    %65 = arith.addf %63, %64 : vector<8x128xf32>
    %66 = arith.negf %65 : vector<8x128xf32>
    %67 = math.exp %66 : vector<8x128xf32>
    %cst_51 = arith.constant 1.000000e+00 : f32
    %68 = vector.broadcast %cst_51 : f32 to vector<8x128xf32>
    %69 = arith.addf %68, %67 : vector<8x128xf32>
    %70 = arith.divf %68, %69 : vector<8x128xf32>
    %71 = vector.extract_strided_slice %48 {offsets = [0, 256], sizes = [8, 128], strides = [1, 1]} : vector<8x384xf32> to vector<8x128xf32>
    %72 = vector.extract_strided_slice %54 {offsets = [0, 256], sizes = [8, 128], strides = [1, 1]} : vector<8x384xf32> to vector<8x128xf32>
    %73 = arith.mulf %62, %72 : vector<8x128xf32>
    %74 = arith.addf %71, %73 : vector<8x128xf32>
    %75 = math.tanh %74 : vector<8x128xf32>
    %cst_52 = arith.constant 1.000000e+00 : f32
    %76 = vector.broadcast %cst_52 : f32 to vector<8x128xf32>
    %77 = arith.subf %76, %70 : vector<8x128xf32>
    %78 = arith.mulf %77, %75 : vector<8x128xf32>
    %79 = arith.mulf %70, %21 : vector<8x128xf32>
    %80 = arith.addf %78, %79 : vector<8x128xf32>
    %c0_53 = arith.constant 0 : index
    %c0_54 = arith.constant 0 : index
    %81 = vector.load %arg10[%c0_53, %c0_54] : memref<16x8xbf16, #tpu.memory_space<vmem>>, vector<16x8xbf16>
    %c0_55 = arith.constant 0 : index
    %c0_56 = arith.constant 0 : index
    %82 = vector.load %arg11[%c0_55, %c0_56] : memref<8x16xbf16, #tpu.memory_space<vmem>>, vector<8x16xbf16>
    %c0_57 = arith.constant 0 : index
    %c0_58 = arith.constant 0 : index
    %83 = vector.load %arg24[%c0_57, %c0_58] : memref<16x256xf32, #tpu.memory_space<vmem>>, vector<16x256xf32>
    %84 = vector.extract_strided_slice %80 {offsets = [0, 0], sizes = [8, 16], strides = [1, 1]} : vector<8x128xf32> to vector<8x16xf32>
    %85 = arith.truncf %84 : vector<8x16xf32> to vector<8x16xbf16>
    %cst_59 = arith.constant dense<0.000000e+00> : vector<16x16xf32>
    %86 = tpu.matmul %81, %85, %cst_59 {dimension_numbers = #tpu.dot_dimension_numbers<[1], [0], [0], [1], [0, 0, 1, 1], [], []>} : vector<16x8xbf16>, vector<8x16xbf16>, vector<16x16xf32> -> vector<16x16xf32>
    %c0_60 = arith.constant 0 : index
    %c0_61 = arith.constant 0 : index
    %87 = vector.load %arg5[%c0_60, %c0_61] : memref<16x256xf32, #tpu.memory_space<vmem>>, vector<16x256xf32>
    %cst_62 = arith.constant dense<0.000000e+00> : vector<16x256xf32>
    %88 = tpu.matmul %86, %87, %cst_62 {dimension_numbers = #tpu.dot_dimension_numbers<[1], [0], [0], [1], [0, 0, 1, 1], [], []>} : vector<16x16xf32>, vector<16x256xf32>, vector<16x256xf32> -> vector<16x256xf32>
    %89 = arith.mulf %88, %83 : vector<16x256xf32>
    %c0_63 = arith.constant 0 : index
    %c0_64 = arith.constant 0 : index
    %90 = vector.load %arg6[%c0_63, %c0_64] : memref<256x16xf32, #tpu.memory_space<vmem>>, vector<256x16xf32>
    %cst_65 = arith.constant dense<0.000000e+00> : vector<16x16xf32>
    %91 = tpu.matmul %89, %90, %cst_65 {dimension_numbers = #tpu.dot_dimension_numbers<[1], [0], [0], [1], [0, 0, 1, 1], [], []>} : vector<16x256xf32>, vector<256x16xf32>, vector<16x16xf32> -> vector<16x16xf32>
    %92 = arith.truncf %91 : vector<16x16xf32> to vector<16x16xbf16>
    %cst_66 = arith.constant dense<0.000000e+00> : vector<8x16xf32>
    %93 = tpu.matmul %82, %92, %cst_66 {dimension_numbers = #tpu.dot_dimension_numbers<[1], [0], [0], [1], [0, 0, 1, 1], [], []>} : vector<8x16xbf16>, vector<16x16xbf16>, vector<8x16xf32> -> vector<8x16xf32>
    %c0_67 = arith.constant 0 : index
    %c0_68 = arith.constant 0 : index
    %94 = vector.load %arg12[%c0_67, %c0_68] : memref<8x1xf32, #tpu.memory_space<vmem>>, vector<8x1xf32>
    %95 = vector.broadcast %94 : vector<8x1xf32> to vector<8x16xf32>
    %96 = arith.mulf %93, %95 : vector<8x16xf32>
    %c0_69 = arith.constant 0 : index
    %c0_70 = arith.constant 0 : index
    %97 = vector.load %arg13[%c0_69, %c0_70] : memref<1x16xf32, #tpu.memory_space<vmem>>, vector<1x16xf32>
    %98 = vector.broadcast %97 : vector<1x16xf32> to vector<8x16xf32>
    %99 = arith.addf %96, %98 : vector<8x16xf32>
    %cst_71 = arith.constant 0.000000e+00 : f32
    %100 = vector.broadcast %cst_71 : f32 to vector<8x16xf32>
    %101 = arith.maximumf %99, %100 : vector<8x16xf32>
    %102 = arith.truncf %101 : vector<8x16xf32> to vector<8x16xbf16>
    %c0_72 = arith.constant 0 : index
    %c0_73 = arith.constant 0 : index
    %103 = vector.load %arg14[%c0_72, %c0_73] : memref<16x384xbf16, #tpu.memory_space<vmem>>, vector<16x384xbf16>
    %cst_74 = arith.constant dense<0.000000e+00> : vector<8x384xf32>
    %104 = tpu.matmul %102, %103, %cst_74 {dimension_numbers = #tpu.dot_dimension_numbers<[1], [0], [0], [1], [0, 0, 1, 1], [], []>} : vector<8x16xbf16>, vector<16x384xbf16>, vector<8x384xf32> -> vector<8x384xf32>
    %c0_75 = arith.constant 0 : index
    %c0_76 = arith.constant 0 : index
    %105 = vector.load %arg16[%c0_75, %c0_76] : memref<1x384xf32, #tpu.memory_space<vmem>>, vector<1x384xf32>
    %106 = vector.broadcast %105 : vector<1x384xf32> to vector<8x384xf32>
    %107 = arith.addf %104, %106 : vector<8x384xf32>
    %108 = arith.truncf %80 : vector<8x128xf32> to vector<8x128xbf16>
    %c0_77 = arith.constant 0 : index
    %c0_78 = arith.constant 0 : index
    %109 = vector.load %arg15[%c0_77, %c0_78] : memref<128x384xbf16, #tpu.memory_space<vmem>>, vector<128x384xbf16>
    %cst_79 = arith.constant dense<0.000000e+00> : vector<8x384xf32>
    %110 = tpu.matmul %108, %109, %cst_79 {dimension_numbers = #tpu.dot_dimension_numbers<[1], [0], [0], [1], [0, 0, 1, 1], [], []>} : vector<8x128xbf16>, vector<128x384xbf16>, vector<8x384xf32> -> vector<8x384xf32>
    %c0_80 = arith.constant 0 : index
    %c0_81 = arith.constant 0 : index
    %111 = vector.load %arg17[%c0_80, %c0_81] : memref<1x384xf32, #tpu.memory_space<vmem>>, vector<1x384xf32>
    %112 = vector.broadcast %111 : vector<1x384xf32> to vector<8x384xf32>
    %113 = arith.addf %110, %112 : vector<8x384xf32>
    %114 = vector.extract_strided_slice %107 {offsets = [0, 0], sizes = [8, 128], strides = [1, 1]} : vector<8x384xf32> to vector<8x128xf32>
    %115 = vector.extract_strided_slice %113 {offsets = [0, 0], sizes = [8, 128], strides = [1, 1]} : vector<8x384xf32> to vector<8x128xf32>
    %116 = arith.addf %114, %115 : vector<8x128xf32>
    %117 = arith.negf %116 : vector<8x128xf32>
    %118 = math.exp %117 : vector<8x128xf32>
    %cst_82 = arith.constant 1.000000e+00 : f32
    %119 = vector.broadcast %cst_82 : f32 to vector<8x128xf32>
    %120 = arith.addf %119, %118 : vector<8x128xf32>
    %121 = arith.divf %119, %120 : vector<8x128xf32>
    %122 = vector.extract_strided_slice %107 {offsets = [0, 128], sizes = [8, 128], strides = [1, 1]} : vector<8x384xf32> to vector<8x128xf32>
    %123 = vector.extract_strided_slice %113 {offsets = [0, 128], sizes = [8, 128], strides = [1, 1]} : vector<8x384xf32> to vector<8x128xf32>
    %124 = arith.addf %122, %123 : vector<8x128xf32>
    %125 = arith.negf %124 : vector<8x128xf32>
    %126 = math.exp %125 : vector<8x128xf32>
    %cst_83 = arith.constant 1.000000e+00 : f32
    %127 = vector.broadcast %cst_83 : f32 to vector<8x128xf32>
    %128 = arith.addf %127, %126 : vector<8x128xf32>
    %129 = arith.divf %127, %128 : vector<8x128xf32>
    %130 = vector.extract_strided_slice %107 {offsets = [0, 256], sizes = [8, 128], strides = [1, 1]} : vector<8x384xf32> to vector<8x128xf32>
    %131 = vector.extract_strided_slice %113 {offsets = [0, 256], sizes = [8, 128], strides = [1, 1]} : vector<8x384xf32> to vector<8x128xf32>
    %132 = arith.mulf %121, %131 : vector<8x128xf32>
    %133 = arith.addf %130, %132 : vector<8x128xf32>
    %134 = math.tanh %133 : vector<8x128xf32>
    %cst_84 = arith.constant 1.000000e+00 : f32
    %135 = vector.broadcast %cst_84 : f32 to vector<8x128xf32>
    %136 = arith.subf %135, %129 : vector<8x128xf32>
    %137 = arith.mulf %136, %134 : vector<8x128xf32>
    %138 = arith.mulf %129, %80 : vector<8x128xf32>
    %139 = arith.addf %137, %138 : vector<8x128xf32>
    %c0_85 = arith.constant 0 : index
    %c0_86 = arith.constant 0 : index
    %140 = vector.load %arg10[%c0_85, %c0_86] : memref<16x8xbf16, #tpu.memory_space<vmem>>, vector<16x8xbf16>
    %c0_87 = arith.constant 0 : index
    %c0_88 = arith.constant 0 : index
    %141 = vector.load %arg11[%c0_87, %c0_88] : memref<8x16xbf16, #tpu.memory_space<vmem>>, vector<8x16xbf16>
    %c0_89 = arith.constant 0 : index
    %c0_90 = arith.constant 0 : index
    %142 = vector.load %arg24[%c0_89, %c0_90] : memref<16x256xf32, #tpu.memory_space<vmem>>, vector<16x256xf32>
    %143 = vector.extract_strided_slice %139 {offsets = [0, 0], sizes = [8, 16], strides = [1, 1]} : vector<8x128xf32> to vector<8x16xf32>
    %144 = arith.truncf %143 : vector<8x16xf32> to vector<8x16xbf16>
    %cst_91 = arith.constant dense<0.000000e+00> : vector<16x16xf32>
    %145 = tpu.matmul %140, %144, %cst_91 {dimension_numbers = #tpu.dot_dimension_numbers<[1], [0], [0], [1], [0, 0, 1, 1], [], []>} : vector<16x8xbf16>, vector<8x16xbf16>, vector<16x16xf32> -> vector<16x16xf32>
    %c0_92 = arith.constant 0 : index
    %c0_93 = arith.constant 0 : index
    %146 = vector.load %arg5[%c0_92, %c0_93] : memref<16x256xf32, #tpu.memory_space<vmem>>, vector<16x256xf32>
    %cst_94 = arith.constant dense<0.000000e+00> : vector<16x256xf32>
    %147 = tpu.matmul %145, %146, %cst_94 {dimension_numbers = #tpu.dot_dimension_numbers<[1], [0], [0], [1], [0, 0, 1, 1], [], []>} : vector<16x16xf32>, vector<16x256xf32>, vector<16x256xf32> -> vector<16x256xf32>
    %148 = arith.mulf %147, %142 : vector<16x256xf32>
    %c0_95 = arith.constant 0 : index
    %c0_96 = arith.constant 0 : index
    %149 = vector.load %arg6[%c0_95, %c0_96] : memref<256x16xf32, #tpu.memory_space<vmem>>, vector<256x16xf32>
    %cst_97 = arith.constant dense<0.000000e+00> : vector<16x16xf32>
    %150 = tpu.matmul %148, %149, %cst_97 {dimension_numbers = #tpu.dot_dimension_numbers<[1], [0], [0], [1], [0, 0, 1, 1], [], []>} : vector<16x256xf32>, vector<256x16xf32>, vector<16x16xf32> -> vector<16x16xf32>
    %151 = arith.truncf %150 : vector<16x16xf32> to vector<16x16xbf16>
    %cst_98 = arith.constant dense<0.000000e+00> : vector<8x16xf32>
    %152 = tpu.matmul %141, %151, %cst_98 {dimension_numbers = #tpu.dot_dimension_numbers<[1], [0], [0], [1], [0, 0, 1, 1], [], []>} : vector<8x16xbf16>, vector<16x16xbf16>, vector<8x16xf32> -> vector<8x16xf32>
    %c0_99 = arith.constant 0 : index
    %c0_100 = arith.constant 0 : index
    %153 = vector.load %arg12[%c0_99, %c0_100] : memref<8x1xf32, #tpu.memory_space<vmem>>, vector<8x1xf32>
    %154 = vector.broadcast %153 : vector<8x1xf32> to vector<8x16xf32>
    %155 = arith.mulf %152, %154 : vector<8x16xf32>
    %c0_101 = arith.constant 0 : index
    %c0_102 = arith.constant 0 : index
    %156 = vector.load %arg13[%c0_101, %c0_102] : memref<1x16xf32, #tpu.memory_space<vmem>>, vector<1x16xf32>
    %157 = vector.broadcast %156 : vector<1x16xf32> to vector<8x16xf32>
    %158 = arith.addf %155, %157 : vector<8x16xf32>
    %cst_103 = arith.constant 0.000000e+00 : f32
    %159 = vector.broadcast %cst_103 : f32 to vector<8x16xf32>
    %160 = arith.maximumf %158, %159 : vector<8x16xf32>
    %161 = arith.truncf %160 : vector<8x16xf32> to vector<8x16xbf16>
    %c0_104 = arith.constant 0 : index
    %c0_105 = arith.constant 0 : index
    %162 = vector.load %arg14[%c0_104, %c0_105] : memref<16x384xbf16, #tpu.memory_space<vmem>>, vector<16x384xbf16>
    %cst_106 = arith.constant dense<0.000000e+00> : vector<8x384xf32>
    %163 = tpu.matmul %161, %162, %cst_106 {dimension_numbers = #tpu.dot_dimension_numbers<[1], [0], [0], [1], [0, 0, 1, 1], [], []>} : vector<8x16xbf16>, vector<16x384xbf16>, vector<8x384xf32> -> vector<8x384xf32>
    %c0_107 = arith.constant 0 : index
    %c0_108 = arith.constant 0 : index
    %164 = vector.load %arg16[%c0_107, %c0_108] : memref<1x384xf32, #tpu.memory_space<vmem>>, vector<1x384xf32>
    %165 = vector.broadcast %164 : vector<1x384xf32> to vector<8x384xf32>
    %166 = arith.addf %163, %165 : vector<8x384xf32>
    %167 = arith.truncf %139 : vector<8x128xf32> to vector<8x128xbf16>
    %c0_109 = arith.constant 0 : index
    %c0_110 = arith.constant 0 : index
    %168 = vector.load %arg15[%c0_109, %c0_110] : memref<128x384xbf16, #tpu.memory_space<vmem>>, vector<128x384xbf16>
    %cst_111 = arith.constant dense<0.000000e+00> : vector<8x384xf32>
    %169 = tpu.matmul %167, %168, %cst_111 {dimension_numbers = #tpu.dot_dimension_numbers<[1], [0], [0], [1], [0, 0, 1, 1], [], []>} : vector<8x128xbf16>, vector<128x384xbf16>, vector<8x384xf32> -> vector<8x384xf32>
    %c0_112 = arith.constant 0 : index
    %c0_113 = arith.constant 0 : index
    %170 = vector.load %arg17[%c0_112, %c0_113] : memref<1x384xf32, #tpu.memory_space<vmem>>, vector<1x384xf32>
    %171 = vector.broadcast %170 : vector<1x384xf32> to vector<8x384xf32>
    %172 = arith.addf %169, %171 : vector<8x384xf32>
    %173 = vector.extract_strided_slice %166 {offsets = [0, 0], sizes = [8, 128], strides = [1, 1]} : vector<8x384xf32> to vector<8x128xf32>
    %174 = vector.extract_strided_slice %172 {offsets = [0, 0], sizes = [8, 128], strides = [1, 1]} : vector<8x384xf32> to vector<8x128xf32>
    %175 = arith.addf %173, %174 : vector<8x128xf32>
    %176 = arith.negf %175 : vector<8x128xf32>
    %177 = math.exp %176 : vector<8x128xf32>
    %cst_114 = arith.constant 1.000000e+00 : f32
    %178 = vector.broadcast %cst_114 : f32 to vector<8x128xf32>
    %179 = arith.addf %178, %177 : vector<8x128xf32>
    %180 = arith.divf %178, %179 : vector<8x128xf32>
    %181 = vector.extract_strided_slice %166 {offsets = [0, 128], sizes = [8, 128], strides = [1, 1]} : vector<8x384xf32> to vector<8x128xf32>
    %182 = vector.extract_strided_slice %172 {offsets = [0, 128], sizes = [8, 128], strides = [1, 1]} : vector<8x384xf32> to vector<8x128xf32>
    %183 = arith.addf %181, %182 : vector<8x128xf32>
    %184 = arith.negf %183 : vector<8x128xf32>
    %185 = math.exp %184 : vector<8x128xf32>
    %cst_115 = arith.constant 1.000000e+00 : f32
    %186 = vector.broadcast %cst_115 : f32 to vector<8x128xf32>
    %187 = arith.addf %186, %185 : vector<8x128xf32>
    %188 = arith.divf %186, %187 : vector<8x128xf32>
    %189 = vector.extract_strided_slice %166 {offsets = [0, 256], sizes = [8, 128], strides = [1, 1]} : vector<8x384xf32> to vector<8x128xf32>
    %190 = vector.extract_strided_slice %172 {offsets = [0, 256], sizes = [8, 128], strides = [1, 1]} : vector<8x384xf32> to vector<8x128xf32>
    %191 = arith.mulf %180, %190 : vector<8x128xf32>
    %192 = arith.addf %189, %191 : vector<8x128xf32>
    %193 = math.tanh %192 : vector<8x128xf32>
    %cst_116 = arith.constant 1.000000e+00 : f32
    %194 = vector.broadcast %cst_116 : f32 to vector<8x128xf32>
    %195 = arith.subf %194, %188 : vector<8x128xf32>
    %196 = arith.mulf %195, %193 : vector<8x128xf32>
    %197 = arith.mulf %188, %139 : vector<8x128xf32>
    %198 = arith.addf %196, %197 : vector<8x128xf32>
    %cst_117 = arith.constant 0.000000e+00 : f32
    %199 = vector.broadcast %cst_117 : f32 to vector<2x128xf32>
    %cst_118 = arith.constant 0.000000e+00 : f32
    %200 = vector.broadcast %cst_118 : f32 to vector<2x128xf32>
    %cst_119 = arith.constant 0.000000e+00 : f32
    %201 = vector.broadcast %cst_119 : f32 to vector<2x128xf32>
    %202 = arith.truncf %199 : vector<2x128xf32> to vector<2x128xbf16>
    %c0_120 = arith.constant 0 : index
    %c0_121 = arith.constant 0 : index
    %203 = vector.load %arg20[%c0_120, %c0_121] : memref<128x512xbf16, #tpu.memory_space<vmem>>, vector<128x512xbf16>
    %cst_122 = arith.constant dense<0.000000e+00> : vector<2x512xf32>
    %204 = tpu.matmul %202, %203, %cst_122 {dimension_numbers = #tpu.dot_dimension_numbers<[1], [0], [0], [1], [0, 0, 1, 1], [], []>} : vector<2x128xbf16>, vector<128x512xbf16>, vector<2x512xf32> -> vector<2x512xf32>
    %205 = arith.truncf %201 : vector<2x128xf32> to vector<2x128xbf16>
    %c0_123 = arith.constant 0 : index
    %c0_124 = arith.constant 0 : index
    %206 = vector.load %arg21[%c0_123, %c0_124] : memref<128x512xbf16, #tpu.memory_space<vmem>>, vector<128x512xbf16>
    %cst_125 = arith.constant dense<0.000000e+00> : vector<2x512xf32>
    %207 = tpu.matmul %205, %206, %cst_125 {dimension_numbers = #tpu.dot_dimension_numbers<[1], [0], [0], [1], [0, 0, 1, 1], [], []>} : vector<2x128xbf16>, vector<128x512xbf16>, vector<2x512xf32> -> vector<2x512xf32>
    %208 = arith.addf %204, %207 : vector<2x512xf32>
    %c0_126 = arith.constant 0 : index
    %c0_127 = arith.constant 0 : index
    %209 = vector.load %arg22[%c0_126, %c0_127] : memref<1x512xf32, #tpu.memory_space<vmem>>, vector<1x512xf32>
    %210 = vector.broadcast %209 : vector<1x512xf32> to vector<2x512xf32>
    %211 = arith.addf %208, %210 : vector<2x512xf32>
    %212 = vector.extract_strided_slice %211 {offsets = [0, 0], sizes = [2, 128], strides = [1, 1]} : vector<2x512xf32> to vector<2x128xf32>
    %213 = arith.negf %212 : vector<2x128xf32>
    %214 = math.exp %213 : vector<2x128xf32>
    %cst_128 = arith.constant 1.000000e+00 : f32
    %215 = vector.broadcast %cst_128 : f32 to vector<2x128xf32>
    %216 = arith.addf %215, %214 : vector<2x128xf32>
    %217 = arith.divf %215, %216 : vector<2x128xf32>
    %218 = vector.extract_strided_slice %211 {offsets = [0, 128], sizes = [2, 128], strides = [1, 1]} : vector<2x512xf32> to vector<2x128xf32>
    %219 = arith.negf %218 : vector<2x128xf32>
    %220 = math.exp %219 : vector<2x128xf32>
    %cst_129 = arith.constant 1.000000e+00 : f32
    %221 = vector.broadcast %cst_129 : f32 to vector<2x128xf32>
    %222 = arith.addf %221, %220 : vector<2x128xf32>
    %223 = arith.divf %221, %222 : vector<2x128xf32>
    %224 = vector.extract_strided_slice %211 {offsets = [0, 256], sizes = [2, 128], strides = [1, 1]} : vector<2x512xf32> to vector<2x128xf32>
    %225 = math.tanh %224 : vector<2x128xf32>
    %226 = vector.extract_strided_slice %211 {offsets = [0, 384], sizes = [2, 128], strides = [1, 1]} : vector<2x512xf32> to vector<2x128xf32>
    %227 = arith.negf %226 : vector<2x128xf32>
    %228 = math.exp %227 : vector<2x128xf32>
    %cst_130 = arith.constant 1.000000e+00 : f32
    %229 = vector.broadcast %cst_130 : f32 to vector<2x128xf32>
    %230 = arith.addf %229, %228 : vector<2x128xf32>
    %231 = arith.divf %229, %230 : vector<2x128xf32>
    %232 = arith.mulf %223, %200 : vector<2x128xf32>
    %233 = arith.mulf %217, %225 : vector<2x128xf32>
    %234 = arith.addf %232, %233 : vector<2x128xf32>
    %235 = math.tanh %234 : vector<2x128xf32>
    %236 = arith.mulf %231, %235 : vector<2x128xf32>
    %c0_131 = arith.constant 0 : index
    %c0_132 = arith.constant 0 : index
    %237 = vector.load %arg18[%c0_131, %c0_132] : memref<2x8xbf16, #tpu.memory_space<vmem>>, vector<2x8xbf16>
    %c0_133 = arith.constant 0 : index
    %c0_134 = arith.constant 0 : index
    %238 = vector.load %arg19[%c0_133, %c0_134] : memref<8x2xbf16, #tpu.memory_space<vmem>>, vector<8x2xbf16>
    %239 = arith.extf %238 : vector<8x2xbf16> to vector<8x2xf32>
    %240 = arith.truncf %236 : vector<2x128xf32> to vector<2x128xbf16>
    %cst_135 = arith.constant dense<0.000000e+00> : vector<8x128xf32>
    %241 = tpu.matmul %238, %240, %cst_135 {dimension_numbers = #tpu.dot_dimension_numbers<[1], [0], [0], [1], [0, 0, 1, 1], [], []>} : vector<8x2xbf16>, vector<2x128xbf16>, vector<8x128xf32> -> vector<8x128xf32>
    %242 = arith.mulf %198, %241 : vector<8x128xf32>
    %cst_136 = arith.constant dense<0.000000e+00> : vector<8xf32>
    %243 = vector.multi_reduction <add>, %242, %cst_136 [1] : vector<8x128xf32> to vector<8xf32>
    %244 = vector.shape_cast %243 : vector<8xf32> to vector<8x1xf32>
    %cst_137 = arith.constant 5.000000e-01 : f32
    %245 = vector.broadcast %cst_137 : f32 to vector<8x2xf32>
    %246 = arith.cmpf ogt, %239, %245 : vector<8x2xf32>
    %cst_138 = arith.constant -1.000000e+30 : f32
    %247 = vector.shape_cast %244 : vector<8x1xf32> to vector<8x1xf32>
    %248 = vector.broadcast %247 : vector<8x1xf32> to vector<8x2xf32>
    %249 = vector.broadcast %cst_138 : f32 to vector<8x2xf32>
    %250 = arith.select %246, %248, %249 : vector<8x2xi1>, vector<8x2xf32>
    %cst_139 = arith.constant dense<0xFF800000> : vector<2xf32>
    %251 = vector.multi_reduction <maximumf>, %250, %cst_139 [0] : vector<8x2xf32> to vector<2xf32>
    %252 = vector.shape_cast %251 : vector<2xf32> to vector<1x2xf32>
    %253 = vector.broadcast %252 : vector<1x2xf32> to vector<8x2xf32>
    %254 = arith.mulf %239, %253 : vector<8x2xf32>
    %cst_140 = arith.constant dense<0.000000e+00> : vector<8xf32>
    %255 = vector.multi_reduction <add>, %254, %cst_140 [1] : vector<8x2xf32> to vector<8xf32>
    %256 = vector.shape_cast %255 : vector<8xf32> to vector<8x1xf32>
    %257 = arith.subf %244, %256 : vector<8x1xf32>
    %258 = math.exp %257 : vector<8x1xf32>
    %259 = vector.broadcast %258 : vector<8x1xf32> to vector<8x2xf32>
    %260 = arith.mulf %239, %259 : vector<8x2xf32>
    %cst_141 = arith.constant dense<0.000000e+00> : vector<2xf32>
    %261 = vector.multi_reduction <add>, %260, %cst_141 [0] : vector<8x2xf32> to vector<2xf32>
    %262 = vector.shape_cast %261 : vector<2xf32> to vector<1x2xf32>
    %cst_142 = arith.constant 1.000000e-16 : f32
    %263 = vector.broadcast %cst_142 : f32 to vector<1x2xf32>
    %264 = arith.addf %262, %263 : vector<1x2xf32>
    %265 = vector.broadcast %264 : vector<1x2xf32> to vector<8x2xf32>
    %266 = arith.mulf %239, %265 : vector<8x2xf32>
    %cst_143 = arith.constant dense<0.000000e+00> : vector<8xf32>
    %267 = vector.multi_reduction <add>, %266, %cst_143 [1] : vector<8x2xf32> to vector<8xf32>
    %268 = vector.shape_cast %267 : vector<8xf32> to vector<8x1xf32>
    %269 = arith.divf %258, %268 : vector<8x1xf32>
    %270 = vector.broadcast %269 : vector<8x1xf32> to vector<8x128xf32>
    %271 = arith.mulf %270, %198 : vector<8x128xf32>
    %272 = arith.truncf %271 : vector<8x128xf32> to vector<8x128xbf16>
    %cst_144 = arith.constant dense<0.000000e+00> : vector<2x128xf32>
    %273 = tpu.matmul %237, %272, %cst_144 {dimension_numbers = #tpu.dot_dimension_numbers<[1], [0], [0], [1], [0, 0, 1, 1], [], []>} : vector<2x8xbf16>, vector<8x128xbf16>, vector<2x128xf32> -> vector<2x128xf32>
    %274 = arith.truncf %236 : vector<2x128xf32> to vector<2x128xbf16>
    %c0_145 = arith.constant 0 : index
    %c0_146 = arith.constant 0 : index
    %275 = vector.load %arg20[%c0_145, %c0_146] : memref<128x512xbf16, #tpu.memory_space<vmem>>, vector<128x512xbf16>
    %cst_147 = arith.constant dense<0.000000e+00> : vector<2x512xf32>
    %276 = tpu.matmul %274, %275, %cst_147 {dimension_numbers = #tpu.dot_dimension_numbers<[1], [0], [0], [1], [0, 0, 1, 1], [], []>} : vector<2x128xbf16>, vector<128x512xbf16>, vector<2x512xf32> -> vector<2x512xf32>
    %277 = arith.truncf %273 : vector<2x128xf32> to vector<2x128xbf16>
    %c0_148 = arith.constant 0 : index
    %c0_149 = arith.constant 0 : index
    %278 = vector.load %arg21[%c0_148, %c0_149] : memref<128x512xbf16, #tpu.memory_space<vmem>>, vector<128x512xbf16>
    %cst_150 = arith.constant dense<0.000000e+00> : vector<2x512xf32>
    %279 = tpu.matmul %277, %278, %cst_150 {dimension_numbers = #tpu.dot_dimension_numbers<[1], [0], [0], [1], [0, 0, 1, 1], [], []>} : vector<2x128xbf16>, vector<128x512xbf16>, vector<2x512xf32> -> vector<2x512xf32>
    %280 = arith.addf %276, %279 : vector<2x512xf32>
    %c0_151 = arith.constant 0 : index
    %c0_152 = arith.constant 0 : index
    %281 = vector.load %arg22[%c0_151, %c0_152] : memref<1x512xf32, #tpu.memory_space<vmem>>, vector<1x512xf32>
    %282 = vector.broadcast %281 : vector<1x512xf32> to vector<2x512xf32>
    %283 = arith.addf %280, %282 : vector<2x512xf32>
    %284 = vector.extract_strided_slice %283 {offsets = [0, 0], sizes = [2, 128], strides = [1, 1]} : vector<2x512xf32> to vector<2x128xf32>
    %285 = arith.negf %284 : vector<2x128xf32>
    %286 = math.exp %285 : vector<2x128xf32>
    %cst_153 = arith.constant 1.000000e+00 : f32
    %287 = vector.broadcast %cst_153 : f32 to vector<2x128xf32>
    %288 = arith.addf %287, %286 : vector<2x128xf32>
    %289 = arith.divf %287, %288 : vector<2x128xf32>
    %290 = vector.extract_strided_slice %283 {offsets = [0, 128], sizes = [2, 128], strides = [1, 1]} : vector<2x512xf32> to vector<2x128xf32>
    %291 = arith.negf %290 : vector<2x128xf32>
    %292 = math.exp %291 : vector<2x128xf32>
    %cst_154 = arith.constant 1.000000e+00 : f32
    %293 = vector.broadcast %cst_154 : f32 to vector<2x128xf32>
    %294 = arith.addf %293, %292 : vector<2x128xf32>
    %295 = arith.divf %293, %294 : vector<2x128xf32>
    %296 = vector.extract_strided_slice %283 {offsets = [0, 256], sizes = [2, 128], strides = [1, 1]} : vector<2x512xf32> to vector<2x128xf32>
    %297 = math.tanh %296 : vector<2x128xf32>
    %298 = vector.extract_strided_slice %283 {offsets = [0, 384], sizes = [2, 128], strides = [1, 1]} : vector<2x512xf32> to vector<2x128xf32>
    %299 = arith.negf %298 : vector<2x128xf32>
    %300 = math.exp %299 : vector<2x128xf32>
    %cst_155 = arith.constant 1.000000e+00 : f32
    %301 = vector.broadcast %cst_155 : f32 to vector<2x128xf32>
    %302 = arith.addf %301, %300 : vector<2x128xf32>
    %303 = arith.divf %301, %302 : vector<2x128xf32>
    %304 = arith.mulf %295, %234 : vector<2x128xf32>
    %305 = arith.mulf %289, %297 : vector<2x128xf32>
    %306 = arith.addf %304, %305 : vector<2x128xf32>
    %307 = math.tanh %306 : vector<2x128xf32>
    %308 = arith.mulf %303, %307 : vector<2x128xf32>
    %c0_156 = arith.constant 0 : index
    %c0_157 = arith.constant 0 : index
    %309 = vector.load %arg18[%c0_156, %c0_157] : memref<2x8xbf16, #tpu.memory_space<vmem>>, vector<2x8xbf16>
    %c0_158 = arith.constant 0 : index
    %c0_159 = arith.constant 0 : index
    %310 = vector.load %arg19[%c0_158, %c0_159] : memref<8x2xbf16, #tpu.memory_space<vmem>>, vector<8x2xbf16>
    %311 = arith.extf %310 : vector<8x2xbf16> to vector<8x2xf32>
    %312 = arith.truncf %308 : vector<2x128xf32> to vector<2x128xbf16>
    %cst_160 = arith.constant dense<0.000000e+00> : vector<8x128xf32>
    %313 = tpu.matmul %310, %312, %cst_160 {dimension_numbers = #tpu.dot_dimension_numbers<[1], [0], [0], [1], [0, 0, 1, 1], [], []>} : vector<8x2xbf16>, vector<2x128xbf16>, vector<8x128xf32> -> vector<8x128xf32>
    %314 = arith.mulf %198, %313 : vector<8x128xf32>
    %cst_161 = arith.constant dense<0.000000e+00> : vector<8xf32>
    %315 = vector.multi_reduction <add>, %314, %cst_161 [1] : vector<8x128xf32> to vector<8xf32>
    %316 = vector.shape_cast %315 : vector<8xf32> to vector<8x1xf32>
    %cst_162 = arith.constant 5.000000e-01 : f32
    %317 = vector.broadcast %cst_162 : f32 to vector<8x2xf32>
    %318 = arith.cmpf ogt, %311, %317 : vector<8x2xf32>
    %cst_163 = arith.constant -1.000000e+30 : f32
    %319 = vector.shape_cast %316 : vector<8x1xf32> to vector<8x1xf32>
    %320 = vector.broadcast %319 : vector<8x1xf32> to vector<8x2xf32>
    %321 = vector.broadcast %cst_163 : f32 to vector<8x2xf32>
    %322 = arith.select %318, %320, %321 : vector<8x2xi1>, vector<8x2xf32>
    %cst_164 = arith.constant dense<0xFF800000> : vector<2xf32>
    %323 = vector.multi_reduction <maximumf>, %322, %cst_164 [0] : vector<8x2xf32> to vector<2xf32>
    %324 = vector.shape_cast %323 : vector<2xf32> to vector<1x2xf32>
    %325 = vector.broadcast %324 : vector<1x2xf32> to vector<8x2xf32>
    %326 = arith.mulf %311, %325 : vector<8x2xf32>
    %cst_165 = arith.constant dense<0.000000e+00> : vector<8xf32>
    %327 = vector.multi_reduction <add>, %326, %cst_165 [1] : vector<8x2xf32> to vector<8xf32>
    %328 = vector.shape_cast %327 : vector<8xf32> to vector<8x1xf32>
    %329 = arith.subf %316, %328 : vector<8x1xf32>
    %330 = math.exp %329 : vector<8x1xf32>
    %331 = vector.broadcast %330 : vector<8x1xf32> to vector<8x2xf32>
    %332 = arith.mulf %311, %331 : vector<8x2xf32>
    %cst_166 = arith.constant dense<0.000000e+00> : vector<2xf32>
    %333 = vector.multi_reduction <add>, %332, %cst_166 [0] : vector<8x2xf32> to vector<2xf32>
    %334 = vector.shape_cast %333 : vector<2xf32> to vector<1x2xf32>
    %cst_167 = arith.constant 1.000000e-16 : f32
    %335 = vector.broadcast %cst_167 : f32 to vector<1x2xf32>
    %336 = arith.addf %334, %335 : vector<1x2xf32>
    %337 = vector.broadcast %336 : vector<1x2xf32> to vector<8x2xf32>
    %338 = arith.mulf %311, %337 : vector<8x2xf32>
    %cst_168 = arith.constant dense<0.000000e+00> : vector<8xf32>
    %339 = vector.multi_reduction <add>, %338, %cst_168 [1] : vector<8x2xf32> to vector<8xf32>
    %340 = vector.shape_cast %339 : vector<8xf32> to vector<8x1xf32>
    %341 = arith.divf %330, %340 : vector<8x1xf32>
    %342 = vector.broadcast %341 : vector<8x1xf32> to vector<8x128xf32>
    %343 = arith.mulf %342, %198 : vector<8x128xf32>
    %344 = arith.truncf %343 : vector<8x128xf32> to vector<8x128xbf16>
    %cst_169 = arith.constant dense<0.000000e+00> : vector<2x128xf32>
    %345 = tpu.matmul %309, %344, %cst_169 {dimension_numbers = #tpu.dot_dimension_numbers<[1], [0], [0], [1], [0, 0, 1, 1], [], []>} : vector<2x8xbf16>, vector<8x128xbf16>, vector<2x128xf32> -> vector<2x128xf32>
    %346 = arith.truncf %308 : vector<2x128xf32> to vector<2x128xbf16>
    %c0_170 = arith.constant 0 : index
    %c0_171 = arith.constant 0 : index
    %347 = vector.load %arg20[%c0_170, %c0_171] : memref<128x512xbf16, #tpu.memory_space<vmem>>, vector<128x512xbf16>
    %cst_172 = arith.constant dense<0.000000e+00> : vector<2x512xf32>
    %348 = tpu.matmul %346, %347, %cst_172 {dimension_numbers = #tpu.dot_dimension_numbers<[1], [0], [0], [1], [0, 0, 1, 1], [], []>} : vector<2x128xbf16>, vector<128x512xbf16>, vector<2x512xf32> -> vector<2x512xf32>
    %349 = arith.truncf %345 : vector<2x128xf32> to vector<2x128xbf16>
    %c0_173 = arith.constant 0 : index
    %c0_174 = arith.constant 0 : index
    %350 = vector.load %arg21[%c0_173, %c0_174] : memref<128x512xbf16, #tpu.memory_space<vmem>>, vector<128x512xbf16>
    %cst_175 = arith.constant dense<0.000000e+00> : vector<2x512xf32>
    %351 = tpu.matmul %349, %350, %cst_175 {dimension_numbers = #tpu.dot_dimension_numbers<[1], [0], [0], [1], [0, 0, 1, 1], [], []>} : vector<2x128xbf16>, vector<128x512xbf16>, vector<2x512xf32> -> vector<2x512xf32>
    %352 = arith.addf %348, %351 : vector<2x512xf32>
    %c0_176 = arith.constant 0 : index
    %c0_177 = arith.constant 0 : index
    %353 = vector.load %arg22[%c0_176, %c0_177] : memref<1x512xf32, #tpu.memory_space<vmem>>, vector<1x512xf32>
    %354 = vector.broadcast %353 : vector<1x512xf32> to vector<2x512xf32>
    %355 = arith.addf %352, %354 : vector<2x512xf32>
    %356 = vector.extract_strided_slice %355 {offsets = [0, 0], sizes = [2, 128], strides = [1, 1]} : vector<2x512xf32> to vector<2x128xf32>
    %357 = arith.negf %356 : vector<2x128xf32>
    %358 = math.exp %357 : vector<2x128xf32>
    %cst_178 = arith.constant 1.000000e+00 : f32
    %359 = vector.broadcast %cst_178 : f32 to vector<2x128xf32>
    %360 = arith.addf %359, %358 : vector<2x128xf32>
    %361 = arith.divf %359, %360 : vector<2x128xf32>
    %362 = vector.extract_strided_slice %355 {offsets = [0, 128], sizes = [2, 128], strides = [1, 1]} : vector<2x512xf32> to vector<2x128xf32>
    %363 = arith.negf %362 : vector<2x128xf32>
    %364 = math.exp %363 : vector<2x128xf32>
    %cst_179 = arith.constant 1.000000e+00 : f32
    %365 = vector.broadcast %cst_179 : f32 to vector<2x128xf32>
    %366 = arith.addf %365, %364 : vector<2x128xf32>
    %367 = arith.divf %365, %366 : vector<2x128xf32>
    %368 = vector.extract_strided_slice %355 {offsets = [0, 256], sizes = [2, 128], strides = [1, 1]} : vector<2x512xf32> to vector<2x128xf32>
    %369 = math.tanh %368 : vector<2x128xf32>
    %370 = vector.extract_strided_slice %355 {offsets = [0, 384], sizes = [2, 128], strides = [1, 1]} : vector<2x512xf32> to vector<2x128xf32>
    %371 = arith.negf %370 : vector<2x128xf32>
    %372 = math.exp %371 : vector<2x128xf32>
    %cst_180 = arith.constant 1.000000e+00 : f32
    %373 = vector.broadcast %cst_180 : f32 to vector<2x128xf32>
    %374 = arith.addf %373, %372 : vector<2x128xf32>
    %375 = arith.divf %373, %374 : vector<2x128xf32>
    %376 = arith.mulf %367, %306 : vector<2x128xf32>
    %377 = arith.mulf %361, %369 : vector<2x128xf32>
    %378 = arith.addf %376, %377 : vector<2x128xf32>
    %379 = math.tanh %378 : vector<2x128xf32>
    %380 = arith.mulf %375, %379 : vector<2x128xf32>
    %c0_181 = arith.constant 0 : index
    %c0_182 = arith.constant 0 : index
    %381 = vector.load %arg18[%c0_181, %c0_182] : memref<2x8xbf16, #tpu.memory_space<vmem>>, vector<2x8xbf16>
    %c0_183 = arith.constant 0 : index
    %c0_184 = arith.constant 0 : index
    %382 = vector.load %arg19[%c0_183, %c0_184] : memref<8x2xbf16, #tpu.memory_space<vmem>>, vector<8x2xbf16>
    %383 = arith.extf %382 : vector<8x2xbf16> to vector<8x2xf32>
    %384 = arith.truncf %380 : vector<2x128xf32> to vector<2x128xbf16>
    %cst_185 = arith.constant dense<0.000000e+00> : vector<8x128xf32>
    %385 = tpu.matmul %382, %384, %cst_185 {dimension_numbers = #tpu.dot_dimension_numbers<[1], [0], [0], [1], [0, 0, 1, 1], [], []>} : vector<8x2xbf16>, vector<2x128xbf16>, vector<8x128xf32> -> vector<8x128xf32>
    %386 = arith.mulf %198, %385 : vector<8x128xf32>
    %cst_186 = arith.constant dense<0.000000e+00> : vector<8xf32>
    %387 = vector.multi_reduction <add>, %386, %cst_186 [1] : vector<8x128xf32> to vector<8xf32>
    %388 = vector.shape_cast %387 : vector<8xf32> to vector<8x1xf32>
    %cst_187 = arith.constant 5.000000e-01 : f32
    %389 = vector.broadcast %cst_187 : f32 to vector<8x2xf32>
    %390 = arith.cmpf ogt, %383, %389 : vector<8x2xf32>
    %cst_188 = arith.constant -1.000000e+30 : f32
    %391 = vector.shape_cast %388 : vector<8x1xf32> to vector<8x1xf32>
    %392 = vector.broadcast %391 : vector<8x1xf32> to vector<8x2xf32>
    %393 = vector.broadcast %cst_188 : f32 to vector<8x2xf32>
    %394 = arith.select %390, %392, %393 : vector<8x2xi1>, vector<8x2xf32>
    %cst_189 = arith.constant dense<0xFF800000> : vector<2xf32>
    %395 = vector.multi_reduction <maximumf>, %394, %cst_189 [0] : vector<8x2xf32> to vector<2xf32>
    %396 = vector.shape_cast %395 : vector<2xf32> to vector<1x2xf32>
    %397 = vector.broadcast %396 : vector<1x2xf32> to vector<8x2xf32>
    %398 = arith.mulf %383, %397 : vector<8x2xf32>
    %cst_190 = arith.constant dense<0.000000e+00> : vector<8xf32>
    %399 = vector.multi_reduction <add>, %398, %cst_190 [1] : vector<8x2xf32> to vector<8xf32>
    %400 = vector.shape_cast %399 : vector<8xf32> to vector<8x1xf32>
    %401 = arith.subf %388, %400 : vector<8x1xf32>
    %402 = math.exp %401 : vector<8x1xf32>
    %403 = vector.broadcast %402 : vector<8x1xf32> to vector<8x2xf32>
    %404 = arith.mulf %383, %403 : vector<8x2xf32>
    %cst_191 = arith.constant dense<0.000000e+00> : vector<2xf32>
    %405 = vector.multi_reduction <add>, %404, %cst_191 [0] : vector<8x2xf32> to vector<2xf32>
    %406 = vector.shape_cast %405 : vector<2xf32> to vector<1x2xf32>
    %cst_192 = arith.constant 1.000000e-16 : f32
    %407 = vector.broadcast %cst_192 : f32 to vector<1x2xf32>
    %408 = arith.addf %406, %407 : vector<1x2xf32>
    %409 = vector.broadcast %408 : vector<1x2xf32> to vector<8x2xf32>
    %410 = arith.mulf %383, %409 : vector<8x2xf32>
    %cst_193 = arith.constant dense<0.000000e+00> : vector<8xf32>
    %411 = vector.multi_reduction <add>, %410, %cst_193 [1] : vector<8x2xf32> to vector<8xf32>
    %412 = vector.shape_cast %411 : vector<8xf32> to vector<8x1xf32>
    %413 = arith.divf %402, %412 : vector<8x1xf32>
    %414 = vector.broadcast %413 : vector<8x1xf32> to vector<8x128xf32>
    %415 = arith.mulf %414, %198 : vector<8x128xf32>
    %416 = arith.truncf %415 : vector<8x128xf32> to vector<8x128xbf16>
    %cst_194 = arith.constant dense<0.000000e+00> : vector<2x128xf32>
    %417 = tpu.matmul %381, %416, %cst_194 {dimension_numbers = #tpu.dot_dimension_numbers<[1], [0], [0], [1], [0, 0, 1, 1], [], []>} : vector<2x8xbf16>, vector<8x128xbf16>, vector<2x128xf32> -> vector<2x128xf32>
    %418 = vector.extract_strided_slice %380 {offsets = [0, 0], sizes = [2, 16], strides = [1, 1]} : vector<2x128xf32> to vector<2x16xf32>
    %419 = vector.extract_strided_slice %417 {offsets = [0, 0], sizes = [2, 16], strides = [1, 1]} : vector<2x128xf32> to vector<2x16xf32>
    %420 = tpu.concatenate %418, %419 in 1 : vector<2x16xf32>, vector<2x16xf32> -> vector<2x32xf32>
    %c0_195 = arith.constant 0 : index
    %c0_196 = arith.constant 0 : index
    %421 = vector.load %arg23[%c0_195, %c0_196] : memref<2x32xf32, #tpu.memory_space<vmem>>, vector<2x32xf32>
    tpu.vector_store %arg23[%c0_195, %c0_196], %420 {strides = array<i32>} : memref<2x32xf32, #tpu.memory_space<vmem>>, vector<2x32xf32>,
    return
  }
}

module attributes {stable_mosaic.version = 11 : i64} {
  func.func @_smiles_lstm_kernel(%arg0: memref<8x2x16xf32, #tpu.memory_space<vmem>>, %arg1: memref<16x512xbf16, #tpu.memory_space<vmem>>, %arg2: memref<128x512xbf16, #tpu.memory_space<vmem>>, %arg3: memref<1x512xf32, #tpu.memory_space<vmem>>, %arg4: memref<2x32xf32, #tpu.memory_space<vmem>>) attributes {dimension_semantics = [], scalar_prefetch = 0 : i64, scratch_operands = 0 : i64, tpu.core_type = #tpu.core_type<tc>} {
    %cst = arith.constant 0.000000e+00 : f32
    %0 = vector.broadcast %cst : f32 to vector<2x128xf32>
    %cst_0 = arith.constant 0.000000e+00 : f32
    %1 = vector.broadcast %cst_0 : f32 to vector<2x128xf32>
    %c0 = arith.constant 0 : index
    %c0_1 = arith.constant 0 : index
    %c0_2 = arith.constant 0 : index
    %2 = vector.load %arg0[%c0, %c0_1, %c0_2] : memref<8x2x16xf32, #tpu.memory_space<vmem>>, vector<1x2x16xf32>
    %3 = vector.shape_cast %2 : vector<1x2x16xf32> to vector<2x16xf32>
    %4 = arith.truncf %3 : vector<2x16xf32> to vector<2x16xbf16>
    %c0_3 = arith.constant 0 : index
    %c0_4 = arith.constant 0 : index
    %5 = vector.load %arg1[%c0_3, %c0_4] : memref<16x512xbf16, #tpu.memory_space<vmem>>, vector<16x512xbf16>
    %cst_5 = arith.constant dense<0.000000e+00> : vector<2x512xf32>
    %6 = tpu.matmul %4, %5, %cst_5 {dimension_numbers = #tpu.dot_dimension_numbers<[1], [0], [0], [1], [0, 0, 1, 1], [], []>} : vector<2x16xbf16>, vector<16x512xbf16>, vector<2x512xf32> -> vector<2x512xf32>
    %7 = arith.truncf %0 : vector<2x128xf32> to vector<2x128xbf16>
    %c0_6 = arith.constant 0 : index
    %c0_7 = arith.constant 0 : index
    %8 = vector.load %arg2[%c0_6, %c0_7] : memref<128x512xbf16, #tpu.memory_space<vmem>>, vector<128x512xbf16>
    %cst_8 = arith.constant dense<0.000000e+00> : vector<2x512xf32>
    %9 = tpu.matmul %7, %8, %cst_8 {dimension_numbers = #tpu.dot_dimension_numbers<[1], [0], [0], [1], [0, 0, 1, 1], [], []>} : vector<2x128xbf16>, vector<128x512xbf16>, vector<2x512xf32> -> vector<2x512xf32>
    %10 = arith.addf %6, %9 : vector<2x512xf32>
    %c0_9 = arith.constant 0 : index
    %c0_10 = arith.constant 0 : index
    %11 = vector.load %arg3[%c0_9, %c0_10] : memref<1x512xf32, #tpu.memory_space<vmem>>, vector<1x512xf32>
    %12 = vector.broadcast %11 : vector<1x512xf32> to vector<2x512xf32>
    %13 = arith.addf %10, %12 : vector<2x512xf32>
    %14 = vector.extract_strided_slice %13 {offsets = [0, 0], sizes = [2, 128], strides = [1, 1]} : vector<2x512xf32> to vector<2x128xf32>
    %15 = arith.negf %14 : vector<2x128xf32>
    %16 = math.exp %15 : vector<2x128xf32>
    %cst_11 = arith.constant 1.000000e+00 : f32
    %17 = vector.broadcast %cst_11 : f32 to vector<2x128xf32>
    %18 = arith.addf %17, %16 : vector<2x128xf32>
    %19 = arith.divf %17, %18 : vector<2x128xf32>
    %20 = vector.extract_strided_slice %13 {offsets = [0, 128], sizes = [2, 128], strides = [1, 1]} : vector<2x512xf32> to vector<2x128xf32>
    %21 = arith.negf %20 : vector<2x128xf32>
    %22 = math.exp %21 : vector<2x128xf32>
    %cst_12 = arith.constant 1.000000e+00 : f32
    %23 = vector.broadcast %cst_12 : f32 to vector<2x128xf32>
    %24 = arith.addf %23, %22 : vector<2x128xf32>
    %25 = arith.divf %23, %24 : vector<2x128xf32>
    %26 = vector.extract_strided_slice %13 {offsets = [0, 256], sizes = [2, 128], strides = [1, 1]} : vector<2x512xf32> to vector<2x128xf32>
    %27 = math.tanh %26 : vector<2x128xf32>
    %28 = vector.extract_strided_slice %13 {offsets = [0, 384], sizes = [2, 128], strides = [1, 1]} : vector<2x512xf32> to vector<2x128xf32>
    %29 = arith.negf %28 : vector<2x128xf32>
    %30 = math.exp %29 : vector<2x128xf32>
    %cst_13 = arith.constant 1.000000e+00 : f32
    %31 = vector.broadcast %cst_13 : f32 to vector<2x128xf32>
    %32 = arith.addf %31, %30 : vector<2x128xf32>
    %33 = arith.divf %31, %32 : vector<2x128xf32>
    %34 = arith.mulf %25, %1 : vector<2x128xf32>
    %35 = arith.mulf %19, %27 : vector<2x128xf32>
    %36 = arith.addf %34, %35 : vector<2x128xf32>
    %37 = math.tanh %36 : vector<2x128xf32>
    %38 = arith.mulf %33, %37 : vector<2x128xf32>
    %c1 = arith.constant 1 : index
    %c0_14 = arith.constant 0 : index
    %c0_15 = arith.constant 0 : index
    %39 = vector.load %arg0[%c1, %c0_14, %c0_15] : memref<8x2x16xf32, #tpu.memory_space<vmem>>, vector<1x2x16xf32>
    %40 = vector.shape_cast %39 : vector<1x2x16xf32> to vector<2x16xf32>
    %41 = arith.truncf %40 : vector<2x16xf32> to vector<2x16xbf16>
    %c0_16 = arith.constant 0 : index
    %c0_17 = arith.constant 0 : index
    %42 = vector.load %arg1[%c0_16, %c0_17] : memref<16x512xbf16, #tpu.memory_space<vmem>>, vector<16x512xbf16>
    %cst_18 = arith.constant dense<0.000000e+00> : vector<2x512xf32>
    %43 = tpu.matmul %41, %42, %cst_18 {dimension_numbers = #tpu.dot_dimension_numbers<[1], [0], [0], [1], [0, 0, 1, 1], [], []>} : vector<2x16xbf16>, vector<16x512xbf16>, vector<2x512xf32> -> vector<2x512xf32>
    %44 = arith.truncf %38 : vector<2x128xf32> to vector<2x128xbf16>
    %c0_19 = arith.constant 0 : index
    %c0_20 = arith.constant 0 : index
    %45 = vector.load %arg2[%c0_19, %c0_20] : memref<128x512xbf16, #tpu.memory_space<vmem>>, vector<128x512xbf16>
    %cst_21 = arith.constant dense<0.000000e+00> : vector<2x512xf32>
    %46 = tpu.matmul %44, %45, %cst_21 {dimension_numbers = #tpu.dot_dimension_numbers<[1], [0], [0], [1], [0, 0, 1, 1], [], []>} : vector<2x128xbf16>, vector<128x512xbf16>, vector<2x512xf32> -> vector<2x512xf32>
    %47 = arith.addf %43, %46 : vector<2x512xf32>
    %c0_22 = arith.constant 0 : index
    %c0_23 = arith.constant 0 : index
    %48 = vector.load %arg3[%c0_22, %c0_23] : memref<1x512xf32, #tpu.memory_space<vmem>>, vector<1x512xf32>
    %49 = vector.broadcast %48 : vector<1x512xf32> to vector<2x512xf32>
    %50 = arith.addf %47, %49 : vector<2x512xf32>
    %51 = vector.extract_strided_slice %50 {offsets = [0, 0], sizes = [2, 128], strides = [1, 1]} : vector<2x512xf32> to vector<2x128xf32>
    %52 = arith.negf %51 : vector<2x128xf32>
    %53 = math.exp %52 : vector<2x128xf32>
    %cst_24 = arith.constant 1.000000e+00 : f32
    %54 = vector.broadcast %cst_24 : f32 to vector<2x128xf32>
    %55 = arith.addf %54, %53 : vector<2x128xf32>
    %56 = arith.divf %54, %55 : vector<2x128xf32>
    %57 = vector.extract_strided_slice %50 {offsets = [0, 128], sizes = [2, 128], strides = [1, 1]} : vector<2x512xf32> to vector<2x128xf32>
    %58 = arith.negf %57 : vector<2x128xf32>
    %59 = math.exp %58 : vector<2x128xf32>
    %cst_25 = arith.constant 1.000000e+00 : f32
    %60 = vector.broadcast %cst_25 : f32 to vector<2x128xf32>
    %61 = arith.addf %60, %59 : vector<2x128xf32>
    %62 = arith.divf %60, %61 : vector<2x128xf32>
    %63 = vector.extract_strided_slice %50 {offsets = [0, 256], sizes = [2, 128], strides = [1, 1]} : vector<2x512xf32> to vector<2x128xf32>
    %64 = math.tanh %63 : vector<2x128xf32>
    %65 = vector.extract_strided_slice %50 {offsets = [0, 384], sizes = [2, 128], strides = [1, 1]} : vector<2x512xf32> to vector<2x128xf32>
    %66 = arith.negf %65 : vector<2x128xf32>
    %67 = math.exp %66 : vector<2x128xf32>
    %cst_26 = arith.constant 1.000000e+00 : f32
    %68 = vector.broadcast %cst_26 : f32 to vector<2x128xf32>
    %69 = arith.addf %68, %67 : vector<2x128xf32>
    %70 = arith.divf %68, %69 : vector<2x128xf32>
    %71 = arith.mulf %62, %36 : vector<2x128xf32>
    %72 = arith.mulf %56, %64 : vector<2x128xf32>
    %73 = arith.addf %71, %72 : vector<2x128xf32>
    %74 = math.tanh %73 : vector<2x128xf32>
    %75 = arith.mulf %70, %74 : vector<2x128xf32>
    %c2 = arith.constant 2 : index
    %c0_27 = arith.constant 0 : index
    %c0_28 = arith.constant 0 : index
    %76 = vector.load %arg0[%c2, %c0_27, %c0_28] : memref<8x2x16xf32, #tpu.memory_space<vmem>>, vector<1x2x16xf32>
    %77 = vector.shape_cast %76 : vector<1x2x16xf32> to vector<2x16xf32>
    %78 = arith.truncf %77 : vector<2x16xf32> to vector<2x16xbf16>
    %c0_29 = arith.constant 0 : index
    %c0_30 = arith.constant 0 : index
    %79 = vector.load %arg1[%c0_29, %c0_30] : memref<16x512xbf16, #tpu.memory_space<vmem>>, vector<16x512xbf16>
    %cst_31 = arith.constant dense<0.000000e+00> : vector<2x512xf32>
    %80 = tpu.matmul %78, %79, %cst_31 {dimension_numbers = #tpu.dot_dimension_numbers<[1], [0], [0], [1], [0, 0, 1, 1], [], []>} : vector<2x16xbf16>, vector<16x512xbf16>, vector<2x512xf32> -> vector<2x512xf32>
    %81 = arith.truncf %75 : vector<2x128xf32> to vector<2x128xbf16>
    %c0_32 = arith.constant 0 : index
    %c0_33 = arith.constant 0 : index
    %82 = vector.load %arg2[%c0_32, %c0_33] : memref<128x512xbf16, #tpu.memory_space<vmem>>, vector<128x512xbf16>
    %cst_34 = arith.constant dense<0.000000e+00> : vector<2x512xf32>
    %83 = tpu.matmul %81, %82, %cst_34 {dimension_numbers = #tpu.dot_dimension_numbers<[1], [0], [0], [1], [0, 0, 1, 1], [], []>} : vector<2x128xbf16>, vector<128x512xbf16>, vector<2x512xf32> -> vector<2x512xf32>
    %84 = arith.addf %80, %83 : vector<2x512xf32>
    %c0_35 = arith.constant 0 : index
    %c0_36 = arith.constant 0 : index
    %85 = vector.load %arg3[%c0_35, %c0_36] : memref<1x512xf32, #tpu.memory_space<vmem>>, vector<1x512xf32>
    %86 = vector.broadcast %85 : vector<1x512xf32> to vector<2x512xf32>
    %87 = arith.addf %84, %86 : vector<2x512xf32>
    %88 = vector.extract_strided_slice %87 {offsets = [0, 0], sizes = [2, 128], strides = [1, 1]} : vector<2x512xf32> to vector<2x128xf32>
    %89 = arith.negf %88 : vector<2x128xf32>
    %90 = math.exp %89 : vector<2x128xf32>
    %cst_37 = arith.constant 1.000000e+00 : f32
    %91 = vector.broadcast %cst_37 : f32 to vector<2x128xf32>
    %92 = arith.addf %91, %90 : vector<2x128xf32>
    %93 = arith.divf %91, %92 : vector<2x128xf32>
    %94 = vector.extract_strided_slice %87 {offsets = [0, 128], sizes = [2, 128], strides = [1, 1]} : vector<2x512xf32> to vector<2x128xf32>
    %95 = arith.negf %94 : vector<2x128xf32>
    %96 = math.exp %95 : vector<2x128xf32>
    %cst_38 = arith.constant 1.000000e+00 : f32
    %97 = vector.broadcast %cst_38 : f32 to vector<2x128xf32>
    %98 = arith.addf %97, %96 : vector<2x128xf32>
    %99 = arith.divf %97, %98 : vector<2x128xf32>
    %100 = vector.extract_strided_slice %87 {offsets = [0, 256], sizes = [2, 128], strides = [1, 1]} : vector<2x512xf32> to vector<2x128xf32>
    %101 = math.tanh %100 : vector<2x128xf32>
    %102 = vector.extract_strided_slice %87 {offsets = [0, 384], sizes = [2, 128], strides = [1, 1]} : vector<2x512xf32> to vector<2x128xf32>
    %103 = arith.negf %102 : vector<2x128xf32>
    %104 = math.exp %103 : vector<2x128xf32>
    %cst_39 = arith.constant 1.000000e+00 : f32
    %105 = vector.broadcast %cst_39 : f32 to vector<2x128xf32>
    %106 = arith.addf %105, %104 : vector<2x128xf32>
    %107 = arith.divf %105, %106 : vector<2x128xf32>
    %108 = arith.mulf %99, %73 : vector<2x128xf32>
    %109 = arith.mulf %93, %101 : vector<2x128xf32>
    %110 = arith.addf %108, %109 : vector<2x128xf32>
    %111 = math.tanh %110 : vector<2x128xf32>
    %112 = arith.mulf %107, %111 : vector<2x128xf32>
    %c3 = arith.constant 3 : index
    %c0_40 = arith.constant 0 : index
    %c0_41 = arith.constant 0 : index
    %113 = vector.load %arg0[%c3, %c0_40, %c0_41] : memref<8x2x16xf32, #tpu.memory_space<vmem>>, vector<1x2x16xf32>
    %114 = vector.shape_cast %113 : vector<1x2x16xf32> to vector<2x16xf32>
    %115 = arith.truncf %114 : vector<2x16xf32> to vector<2x16xbf16>
    %c0_42 = arith.constant 0 : index
    %c0_43 = arith.constant 0 : index
    %116 = vector.load %arg1[%c0_42, %c0_43] : memref<16x512xbf16, #tpu.memory_space<vmem>>, vector<16x512xbf16>
    %cst_44 = arith.constant dense<0.000000e+00> : vector<2x512xf32>
    %117 = tpu.matmul %115, %116, %cst_44 {dimension_numbers = #tpu.dot_dimension_numbers<[1], [0], [0], [1], [0, 0, 1, 1], [], []>} : vector<2x16xbf16>, vector<16x512xbf16>, vector<2x512xf32> -> vector<2x512xf32>
    %118 = arith.truncf %112 : vector<2x128xf32> to vector<2x128xbf16>
    %c0_45 = arith.constant 0 : index
    %c0_46 = arith.constant 0 : index
    %119 = vector.load %arg2[%c0_45, %c0_46] : memref<128x512xbf16, #tpu.memory_space<vmem>>, vector<128x512xbf16>
    %cst_47 = arith.constant dense<0.000000e+00> : vector<2x512xf32>
    %120 = tpu.matmul %118, %119, %cst_47 {dimension_numbers = #tpu.dot_dimension_numbers<[1], [0], [0], [1], [0, 0, 1, 1], [], []>} : vector<2x128xbf16>, vector<128x512xbf16>, vector<2x512xf32> -> vector<2x512xf32>
    %121 = arith.addf %117, %120 : vector<2x512xf32>
    %c0_48 = arith.constant 0 : index
    %c0_49 = arith.constant 0 : index
    %122 = vector.load %arg3[%c0_48, %c0_49] : memref<1x512xf32, #tpu.memory_space<vmem>>, vector<1x512xf32>
    %123 = vector.broadcast %122 : vector<1x512xf32> to vector<2x512xf32>
    %124 = arith.addf %121, %123 : vector<2x512xf32>
    %125 = vector.extract_strided_slice %124 {offsets = [0, 0], sizes = [2, 128], strides = [1, 1]} : vector<2x512xf32> to vector<2x128xf32>
    %126 = arith.negf %125 : vector<2x128xf32>
    %127 = math.exp %126 : vector<2x128xf32>
    %cst_50 = arith.constant 1.000000e+00 : f32
    %128 = vector.broadcast %cst_50 : f32 to vector<2x128xf32>
    %129 = arith.addf %128, %127 : vector<2x128xf32>
    %130 = arith.divf %128, %129 : vector<2x128xf32>
    %131 = vector.extract_strided_slice %124 {offsets = [0, 128], sizes = [2, 128], strides = [1, 1]} : vector<2x512xf32> to vector<2x128xf32>
    %132 = arith.negf %131 : vector<2x128xf32>
    %133 = math.exp %132 : vector<2x128xf32>
    %cst_51 = arith.constant 1.000000e+00 : f32
    %134 = vector.broadcast %cst_51 : f32 to vector<2x128xf32>
    %135 = arith.addf %134, %133 : vector<2x128xf32>
    %136 = arith.divf %134, %135 : vector<2x128xf32>
    %137 = vector.extract_strided_slice %124 {offsets = [0, 256], sizes = [2, 128], strides = [1, 1]} : vector<2x512xf32> to vector<2x128xf32>
    %138 = math.tanh %137 : vector<2x128xf32>
    %139 = vector.extract_strided_slice %124 {offsets = [0, 384], sizes = [2, 128], strides = [1, 1]} : vector<2x512xf32> to vector<2x128xf32>
    %140 = arith.negf %139 : vector<2x128xf32>
    %141 = math.exp %140 : vector<2x128xf32>
    %cst_52 = arith.constant 1.000000e+00 : f32
    %142 = vector.broadcast %cst_52 : f32 to vector<2x128xf32>
    %143 = arith.addf %142, %141 : vector<2x128xf32>
    %144 = arith.divf %142, %143 : vector<2x128xf32>
    %145 = arith.mulf %136, %110 : vector<2x128xf32>
    %146 = arith.mulf %130, %138 : vector<2x128xf32>
    %147 = arith.addf %145, %146 : vector<2x128xf32>
    %148 = math.tanh %147 : vector<2x128xf32>
    %149 = arith.mulf %144, %148 : vector<2x128xf32>
    %c4 = arith.constant 4 : index
    %c0_53 = arith.constant 0 : index
    %c0_54 = arith.constant 0 : index
    %150 = vector.load %arg0[%c4, %c0_53, %c0_54] : memref<8x2x16xf32, #tpu.memory_space<vmem>>, vector<1x2x16xf32>
    %151 = vector.shape_cast %150 : vector<1x2x16xf32> to vector<2x16xf32>
    %152 = arith.truncf %151 : vector<2x16xf32> to vector<2x16xbf16>
    %c0_55 = arith.constant 0 : index
    %c0_56 = arith.constant 0 : index
    %153 = vector.load %arg1[%c0_55, %c0_56] : memref<16x512xbf16, #tpu.memory_space<vmem>>, vector<16x512xbf16>
    %cst_57 = arith.constant dense<0.000000e+00> : vector<2x512xf32>
    %154 = tpu.matmul %152, %153, %cst_57 {dimension_numbers = #tpu.dot_dimension_numbers<[1], [0], [0], [1], [0, 0, 1, 1], [], []>} : vector<2x16xbf16>, vector<16x512xbf16>, vector<2x512xf32> -> vector<2x512xf32>
    %155 = arith.truncf %149 : vector<2x128xf32> to vector<2x128xbf16>
    %c0_58 = arith.constant 0 : index
    %c0_59 = arith.constant 0 : index
    %156 = vector.load %arg2[%c0_58, %c0_59] : memref<128x512xbf16, #tpu.memory_space<vmem>>, vector<128x512xbf16>
    %cst_60 = arith.constant dense<0.000000e+00> : vector<2x512xf32>
    %157 = tpu.matmul %155, %156, %cst_60 {dimension_numbers = #tpu.dot_dimension_numbers<[1], [0], [0], [1], [0, 0, 1, 1], [], []>} : vector<2x128xbf16>, vector<128x512xbf16>, vector<2x512xf32> -> vector<2x512xf32>
    %158 = arith.addf %154, %157 : vector<2x512xf32>
    %c0_61 = arith.constant 0 : index
    %c0_62 = arith.constant 0 : index
    %159 = vector.load %arg3[%c0_61, %c0_62] : memref<1x512xf32, #tpu.memory_space<vmem>>, vector<1x512xf32>
    %160 = vector.broadcast %159 : vector<1x512xf32> to vector<2x512xf32>
    %161 = arith.addf %158, %160 : vector<2x512xf32>
    %162 = vector.extract_strided_slice %161 {offsets = [0, 0], sizes = [2, 128], strides = [1, 1]} : vector<2x512xf32> to vector<2x128xf32>
    %163 = arith.negf %162 : vector<2x128xf32>
    %164 = math.exp %163 : vector<2x128xf32>
    %cst_63 = arith.constant 1.000000e+00 : f32
    %165 = vector.broadcast %cst_63 : f32 to vector<2x128xf32>
    %166 = arith.addf %165, %164 : vector<2x128xf32>
    %167 = arith.divf %165, %166 : vector<2x128xf32>
    %168 = vector.extract_strided_slice %161 {offsets = [0, 128], sizes = [2, 128], strides = [1, 1]} : vector<2x512xf32> to vector<2x128xf32>
    %169 = arith.negf %168 : vector<2x128xf32>
    %170 = math.exp %169 : vector<2x128xf32>
    %cst_64 = arith.constant 1.000000e+00 : f32
    %171 = vector.broadcast %cst_64 : f32 to vector<2x128xf32>
    %172 = arith.addf %171, %170 : vector<2x128xf32>
    %173 = arith.divf %171, %172 : vector<2x128xf32>
    %174 = vector.extract_strided_slice %161 {offsets = [0, 256], sizes = [2, 128], strides = [1, 1]} : vector<2x512xf32> to vector<2x128xf32>
    %175 = math.tanh %174 : vector<2x128xf32>
    %176 = vector.extract_strided_slice %161 {offsets = [0, 384], sizes = [2, 128], strides = [1, 1]} : vector<2x512xf32> to vector<2x128xf32>
    %177 = arith.negf %176 : vector<2x128xf32>
    %178 = math.exp %177 : vector<2x128xf32>
    %cst_65 = arith.constant 1.000000e+00 : f32
    %179 = vector.broadcast %cst_65 : f32 to vector<2x128xf32>
    %180 = arith.addf %179, %178 : vector<2x128xf32>
    %181 = arith.divf %179, %180 : vector<2x128xf32>
    %182 = arith.mulf %173, %147 : vector<2x128xf32>
    %183 = arith.mulf %167, %175 : vector<2x128xf32>
    %184 = arith.addf %182, %183 : vector<2x128xf32>
    %185 = math.tanh %184 : vector<2x128xf32>
    %186 = arith.mulf %181, %185 : vector<2x128xf32>
    %c5 = arith.constant 5 : index
    %c0_66 = arith.constant 0 : index
    %c0_67 = arith.constant 0 : index
    %187 = vector.load %arg0[%c5, %c0_66, %c0_67] : memref<8x2x16xf32, #tpu.memory_space<vmem>>, vector<1x2x16xf32>
    %188 = vector.shape_cast %187 : vector<1x2x16xf32> to vector<2x16xf32>
    %189 = arith.truncf %188 : vector<2x16xf32> to vector<2x16xbf16>
    %c0_68 = arith.constant 0 : index
    %c0_69 = arith.constant 0 : index
    %190 = vector.load %arg1[%c0_68, %c0_69] : memref<16x512xbf16, #tpu.memory_space<vmem>>, vector<16x512xbf16>
    %cst_70 = arith.constant dense<0.000000e+00> : vector<2x512xf32>
    %191 = tpu.matmul %189, %190, %cst_70 {dimension_numbers = #tpu.dot_dimension_numbers<[1], [0], [0], [1], [0, 0, 1, 1], [], []>} : vector<2x16xbf16>, vector<16x512xbf16>, vector<2x512xf32> -> vector<2x512xf32>
    %192 = arith.truncf %186 : vector<2x128xf32> to vector<2x128xbf16>
    %c0_71 = arith.constant 0 : index
    %c0_72 = arith.constant 0 : index
    %193 = vector.load %arg2[%c0_71, %c0_72] : memref<128x512xbf16, #tpu.memory_space<vmem>>, vector<128x512xbf16>
    %cst_73 = arith.constant dense<0.000000e+00> : vector<2x512xf32>
    %194 = tpu.matmul %192, %193, %cst_73 {dimension_numbers = #tpu.dot_dimension_numbers<[1], [0], [0], [1], [0, 0, 1, 1], [], []>} : vector<2x128xbf16>, vector<128x512xbf16>, vector<2x512xf32> -> vector<2x512xf32>
    %195 = arith.addf %191, %194 : vector<2x512xf32>
    %c0_74 = arith.constant 0 : index
    %c0_75 = arith.constant 0 : index
    %196 = vector.load %arg3[%c0_74, %c0_75] : memref<1x512xf32, #tpu.memory_space<vmem>>, vector<1x512xf32>
    %197 = vector.broadcast %196 : vector<1x512xf32> to vector<2x512xf32>
    %198 = arith.addf %195, %197 : vector<2x512xf32>
    %199 = vector.extract_strided_slice %198 {offsets = [0, 0], sizes = [2, 128], strides = [1, 1]} : vector<2x512xf32> to vector<2x128xf32>
    %200 = arith.negf %199 : vector<2x128xf32>
    %201 = math.exp %200 : vector<2x128xf32>
    %cst_76 = arith.constant 1.000000e+00 : f32
    %202 = vector.broadcast %cst_76 : f32 to vector<2x128xf32>
    %203 = arith.addf %202, %201 : vector<2x128xf32>
    %204 = arith.divf %202, %203 : vector<2x128xf32>
    %205 = vector.extract_strided_slice %198 {offsets = [0, 128], sizes = [2, 128], strides = [1, 1]} : vector<2x512xf32> to vector<2x128xf32>
    %206 = arith.negf %205 : vector<2x128xf32>
    %207 = math.exp %206 : vector<2x128xf32>
    %cst_77 = arith.constant 1.000000e+00 : f32
    %208 = vector.broadcast %cst_77 : f32 to vector<2x128xf32>
    %209 = arith.addf %208, %207 : vector<2x128xf32>
    %210 = arith.divf %208, %209 : vector<2x128xf32>
    %211 = vector.extract_strided_slice %198 {offsets = [0, 256], sizes = [2, 128], strides = [1, 1]} : vector<2x512xf32> to vector<2x128xf32>
    %212 = math.tanh %211 : vector<2x128xf32>
    %213 = vector.extract_strided_slice %198 {offsets = [0, 384], sizes = [2, 128], strides = [1, 1]} : vector<2x512xf32> to vector<2x128xf32>
    %214 = arith.negf %213 : vector<2x128xf32>
    %215 = math.exp %214 : vector<2x128xf32>
    %cst_78 = arith.constant 1.000000e+00 : f32
    %216 = vector.broadcast %cst_78 : f32 to vector<2x128xf32>
    %217 = arith.addf %216, %215 : vector<2x128xf32>
    %218 = arith.divf %216, %217 : vector<2x128xf32>
    %219 = arith.mulf %210, %184 : vector<2x128xf32>
    %220 = arith.mulf %204, %212 : vector<2x128xf32>
    %221 = arith.addf %219, %220 : vector<2x128xf32>
    %222 = math.tanh %221 : vector<2x128xf32>
    %223 = arith.mulf %218, %222 : vector<2x128xf32>
    %c6 = arith.constant 6 : index
    %c0_79 = arith.constant 0 : index
    %c0_80 = arith.constant 0 : index
    %224 = vector.load %arg0[%c6, %c0_79, %c0_80] : memref<8x2x16xf32, #tpu.memory_space<vmem>>, vector<1x2x16xf32>
    %225 = vector.shape_cast %224 : vector<1x2x16xf32> to vector<2x16xf32>
    %226 = arith.truncf %225 : vector<2x16xf32> to vector<2x16xbf16>
    %c0_81 = arith.constant 0 : index
    %c0_82 = arith.constant 0 : index
    %227 = vector.load %arg1[%c0_81, %c0_82] : memref<16x512xbf16, #tpu.memory_space<vmem>>, vector<16x512xbf16>
    %cst_83 = arith.constant dense<0.000000e+00> : vector<2x512xf32>
    %228 = tpu.matmul %226, %227, %cst_83 {dimension_numbers = #tpu.dot_dimension_numbers<[1], [0], [0], [1], [0, 0, 1, 1], [], []>} : vector<2x16xbf16>, vector<16x512xbf16>, vector<2x512xf32> -> vector<2x512xf32>
    %229 = arith.truncf %223 : vector<2x128xf32> to vector<2x128xbf16>
    %c0_84 = arith.constant 0 : index
    %c0_85 = arith.constant 0 : index
    %230 = vector.load %arg2[%c0_84, %c0_85] : memref<128x512xbf16, #tpu.memory_space<vmem>>, vector<128x512xbf16>
    %cst_86 = arith.constant dense<0.000000e+00> : vector<2x512xf32>
    %231 = tpu.matmul %229, %230, %cst_86 {dimension_numbers = #tpu.dot_dimension_numbers<[1], [0], [0], [1], [0, 0, 1, 1], [], []>} : vector<2x128xbf16>, vector<128x512xbf16>, vector<2x512xf32> -> vector<2x512xf32>
    %232 = arith.addf %228, %231 : vector<2x512xf32>
    %c0_87 = arith.constant 0 : index
    %c0_88 = arith.constant 0 : index
    %233 = vector.load %arg3[%c0_87, %c0_88] : memref<1x512xf32, #tpu.memory_space<vmem>>, vector<1x512xf32>
    %234 = vector.broadcast %233 : vector<1x512xf32> to vector<2x512xf32>
    %235 = arith.addf %232, %234 : vector<2x512xf32>
    %236 = vector.extract_strided_slice %235 {offsets = [0, 0], sizes = [2, 128], strides = [1, 1]} : vector<2x512xf32> to vector<2x128xf32>
    %237 = arith.negf %236 : vector<2x128xf32>
    %238 = math.exp %237 : vector<2x128xf32>
    %cst_89 = arith.constant 1.000000e+00 : f32
    %239 = vector.broadcast %cst_89 : f32 to vector<2x128xf32>
    %240 = arith.addf %239, %238 : vector<2x128xf32>
    %241 = arith.divf %239, %240 : vector<2x128xf32>
    %242 = vector.extract_strided_slice %235 {offsets = [0, 128], sizes = [2, 128], strides = [1, 1]} : vector<2x512xf32> to vector<2x128xf32>
    %243 = arith.negf %242 : vector<2x128xf32>
    %244 = math.exp %243 : vector<2x128xf32>
    %cst_90 = arith.constant 1.000000e+00 : f32
    %245 = vector.broadcast %cst_90 : f32 to vector<2x128xf32>
    %246 = arith.addf %245, %244 : vector<2x128xf32>
    %247 = arith.divf %245, %246 : vector<2x128xf32>
    %248 = vector.extract_strided_slice %235 {offsets = [0, 256], sizes = [2, 128], strides = [1, 1]} : vector<2x512xf32> to vector<2x128xf32>
    %249 = math.tanh %248 : vector<2x128xf32>
    %250 = vector.extract_strided_slice %235 {offsets = [0, 384], sizes = [2, 128], strides = [1, 1]} : vector<2x512xf32> to vector<2x128xf32>
    %251 = arith.negf %250 : vector<2x128xf32>
    %252 = math.exp %251 : vector<2x128xf32>
    %cst_91 = arith.constant 1.000000e+00 : f32
    %253 = vector.broadcast %cst_91 : f32 to vector<2x128xf32>
    %254 = arith.addf %253, %252 : vector<2x128xf32>
    %255 = arith.divf %253, %254 : vector<2x128xf32>
    %256 = arith.mulf %247, %221 : vector<2x128xf32>
    %257 = arith.mulf %241, %249 : vector<2x128xf32>
    %258 = arith.addf %256, %257 : vector<2x128xf32>
    %259 = math.tanh %258 : vector<2x128xf32>
    %260 = arith.mulf %255, %259 : vector<2x128xf32>
    %c7 = arith.constant 7 : index
    %c0_92 = arith.constant 0 : index
    %c0_93 = arith.constant 0 : index
    %261 = vector.load %arg0[%c7, %c0_92, %c0_93] : memref<8x2x16xf32, #tpu.memory_space<vmem>>, vector<1x2x16xf32>
    %262 = vector.shape_cast %261 : vector<1x2x16xf32> to vector<2x16xf32>
    %263 = arith.truncf %262 : vector<2x16xf32> to vector<2x16xbf16>
    %c0_94 = arith.constant 0 : index
    %c0_95 = arith.constant 0 : index
    %264 = vector.load %arg1[%c0_94, %c0_95] : memref<16x512xbf16, #tpu.memory_space<vmem>>, vector<16x512xbf16>
    %cst_96 = arith.constant dense<0.000000e+00> : vector<2x512xf32>
    %265 = tpu.matmul %263, %264, %cst_96 {dimension_numbers = #tpu.dot_dimension_numbers<[1], [0], [0], [1], [0, 0, 1, 1], [], []>} : vector<2x16xbf16>, vector<16x512xbf16>, vector<2x512xf32> -> vector<2x512xf32>
    %266 = arith.truncf %260 : vector<2x128xf32> to vector<2x128xbf16>
    %c0_97 = arith.constant 0 : index
    %c0_98 = arith.constant 0 : index
    %267 = vector.load %arg2[%c0_97, %c0_98] : memref<128x512xbf16, #tpu.memory_space<vmem>>, vector<128x512xbf16>
    %cst_99 = arith.constant dense<0.000000e+00> : vector<2x512xf32>
    %268 = tpu.matmul %266, %267, %cst_99 {dimension_numbers = #tpu.dot_dimension_numbers<[1], [0], [0], [1], [0, 0, 1, 1], [], []>} : vector<2x128xbf16>, vector<128x512xbf16>, vector<2x512xf32> -> vector<2x512xf32>
    %269 = arith.addf %265, %268 : vector<2x512xf32>
    %c0_100 = arith.constant 0 : index
    %c0_101 = arith.constant 0 : index
    %270 = vector.load %arg3[%c0_100, %c0_101] : memref<1x512xf32, #tpu.memory_space<vmem>>, vector<1x512xf32>
    %271 = vector.broadcast %270 : vector<1x512xf32> to vector<2x512xf32>
    %272 = arith.addf %269, %271 : vector<2x512xf32>
    %273 = vector.extract_strided_slice %272 {offsets = [0, 0], sizes = [2, 128], strides = [1, 1]} : vector<2x512xf32> to vector<2x128xf32>
    %274 = arith.negf %273 : vector<2x128xf32>
    %275 = math.exp %274 : vector<2x128xf32>
    %cst_102 = arith.constant 1.000000e+00 : f32
    %276 = vector.broadcast %cst_102 : f32 to vector<2x128xf32>
    %277 = arith.addf %276, %275 : vector<2x128xf32>
    %278 = arith.divf %276, %277 : vector<2x128xf32>
    %279 = vector.extract_strided_slice %272 {offsets = [0, 128], sizes = [2, 128], strides = [1, 1]} : vector<2x512xf32> to vector<2x128xf32>
    %280 = arith.negf %279 : vector<2x128xf32>
    %281 = math.exp %280 : vector<2x128xf32>
    %cst_103 = arith.constant 1.000000e+00 : f32
    %282 = vector.broadcast %cst_103 : f32 to vector<2x128xf32>
    %283 = arith.addf %282, %281 : vector<2x128xf32>
    %284 = arith.divf %282, %283 : vector<2x128xf32>
    %285 = vector.extract_strided_slice %272 {offsets = [0, 256], sizes = [2, 128], strides = [1, 1]} : vector<2x512xf32> to vector<2x128xf32>
    %286 = math.tanh %285 : vector<2x128xf32>
    %287 = vector.extract_strided_slice %272 {offsets = [0, 384], sizes = [2, 128], strides = [1, 1]} : vector<2x512xf32> to vector<2x128xf32>
    %288 = arith.negf %287 : vector<2x128xf32>
    %289 = math.exp %288 : vector<2x128xf32>
    %cst_104 = arith.constant 1.000000e+00 : f32
    %290 = vector.broadcast %cst_104 : f32 to vector<2x128xf32>
    %291 = arith.addf %290, %289 : vector<2x128xf32>
    %292 = arith.divf %290, %291 : vector<2x128xf32>
    %293 = arith.mulf %284, %258 : vector<2x128xf32>
    %294 = arith.mulf %278, %286 : vector<2x128xf32>
    %295 = arith.addf %293, %294 : vector<2x128xf32>
    %296 = math.tanh %295 : vector<2x128xf32>
    %297 = arith.mulf %292, %296 : vector<2x128xf32>
    %298 = vector.extract_strided_slice %297 {offsets = [0, 0], sizes = [2, 32], strides = [1, 1]} : vector<2x128xf32> to vector<2x32xf32>
    %c0_105 = arith.constant 0 : index
    %c0_106 = arith.constant 0 : index
    %299 = vector.load %arg4[%c0_105, %c0_106] : memref<2x32xf32, #tpu.memory_space<vmem>>, vector<2x32xf32>
    tpu.vector_store %arg4[%c0_105, %c0_106], %298 {strides = array<i32>} : memref<2x32xf32, #tpu.memory_space<vmem>>, vector<2x32xf32>,
    return
  }
}

module attributes {stable_mosaic.version = 11 : i64} {
  func.func @_proj_head_kernel(%arg0: memref<2x32xf32, #tpu.memory_space<vmem>>, %arg1: memref<2x32xf32, #tpu.memory_space<vmem>>, %arg2: memref<32x64xf32, #tpu.memory_space<vmem>>, %arg3: memref<1x64xf32, #tpu.memory_space<vmem>>, %arg4: memref<1x64xf32, #tpu.memory_space<vmem>>, %arg5: memref<1x64xf32, #tpu.memory_space<vmem>>, %arg6: memref<64x96xf32, #tpu.memory_space<vmem>>, %arg7: memref<2x96xf32, #tpu.memory_space<vmem>>, %arg8: memref<2x96xf32, #tpu.memory_space<vmem>>) attributes {dimension_semantics = [], scalar_prefetch = 0 : i64, scratch_operands = 0 : i64, tpu.core_type = #tpu.core_type<tc>} {
    %c0 = arith.constant 0 : index
    %c0_0 = arith.constant 0 : index
    %0 = vector.load %arg0[%c0, %c0_0] : memref<2x32xf32, #tpu.memory_space<vmem>>, vector<2x32xf32>
    %c0_1 = arith.constant 0 : index
    %c0_2 = arith.constant 0 : index
    %1 = vector.load %arg1[%c0_1, %c0_2] : memref<2x32xf32, #tpu.memory_space<vmem>>, vector<2x32xf32>
    %2 = tpu.concatenate %0, %1 in 0 : vector<2x32xf32>, vector<2x32xf32> -> vector<4x32xf32>
    %c0_3 = arith.constant 0 : index
    %c0_4 = arith.constant 0 : index
    %3 = vector.load %arg2[%c0_3, %c0_4] : memref<32x64xf32, #tpu.memory_space<vmem>>, vector<32x64xf32>
    %cst = arith.constant dense<0.000000e+00> : vector<4x64xf32>
    %4 = tpu.matmul %2, %3, %cst {dimension_numbers = #tpu.dot_dimension_numbers<[1], [0], [0], [1], [0, 0, 1, 1], [], []>} : vector<4x32xf32>, vector<32x64xf32>, vector<4x64xf32> -> vector<4x64xf32>
    %c0_5 = arith.constant 0 : index
    %c0_6 = arith.constant 0 : index
    %5 = vector.load %arg3[%c0_5, %c0_6] : memref<1x64xf32, #tpu.memory_space<vmem>>, vector<1x64xf32>
    %6 = vector.broadcast %5 : vector<1x64xf32> to vector<4x64xf32>
    %7 = arith.addf %4, %6 : vector<4x64xf32>
    %8 = vector.extract_strided_slice %7 {offsets = [0, 0], sizes = [2, 64], strides = [1, 1]} : vector<4x64xf32> to vector<2x64xf32>
    %cst_7 = arith.constant dense<0.000000e+00> : vector<64xf32>
    %9 = vector.multi_reduction <add>, %8, %cst_7 [0] : vector<2x64xf32> to vector<64xf32>
    %10 = vector.shape_cast %9 : vector<64xf32> to vector<1x64xf32>
    %cst_8 = arith.constant 2.000000e+00 : f32
    %11 = vector.broadcast %cst_8 : f32 to vector<1x64xf32>
    %12 = arith.divf %10, %11 : vector<1x64xf32>
    %13 = vector.broadcast %12 : vector<1x64xf32> to vector<2x64xf32>
    %14 = arith.subf %8, %13 : vector<2x64xf32>
    %15 = arith.mulf %14, %14 : vector<2x64xf32>
    %cst_9 = arith.constant dense<0.000000e+00> : vector<64xf32>
    %16 = vector.multi_reduction <add>, %15, %cst_9 [0] : vector<2x64xf32> to vector<64xf32>
    %17 = vector.shape_cast %16 : vector<64xf32> to vector<1x64xf32>
    %cst_10 = arith.constant 2.000000e+00 : f32
    %18 = vector.broadcast %cst_10 : f32 to vector<1x64xf32>
    %19 = arith.divf %17, %18 : vector<1x64xf32>
    %20 = vector.broadcast %12 : vector<1x64xf32> to vector<2x64xf32>
    %21 = arith.subf %8, %20 : vector<2x64xf32>
    %cst_11 = arith.constant 9.99999974E-6 : f32
    %22 = vector.broadcast %cst_11 : f32 to vector<1x64xf32>
    %23 = arith.addf %19, %22 : vector<1x64xf32>
    %24 = math.rsqrt %23 : vector<1x64xf32>
    %25 = vector.broadcast %24 : vector<1x64xf32> to vector<2x64xf32>
    %26 = arith.mulf %21, %25 : vector<2x64xf32>
    %27 = vector.extract_strided_slice %7 {offsets = [2, 0], sizes = [2, 64], strides = [1, 1]} : vector<4x64xf32> to vector<2x64xf32>
    %cst_12 = arith.constant dense<0.000000e+00> : vector<64xf32>
    %28 = vector.multi_reduction <add>, %27, %cst_12 [0] : vector<2x64xf32> to vector<64xf32>
    %29 = vector.shape_cast %28 : vector<64xf32> to vector<1x64xf32>
    %cst_13 = arith.constant 2.000000e+00 : f32
    %30 = vector.broadcast %cst_13 : f32 to vector<1x64xf32>
    %31 = arith.divf %29, %30 : vector<1x64xf32>
    %32 = vector.broadcast %31 : vector<1x64xf32> to vector<2x64xf32>
    %33 = arith.subf %27, %32 : vector<2x64xf32>
    %34 = arith.mulf %33, %33 : vector<2x64xf32>
    %cst_14 = arith.constant dense<0.000000e+00> : vector<64xf32>
    %35 = vector.multi_reduction <add>, %34, %cst_14 [0] : vector<2x64xf32> to vector<64xf32>
    %36 = vector.shape_cast %35 : vector<64xf32> to vector<1x64xf32>
    %cst_15 = arith.constant 2.000000e+00 : f32
    %37 = vector.broadcast %cst_15 : f32 to vector<1x64xf32>
    %38 = arith.divf %36, %37 : vector<1x64xf32>
    %39 = vector.broadcast %31 : vector<1x64xf32> to vector<2x64xf32>
    %40 = arith.subf %27, %39 : vector<2x64xf32>
    %cst_16 = arith.constant 9.99999974E-6 : f32
    %41 = vector.broadcast %cst_16 : f32 to vector<1x64xf32>
    %42 = arith.addf %38, %41 : vector<1x64xf32>
    %43 = math.rsqrt %42 : vector<1x64xf32>
    %44 = vector.broadcast %43 : vector<1x64xf32> to vector<2x64xf32>
    %45 = arith.mulf %40, %44 : vector<2x64xf32>
    %46 = tpu.concatenate %26, %45 in 0 : vector<2x64xf32>, vector<2x64xf32> -> vector<4x64xf32>
    %c0_17 = arith.constant 0 : index
    %c0_18 = arith.constant 0 : index
    %47 = vector.load %arg4[%c0_17, %c0_18] : memref<1x64xf32, #tpu.memory_space<vmem>>, vector<1x64xf32>
    %48 = vector.broadcast %47 : vector<1x64xf32> to vector<4x64xf32>
    %49 = arith.mulf %46, %48 : vector<4x64xf32>
    %c0_19 = arith.constant 0 : index
    %c0_20 = arith.constant 0 : index
    %50 = vector.load %arg5[%c0_19, %c0_20] : memref<1x64xf32, #tpu.memory_space<vmem>>, vector<1x64xf32>
    %51 = vector.broadcast %50 : vector<1x64xf32> to vector<4x64xf32>
    %52 = arith.addf %49, %51 : vector<4x64xf32>
    %cst_21 = arith.constant 0.000000e+00 : f32
    %53 = vector.broadcast %cst_21 : f32 to vector<4x64xf32>
    %54 = arith.maximumf %52, %53 : vector<4x64xf32>
    %c0_22 = arith.constant 0 : index
    %c0_23 = arith.constant 0 : index
    %55 = vector.load %arg6[%c0_22, %c0_23] : memref<64x96xf32, #tpu.memory_space<vmem>>, vector<64x96xf32>
    %cst_24 = arith.constant dense<0.000000e+00> : vector<4x96xf32>
    %56 = tpu.matmul %54, %55, %cst_24 {dimension_numbers = #tpu.dot_dimension_numbers<[1], [0], [0], [1], [0, 0, 1, 1], [], []>} : vector<4x64xf32>, vector<64x96xf32>, vector<4x96xf32> -> vector<4x96xf32>
    %57 = arith.mulf %56, %56 : vector<4x96xf32>
    %cst_25 = arith.constant dense<0.000000e+00> : vector<4xf32>
    %58 = vector.multi_reduction <add>, %57, %cst_25 [1] : vector<4x96xf32> to vector<4xf32>
    %59 = vector.shape_cast %58 : vector<4xf32> to vector<4x1xf32>
    %60 = math.sqrt %59 : vector<4x1xf32>
    %cst_26 = arith.constant 9.99999996E-13 : f32
    %61 = vector.broadcast %cst_26 : f32 to vector<4x1xf32>
    %62 = arith.maximumf %60, %61 : vector<4x1xf32>
    %63 = vector.broadcast %62 : vector<4x1xf32> to vector<4x96xf32>
    %64 = arith.divf %56, %63 : vector<4x96xf32>
    %65 = vector.extract_strided_slice %64 {offsets = [0, 0], sizes = [2, 96], strides = [1, 1]} : vector<4x96xf32> to vector<2x96xf32>
    %c0_27 = arith.constant 0 : index
    %c0_28 = arith.constant 0 : index
    %66 = vector.load %arg7[%c0_27, %c0_28] : memref<2x96xf32, #tpu.memory_space<vmem>>, vector<2x96xf32>
    tpu.vector_store %arg7[%c0_27, %c0_28], %65 {strides = array<i32>} : memref<2x96xf32, #tpu.memory_space<vmem>>, vector<2x96xf32>,
    %67 = vector.extract_strided_slice %64 {offsets = [2, 0], sizes = [2, 96], strides = [1, 1]} : vector<4x96xf32> to vector<2x96xf32>
    %c0_29 = arith.constant 0 : index
    %c0_30 = arith.constant 0 : index
    %68 = vector.load %arg8[%c0_29, %c0_30] : memref<2x96xf32, #tpu.memory_space<vmem>>, vector<2x96xf32>
    tpu.vector_store %arg8[%c0_29, %c0_30], %67 {strides = array<i32>} : memref<2x96xf32, #tpu.memory_space<vmem>>, vector<2x96xf32>,
    return
  }
}

</mosaic_0001>

<llo_original>
// kernel: net_forward.5
$region0: #{net_forward.5}
  #allocation0 [shape = 'u32[]', space=smem, size = 0x4, offset = 0x4, fixed_abs, tag = 'smem constant byte address 0x4 - core index']
  #allocation1 [shape = 'u32[144,128]{1,0:T(1,128)}', space=vmem, size = 0x12000, scoped, tag = 'internal scratch']
  %s0 = inlined_call_operand.vmem [shape: f32[2,32], index: 0, kind: input, shape index: {}]
  %s1 = inlined_call_operand.vmem [shape: f32[2,32], index: 1, kind: input, shape index: {}]
  %s2 = inlined_call_operand.vmem [shape: f32[32,64], index: 2, kind: input, shape index: {}]
  %s3 = inlined_call_operand.vmem [shape: f32[1,64], index: 3, kind: input, shape index: {}]
  %s4 = inlined_call_operand.vmem [shape: f32[1,64], index: 4, kind: input, shape index: {}]
  %s5 = inlined_call_operand.vmem [shape: f32[1,64], index: 5, kind: input, shape index: {}]
  %s6 = inlined_call_operand.vmem [shape: f32[64,96], index: 6, kind: input, shape index: {}]
  %s7 = inlined_call_operand.hbm [shape: f32[2,96], index: 7, kind: output, shape index: {0}]
  %s8 = inlined_call_operand.hbm [shape: f32[2,96], index: 8, kind: output, shape index: {1}]
  %9 = xla_tuple %s7, %s8
  %s10 = sld [smem:[#allocation0]]
  $region46: #{net_forward.5} parent=0
    _
  %s12 = ssub.s32 1, %s10
  %s13 = scalar_select 0, %s12, %s10
  $region1: #{net_forward.5} parent=0
    #allocation2 [shape = 'u8[1024]{0}', space=vmem, size = 0x400, scoped, tag = 'output window, operand 0, single buffered']
    #allocation3 [shape = 's32[1]{0}', space=sflag, size = 0x4, scoped, tag = 'scoped memory for net_forward.5']
    #allocation4 [shape = 'u8[1024]{0}', space=vmem, size = 0x400, scoped, tag = 'output window, operand 1, single buffered']
    #allocation5 [shape = 's32[1]{0}', space=sflag, size = 0x4, scoped, tag = 'scoped memory for net_forward.5']
    %14 = vsyncpa [#allocation3], 0
    %15 = vsyncpa [#allocation5], 0
    // Predicated region
    $region2: #{net_forward.5} parent=1 // pred_check
      _
    $region3: #{net_forward.5} parent=1 // pred_check_branch
      %17 = sbr.rel (0) target = $region5
    $region4: #{net_forward.5} parent=1 // pred_region
      _
    $region5: #{net_forward.5} parent=1 // pred_fallthru
      _
    // Predicated region
    $region6: #{net_forward.5} parent=1 // pred_check
      _
    $region7: #{net_forward.5} parent=1 // pred_check_branch
      %19 = sbr.rel (0) target = $region9
    $region8: #{net_forward.5} parent=1 // pred_region
      _
    $region9: #{net_forward.5} parent=1 // pred_fallthru
      _
    // Predicated region
    $region10: #{net_forward.5} parent=1 // pred_check
      _
    $region11: #{net_forward.5} parent=1 // pred_check_branch
      %21 = sbr.rel (0) target = $region13
    $region12: #{net_forward.5} parent=1 // pred_region
      _
    $region13: #{net_forward.5} parent=1 // pred_fallthru
      _
    // Predicated region
    $region14: #{net_forward.5} parent=1 // pred_check
      _
    $region15: #{net_forward.5} parent=1 // pred_check_branch
      %23 = sbr.rel (0) target = $region17
    $region16: #{net_forward.5} parent=1 // pred_region
      _
    $region17: #{net_forward.5} parent=1 // pred_fallthru
      _
    // Predicated region
    $region18: #{net_forward.5} parent=1 // pred_check
      _
    $region19: #{net_forward.5} parent=1 // pred_check_branch
      %25 = sbr.rel (0) target = $region21
    $region20: #{net_forward.5} parent=1 // pred_region
      _
    $region21: #{net_forward.5} parent=1 // pred_fallthru
      _
    // Predicated region
    $region22: #{net_forward.5} parent=1 // pred_check
      _
    $region23: #{net_forward.5} parent=1 // pred_check_branch
      %27 = sbr.rel (0) target = $region25
    $region24: #{net_forward.5} parent=1 // pred_region
      _
    $region25: #{net_forward.5} parent=1 // pred_fallthru
      _
    // Predicated region
    $region26: #{net_forward.5} parent=1 // pred_check
      _
    $region27: #{net_forward.5} parent=1 // pred_check_branch
      %29 = sbr.rel (0) target = $region29
    $region28: #{net_forward.5} parent=1 // pred_region
      _
    $region29: #{net_forward.5} parent=1 // pred_fallthru
      _
    %v30 = vld [vmem:[%s0] sm:$0x3]
    %v31 = vld [vmem:[%s1] sm:$0x3]
    %v33 = vrot.slane %v31, 6
    %vm35 = vcmask 1041408
    %v36 = vsel %vm35, %v30, %v33
    %v37 = vld [vmem:[%s2] sm:$0xff]
    %v38 = vld [vmem:[%s2 + $0x8] sm:$0xff]
    %v39 = vld [vmem:[%s2 + $0x10] sm:$0xff]
    %v40 = vld [vmem:[%s2 + $0x18] sm:$0xff]
    %v41 = vld [vmem:[%s3] sm:$0x1]
    %v43 = vlaneseq
    %v44 = vshrl.u32 %v43, 7
    %v45 = vsub.s32 0, %v44
    %v46 = vrot.slane %v41, %v45
    %vm48 = vcmask 261120
    %v50 = vsel %vm48, %v36, 0
    %52 = vmatprep.subr.mxu0 0.0
    %53 = vmatpush1.msra.mxu0 %v37
    %54 = vmatprep.subr.mxu0 0.0
    %55 = vmatpush1.msra.mxu0 %v38
    %56 = vmatprep.subr.mxu0 0.0
    %57 = vmatpush1.msra.mxu0 %v39
    %58 = vmatprep.subr.mxu0 0.0
    %59 = vmatpush1.msra.mxu0 %v40
    %60 = vmatprep.subr.mxu0 0.0
    %61 = vmatpush1.msra.mxu0 0.0
    %62 = vmatprep.subr.mxu0 0.0
    %63 = vmatpush1.msra.mxu0 0.0
    %64 = vmatprep.subr.mxu0 0.0
    %65 = vmatpush1.msra.mxu0 0.0
    %66 = vmatprep.subr.mxu0 0.0
    %67 = vmatpush1.msra.mxu0 0.0
    %68 = vmatprep.subr.mxu0 0.0
    %69 = vmatpush1.msra.mxu0 0.0
    %70 = vmatprep.subr.mxu0 0.0
    %71 = vmatpush1.msra.mxu0 0.0
    %72 = vmatprep.subr.mxu0 0.0
    %73 = vmatpush1.msra.mxu0 0.0
    %74 = vmatprep.subr.mxu0 0.0
    %75 = vmatpush1.msra.mxu0 0.0
    %76 = vmatprep.subr.mxu0 0.0
    %77 = vmatpush1.msra.mxu0 0.0
    %78 = vmatprep.subr.mxu0 0.0
    %79 = vmatpush1.msra.mxu0 0.0
    %80 = vmatprep.subr.mxu0 0.0
    %81 = vmatpush1.msra.mxu0 0.0
    %82 = vmatprep.subr.mxu0 0.0
    %83 = vmatpush1.msra.mxu0 0.0
    %84 = vmatprep.subr.mxu0 0.0
    %85 = vmatpush1.msra.mxu0 0.0
    %86 = vmatprep.subr.mxu0 0.0
    %87 = vmatpush1.msra.mxu0 0.0
    %88 = vmatprep.subr.mxu0 0.0
    %89 = vmatpush1.msra.mxu0 0.0
    %90 = vmatprep.subr.mxu0 0.0
    %91 = vmatpush1.msra.mxu0 0.0
    %92 = vmatprep.subr.mxu0 0.0
    %93 = vmatpush1.msra.mxu0 0.0
    %94 = vmatprep.subr.mxu0 0.0
    %95 = vmatpush1.msra.mxu0 0.0
    %96 = vmatprep.subr.mxu0 0.0
    %97 = vmatpush1.msra.mxu0 0.0
    %98 = vmatprep.subr.mxu0 0.0
    %99 = vmatpush1.msra.mxu0 0.0
    %100 = vmatprep.subr.mxu0 0.0
    %101 = vmatpush1.msra.mxu0 0.0
    %102 = vmatprep.subr.mxu0 0.0
    %103 = vmatpush1.msra.mxu0 0.0
    %104 = vmatprep.subr.mxu0 0.0
    %105 = vmatpush1.msra.mxu0 0.0
    %106 = vmatprep.subr.mxu0 0.0
    %107 = vmatpush1.msra.mxu0 0.0
    %108 = vmatprep.subr.mxu0 0.0
    %109 = vmatpush1.msra.mxu0 0.0
    %110 = vmatprep.subr.mxu0 0.0
    %111 = vmatpush1.msra.mxu0 0.0
    %112 = vmatprep.subr.mxu0 0.0
    %113 = vmatpush1.msra.mxu0 0.0
    %114 = vmatprep.subr.mxu0 0.0
    %115 = vmatpush1.msra.mxu0 0.0
    %116 = vmatprep.mubr.f32.mxu0 0.0
    %117 = vmatmul.mubr.f32.gmra.mrb[0].mxu0 %v50
    %v118 = vpop.f32.mrb[0].mxu0
    %v119 = vadd.f32 %v46, %v118
    %v120 = vpop.f32.mrb[0].mxu0
    %121 = vdwg.mxu0
    %vm122 = vcmask 517120
    %v123 = vsel %vm122, %v119, 0.0
    %v124 = vrot.slane %v123, 4
    %v125 = vadd.f32 %v123, %v124
    %v126 = vrot.slane %v125, 2
    %v127 = vadd.f32 %v125, %v126
    %v128 = vrot.slane %v127, 1
    %v129 = vadd.f32 %v127, %v128
    %v130 = vrcp.pop 2.0
    %v131 = vmul.f32 %v129, %v130
    %v132 = vsub.f32 %v119, %v131
    %v133 = vmul.f32 %v132, %v132
    %v134 = vsel %vm122, %v133, 0.0
    %v135 = vrot.slane %v134, 4
    %v136 = vadd.f32 %v134, %v135
    %v137 = vrot.slane %v136, 2
    %v138 = vadd.f32 %v136, %v137
    %v139 = vrot.slane %v138, 1
    %v140 = vadd.f32 %v138, %v139
    %v141 = vmul.f32 %v140, %v130
    %v142 = vadd.f32 %v141, 1e-05
    %v143 = vrsqrt.pop %v142
    %v144 = vmul.f32 %v132, %v143
    %v146 = vrot.slane %v119, 2
    %v148 = vsel %vm122, %v146, 0.0
    %v149 = vrot.slane %v148, 4
    %v150 = vadd.f32 %v148, %v149
    %v151 = vrot.slane %v150, 2
    %v152 = vadd.f32 %v150, %v151
    %v153 = vrot.slane %v152, 1
    %v154 = vadd.f32 %v152, %v153
    %v155 = vmul.f32 %v154, %v130
    %v156 = vsub.f32 %v119, %v155
    %v157 = vmul.f32 %v156, %v156
    %v159 = vrot.slane %v157, 2
    %v161 = vsel %vm122, %v159, 0.0
    %v162 = vrot.slane %v161, 4
    %v163 = vadd.f32 %v161, %v162
    %v164 = vrot.slane %v163, 2
    %v165 = vadd.f32 %v163, %v164
    %v166 = vrot.slane %v165, 1
    %v167 = vadd.f32 %v165, %v166
    %v168 = vmul.f32 %v167, %v130
    %v169 = vadd.f32 %v168, 1e-05
    %v170 = vrsqrt.pop %v169
    %v171 = vmul.f32 %v156, %v170
    %v172 = vsel %vm35, %v144, %v171
    %v173 = vld [vmem:[%s4] sm:$0x1]
    %v175 = vlaneseq
    %v176 = vshrl.u32 %v175, 7
    %v177 = vsub.s32 0, %v176
    %v178 = vrot.slane %v173, %v177
    %v180 = vmul.f32 %v172, %v178
    %v181 = vld [vmem:[%s5] sm:$0x1]
    %v183 = vlaneseq
    %v184 = vshrl.u32 %v183, 7
    %v185 = vsub.s32 0, %v184
    %v186 = vrot.slane %v181, %v185
    %v188 = vadd.f32 %v180, %v186
    %v189 = vmax.f32 %v188, 0.0
    %v190 = vld [vmem:[%s6] sm:$0xff]
    %v191 = vld [vmem:[%s6 + $0x8] sm:$0xff]
    %v192 = vld [vmem:[%s6 + $0x10] sm:$0xff]
    %v193 = vld [vmem:[%s6 + $0x18] sm:$0xff]
    %v194 = vld [vmem:[%s6 + $0x20] sm:$0xff]
    %v195 = vld [vmem:[%s6 + $0x28] sm:$0xff]
    %v196 = vld [vmem:[%s6 + $0x30] sm:$0xff]
    %v197 = vld [vmem:[%s6 + $0x38] sm:$0xff]
    %vm198 = vcmask 523264
    %v200 = vsel %vm198, %v189, 0
    %202 = vmatprep.subr.mxu0 0.0
    %203 = vmatpush1.msra.mxu0 %v190
    %204 = vmatprep.subr.mxu0 0.0
    %205 = vmatpush1.msra.mxu0 %v191
    %206 = vmatprep.subr.mxu0 0.0
    %207 = vmatpush1.msra.mxu0 %v192
    %208 = vmatprep.subr.mxu0 0.0
    %209 = vmatpush1.msra.mxu0 %v193
    %210 = vmatprep.subr.mxu0 0.0
    %211 = vmatpush1.msra.mxu0 %v194
    %212 = vmatprep.subr.mxu0 0.0
    %213 = vmatpush1.msra.mxu0 %v195
    %214 = vmatprep.subr.mxu0 0.0
    %215 = vmatpush1.msra.mxu0 %v196
    %216 = vmatprep.subr.mxu0 0.0
    %217 = vmatpush1.msra.mxu0 %v197
    %218 = vmatprep.subr.mxu0 0.0
    %219 = vmatpush1.msra.mxu0 0.0
    %220 = vmatprep.subr.mxu0 0.0
    %221 = vmatpush1.msra.mxu0 0.0
    %222 = vmatprep.subr.mxu0 0.0
    %223 = vmatpush1.msra.mxu0 0.0
    %224 = vmatprep.subr.mxu0 0.0
    %225 = vmatpush1.msra.mxu0 0.0
    %226 = vmatprep.subr.mxu0 0.0
    %227 = vmatpush1.msra.mxu0 0.0
    %228 = vmatprep.subr.mxu0 0.0
    %229 = vmatpush1.msra.mxu0 0.0
    %230 = vmatprep.subr.mxu0 0.0
    %231 = vmatpush1.msra.mxu0 0.0
    %232 = vmatprep.subr.mxu0 0.0
    %233 = vmatpush1.msra.mxu0 0.0
    %234 = vmatprep.subr.mxu0 0.0
    %235 = vmatpush1.msra.mxu0 0.0
    %236 = vmatprep.subr.mxu0 0.0
    %237 = vmatpush1.msra.mxu0 0.0
    %238 = vmatprep.subr.mxu0 0.0
    %239 = vmatpush1.msra.mxu0 0.0
    %240 = vmatprep.subr.mxu0 0.0
    %241 = vmatpush1.msra.mxu0 0.0
    %242 = vmatprep.subr.mxu0 0.0
    %243 = vmatpush1.msra.mxu0 0.0
    %244 = vmatprep.subr.mxu0 0.0
    %245 = vmatpush1.msra.mxu0 0.0
    %246 = vmatprep.subr.mxu0 0.0
    %247 = vmatpush1.msra.mxu0 0.0
    %248 = vmatprep.subr.mxu0 0.0
    %249 = vmatpush1.msra.mxu0 0.0
    %250 = vmatprep.subr.mxu0 0.0
    %251 = vmatpush1.msra.mxu0 0.0
    %252 = vmatprep.subr.mxu0 0.0
    %253 = vmatpush1.msra.mxu0 0.0
    %254 = vmatprep.subr.mxu0 0.0
    %255 = vmatpush1.msra.mxu0 0.0
    %256 = vmatprep.subr.mxu0 0.0
    %257 = vmatpush1.msra.mxu0 0.0
    %258 = vmatprep.subr.mxu0 0.0
    %259 = vmatpush1.msra.mxu0 0.0
    %260 = vmatprep.subr.mxu0 0.0
    %261 = vmatpush1.msra.mxu0 0.0
    %262 = vmatprep.subr.mxu0 0.0
    %263 = vmatpush1.msra.mxu0 0.0
    %264 = vmatprep.subr.mxu0 0.0
    %265 = vmatpush1.msra.mxu0 0.0
    %266 = vmatprep.mubr.f32.mxu0 0.0
    %267 = vmatmul.mubr.f32.gmra.mrb[0].mxu0 %v200
    %v268 = vpop.f32.mrb[0].mxu0
    %v269 = vadd.f32 0.0, %v268
    %v270 = vpop.f32.mrb[0].mxu0
    %271 = vdwg.mxu0
    %v272 = vmul.f32 %v269, %v269
    %vm273 = vcmask 781312
    %v274 = vsel %vm273, %v272, 0.0
    %275 = vadd.xlane.f32.xlu0 %v274
    %v276 = vpop.xlane.xlu0 %275
    %v277 = vrsqrt.pop %v276
    %v278 = vmul.f32 %v276, %v277
    %vm279 = vcmp.eq.f32.partialorder %v276, inf
    %v280 = vsel %vm279, %v276, %v278
    %vm281 = vcmp.eq.f32.partialorder %v276, 0.0
    %v282 = vand.u32 %v276, 2147483648
    %v283 = vsel %vm281, %v282, %v280
    %v284 = vmax.f32 %v283, 1e-12
    %v285 = vrcp.pop %v284
    %v286 = vmul.f32 %v269, %v285
    %vm287 = vcmask 779264
    %288 = vst.msk [vmem:[#allocation2] sm:$0x3] %vm287, %v286
    %vm289 = vcmask 781314
    %290 = vst.msk [vmem:[#allocation4 - $0x2] sm:$0xc] %vm289, %v286
    // Predicated region
    $region30: #{net_forward.5} parent=1 // pred_check
      _
    $region31: #{net_forward.5} parent=1 // pred_check_branch
      %292 = sbr.rel (0) target = $region33
    $region32: #{net_forward.5} parent=1 // pred_region
      %s294 = ssub.s32 32, 32
      %295 = vsyncadd [#allocation3], %s294
      %s297 = sshll.u32 [#allocation2], 4
      %s298 = int_to_ptr.vmem [resolvable:$true] %s297
      %300 = dma.vmem_to_hbm [thread:$0]  %s298, 32, %s7, [#allocation3]
    $region33: #{net_forward.5} parent=1 // pred_fallthru
      _
    // Predicated region
    $region34: #{net_forward.5} parent=1 // pred_check
      _
    $region35: #{net_forward.5} parent=1 // pred_check_branch
      %302 = sbr.rel (0) target = $region37
    $region36: #{net_forward.5} parent=1 // pred_region
      %s304 = ssub.s32 32, 32
      %305 = vsyncadd [#allocation5], %s304
      %s307 = sshll.u32 [#allocation4], 4
      %s308 = int_to_ptr.vmem [resolvable:$true] %s307
      %310 = dma.vmem_to_hbm [thread:$0]  %s308, 32, %s8, [#allocation5]
    $region37: #{net_forward.5} parent=1 // pred_fallthru
      _
    // Predicated region
    $region38: #{net_forward.5} parent=1 // pred_check
      _
    $region39: #{net_forward.5} parent=1 // pred_check_branch
      %312 = sbr.rel (0) target = $region41
    $region40: #{net_forward.5} parent=1 // pred_region
      %313 = dma.done [#allocation3], 32
    $region41: #{net_forward.5} parent=1 // pred_fallthru
      _
    // Predicated region
    $region42: #{net_forward.5} parent=1 // pred_check
      _
    $region43: #{net_forward.5} parent=1 // pred_check_branch
      %315 = sbr.rel (0) target = $region45
    $region44: #{net_forward.5} parent=1 // pred_region
      %316 = dma.done [#allocation5], 32
    $region45: #{net_forward.5} parent=1 // pred_fallthru
      _
    %317 = vsyncpa [#allocation3], 1
    %318 = vsyncpa [#allocation5], 1

// kernel: net_forward.4
$region0: #{net_forward.4}
  #allocation0 [shape = 'u32[]', space=smem, size = 0x4, offset = 0x4, fixed_abs, tag = 'smem constant byte address 0x4 - core index']
  #allocation1 [shape = 'u32[144,128]{1,0:T(1,128)}', space=vmem, size = 0x12000, scoped, tag = 'internal scratch']
  %s0 = inlined_call_operand.vmem [shape: f32[8,2,16], index: 0, kind: input, shape index: {}]
  %s1 = inlined_call_operand.vmem [shape: bf16[16,512], index: 1, kind: input, shape index: {}]
  %s2 = inlined_call_operand.vmem [shape: bf16[128,512], index: 2, kind: input, shape index: {}]
  %s3 = inlined_call_operand.vmem [shape: f32[1,512], index: 3, kind: input, shape index: {}]
  %s4 = inlined_call_operand.vmem [shape: f32[2,32], index: 4, kind: output, shape index: {}]
  %s5 = sld [smem:[#allocation0]]
  $region26: #{net_forward.4} parent=0
    _
  %s7 = ssub.s32 1, %s5
  %s8 = scalar_select 0, %s7, %s5
  // Predicated region
  $region2: #{net_forward.4} parent=0 // pred_check
    _
  $region3: #{net_forward.4} parent=0 // pred_check_branch
    %10 = sbr.rel (0) target = $region5
  $region4: #{net_forward.4} parent=0 // pred_region
    _
  $region5: #{net_forward.4} parent=0 // pred_fallthru
    _
  // Predicated region
  $region6: #{net_forward.4} parent=0 // pred_check
    _
  $region7: #{net_forward.4} parent=0 // pred_check_branch
    %12 = sbr.rel (0) target = $region9
  $region8: #{net_forward.4} parent=0 // pred_region
    _
  $region9: #{net_forward.4} parent=0 // pred_fallthru
    _
  // Predicated region
  $region10: #{net_forward.4} parent=0 // pred_check
    _
  $region11: #{net_forward.4} parent=0 // pred_check_branch
    %14 = sbr.rel (0) target = $region13
  $region12: #{net_forward.4} parent=0 // pred_region
    _
  $region13: #{net_forward.4} parent=0 // pred_fallthru
    _
  // Predicated region
  $region14: #{net_forward.4} parent=0 // pred_check
    _
  $region15: #{net_forward.4} parent=0 // pred_check_branch
    %16 = sbr.rel (0) target = $region17
  $region16: #{net_forward.4} parent=0 // pred_region
    _
  $region17: #{net_forward.4} parent=0 // pred_fallthru
    _
  %v18 = vld [vmem:[%s0] sm:$0x3]
  %v19 = vpack.c.bf16 %v18, %v18
  %v20 = vld [vmem:[%s1] sm:$0xff]
  %v21 = vld [vmem:[%s1 + $0x8] sm:$0xff]
  %v22 = vld [vmem:[%s1 + $0x10] sm:$0xff]
  %v23 = vld [vmem:[%s1 + $0x18] sm:$0xff]
  %v24 = vld [vmem:[%s2] sm:$0xff]
  %v25 = vld [vmem:[%s2 + $0x8] sm:$0xff]
  %v26 = vld [vmem:[%s2 + $0x10] sm:$0xff]
  %v27 = vld [vmem:[%s2 + $0x18] sm:$0xff]
  %v28 = vld [vmem:[%s2 + $0x20] sm:$0xff]
  %v29 = vld [vmem:[%s2 + $0x28] sm:$0xff]
  %v30 = vld [vmem:[%s2 + $0x30] sm:$0xff]
  %v31 = vld [vmem:[%s2 + $0x38] sm:$0xff]
  %v32 = vld [vmem:[%s2 + $0x40] sm:$0xff]
  %v33 = vld [vmem:[%s2 + $0x48] sm:$0xff]
  %v34 = vld [vmem:[%s2 + $0x50] sm:$0xff]
  %v35 = vld [vmem:[%s2 + $0x58] sm:$0xff]
  %v36 = vld [vmem:[%s2 + $0x60] sm:$0xff]
  %v37 = vld [vmem:[%s2 + $0x68] sm:$0xff]
  %v38 = vld [vmem:[%s2 + $0x70] sm:$0xff]
  %v39 = vld [vmem:[%s2 + $0x78] sm:$0xff]
  %v40 = vld [vmem:[%s2 + $0x80] sm:$0xff]
  %v41 = vld [vmem:[%s2 + $0x88] sm:$0xff]
  %v42 = vld [vmem:[%s2 + $0x90] sm:$0xff]
  %v43 = vld [vmem:[%s2 + $0x98] sm:$0xff]
  %v44 = vld [vmem:[%s2 + $0xa0] sm:$0xff]
  %v45 = vld [vmem:[%s2 + $0xa8] sm:$0xff]
  %v46 = vld [vmem:[%s2 + $0xb0] sm:$0xff]
  %v47 = vld [vmem:[%s2 + $0xb8] sm:$0xff]
  %v48 = vld [vmem:[%s2 + $0xc0] sm:$0xff]
  %v49 = vld [vmem:[%s2 + $0xc8] sm:$0xff]
  %v50 = vld [vmem:[%s2 + $0xd0] sm:$0xff]
  %v51 = vld [vmem:[%s2 + $0xd8] sm:$0xff]
  %v52 = vld [vmem:[%s2 + $0xe0] sm:$0xff]
  %v53 = vld [vmem:[%s2 + $0xe8] sm:$0xff]
  %v54 = vld [vmem:[%s2 + $0xf0] sm:$0xff]
  %v55 = vld [vmem:[%s2 + $0xf8] sm:$0xff]
  %v88 = vunpack.c.l.b16 %v24
  %v89 = vunpack.c.h.b16 %v24
  %v90 = vunpack.c.l.b16 %v25
  %v91 = vunpack.c.h.b16 %v25
  %v92 = vunpack.c.l.b16 %v26
  %v93 = vunpack.c.h.b16 %v26
  %v94 = vunpack.c.l.b16 %v27
  %v95 = vunpack.c.h.b16 %v27
  %v96 = vunpack.c.l.b16 %v28
  %v97 = vunpack.c.h.b16 %v28
  %v98 = vunpack.c.l.b16 %v29
  %v99 = vunpack.c.h.b16 %v29
  %v100 = vunpack.c.l.b16 %v30
  %v101 = vunpack.c.h.b16 %v30
  %v102 = vunpack.c.l.b16 %v31
  %v103 = vunpack.c.h.b16 %v31
  %v104 = vunpack.c.l.b16 %v32
  %v105 = vunpack.c.h.b16 %v32
  %v106 = vunpack.c.l.b16 %v33
  %v107 = vunpack.c.h.b16 %v33
  %v108 = vunpack.c.l.b16 %v34
  %v109 = vunpack.c.h.b16 %v34
  %v110 = vunpack.c.l.b16 %v35
  %v111 = vunpack.c.h.b16 %v35
  %v112 = vunpack.c.l.b16 %v36
  %v113 = vunpack.c.h.b16 %v36
  %v114 = vunpack.c.l.b16 %v37
  %v115 = vunpack.c.h.b16 %v37
  %v116 = vunpack.c.l.b16 %v38
  %v117 = vunpack.c.h.b16 %v38
  %v118 = vunpack.c.l.b16 %v39
  %v119 = vunpack.c.h.b16 %v39
  %v120 = vunpack.c.l.b16 %v40
  %v121 = vunpack.c.h.b16 %v40
  %v122 = vunpack.c.l.b16 %v41
  %v123 = vunpack.c.h.b16 %v41
  %v124 = vunpack.c.l.b16 %v42
  %v125 = vunpack.c.h.b16 %v42
  %v126 = vunpack.c.l.b16 %v43
  %v127 = vunpack.c.h.b16 %v43
  %v128 = vunpack.c.l.b16 %v44
  %v129 = vunpack.c.h.b16 %v44
  %v130 = vunpack.c.l.b16 %v45
  %v131 = vunpack.c.h.b16 %v45
  %v132 = vunpack.c.l.b16 %v46
  %v133 = vunpack.c.h.b16 %v46
  %v134 = vunpack.c.l.b16 %v47
  %v135 = vunpack.c.h.b16 %v47
  %v136 = vunpack.c.l.b16 %v48
  %v137 = vunpack.c.h.b16 %v48
  %v138 = vunpack.c.l.b16 %v49
  %v139 = vunpack.c.h.b16 %v49
  %v140 = vunpack.c.l.b16 %v50
  %v141 = vunpack.c.h.b16 %v50
  %v142 = vunpack.c.l.b16 %v51
  %v143 = vunpack.c.h.b16 %v51
  %v144 = vunpack.c.l.b16 %v52
  %v145 = vunpack.c.h.b16 %v52
  %v146 = vunpack.c.l.b16 %v53
  %v147 = vunpack.c.h.b16 %v53
  %v148 = vunpack.c.l.b16 %v54
  %v149 = vunpack.c.h.b16 %v54
  %v150 = vunpack.c.l.b16 %v55
  %v151 = vunpack.c.h.b16 %v55
  %v152 = vpack.c.b16 %v92, %v88
  %v153 = vpack.c.b16 %v93, %v89
  %v154 = vpack.c.b16 %v94, %v90
  %v155 = vpack.c.b16 %v95, %v91
  %v156 = vpack.c.b16 %v100, %v96
  %v157 = vpack.c.b16 %v101, %v97
  %v158 = vpack.c.b16 %v102, %v98
  %v159 = vpack.c.b16 %v103, %v99
  %v160 = vpack.c.b16 %v108, %v104
  %v161 = vpack.c.b16 %v109, %v105
  %v162 = vpack.c.b16 %v110, %v106
  %v163 = vpack.c.b16 %v111, %v107
  %v164 = vpack.c.b16 %v116, %v112
  %v165 = vpack.c.b16 %v117, %v113
  %v166 = vpack.c.b16 %v118, %v114
  %v167 = vpack.c.b16 %v119, %v115
  %v168 = vpack.c.b16 %v124, %v120
  %v169 = vpack.c.b16 %v125, %v121
  %v170 = vpack.c.b16 %v126, %v122
  %v171 = vpack.c.b16 %v127, %v123
  %v172 = vpack.c.b16 %v132, %v128
  %v173 = vpack.c.b16 %v133, %v129
  %v174 = vpack.c.b16 %v134, %v130
  %v175 = vpack.c.b16 %v135, %v131
  %v176 = vpack.c.b16 %v140, %v136
  %v177 = vpack.c.b16 %v141, %v137
  %v178 = vpack.c.b16 %v142, %v138
  %v179 = vpack.c.b16 %v143, %v139
  %v180 = vpack.c.b16 %v148, %v144
  %v181 = vpack.c.b16 %v149, %v145
  %v182 = vpack.c.b16 %v150, %v146
  %v183 = vpack.c.b16 %v151, %v147
  %216 = vmatprep.subr.bf16.mxu0 %v153
  %217 = vmatpush1.bf16.msra.mxu0 %v152
  %218 = vmatprep.subr.bf16.mxu0 %v157
  %219 = vmatpush1.bf16.msra.mxu0 %v156
  %220 = vmatprep.subr.bf16.mxu0 %v161
  %221 = vmatpush1.bf16.msra.mxu0 %v160
  %222 = vmatprep.subr.bf16.mxu0 %v165
  %223 = vmatpush1.bf16.msra.mxu0 %v164
  %224 = vmatprep.subr.bf16.mxu0 %v169
  %225 = vmatpush1.bf16.msra.mxu0 %v168
  %226 = vmatprep.subr.bf16.mxu0 %v173
  %227 = vmatpush1.bf16.msra.mxu0 %v172
  %228 = vmatprep.subr.bf16.mxu0 %v177
  %229 = vmatpush1.bf16.msra.mxu0 %v176
  %230 = vmatprep.subr.bf16.mxu0 %v181
  %231 = vmatpush1.bf16.msra.mxu0 %v180
  %232 = vmatprep.subr.bf16.mxu0 0
  %233 = vmatpush1.bf16.msra.mxu0 0
  %234 = vmatprep.subr.bf16.mxu0 0
  %235 = vmatpush1.bf16.msra.mxu0 0
  %236 = vmatprep.subr.bf16.mxu0 0
  %237 = vmatpush1.bf16.msra.mxu0 0
  %238 = vmatprep.subr.bf16.mxu0 0
  %239 = vmatpush1.bf16.msra.mxu0 0
  %240 = vmatprep.subr.bf16.mxu0 0
  %241 = vmatpush1.bf16.msra.mxu0 0
  %242 = vmatprep.subr.bf16.mxu0 0
  %243 = vmatpush1.bf16.msra.mxu0 0
  %244 = vmatprep.subr.bf16.mxu0 0
  %245 = vmatpush1.bf16.msra.mxu0 0
  %246 = vmatprep.subr.bf16.mxu0 0
  %247 = vmatpush1.bf16.msra.mxu0 0
  %248 = vmatprep.mubr.bf16.mxu0 0
  %249 = vmatmul.mubr.bf16.gmra.mrb[0].mxu0 0
  %v250 = vpop.f32.mrb[0].mxu0
  %v251 = vadd.f32 0.0, %v250
  %v252 = vpop.f32.mrb[0].mxu0
  %v253 = vadd.f32 0.0, %v252
  %v254 = vpop.f32.mrb[0].mxu0
  %v255 = vpop.f32.mrb[0].mxu0
  %256 = vdwg.mxu0
  %257 = vmatprep.subr.bf16.mxu0 %v155
  %258 = vmatpush1.bf16.msra.mxu0 %v154
  %259 = vmatprep.subr.bf16.mxu0 %v159
  %260 = vmatpush1.bf16.msra.mxu0 %v158
  %261 = vmatprep.subr.bf16.mxu0 %v163
  %262 = vmatpush1.bf16.msra.mxu0 %v162
  %263 = vmatprep.subr.bf16.mxu0 %v167
  %264 = vmatpush1.bf16.msra.mxu0 %v166
  %265 = vmatprep.subr.bf16.mxu0 %v171
  %266 = vmatpush1.bf16.msra.mxu0 %v170
  %267 = vmatprep.subr.bf16.mxu0 %v175
  %268 = vmatpush1.bf16.msra.mxu0 %v174
  %269 = vmatprep.subr.bf16.mxu0 %v179
  %270 = vmatpush1.bf16.msra.mxu0 %v178
  %271 = vmatprep.subr.bf16.mxu0 %v183
  %272 = vmatpush1.bf16.msra.mxu0 %v182
  %273 = vmatprep.subr.bf16.mxu0 0
  %274 = vmatpush1.bf16.msra.mxu0 0
  %275 = vmatprep.subr.bf16.mxu0 0
  %276 = vmatpush1.bf16.msra.mxu0 0
  %277 = vmatprep.subr.bf16.mxu0 0
  %278 = vmatpush1.bf16.msra.mxu0 0
  %279 = vmatprep.subr.bf16.mxu0 0
  %280 = vmatpush1.bf16.msra.mxu0 0
  %281 = vmatprep.subr.bf16.mxu0 0
  %282 = vmatpush1.bf16.msra.mxu0 0
  %283 = vmatprep.subr.bf16.mxu0 0
  %284 = vmatpush1.bf16.msra.mxu0 0
  %285 = vmatprep.subr.bf16.mxu0 0
  %286 = vmatpush1.bf16.msra.mxu0 0
  %287 = vmatprep.subr.bf16.mxu0 0
  %288 = vmatpush1.bf16.msra.mxu0 0
  %289 = vmatprep.mubr.bf16.mxu0 0
  %290 = vmatmul.mubr.bf16.gmra.mrb[0].mxu0 0
  %v291 = vpop.f32.mrb[0].mxu0
  %v292 = vadd.f32 0.0, %v291
  %v293 = vpop.f32.mrb[0].mxu0
  %v294 = vadd.f32 0.0, %v293
  %v295 = vpop.f32.mrb[0].mxu0
  %v296 = vpop.f32.mrb[0].mxu0
  %297 = vdwg.mxu0
  %v302 = vunpack.c.l.b16 %v20
  %v303 = vunpack.c.h.b16 %v20
  %v304 = vunpack.c.l.b16 %v21
  %v305 = vunpack.c.h.b16 %v21
  %v306 = vunpack.c.l.b16 %v22
  %v307 = vunpack.c.h.b16 %v22
  %v308 = vunpack.c.l.b16 %v23
  %v309 = vunpack.c.h.b16 %v23
  %v310 = vpack.c.b16 %v306, %v302
  %v311 = vpack.c.b16 %v307, %v303
  %v312 = vpack.c.b16 %v308, %v304
  %v313 = vpack.c.b16 %v309, %v305
  %vm318 = vcmask 130048
  %v320 = vsel %vm318, %v19, 0
  %322 = vmatprep.subr.bf16.mxu0 %v311
  %323 = vmatpush1.bf16.msra.mxu0 %v310
  %324 = vmatprep.subr.bf16.mxu0 0
  %325 = vmatpush1.bf16.msra.mxu0 0
  %326 = vmatprep.subr.bf16.mxu0 0
  %327 = vmatpush1.bf16.msra.mxu0 0
  %328 = vmatprep.subr.bf16.mxu0 0
  %329 = vmatpush1.bf16.msra.mxu0 0
  %330 = vmatprep.subr.bf16.mxu0 0
  %331 = vmatpush1.bf16.msra.mxu0 0
  %332 = vmatprep.subr.bf16.mxu0 0
  %333 = vmatpush1.bf16.msra.mxu0 0
  %334 = vmatprep.subr.bf16.mxu0 0
  %335 = vmatpush1.bf16.msra.mxu0 0
  %336 = vmatprep.subr.bf16.mxu0 0
  %337 = vmatpush1.bf16.msra.mxu0 0
  %338 = vmatprep.subr.bf16.mxu0 0
  %339 = vmatpush1.bf16.msra.mxu0 0
  %340 = vmatprep.subr.bf16.mxu0 0
  %341 = vmatpush1.bf16.msra.mxu0 0
  %342 = vmatprep.subr.bf16.mxu0 0
  %343 = vmatpush1.bf16.msra.mxu0 0
  %344 = vmatprep.subr.bf16.mxu0 0
  %345 = vmatpush1.bf16.msra.mxu0 0
  %346 = vmatprep.subr.bf16.mxu0 0
  %347 = vmatpush1.bf16.msra.mxu0 0
  %348 = vmatprep.subr.bf16.mxu0 0
  %349 = vmatpush1.bf16.msra.mxu0 0
  %350 = vmatprep.subr.bf16.mxu0 0
  %351 = vmatpush1.bf16.msra.mxu0 0
  %352 = vmatprep.subr.bf16.mxu0 0
  %353 = vmatpush1.bf16.msra.mxu0 0
  %354 = vmatprep.mubr.bf16.mxu0 0
  %355 = vmatmul.mubr.bf16.gmra.mrb[0].mxu0 %v320
  %v356 = vpop.f32.mrb[0].mxu0
  %v357 = vadd.f32 %v251, %v356
  %v358 = vpop.f32.mrb[0].mxu0
  %v359 = vadd.f32 %v253, %v358
  %v360 = vpop.f32.mrb[0].mxu0
  %v361 = vpop.f32.mrb[0].mxu0
  %362 = vdwg.mxu0
  %363 = vmatprep.subr.bf16.mxu0 %v313
  %364 = vmatpush1.bf16.msra.mxu0 %v312
  %365 = vmatprep.subr.bf16.mxu0 0
  %366 = vmatpush1.bf16.msra.mxu0 0
  %367 = vmatprep.subr.bf16.mxu0 0
  %368 = vmatpush1.bf16.msra.mxu0 0
  %369 = vmatprep.subr.bf16.mxu0 0
  %370 = vmatpush1.bf16.msra.mxu0 0
  %371 = vmatprep.subr.bf16.mxu0 0
  %372 = vmatpush1.bf16.msra.mxu0 0
  %373 = vmatprep.subr.bf16.mxu0 0
  %374 = vmatpush1.bf16.msra.mxu0 0
  %375 = vmatprep.subr.bf16.mxu0 0
  %376 = vmatpush1.bf16.msra.mxu0 0
  %377 = vmatprep.subr.bf16.mxu0 0
  %378 = vmatpush1.bf16.msra.mxu0 0
  %379 = vmatprep.subr.bf16.mxu0 0
  %380 = vmatpush1.bf16.msra.mxu0 0
  %381 = vmatprep.subr.bf16.mxu0 0
  %382 = vmatpush1.bf16.msra.mxu0 0
  %383 = vmatprep.subr.bf16.mxu0 0
  %384 = vmatpush1.bf16.msra.mxu0 0
  %385 = vmatprep.subr.bf16.mxu0 0
  %386 = vmatpush1.bf16.msra.mxu0 0
  %387 = vmatprep.subr.bf16.mxu0 0
  %388 = vmatpush1.bf16.msra.mxu0 0
  %389 = vmatprep.subr.bf16.mxu0 0
  %390 = vmatpush1.bf16.msra.mxu0 0
  %391 = vmatprep.subr.bf16.mxu0 0
  %392 = vmatpush1.bf16.msra.mxu0 0
  %393 = vmatprep.subr.bf16.mxu0 0
  %394 = vmatpush1.bf16.msra.mxu0 0
  %395 = vmatprep.mubr.bf16.mxu0 0
  %396 = vmatmul.mubr.bf16.gmra.mrb[0].mxu0 %v320
  %v397 = vpop.f32.mrb[0].mxu0
  %v398 = vadd.f32 %v292, %v397
  %v399 = vpop.f32.mrb[0].mxu0
  %v400 = vadd.f32 %v294, %v399
  %v401 = vpop.f32.mrb[0].mxu0
  %v402 = vpop.f32.mrb[0].mxu0
  %403 = vdwg.mxu0
  %v404 = vld [vmem:[%s3] sm:$0xf]
  %v406 = vlaneseq
  %v407 = vshrl.u32 %v406, 7
  %v408 = vsub.s32 0, %v407
  %v409 = vrot.slane %v404, %v408
  %v410 = vlaneseq
  %v411 = vshrl.u32 %v410, 7
  %v412 = vsub.s32 1, %v411
  %v413 = vrot.slane %v404, %v412
  %v414 = vlaneseq
  %v415 = vshrl.u32 %v414, 7
  %v416 = vsub.s32 2, %v415
  %v417 = vrot.slane %v404, %v416
  %v418 = vlaneseq
  %v419 = vshrl.u32 %v418, 7
  %v420 = vsub.s32 3, %v419
  %v421 = vrot.slane %v404, %v420
  %v426 = vadd.f32 %v357, %v409
  %v427 = vadd.f32 %v359, %v413
  %v428 = vadd.f32 %v398, %v417
  %v429 = vadd.f32 %v400, %v421
  %v430 = vxor.u32 %v426, 2147483648
  %v431 = vmul.f32 %v430, 1.442695
  %v432 = vpow.pop %v431
  %v433 = vadd.f32 %v432, 1.0
  %v434 = vrcp.pop %v433
  %v435 = vmul.f32 1.0, %v434
  %v436 = vxor.u32 %v427, 2147483648
  %v437 = vmul.f32 %v436, 1.442695
  %v438 = vpow.pop %v437
  %v439 = vadd.f32 %v438, 1.0
  %v440 = vrcp.pop %v439
  %v441 = vmul.f32 1.0, %v440
  %v442 = vtanh.pop %v428
  %v443 = vxor.u32 %v429, 2147483648
  %v444 = vmul.f32 %v443, 1.442695
  %v445 = vpow.pop %v444
  %v446 = vadd.f32 %v445, 1.0
  %v447 = vrcp.pop %v446
  %v448 = vmul.f32 1.0, %v447
  %v449 = vmul.f32 %v441, 0.0
  %v450 = vmul.f32 %v435, %v442
  %v451 = vadd.f32 %v449, %v450
  %v452 = vtanh.pop %v451
  %v453 = vmul.f32 %v448, %v452
  %s454 = scalar_lea.vmem %s0, 2
  %v455 = vld [vmem:[%s454] sm:$0x3]
  %v456 = vpack.c.bf16 %v455, %v455
  %v457 = vpack.c.bf16 %v453, %v453
  %458 = vmatprep.subr.bf16.mxu0 %v153
  %459 = vmatpush1.bf16.msra.mxu0 %v152
  %460 = vmatprep.subr.bf16.mxu0 %v157
  %461 = vmatpush1.bf16.msra.mxu0 %v156
  %462 = vmatprep.subr.bf16.mxu0 %v161
  %463 = vmatpush1.bf16.msra.mxu0 %v160
  %464 = vmatprep.subr.bf16.mxu0 %v165
  %465 = vmatpush1.bf16.msra.mxu0 %v164
  %466 = vmatprep.subr.bf16.mxu0 %v169
  %467 = vmatpush1.bf16.msra.mxu0 %v168
  %468 = vmatprep.subr.bf16.mxu0 %v173
  %469 = vmatpush1.bf16.msra.mxu0 %v172
  %470 = vmatprep.subr.bf16.mxu0 %v177
  %471 = vmatpush1.bf16.msra.mxu0 %v176
  %472 = vmatprep.subr.bf16.mxu0 %v181
  %473 = vmatpush1.bf16.msra.mxu0 %v180
  %474 = vmatprep.subr.bf16.mxu0 0
  %475 = vmatpush1.bf16.msra.mxu0 0
  %476 = vmatprep.subr.bf16.mxu0 0
  %477 = vmatpush1.bf16.msra.mxu0 0
  %478 = vmatprep.subr.bf16.mxu0 0
  %479 = vmatpush1.bf16.msra.mxu0 0
  %480 = vmatprep.subr.bf16.mxu0 0
  %481 = vmatpush1.bf16.msra.mxu0 0
  %482 = vmatprep.subr.bf16.mxu0 0
  %483 = vmatpush1.bf16.msra.mxu0 0
  %484 = vmatprep.subr.bf16.mxu0 0
  %485 = vmatpush1.bf16.msra.mxu0 0
  %486 = vmatprep.subr.bf16.mxu0 0
  %487 = vmatpush1.bf16.msra.mxu0 0
  %488 = vmatprep.subr.bf16.mxu0 0
  %489 = vmatpush1.bf16.msra.mxu0 0
  %490 = vmatprep.mubr.bf16.mxu0 0
  %491 = vmatmul.mubr.bf16.gmra.mrb[0].mxu0 %v457
  %v492 = vpop.f32.mrb[0].mxu0
  %v493 = vadd.f32 0.0, %v492
  %v494 = vpop.f32.mrb[0].mxu0
  %v495 = vadd.f32 0.0, %v494
  %v496 = vpop.f32.mrb[0].mxu0
  %v497 = vpop.f32.mrb[0].mxu0
  %498 = vdwg.mxu0
  %499 = vmatprep.subr.bf16.mxu0 %v155
  %500 = vmatpush1.bf16.msra.mxu0 %v154
  %501 = vmatprep.subr.bf16.mxu0 %v159
  %502 = vmatpush1.bf16.msra.mxu0 %v158
  %503 = vmatprep.subr.bf16.mxu0 %v163
  %504 = vmatpush1.bf16.msra.mxu0 %v162
  %505 = vmatprep.subr.bf16.mxu0 %v167
  %506 = vmatpush1.bf16.msra.mxu0 %v166
  %507 = vmatprep.subr.bf16.mxu0 %v171
  %508 = vmatpush1.bf16.msra.mxu0 %v170
  %509 = vmatprep.subr.bf16.mxu0 %v175
  %510 = vmatpush1.bf16.msra.mxu0 %v174
  %511 = vmatprep.subr.bf16.mxu0 %v179
  %512 = vmatpush1.bf16.msra.mxu0 %v178
  %513 = vmatprep.subr.bf16.mxu0 %v183
  %514 = vmatpush1.bf16.msra.mxu0 %v182
  %515 = vmatprep.subr.bf16.mxu0 0
  %516 = vmatpush1.bf16.msra.mxu0 0
  %517 = vmatprep.subr.bf16.mxu0 0
  %518 = vmatpush1.bf16.msra.mxu0 0
  %519 = vmatprep.subr.bf16.mxu0 0
  %520 = vmatpush1.bf16.msra.mxu0 0
  %521 = vmatprep.subr.bf16.mxu0 0
  %522 = vmatpush1.bf16.msra.mxu0 0
  %523 = vmatprep.subr.bf16.mxu0 0
  %524 = vmatpush1.bf16.msra.mxu0 0
  %525 = vmatprep.subr.bf16.mxu0 0
  %526 = vmatpush1.bf16.msra.mxu0 0
  %527 = vmatprep.subr.bf16.mxu0 0
  %528 = vmatpush1.bf16.msra.mxu0 0
  %529 = vmatprep.subr.bf16.mxu0 0
  %530 = vmatpush1.bf16.msra.mxu0 0
  %531 = vmatprep.mubr.bf16.mxu0 0
  %532 = vmatmul.mubr.bf16.gmra.mrb[0].mxu0 %v457
  %v533 = vpop.f32.mrb[0].mxu0
  %v534 = vadd.f32 0.0, %v533
  %v535 = vpop.f32.mrb[0].mxu0
  %v536 = vadd.f32 0.0, %v535
  %v537 = vpop.f32.mrb[0].mxu0
  %v538 = vpop.f32.mrb[0].mxu0
  %539 = vdwg.mxu0
  %v541 = vsel %vm318, %v456, 0
  %543 = vmatprep.subr.bf16.mxu0 %v311
  %544 = vmatpush1.bf16.msra.mxu0 %v310
  %545 = vmatprep.subr.bf16.mxu0 0
  %546 = vmatpush1.bf16.msra.mxu0 0
  %547 = vmatprep.subr.bf16.mxu0 0
  %548 = vmatpush1.bf16.msra.mxu0 0
  %549 = vmatprep.subr.bf16.mxu0 0
  %550 = vmatpush1.bf16.msra.mxu0 0
  %551 = vmatprep.subr.bf16.mxu0 0
  %552 = vmatpush1.bf16.msra.mxu0 0
  %553 = vmatprep.subr.bf16.mxu0 0
  %554 = vmatpush1.bf16.msra.mxu0 0
  %555 = vmatprep.subr.bf16.mxu0 0
  %556 = vmatpush1.bf16.msra.mxu0 0
  %557 = vmatprep.subr.bf16.mxu0 0
  %558 = vmatpush1.bf16.msra.mxu0 0
  %559 = vmatprep.subr.bf16.mxu0 0
  %560 = vmatpush1.bf16.msra.mxu0 0
  %561 = vmatprep.subr.bf16.mxu0 0
  %562 = vmatpush1.bf16.msra.mxu0 0
  %563 = vmatprep.subr.bf16.mxu0 0
  %564 = vmatpush1.bf16.msra.mxu0 0
  %565 = vmatprep.subr.bf16.mxu0 0
  %566 = vmatpush1.bf16.msra.mxu0 0
  %567 = vmatprep.subr.bf16.mxu0 0
  %568 = vmatpush1.bf16.msra.mxu0 0
  %569 = vmatprep.subr.bf16.mxu0 0
  %570 = vmatpush1.bf16.msra.mxu0 0
  %571 = vmatprep.subr.bf16.mxu0 0
  %572 = vmatpush1.bf16.msra.mxu0 0
  %573 = vmatprep.subr.bf16.mxu0 0
  %574 = vmatpush1.bf16.msra.mxu0 0
  %575 = vmatprep.mubr.bf16.mxu0 0
  %576 = vmatmul.mubr.bf16.gmra.mrb[0].mxu0 %v541
  %v577 = vpop.f32.mrb[0].mxu0
  %v578 = vadd.f32 %v493, %v577
  %v579 = vpop.f32.mrb[0].mxu0
  %v580 = vadd.f32 %v495, %v579
  %v581 = vpop.f32.mrb[0].mxu0
  %v582 = vpop.f32.mrb[0].mxu0
  %583 = vdwg.mxu0
  %584 = vmatprep.subr.bf16.mxu0 %v313
  %585 = vmatpush1.bf16.msra.mxu0 %v312
  %586 = vmatprep.subr.bf16.mxu0 0
  %587 = vmatpush1.bf16.msra.mxu0 0
  %588 = vmatprep.subr.bf16.mxu0 0
  %589 = vmatpush1.bf16.msra.mxu0 0
  %590 = vmatprep.subr.bf16.mxu0 0
  %591 = vmatpush1.bf16.msra.mxu0 0
  %592 = vmatprep.subr.bf16.mxu0 0
  %593 = vmatpush1.bf16.msra.mxu0 0
  %594 = vmatprep.subr.bf16.mxu0 0
  %595 = vmatpush1.bf16.msra.mxu0 0
  %596 = vmatprep.subr.bf16.mxu0 0
  %597 = vmatpush1.bf16.msra.mxu0 0
  %598 = vmatprep.subr.bf16.mxu0 0
  %599 = vmatpush1.bf16.msra.mxu0 0
  %600 = vmatprep.subr.bf16.mxu0 0
  %601 = vmatpush1.bf16.msra.mxu0 0
  %602 = vmatprep.subr.bf16.mxu0 0
  %603 = vmatpush1.bf16.msra.mxu0 0
  %604 = vmatprep.subr.bf16.mxu0 0
  %605 = vmatpush1.bf16.msra.mxu0 0
  %606 = vmatprep.subr.bf16.mxu0 0
  %607 = vmatpush1.bf16.msra.mxu0 0
  %608 = vmatprep.subr.bf16.mxu0 0
  %609 = vmatpush1.bf16.msra.mxu0 0
  %610 = vmatprep.subr.bf16.mxu0 0
  %611 = vmatpush1.bf16.msra.mxu0 0
  %612 = vmatprep.subr.bf16.mxu0 0
  %613 = vmatpush1.bf16.msra.mxu0 0
  %614 = vmatprep.subr.bf16.mxu0 0
  %615 = vmatpush1.bf16.msra.mxu0 0
  %616 = vmatprep.mubr.bf16.mxu0 0
  %617 = vmatmul.mubr.bf16.gmra.mrb[0].mxu0 %v541
  %v618 = vpop.f32.mrb[0].mxu0
  %v619 = vadd.f32 %v534, %v618
  %v620 = vpop.f32.mrb[0].mxu0
  %v621 = vadd.f32 %v536, %v620
  %v622 = vpop.f32.mrb[0].mxu0
  %v623 = vpop.f32.mrb[0].mxu0
  %624 = vdwg.mxu0
  %v625 = vadd.f32 %v578, %v409
  %v626 = vadd.f32 %v580, %v413
  %v627 = vadd.f32 %v619, %v417
  %v628 = vadd.f32 %v621, %v421
  %v629 = vxor.u32 %v625, 2147483648
  %v630 = vmul.f32 %v629, 1.442695
  %v631 = vpow.pop %v630
  %v632 = vadd.f32 %v631, 1.0
  %v633 = vrcp.pop %v632
  %v634 = vmul.f32 1.0, %v633
  %v635 = vxor.u32 %v626, 2147483648
  %v636 = vmul.f32 %v635, 1.442695
  %v637 = vpow.pop %v636
  %v638 = vadd.f32 %v637, 1.0
  %v639 = vrcp.pop %v638
  %v640 = vmul.f32 1.0, %v639
  %v641 = vtanh.pop %v627
  %v642 = vxor.u32 %v628, 2147483648
  %v643 = vmul.f32 %v642, 1.442695
  %v644 = vpow.pop %v643
  %v645 = vadd.f32 %v644, 1.0
  %v646 = vrcp.pop %v645
  %v647 = vmul.f32 1.0, %v646
  %v648 = vmul.f32 %v640, %v451
  %v649 = vmul.f32 %v634, %v641
  %v650 = vadd.f32 %v648, %v649
  %v651 = vtanh.pop %v650
  %v652 = vmul.f32 %v647, %v651
  %s653 = scalar_lea.vmem %s0, 4
  %v654 = vld [vmem:[%s653] sm:$0x3]
  %v655 = vpack.c.bf16 %v654, %v654
  %v656 = vpack.c.bf16 %v652, %v652
  %657 = vmatprep.subr.bf16.mxu0 %v153
  %658 = vmatpush1.bf16.msra.mxu0 %v152
  %659 = vmatprep.subr.bf16.mxu0 %v157
  %660 = vmatpush1.bf16.msra.mxu0 %v156
  %661 = vmatprep.subr.bf16.mxu0 %v161
  %662 = vmatpush1.bf16.msra.mxu0 %v160
  %663 = vmatprep.subr.bf16.mxu0 %v165
  %664 = vmatpush1.bf16.msra.mxu0 %v164
  %665 = vmatprep.subr.bf16.mxu0 %v169
  %666 = vmatpush1.bf16.msra.mxu0 %v168
  %667 = vmatprep.subr.bf16.mxu0 %v173
  %668 = vmatpush1.bf16.msra.mxu0 %v172
  %669 = vmatprep.subr.bf16.mxu0 %v177
  %670 = vmatpush1.bf16.msra.mxu0 %v176
  %671 = vmatprep.subr.bf16.mxu0 %v181
  %672 = vmatpush1.bf16.msra.mxu0 %v180
  %673 = vmatprep.subr.bf16.mxu0 0
  %674 = vmatpush1.bf16.msra.mxu0 0
  %675 = vmatprep.subr.bf16.mxu0 0
  %676 = vmatpush1.bf16.msra.mxu0 0
  %677 = vmatprep.subr.bf16.mxu0 0
  %678 = vmatpush1.bf16.msra.mxu0 0
  %679 = vmatprep.subr.bf16.mxu0 0
  %680 = vmatpush1.bf16.msra.mxu0 0
  %681 = vmatprep.subr.bf16.mxu0 0
  %682 = vmatpush1.bf16.msra.mxu0 0
  %683 = vmatprep.subr.bf16.mxu0 0
  %684 = vmatpush1.bf16.msra.mxu0 0
  %685 = vmatprep.subr.bf16.mxu0 0
  %686 = vmatpush1.bf16.msra.mxu0 0
  %687 = vmatprep.subr.bf16.mxu0 0
  %688 = vmatpush1.bf16.msra.mxu0 0
  %689 = vmatprep.mubr.bf16.mxu0 0
  %690 = vmatmul.mubr.bf16.gmra.mrb[0].mxu0 %v656
  %v691 = vpop.f32.mrb[0].mxu0
  %v692 = vadd.f32 0.0, %v691
  %v693 = vpop.f32.mrb[0].mxu0
  %v694 = vadd.f32 0.0, %v693
  %v695 = vpop.f32.mrb[0].mxu0
  %v696 = vpop.f32.mrb[0].mxu0
  %697 = vdwg.mxu0
  %698 = vmatprep.subr.bf16.mxu0 %v155
  %699 = vmatpush1.bf16.msra.mxu0 %v154
  %700 = vmatprep.subr.bf16.mxu0 %v159
  %701 = vmatpush1.bf16.msra.mxu0 %v158
  %702 = vmatprep.subr.bf16.mxu0 %v163
  %703 = vmatpush1.bf16.msra.mxu0 %v162
  %704 = vmatprep.subr.bf16.mxu0 %v167
  %705 = vmatpush1.bf16.msra.mxu0 %v166
  %706 = vmatprep.subr.bf16.mxu0 %v171
  %707 = vmatpush1.bf16.msra.mxu0 %v170
  %708 = vmatprep.subr.bf16.mxu0 %v175
  %709 = vmatpush1.bf16.msra.mxu0 %v174
  %710 = vmatprep.subr.bf16.mxu0 %v179
  %711 = vmatpush1.bf16.msra.mxu0 %v178
  %712 = vmatprep.subr.bf16.mxu0 %v183
  %713 = vmatpush1.bf16.msra.mxu0 %v182
  %714 = vmatprep.subr.bf16.mxu0 0
  %715 = vmatpush1.bf16.msra.mxu0 0
  %716 = vmatprep.subr.bf16.mxu0 0
  %717 = vmatpush1.bf16.msra.mxu0 0
  %718 = vmatprep.subr.bf16.mxu0 0
  %719 = vmatpush1.bf16.msra.mxu0 0
  %720 = vmatprep.subr.bf16.mxu0 0
  %721 = vmatpush1.bf16.msra.mxu0 0
  %722 = vmatprep.subr.bf16.mxu0 0
  %723 = vmatpush1.bf16.msra.mxu0 0
  %724 = vmatprep.subr.bf16.mxu0 0
  %725 = vmatpush1.bf16.msra.mxu0 0
  %726 = vmatprep.subr.bf16.mxu0 0
  %727 = vmatpush1.bf16.msra.mxu0 0
  %728 = vmatprep.subr.bf16.mxu0 0
  %729 = vmatpush1.bf16.msra.mxu0 0
  %730 = vmatprep.mubr.bf16.mxu0 0
  %731 = vmatmul.mubr.bf16.gmra.mrb[0].mxu0 %v656
  %v732 = vpop.f32.mrb[0].mxu0
  %v733 = vadd.f32 0.0, %v732
  %v734 = vpop.f32.mrb[0].mxu0
  %v735 = vadd.f32 0.0, %v734
  %v736 = vpop.f32.mrb[0].mxu0
  %v737 = vpop.f32.mrb[0].mxu0
  %738 = vdwg.mxu0
  %v740 = vsel %vm318, %v655, 0
  %742 = vmatprep.subr.bf16.mxu0 %v311
  %743 = vmatpush1.bf16.msra.mxu0 %v310
  %744 = vmatprep.subr.bf16.mxu0 0
  %745 = vmatpush1.bf16.msra.mxu0 0
  %746 = vmatprep.subr.bf16.mxu0 0
  %747 = vmatpush1.bf16.msra.mxu0 0
  %748 = vmatprep.subr.bf16.mxu0 0
  %749 = vmatpush1.bf16.msra.mxu0 0
  %750 = vmatprep.subr.bf16.mxu0 0
  %751 = vmatpush1.bf16.msra.mxu0 0
  %752 = vmatprep.subr.bf16.mxu0 0
  %753 = vmatpush1.bf16.msra.mxu0 0
  %754 = vmatprep.subr.bf16.mxu0 0
  %755 = vmatpush1.bf16.msra.mxu0 0
  %756 = vmatprep.subr.bf16.mxu0 0
  %757 = vmatpush1.bf16.msra.mxu0 0
  %758 = vmatprep.subr.bf16.mxu0 0
  %759 = vmatpush1.bf16.msra.mxu0 0
  %760 = vmatprep.subr.bf16.mxu0 0
  %761 = vmatpush1.bf16.msra.mxu0 0
  %762 = vmatprep.subr.bf16.mxu0 0
  %763 = vmatpush1.bf16.msra.mxu0 0
  %764 = vmatprep.subr.bf16.mxu0 0
  %765 = vmatpush1.bf16.msra.mxu0 0
  %766 = vmatprep.subr.bf16.mxu0 0
  %767 = vmatpush1.bf16.msra.mxu0 0
  %768 = vmatprep.subr.bf16.mxu0 0
  %769 = vmatpush1.bf16.msra.mxu0 0
  %770 = vmatprep.subr.bf16.mxu0 0
  %771 = vmatpush1.bf16.msra.mxu0 0
  %772 = vmatprep.subr.bf16.mxu0 0
  %773 = vmatpush1.bf16.msra.mxu0 0
  %774 = vmatprep.mubr.bf16.mxu0 0
  %775 = vmatmul.mubr.bf16.gmra.mrb[0].mxu0 %v740
  %v776 = vpop.f32.mrb[0].mxu0
  %v777 = vadd.f32 %v692, %v776
  %v778 = vpop.f32.mrb[0].mxu0
  %v779 = vadd.f32 %v694, %v778
  %v780 = vpop.f32.mrb[0].mxu0
  %v781 = vpop.f32.mrb[0].mxu0
  %782 = vdwg.mxu0
  %783 = vmatprep.subr.bf16.mxu0 %v313
  %784 = vmatpush1.bf16.msra.mxu0 %v312
  %785 = vmatprep.subr.bf16.mxu0 0
  %786 = vmatpush1.bf16.msra.mxu0 0
  %787 = vmatprep.subr.bf16.mxu0 0
  %788 = vmatpush1.bf16.msra.mxu0 0
  %789 = vmatprep.subr.bf16.mxu0 0
  %790 = vmatpush1.bf16.msra.mxu0 0
  %791 = vmatprep.subr.bf16.mxu0 0
  %792 = vmatpush1.bf16.msra.mxu0 0
  %793 = vmatprep.subr.bf16.mxu0 0
  %794 = vmatpush1.bf16.msra.mxu0 0
  %795 = vmatprep.subr.bf16.mxu0 0
  %796 = vmatpush1.bf16.msra.mxu0 0
  %797 = vmatprep.subr.bf16.mxu0 0
  %798 = vmatpush1.bf16.msra.mxu0 0
  %799 = vmatprep.subr.bf16.mxu0 0
  %800 = vmatpush1.bf16.msra.mxu0 0
  %801 = vmatprep.subr.bf16.mxu0 0
  %802 = vmatpush1.bf16.msra.mxu0 0
  %803 = vmatprep.subr.bf16.mxu0 0
  %804 = vmatpush1.bf16.msra.mxu0 0
  %805 = vmatprep.subr.bf16.mxu0 0
  %806 = vmatpush1.bf16.msra.mxu0 0
  %807 = vmatprep.subr.bf16.mxu0 0
  %808 = vmatpush1.bf16.msra.mxu0 0
  %809 = vmatprep.subr.bf16.mxu0 0
  %810 = vmatpush1.bf16.msra.mxu0 0
  %811 = vmatprep.subr.bf16.mxu0 0
  %812 = vmatpush1.bf16.msra.mxu0 0
  %813 = vmatprep.subr.bf16.mxu0 0
  %814 = vmatpush1.bf16.msra.mxu0 0
  %815 = vmatprep.mubr.bf16.mxu0 0
  %816 = vmatmul.mubr.bf16.gmra.mrb[0].mxu0 %v740
  %v817 = vpop.f32.mrb[0].mxu0
  %v818 = vadd.f32 %v733, %v817
  %v819 = vpop.f32.mrb[0].mxu0
  %v820 = vadd.f32 %v735, %v819
  %v821 = vpop.f32.mrb[0].mxu0
  %v822 = vpop.f32.mrb[0].mxu0
  %823 = vdwg.mxu0
  %v824 = vadd.f32 %v777, %v409
  %v825 = vadd.f32 %v779, %v413
  %v826 = vadd.f32 %v818, %v417
  %v827 = vadd.f32 %v820, %v421
  %v828 = vxor.u32 %v824, 2147483648
  %v829 = vmul.f32 %v828, 1.442695
  %v830 = vpow.pop %v829
  %v831 = vadd.f32 %v830, 1.0
  %v832 = vrcp.pop %v831
  %v833 = vmul.f32 1.0, %v832
  %v834 = vxor.u32 %v825, 2147483648
  %v835 = vmul.f32 %v834, 1.442695
  %v836 = vpow.pop %v835
  %v837 = vadd.f32 %v836, 1.0
  %v838 = vrcp.pop %v837
  %v839 = vmul.f32 1.0, %v838
  %v840 = vtanh.pop %v826
  %v841 = vxor.u32 %v827, 2147483648
  %v842 = vmul.f32 %v841, 1.442695
  %v843 = vpow.pop %v842
  %v844 = vadd.f32 %v843, 1.0
  %v845 = vrcp.pop %v844
  %v846 = vmul.f32 1.0, %v845
  %v847 = vmul.f32 %v839, %v650
  %v848 = vmul.f32 %v833, %v840
  %v849 = vadd.f32 %v847, %v848
  %v850 = vtanh.pop %v849
  %v851 = vmul.f32 %v846, %v850
  %s852 = scalar_lea.vmem %s0, 6
  %v853 = vld [vmem:[%s852] sm:$0x3]
  %v854 = vpack.c.bf16 %v853, %v853
  %v855 = vpack.c.bf16 %v851, %v851
  %856 = vmatprep.subr.bf16.mxu0 %v153
  %857 = vmatpush1.bf16.msra.mxu0 %v152
  %858 = vmatprep.subr.bf16.mxu0 %v157
  %859 = vmatpush1.bf16.msra.mxu0 %v156
  %860 = vmatprep.subr.bf16.mxu0 %v161
  %861 = vmatpush1.bf16.msra.mxu0 %v160
  %862 = vmatprep.subr.bf16.mxu0 %v165
  %863 = vmatpush1.bf16.msra.mxu0 %v164
  %864 = vmatprep.subr.bf16.mxu0 %v169
  %865 = vmatpush1.bf16.msra.mxu0 %v168
  %866 = vmatprep.subr.bf16.mxu0 %v173
  %867 = vmatpush1.bf16.msra.mxu0 %v172
  %868 = vmatprep.subr.bf16.mxu0 %v177
  %869 = vmatpush1.bf16.msra.mxu0 %v176
  %870 = vmatprep.subr.bf16.mxu0 %v181
  %871 = vmatpush1.bf16.msra.mxu0 %v180
  %872 = vmatprep.subr.bf16.mxu0 0
  %873 = vmatpush1.bf16.msra.mxu0 0
  %874 = vmatprep.subr.bf16.mxu0 0
  %875 = vmatpush1.bf16.msra.mxu0 0
  %876 = vmatprep.subr.bf16.mxu0 0
  %877 = vmatpush1.bf16.msra.mxu0 0
  %878 = vmatprep.subr.bf16.mxu0 0
  %879 = vmatpush1.bf16.msra.mxu0 0
  %880 = vmatprep.subr.bf16.mxu0 0
  %881 = vmatpush1.bf16.msra.mxu0 0
  %882 = vmatprep.subr.bf16.mxu0 0
  %883 = vmatpush1.bf16.msra.mxu0 0
  %884 = vmatprep.subr.bf16.mxu0 0
  %885 = vmatpush1.bf16.msra.mxu0 0
  %886 = vmatprep.subr.bf16.mxu0 0
  %887 = vmatpush1.bf16.msra.mxu0 0
  %888 = vmatprep.mubr.bf16.mxu0 0
  %889 = vmatmul.mubr.bf16.gmra.mrb[0].mxu0 %v855
  %v890 = vpop.f32.mrb[0].mxu0
  %v891 = vadd.f32 0.0, %v890
  %v892 = vpop.f32.mrb[0].mxu0
  %v893 = vadd.f32 0.0, %v892
  %v894 = vpop.f32.mrb[0].mxu0
  %v895 = vpop.f32.mrb[0].mxu0
  %896 = vdwg.mxu0
  %897 = vmatprep.subr.bf16.mxu0 %v155
  %898 = vmatpush1.bf16.msra.mxu0 %v154
  %899 = vmatprep.subr.bf16.mxu0 %v159
  %900 = vmatpush1.bf16.msra.mxu0 %v158
  %901 = vmatprep.subr.bf16.mxu0 %v163
  %902 = vmatpush1.bf16.msra.mxu0 %v162
  %903 = vmatprep.subr.bf16.mxu0 %v167
  %904 = vmatpush1.bf16.msra.mxu0 %v166
  %905 = vmatprep.subr.bf16.mxu0 %v171
  %906 = vmatpush1.bf16.msra.mxu0 %v170
  %907 = vmatprep.subr.bf16.mxu0 %v175
  %908 = vmatpush1.bf16.msra.mxu0 %v174
  %909 = vmatprep.subr.bf16.mxu0 %v179
  %910 = vmatpush1.bf16.msra.mxu0 %v178
  %911 = vmatprep.subr.bf16.mxu0 %v183
  %912 = vmatpush1.bf16.msra.mxu0 %v182
  %913 = vmatprep.subr.bf16.mxu0 0
  %914 = vmatpush1.bf16.msra.mxu0 0
  %915 = vmatprep.subr.bf16.mxu0 0
  %916 = vmatpush1.bf16.msra.mxu0 0
  %917 = vmatprep.subr.bf16.mxu0 0
  %918 = vmatpush1.bf16.msra.mxu0 0
  %919 = vmatprep.subr.bf16.mxu0 0
  %920 = vmatpush1.bf16.msra.mxu0 0
  %921 = vmatprep.subr.bf16.mxu0 0
  %922 = vmatpush1.bf16.msra.mxu0 0
  %923 = vmatprep.subr.bf16.mxu0 0
  %924 = vmatpush1.bf16.msra.mxu0 0
  %925 = vmatprep.subr.bf16.mxu0 0
  %926 = vmatpush1.bf16.msra.mxu0 0
  %927 = vmatprep.subr.bf16.mxu0 0
  %928 = vmatpush1.bf16.msra.mxu0 0
  %929 = vmatprep.mubr.bf16.mxu0 0
  %930 = vmatmul.mubr.bf16.gmra.mrb[0].mxu0 %v855
  %v931 = vpop.f32.mrb[0].mxu0
  %v932 = vadd.f32 0.0, %v931
  %v933 = vpop.f32.mrb[0].mxu0
  %v934 = vadd.f32 0.0, %v933
  %v935 = vpop.f32.mrb[0].mxu0
  %v936 = vpop.f32.mrb[0].mxu0
  %937 = vdwg.mxu0
  %v939 = vsel %vm318, %v854, 0
  %941 = vmatprep.subr.bf16.mxu0 %v311
  %942 = vmatpush1.bf16.msra.mxu0 %v310
  %943 = vmatprep.subr.bf16.mxu0 0
  %944 = vmatpush1.bf16.msra.mxu0 0
  %945 = vmatprep.subr.bf16.mxu0 0
  %946 = vmatpush1.bf16.msra.mxu0 0
  %947 = vmatprep.subr.bf16.mxu0 0
  %948 = vmatpush1.bf16.msra.mxu0 0
  %949 = vmatprep.subr.bf16.mxu0 0
  %950 = vmatpush1.bf16.msra.mxu0 0
  %951 = vmatprep.subr.bf16.mxu0 0
  %952 = vmatpush1.bf16.msra.mxu0 0
  %953 = vmatprep.subr.bf16.mxu0 0
  %954 = vmatpush1.bf16.msra.mxu0 0
  %955 = vmatprep.subr.bf16.mxu0 0
  %956 = vmatpush1.bf16.msra.mxu0 0
  %957 = vmatprep.subr.bf16.mxu0 0
  %958 = vmatpush1.bf16.msra.mxu0 0
  %959 = vmatprep.subr.bf16.mxu0 0
  %960 = vmatpush1.bf16.msra.mxu0 0
  %961 = vmatprep.subr.bf16.mxu0 0
  %962 = vmatpush1.bf16.msra.mxu0 0
  %963 = vmatprep.subr.bf16.mxu0 0
  %964 = vmatpush1.bf16.msra.mxu0 0
  %965 = vmatprep.subr.bf16.mxu0 0
  %966 = vmatpush1.bf16.msra.mxu0 0
  %967 = vmatprep.subr.bf16.mxu0 0
  %968 = vmatpush1.bf16.msra.mxu0 0
  %969 = vmatprep.subr.bf16.mxu0 0
  %970 = vmatpush1.bf16.msra.mxu0 0
  %971 = vmatprep.subr.bf16.mxu0 0
  %972 = vmatpush1.bf16.msra.mxu0 0
  %973 = vmatprep.mubr.bf16.mxu0 0
  %974 = vmatmul.mubr.bf16.gmra.mrb[0].mxu0 %v939
  %v975 = vpop.f32.mrb[0].mxu0
  %v976 = vadd.f32 %v891, %v975
  %v977 = vpop.f32.mrb[0].mxu0
  %v978 = vadd.f32 %v893, %v977
  %v979 = vpop.f32.mrb[0].mxu0
  %v980 = vpop.f32.mrb[0].mxu0
  %981 = vdwg.mxu0
  %982 = vmatprep.subr.bf16.mxu0 %v313
  %983 = vmatpush1.bf16.msra.mxu0 %v312
  %984 = vmatprep.subr.bf16.mxu0 0
  %985 = vmatpush1.bf16.msra.mxu0 0
  %986 = vmatprep.subr.bf16.mxu0 0
  %987 = vmatpush1.bf16.msra.mxu0 0
  %988 = vmatprep.subr.bf16.mxu0 0
  %989 = vmatpush1.bf16.msra.mxu0 0
  %990 = vmatprep.subr.bf16.mxu0 0
  %991 = vmatpush1.bf16.msra.mxu0 0
  %992 = vmatprep.subr.bf16.mxu0 0
  %993 = vmatpush1.bf16.msra.mxu0 0
  %994 = vmatprep.subr.bf16.mxu0 0
  %995 = vmatpush1.bf16.msra.mxu0 0
  %996 = vmatprep.subr.bf16.mxu0 0
  %997 = vmatpush1.bf16.msra.mxu0 0
  %998 = vmatprep.subr.bf16.mxu0 0
  %999 = vmatpush1.bf16.msra.mxu0 0
  %1000 = vmatprep.subr.bf16.mxu0 0
  %1001 = vmatpush1.bf16.msra.mxu0 0
  %1002 = vmatprep.subr.bf16.mxu0 0
  %1003 = vmatpush1.bf16.msra.mxu0 0
  %1004 = vmatprep.subr.bf16.mxu0 0
  %1005 = vmatpush1.bf16.msra.mxu0 0
  %1006 = vmatprep.subr.bf16.mxu0 0
  %1007 = vmatpush1.bf16.msra.mxu0 0
  %1008 = vmatprep.subr.bf16.mxu0 0
  %1009 = vmatpush1.bf16.msra.mxu0 0
  %1010 = vmatprep.subr.bf16.mxu0 0
  %1011 = vmatpush1.bf16.msra.mxu0 0
  %1012 = vmatprep.subr.bf16.mxu0 0
  %1013 = vmatpush1.bf16.msra.mxu0 0
  %1014 = vmatprep.mubr.bf16.mxu0 0
  %1015 = vmatmul.mubr.bf16.gmra.mrb[0].mxu0 %v939
  %v1016 = vpop.f32.mrb[0].mxu0
  %v1017 = vadd.f32 %v932, %v1016
  %v1018 = vpop.f32.mrb[0].mxu0
  %v1019 = vadd.f32 %v934, %v1018
  %v1020 = vpop.f32.mrb[0].mxu0
  %v1021 = vpop.f32.mrb[0].mxu0
  %1022 = vdwg.mxu0
  %v1023 = vadd.f32 %v976, %v409
  %v1024 = vadd.f32 %v978, %v413
  %v1025 = vadd.f32 %v1017, %v417
  %v1026 = vadd.f32 %v1019, %v421
  %v1027 = vxor.u32 %v1023, 2147483648
  %v1028 = vmul.f32 %v1027, 1.442695
  %v1029 = vpow.pop %v1028
  %v1030 = vadd.f32 %v1029, 1.0
  %v1031 = vrcp.pop %v1030
  %v1032 = vmul.f32 1.0, %v1031
  %v1033 = vxor.u32 %v1024, 2147483648
  %v1034 = vmul.f32 %v1033, 1.442695
  %v1035 = vpow.pop %v1034
  %v1036 = vadd.f32 %v1035, 1.0
  %v1037 = vrcp.pop %v1036
  %v1038 = vmul.f32 1.0, %v1037
  %v1039 = vtanh.pop %v1025
  %v1040 = vxor.u32 %v1026, 2147483648
  %v1041 = vmul.f32 %v1040, 1.442695
  %v1042 = vpow.pop %v1041
  %v1043 = vadd.f32 %v1042, 1.0
  %v1044 = vrcp.pop %v1043
  %v1045 = vmul.f32 1.0, %v1044
  %v1046 = vmul.f32 %v1038, %v849
  %v1047 = vmul.f32 %v1032, %v1039
  %v1048 = vadd.f32 %v1046, %v1047
  %v1049 = vtanh.pop %v1048
  %v1050 = vmul.f32 %v1045, %v1049
  %s1051 = scalar_lea.vmem %s0, 8
  %v1052 = vld [vmem:[%s1051] sm:$0x3]
  %v1053 = vpack.c.bf16 %v1052, %v1052
  %v1054 = vpack.c.bf16 %v1050, %v1050
  %1055 = vmatprep.subr.bf16.mxu0 %v153
  %1056 = vmatpush1.bf16.msra.mxu0 %v152
  %1057 = vmatprep.subr.bf16.mxu0 %v157
  %1058 = vmatpush1.bf16.msra.mxu0 %v156
  %1059 = vmatprep.subr.bf16.mxu0 %v161
  %1060 = vmatpush1.bf16.msra.mxu0 %v160
  %1061 = vmatprep.subr.bf16.mxu0 %v165
  %1062 = vmatpush1.bf16.msra.mxu0 %v164
  %1063 = vmatprep.subr.bf16.mxu0 %v169
  %1064 = vmatpush1.bf16.msra.mxu0 %v168
  %1065 = vmatprep.subr.bf16.mxu0 %v173
  %1066 = vmatpush1.bf16.msra.mxu0 %v172
  %1067 = vmatprep.subr.bf16.mxu0 %v177
  %1068 = vmatpush1.bf16.msra.mxu0 %v176
  %1069 = vmatprep.subr.bf16.mxu0 %v181
  %1070 = vmatpush1.bf16.msra.mxu0 %v180
  %1071 = vmatprep.subr.bf16.mxu0 0
  %1072 = vmatpush1.bf16.msra.mxu0 0
  %1073 = vmatprep.subr.bf16.mxu0 0
  %1074 = vmatpush1.bf16.msra.mxu0 0
  %1075 = vmatprep.subr.bf16.mxu0 0
  %1076 = vmatpush1.bf16.msra.mxu0 0
  %1077 = vmatprep.subr.bf16.mxu0 0
  %1078 = vmatpush1.bf16.msra.mxu0 0
  %1079 = vmatprep.subr.bf16.mxu0 0
  %1080 = vmatpush1.bf16.msra.mxu0 0
  %1081 = vmatprep.subr.bf16.mxu0 0
  %1082 = vmatpush1.bf16.msra.mxu0 0
  %1083 = vmatprep.subr.bf16.mxu0 0
  %1084 = vmatpush1.bf16.msra.mxu0 0
  %1085 = vmatprep.subr.bf16.mxu0 0
  %1086 = vmatpush1.bf16.msra.mxu0 0
  %1087 = vmatprep.mubr.bf16.mxu0 0
  %1088 = vmatmul.mubr.bf16.gmra.mrb[0].mxu0 %v1054
  %v1089 = vpop.f32.mrb[0].mxu0
  %v1090 = vadd.f32 0.0, %v1089
  %v1091 = vpop.f32.mrb[0].mxu0
  %v1092 = vadd.f32 0.0, %v1091
  %v1093 = vpop.f32.mrb[0].mxu0
  %v1094 = vpop.f32.mrb[0].mxu0
  %1095 = vdwg.mxu0
  %1096 = vmatprep.subr.bf16.mxu0 %v155
  %1097 = vmatpush1.bf16.msra.mxu0 %v154
  %1098 = vmatprep.subr.bf16.mxu0 %v159
  %1099 = vmatpush1.bf16.msra.mxu0 %v158
  %1100 = vmatprep.subr.bf16.mxu0 %v163
  %1101 = vmatpush1.bf16.msra.mxu0 %v162
  %1102 = vmatprep.subr.bf16.mxu0 %v167
  %1103 = vmatpush1.bf16.msra.mxu0 %v166
  %1104 = vmatprep.subr.bf16.mxu0 %v171
  %1105 = vmatpush1.bf16.msra.mxu0 %v170
  %1106 = vmatprep.subr.bf16.mxu0 %v175
  %1107 = vmatpush1.bf16.msra.mxu0 %v174
  %1108 = vmatprep.subr.bf16.mxu0 %v179
  %1109 = vmatpush1.bf16.msra.mxu0 %v178
  %1110 = vmatprep.subr.bf16.mxu0 %v183
  %1111 = vmatpush1.bf16.msra.mxu0 %v182
  %1112 = vmatprep.subr.bf16.mxu0 0
  %1113 = vmatpush1.bf16.msra.mxu0 0
  %1114 = vmatprep.subr.bf16.mxu0 0
  %1115 = vmatpush1.bf16.msra.mxu0 0
  %1116 = vmatprep.subr.bf16.mxu0 0
  %1117 = vmatpush1.bf16.msra.mxu0 0
  %1118 = vmatprep.subr.bf16.mxu0 0
  %1119 = vmatpush1.bf16.msra.mxu0 0
  %1120 = vmatprep.subr.bf16.mxu0 0
  %1121 = vmatpush1.bf16.msra.mxu0 0
  %1122 = vmatprep.subr.bf16.mxu0 0
  %1123 = vmatpush1.bf16.msra.mxu0 0
  %1124 = vmatprep.subr.bf16.mxu0 0
  %1125 = vmatpush1.bf16.msra.mxu0 0
  %1126 = vmatprep.subr.bf16.mxu0 0
  %1127 = vmatpush1.bf16.msra.mxu0 0
  %1128 = vmatprep.mubr.bf16.mxu0 0
  %1129 = vmatmul.mubr.bf16.gmra.mrb[0].mxu0 %v1054
  %v1130 = vpop.f32.mrb[0].mxu0
  %v1131 = vadd.f32 0.0, %v1130
  %v1132 = vpop.f32.mrb[0].mxu0
  %v1133 = vadd.f32 0.0, %v1132
  %v1134 = vpop.f32.mrb[0].mxu0
  %v1135 = vpop.f32.mrb[0].mxu0
  %1136 = vdwg.mxu0
  %v1138 = vsel %vm318, %v1053, 0
  %1140 = vmatprep.subr.bf16.mxu0 %v311
  %1141 = vmatpush1.bf16.msra.mxu0 %v310
  %1142 = vmatprep.subr.bf16.mxu0 0
  %1143 = vmatpush1.bf16.msra.mxu0 0
  %1144 = vmatprep.subr.bf16.mxu0 0
  %1145 = vmatpush1.bf16.msra.mxu0 0
  %1146 = vmatprep.subr.bf16.mxu0 0
  %1147 = vmatpush1.bf16.msra.mxu0 0
  %1148 = vmatprep.subr.bf16.mxu0 0
  %1149 = vmatpush1.bf16.msra.mxu0 0
  %1150 = vmatprep.subr.bf16.mxu0 0
  %1151 = vmatpush1.bf16.msra.mxu0 0
  %1152 = vmatprep.subr.bf16.mxu0 0
  %1153 = vmatpush1.bf16.msra.mxu0 0
  %1154 = vmatprep.subr.bf16.mxu0 0
  %1155 = vmatpush1.bf16.msra.mxu0 0
  %1156 = vmatprep.subr.bf16.mxu0 0
  %1157 = vmatpush1.bf16.msra.mxu0 0
  %1158 = vmatprep.subr.bf16.mxu0 0
  %1159 = vmatpush1.bf16.msra.mxu0 0
  %1160 = vmatprep.subr.bf16.mxu0 0
  %1161 = vmatpush1.bf16.msra.mxu0 0
  %1162 = vmatprep.subr.bf16.mxu0 0
  %1163 = vmatpush1.bf16.msra.mxu0 0
  %1164 = vmatprep.subr.bf16.mxu0 0
  %1165 = vmatpush1.bf16.msra.mxu0 0
  %1166 = vmatprep.subr.bf16.mxu0 0
  %1167 = vmatpush1.bf16.msra.mxu0 0
  %1168 = vmatprep.subr.bf16.mxu0 0
  %1169 = vmatpush1.bf16.msra.mxu0 0
  %1170 = vmatprep.subr.bf16.mxu0 0
  %1171 = vmatpush1.bf16.msra.mxu0 0
  %1172 = vmatprep.mubr.bf16.mxu0 0
  %1173 = vmatmul.mubr.bf16.gmra.mrb[0].mxu0 %v1138
  %v1174 = vpop.f32.mrb[0].mxu0
  %v1175 = vadd.f32 %v1090, %v1174
  %v1176 = vpop.f32.mrb[0].mxu0
  %v1177 = vadd.f32 %v1092, %v1176
  %v1178 = vpop.f32.mrb[0].mxu0
  %v1179 = vpop.f32.mrb[0].mxu0
  %1180 = vdwg.mxu0
  %1181 = vmatprep.subr.bf16.mxu0 %v313
  %1182 = vmatpush1.bf16.msra.mxu0 %v312
  %1183 = vmatprep.subr.bf16.mxu0 0
  %1184 = vmatpush1.bf16.msra.mxu0 0
  %1185 = vmatprep.subr.bf16.mxu0 0
  %1186 = vmatpush1.bf16.msra.mxu0 0
  %1187 = vmatprep.subr.bf16.mxu0 0
  %1188 = vmatpush1.bf16.msra.mxu0 0
  %1189 = vmatprep.subr.bf16.mxu0 0
  %1190 = vmatpush1.bf16.msra.mxu0 0
  %1191 = vmatprep.subr.bf16.mxu0 0
  %1192 = vmatpush1.bf16.msra.mxu0 0
  %1193 = vmatprep.subr.bf16.mxu0 0
  %1194 = vmatpush1.bf16.msra.mxu0 0
  %1195 = vmatprep.subr.bf16.mxu0 0
  %1196 = vmatpush1.bf16.msra.mxu0 0
  %1197 = vmatprep.subr.bf16.mxu0 0
  %1198 = vmatpush1.bf16.msra.mxu0 0
  %1199 = vmatprep.subr.bf16.mxu0 0
  %1200 = vmatpush1.bf16.msra.mxu0 0
  %1201 = vmatprep.subr.bf16.mxu0 0
  %1202 = vmatpush1.bf16.msra.mxu0 0
  %1203 = vmatprep.subr.bf16.mxu0 0
  %1204 = vmatpush1.bf16.msra.mxu0 0
  %1205 = vmatprep.subr.bf16.mxu0 0
  %1206 = vmatpush1.bf16.msra.mxu0 0
  %1207 = vmatprep.subr.bf16.mxu0 0
  %1208 = vmatpush1.bf16.msra.mxu0 0
  %1209 = vmatprep.subr.bf16.mxu0 0
  %1210 = vmatpush1.bf16.msra.mxu0 0
  %1211 = vmatprep.subr.bf16.mxu0 0
  %1212 = vmatpush1.bf16.msra.mxu0 0
  %1213 = vmatprep.mubr.bf16.mxu0 0
  %1214 = vmatmul.mubr.bf16.gmra.mrb[0].mxu0 %v1138
  %v1215 = vpop.f32.mrb[0].mxu0
  %v1216 = vadd.f32 %v1131, %v1215
  %v1217 = vpop.f32.mrb[0].mxu0
  %v1218 = vadd.f32 %v1133, %v1217
  %v1219 = vpop.f32.mrb[0].mxu0
  %v1220 = vpop.f32.mrb[0].mxu0
  %1221 = vdwg.mxu0
  %v1222 = vadd.f32 %v1175, %v409
  %v1223 = vadd.f32 %v1177, %v413
  %v1224 = vadd.f32 %v1216, %v417
  %v1225 = vadd.f32 %v1218, %v421
  %v1226 = vxor.u32 %v1222, 2147483648
  %v1227 = vmul.f32 %v1226, 1.442695
  %v1228 = vpow.pop %v1227
  %v1229 = vadd.f32 %v1228, 1.0
  %v1230 = vrcp.pop %v1229
  %v1231 = vmul.f32 1.0, %v1230
  %v1232 = vxor.u32 %v1223, 2147483648
  %v1233 = vmul.f32 %v1232, 1.442695
  %v1234 = vpow.pop %v1233
  %v1235 = vadd.f32 %v1234, 1.0
  %v1236 = vrcp.pop %v1235
  %v1237 = vmul.f32 1.0, %v1236
  %v1238 = vtanh.pop %v1224
  %v1239 = vxor.u32 %v1225, 2147483648
  %v1240 = vmul.f32 %v1239, 1.442695
  %v1241 = vpow.pop %v1240
  %v1242 = vadd.f32 %v1241, 1.0
  %v1243 = vrcp.pop %v1242
  %v1244 = vmul.f32 1.0, %v1243
  %v1245 = vmul.f32 %v1237, %v1048
  %v1246 = vmul.f32 %v1231, %v1238
  %v1247 = vadd.f32 %v1245, %v1246
  %v1248 = vtanh.pop %v1247
  %v1249 = vmul.f32 %v1244, %v1248
  %s1250 = scalar_lea.vmem %s0, 10
  %v1251 = vld [vmem:[%s1250] sm:$0x3]
  %v1252 = vpack.c.bf16 %v1251, %v1251
  %v1253 = vpack.c.bf16 %v1249, %v1249
  %1254 = vmatprep.subr.bf16.mxu0 %v153
  %1255 = vmatpush1.bf16.msra.mxu0 %v152
  %1256 = vmatprep.subr.bf16.mxu0 %v157
  %1257 = vmatpush1.bf16.msra.mxu0 %v156
  %1258 = vmatprep.subr.bf16.mxu0 %v161
  %1259 = vmatpush1.bf16.msra.mxu0 %v160
  %1260 = vmatprep.subr.bf16.mxu0 %v165
  %1261 = vmatpush1.bf16.msra.mxu0 %v164
  %1262 = vmatprep.subr.bf16.mxu0 %v169
  %1263 = vmatpush1.bf16.msra.mxu0 %v168
  %1264 = vmatprep.subr.bf16.mxu0 %v173
  %1265 = vmatpush1.bf16.msra.mxu0 %v172
  %1266 = vmatprep.subr.bf16.mxu0 %v177
  %1267 = vmatpush1.bf16.msra.mxu0 %v176
  %1268 = vmatprep.subr.bf16.mxu0 %v181
  %1269 = vmatpush1.bf16.msra.mxu0 %v180
  %1270 = vmatprep.subr.bf16.mxu0 0
  %1271 = vmatpush1.bf16.msra.mxu0 0
  %1272 = vmatprep.subr.bf16.mxu0 0
  %1273 = vmatpush1.bf16.msra.mxu0 0
  %1274 = vmatprep.subr.bf16.mxu0 0
  %1275 = vmatpush1.bf16.msra.mxu0 0
  %1276 = vmatprep.subr.bf16.mxu0 0
  %1277 = vmatpush1.bf16.msra.mxu0 0
  %1278 = vmatprep.subr.bf16.mxu0 0
  %1279 = vmatpush1.bf16.msra.mxu0 0
  %1280 = vmatprep.subr.bf16.mxu0 0
  %1281 = vmatpush1.bf16.msra.mxu0 0
  %1282 = vmatprep.subr.bf16.mxu0 0
  %1283 = vmatpush1.bf16.msra.mxu0 0
  %1284 = vmatprep.subr.bf16.mxu0 0
  %1285 = vmatpush1.bf16.msra.mxu0 0
  %1286 = vmatprep.mubr.bf16.mxu0 0
  %1287 = vmatmul.mubr.bf16.gmra.mrb[0].mxu0 %v1253
  %v1288 = vpop.f32.mrb[0].mxu0
  %v1289 = vadd.f32 0.0, %v1288
  %v1290 = vpop.f32.mrb[0].mxu0
  %v1291 = vadd.f32 0.0, %v1290
  %v1292 = vpop.f32.mrb[0].mxu0
  %v1293 = vpop.f32.mrb[0].mxu0
  %1294 = vdwg.mxu0
  %1295 = vmatprep.subr.bf16.mxu0 %v155
  %1296 = vmatpush1.bf16.msra.mxu0 %v154
  %1297 = vmatprep.subr.bf16.mxu0 %v159
  %1298 = vmatpush1.bf16.msra.mxu0 %v158
  %1299 = vmatprep.subr.bf16.mxu0 %v163
  %1300 = vmatpush1.bf16.msra.mxu0 %v162
  %1301 = vmatprep.subr.bf16.mxu0 %v167
  %1302 = vmatpush1.bf16.msra.mxu0 %v166
  %1303 = vmatprep.subr.bf16.mxu0 %v171
  %1304 = vmatpush1.bf16.msra.mxu0 %v170
  %1305 = vmatprep.subr.bf16.mxu0 %v175
  %1306 = vmatpush1.bf16.msra.mxu0 %v174
  %1307 = vmatprep.subr.bf16.mxu0 %v179
  %1308 = vmatpush1.bf16.msra.mxu0 %v178
  %1309 = vmatprep.subr.bf16.mxu0 %v183
  %1310 = vmatpush1.bf16.msra.mxu0 %v182
  %1311 = vmatprep.subr.bf16.mxu0 0
  %1312 = vmatpush1.bf16.msra.mxu0 0
  %1313 = vmatprep.subr.bf16.mxu0 0
  %1314 = vmatpush1.bf16.msra.mxu0 0
  %1315 = vmatprep.subr.bf16.mxu0 0
  %1316 = vmatpush1.bf16.msra.mxu0 0
  %1317 = vmatprep.subr.bf16.mxu0 0
  %1318 = vmatpush1.bf16.msra.mxu0 0
  %1319 = vmatprep.subr.bf16.mxu0 0
  %1320 = vmatpush1.bf16.msra.mxu0 0
  %1321 = vmatprep.subr.bf16.mxu0 0
  %1322 = vmatpush1.bf16.msra.mxu0 0
  %1323 = vmatprep.subr.bf16.mxu0 0
  %1324 = vmatpush1.bf16.msra.mxu0 0
  %1325 = vmatprep.subr.bf16.mxu0 0
  %1326 = vmatpush1.bf16.msra.mxu0 0
  %1327 = vmatprep.mubr.bf16.mxu0 0
  %1328 = vmatmul.mubr.bf16.gmra.mrb[0].mxu0 %v1253
  %v1329 = vpop.f32.mrb[0].mxu0
  %v1330 = vadd.f32 0.0, %v1329
  %v1331 = vpop.f32.mrb[0].mxu0
  %v1332 = vadd.f32 0.0, %v1331
  %v1333 = vpop.f32.mrb[0].mxu0
  %v1334 = vpop.f32.mrb[0].mxu0
  %1335 = vdwg.mxu0
  %v1337 = vsel %vm318, %v1252, 0
  %1339 = vmatprep.subr.bf16.mxu0 %v311
  %1340 = vmatpush1.bf16.msra.mxu0 %v310
  %1341 = vmatprep.subr.bf16.mxu0 0
  %1342 = vmatpush1.bf16.msra.mxu0 0
  %1343 = vmatprep.subr.bf16.mxu0 0
  %1344 = vmatpush1.bf16.msra.mxu0 0
  %1345 = vmatprep.subr.bf16.mxu0 0
  %1346 = vmatpush1.bf16.msra.mxu0 0
  %1347 = vmatprep.subr.bf16.mxu0 0
  %1348 = vmatpush1.bf16.msra.mxu0 0
  %1349 = vmatprep.subr.bf16.mxu0 0
  %1350 = vmatpush1.bf16.msra.mxu0 0
  %1351 = vmatprep.subr.bf16.mxu0 0
  %1352 = vmatpush1.bf16.msra.mxu0 0
  %1353 = vmatprep.subr.bf16.mxu0 0
  %1354 = vmatpush1.bf16.msra.mxu0 0
  %1355 = vmatprep.subr.bf16.mxu0 0
  %1356 = vmatpush1.bf16.msra.mxu0 0
  %1357 = vmatprep.subr.bf16.mxu0 0
  %1358 = vmatpush1.bf16.msra.mxu0 0
  %1359 = vmatprep.subr.bf16.mxu0 0
  %1360 = vmatpush1.bf16.msra.mxu0 0
  %1361 = vmatprep.subr.bf16.mxu0 0
  %1362 = vmatpush1.bf16.msra.mxu0 0
  %1363 = vmatprep.subr.bf16.mxu0 0
  %1364 = vmatpush1.bf16.msra.mxu0 0
  %1365 = vmatprep.subr.bf16.mxu0 0
  %1366 = vmatpush1.bf16.msra.mxu0 0
  %1367 = vmatprep.subr.bf16.mxu0 0
  %1368 = vmatpush1.bf16.msra.mxu0 0
  %1369 = vmatprep.subr.bf16.mxu0 0
  %1370 = vmatpush1.bf16.msra.mxu0 0
  %1371 = vmatprep.mubr.bf16.mxu0 0
  %1372 = vmatmul.mubr.bf16.gmra.mrb[0].mxu0 %v1337
  %v1373 = vpop.f32.mrb[0].mxu0
  %v1374 = vadd.f32 %v1289, %v1373
  %v1375 = vpop.f32.mrb[0].mxu0
  %v1376 = vadd.f32 %v1291, %v1375
  %v1377 = vpop.f32.mrb[0].mxu0
  %v1378 = vpop.f32.mrb[0].mxu0
  %1379 = vdwg.mxu0
  %1380 = vmatprep.subr.bf16.mxu0 %v313
  %1381 = vmatpush1.bf16.msra.mxu0 %v312
  %1382 = vmatprep.subr.bf16.mxu0 0
  %1383 = vmatpush1.bf16.msra.mxu0 0
  %1384 = vmatprep.subr.bf16.mxu0 0
  %1385 = vmatpush1.bf16.msra.mxu0 0
  %1386 = vmatprep.subr.bf16.mxu0 0
  %1387 = vmatpush1.bf16.msra.mxu0 0
  %1388 = vmatprep.subr.bf16.mxu0 0
  %1389 = vmatpush1.bf16.msra.mxu0 0
  %1390 = vmatprep.subr.bf16.mxu0 0
  %1391 = vmatpush1.bf16.msra.mxu0 0
  %1392 = vmatprep.subr.bf16.mxu0 0
  %1393 = vmatpush1.bf16.msra.mxu0 0
  %1394 = vmatprep.subr.bf16.mxu0 0
  %1395 = vmatpush1.bf16.msra.mxu0 0
  %1396 = vmatprep.subr.bf16.mxu0 0
  %1397 = vmatpush1.bf16.msra.mxu0 0
  %1398 = vmatprep.subr.bf16.mxu0 0
  %1399 = vmatpush1.bf16.msra.mxu0 0
  %1400 = vmatprep.subr.bf16.mxu0 0
  %1401 = vmatpush1.bf16.msra.mxu0 0
  %1402 = vmatprep.subr.bf16.mxu0 0
  %1403 = vmatpush1.bf16.msra.mxu0 0
  %1404 = vmatprep.subr.bf16.mxu0 0
  %1405 = vmatpush1.bf16.msra.mxu0 0
  %1406 = vmatprep.subr.bf16.mxu0 0
  %1407 = vmatpush1.bf16.msra.mxu0 0
  %1408 = vmatprep.subr.bf16.mxu0 0
  %1409 = vmatpush1.bf16.msra.mxu0 0
  %1410 = vmatprep.subr.bf16.mxu0 0
  %1411 = vmatpush1.bf16.msra.mxu0 0
  %1412 = vmatprep.mubr.bf16.mxu0 0
  %1413 = vmatmul.mubr.bf16.gmra.mrb[0].mxu0 %v1337
  %v1414 = vpop.f32.mrb[0].mxu0
  %v1415 = vadd.f32 %v1330, %v1414
  %v1416 = vpop.f32.mrb[0].mxu0
  %v1417 = vadd.f32 %v1332, %v1416
  %v1418 = vpop.f32.mrb[0].mxu0
  %v1419 = vpop.f32.mrb[0].mxu0
  %1420 = vdwg.mxu0
  %v1421 = vadd.f32 %v1374, %v409
  %v1422 = vadd.f32 %v1376, %v413
  %v1423 = vadd.f32 %v1415, %v417
  %v1424 = vadd.f32 %v1417, %v421
  %v1425 = vxor.u32 %v1421, 2147483648
  %v1426 = vmul.f32 %v1425, 1.442695
  %v1427 = vpow.pop %v1426
  %v1428 = vadd.f32 %v1427, 1.0
  %v1429 = vrcp.pop %v1428
  %v1430 = vmul.f32 1.0, %v1429
  %v1431 = vxor.u32 %v1422, 2147483648
  %v1432 = vmul.f32 %v1431, 1.442695
  %v1433 = vpow.pop %v1432
  %v1434 = vadd.f32 %v1433, 1.0
  %v1435 = vrcp.pop %v1434
  %v1436 = vmul.f32 1.0, %v1435
  %v1437 = vtanh.pop %v1423
  %v1438 = vxor.u32 %v1424, 2147483648
  %v1439 = vmul.f32 %v1438, 1.442695
  %v1440 = vpow.pop %v1439
  %v1441 = vadd.f32 %v1440, 1.0
  %v1442 = vrcp.pop %v1441
  %v1443 = vmul.f32 1.0, %v1442
  %v1444 = vmul.f32 %v1436, %v1247
  %v1445 = vmul.f32 %v1430, %v1437
  %v1446 = vadd.f32 %v1444, %v1445
  %v1447 = vtanh.pop %v1446
  %v1448 = vmul.f32 %v1443, %v1447
  %s1449 = scalar_lea.vmem %s0, 12
  %v1450 = vld [vmem:[%s1449] sm:$0x3]
  %v1451 = vpack.c.bf16 %v1450, %v1450
  %v1452 = vpack.c.bf16 %v1448, %v1448
  %1453 = vmatprep.subr.bf16.mxu0 %v153
  %1454 = vmatpush1.bf16.msra.mxu0 %v152
  %1455 = vmatprep.subr.bf16.mxu0 %v157
  %1456 = vmatpush1.bf16.msra.mxu0 %v156
  %1457 = vmatprep.subr.bf16.mxu0 %v161
  %1458 = vmatpush1.bf16.msra.mxu0 %v160
  %1459 = vmatprep.subr.bf16.mxu0 %v165
  %1460 = vmatpush1.bf16.msra.mxu0 %v164
  %1461 = vmatprep.subr.bf16.mxu0 %v169
  %1462 = vmatpush1.bf16.msra.mxu0 %v168
  %1463 = vmatprep.subr.bf16.mxu0 %v173
  %1464 = vmatpush1.bf16.msra.mxu0 %v172
  %1465 = vmatprep.subr.bf16.mxu0 %v177
  %1466 = vmatpush1.bf16.msra.mxu0 %v176
  %1467 = vmatprep.subr.bf16.mxu0 %v181
  %1468 = vmatpush1.bf16.msra.mxu0 %v180
  %1469 = vmatprep.subr.bf16.mxu0 0
  %1470 = vmatpush1.bf16.msra.mxu0 0
  %1471 = vmatprep.subr.bf16.mxu0 0
  %1472 = vmatpush1.bf16.msra.mxu0 0
  %1473 = vmatprep.subr.bf16.mxu0 0
  %1474 = vmatpush1.bf16.msra.mxu0 0
  %1475 = vmatprep.subr.bf16.mxu0 0
  %1476 = vmatpush1.bf16.msra.mxu0 0
  %1477 = vmatprep.subr.bf16.mxu0 0
  %1478 = vmatpush1.bf16.msra.mxu0 0
  %1479 = vmatprep.subr.bf16.mxu0 0
  %1480 = vmatpush1.bf16.msra.mxu0 0
  %1481 = vmatprep.subr.bf16.mxu0 0
  %1482 = vmatpush1.bf16.msra.mxu0 0
  %1483 = vmatprep.subr.bf16.mxu0 0
  %1484 = vmatpush1.bf16.msra.mxu0 0
  %1485 = vmatprep.mubr.bf16.mxu0 0
  %1486 = vmatmul.mubr.bf16.gmra.mrb[0].mxu0 %v1452
  %v1487 = vpop.f32.mrb[0].mxu0
  %v1488 = vadd.f32 0.0, %v1487
  %v1489 = vpop.f32.mrb[0].mxu0
  %v1490 = vadd.f32 0.0, %v1489
  %v1491 = vpop.f32.mrb[0].mxu0
  %v1492 = vpop.f32.mrb[0].mxu0
  %1493 = vdwg.mxu0
  %1494 = vmatprep.subr.bf16.mxu0 %v155
  %1495 = vmatpush1.bf16.msra.mxu0 %v154
  %1496 = vmatprep.subr.bf16.mxu0 %v159
  %1497 = vmatpush1.bf16.msra.mxu0 %v158
  %1498 = vmatprep.subr.bf16.mxu0 %v163
  %1499 = vmatpush1.bf16.msra.mxu0 %v162
  %1500 = vmatprep.subr.bf16.mxu0 %v167
  %1501 = vmatpush1.bf16.msra.mxu0 %v166
  %1502 = vmatprep.subr.bf16.mxu0 %v171
  %1503 = vmatpush1.bf16.msra.mxu0 %v170
  %1504 = vmatprep.subr.bf16.mxu0 %v175
  %1505 = vmatpush1.bf16.msra.mxu0 %v174
  %1506 = vmatprep.subr.bf16.mxu0 %v179
  %1507 = vmatpush1.bf16.msra.mxu0 %v178
  %1508 = vmatprep.subr.bf16.mxu0 %v183
  %1509 = vmatpush1.bf16.msra.mxu0 %v182
  %1510 = vmatprep.subr.bf16.mxu0 0
  %1511 = vmatpush1.bf16.msra.mxu0 0
  %1512 = vmatprep.subr.bf16.mxu0 0
  %1513 = vmatpush1.bf16.msra.mxu0 0
  %1514 = vmatprep.subr.bf16.mxu0 0
  %1515 = vmatpush1.bf16.msra.mxu0 0
  %1516 = vmatprep.subr.bf16.mxu0 0
  %1517 = vmatpush1.bf16.msra.mxu0 0
  %1518 = vmatprep.subr.bf16.mxu0 0
  %1519 = vmatpush1.bf16.msra.mxu0 0
  %1520 = vmatprep.subr.bf16.mxu0 0
  %1521 = vmatpush1.bf16.msra.mxu0 0
  %1522 = vmatprep.subr.bf16.mxu0 0
  %1523 = vmatpush1.bf16.msra.mxu0 0
  %1524 = vmatprep.subr.bf16.mxu0 0
  %1525 = vmatpush1.bf16.msra.mxu0 0
  %1526 = vmatprep.mubr.bf16.mxu0 0
  %1527 = vmatmul.mubr.bf16.gmra.mrb[0].mxu0 %v1452
  %v1528 = vpop.f32.mrb[0].mxu0
  %v1529 = vadd.f32 0.0, %v1528
  %v1530 = vpop.f32.mrb[0].mxu0
  %v1531 = vadd.f32 0.0, %v1530
  %v1532 = vpop.f32.mrb[0].mxu0
  %v1533 = vpop.f32.mrb[0].mxu0
  %1534 = vdwg.mxu0
  %v1536 = vsel %vm318, %v1451, 0
  %1538 = vmatprep.subr.bf16.mxu0 %v311
  %1539 = vmatpush1.bf16.msra.mxu0 %v310
  %1540 = vmatprep.subr.bf16.mxu0 0
  %1541 = vmatpush1.bf16.msra.mxu0 0
  %1542 = vmatprep.subr.bf16.mxu0 0
  %1543 = vmatpush1.bf16.msra.mxu0 0
  %1544 = vmatprep.subr.bf16.mxu0 0
  %1545 = vmatpush1.bf16.msra.mxu0 0
  %1546 = vmatprep.subr.bf16.mxu0 0
  %1547 = vmatpush1.bf16.msra.mxu0 0
  %1548 = vmatprep.subr.bf16.mxu0 0
  %1549 = vmatpush1.bf16.msra.mxu0 0
  %1550 = vmatprep.subr.bf16.mxu0 0
  %1551 = vmatpush1.bf16.msra.mxu0 0
  %1552 = vmatprep.subr.bf16.mxu0 0
  %1553 = vmatpush1.bf16.msra.mxu0 0
  %1554 = vmatprep.subr.bf16.mxu0 0
  %1555 = vmatpush1.bf16.msra.mxu0 0
  %1556 = vmatprep.subr.bf16.mxu0 0
  %1557 = vmatpush1.bf16.msra.mxu0 0
  %1558 = vmatprep.subr.bf16.mxu0 0
  %1559 = vmatpush1.bf16.msra.mxu0 0
  %1560 = vmatprep.subr.bf16.mxu0 0
  %1561 = vmatpush1.bf16.msra.mxu0 0
  %1562 = vmatprep.subr.bf16.mxu0 0
  %1563 = vmatpush1.bf16.msra.mxu0 0
  %1564 = vmatprep.subr.bf16.mxu0 0
  %1565 = vmatpush1.bf16.msra.mxu0 0
  %1566 = vmatprep.subr.bf16.mxu0 0
  %1567 = vmatpush1.bf16.msra.mxu0 0
  %1568 = vmatprep.subr.bf16.mxu0 0
  %1569 = vmatpush1.bf16.msra.mxu0 0
  %1570 = vmatprep.mubr.bf16.mxu0 0
  %1571 = vmatmul.mubr.bf16.gmra.mrb[0].mxu0 %v1536
  %v1572 = vpop.f32.mrb[0].mxu0
  %v1573 = vadd.f32 %v1488, %v1572
  %v1574 = vpop.f32.mrb[0].mxu0
  %v1575 = vadd.f32 %v1490, %v1574
  %v1576 = vpop.f32.mrb[0].mxu0
  %v1577 = vpop.f32.mrb[0].mxu0
  %1578 = vdwg.mxu0
  %1579 = vmatprep.subr.bf16.mxu0 %v313
  %1580 = vmatpush1.bf16.msra.mxu0 %v312
  %1581 = vmatprep.subr.bf16.mxu0 0
  %1582 = vmatpush1.bf16.msra.mxu0 0
  %1583 = vmatprep.subr.bf16.mxu0 0
  %1584 = vmatpush1.bf16.msra.mxu0 0
  %1585 = vmatprep.subr.bf16.mxu0 0
  %1586 = vmatpush1.bf16.msra.mxu0 0
  %1587 = vmatprep.subr.bf16.mxu0 0
  %1588 = vmatpush1.bf16.msra.mxu0 0
  %1589 = vmatprep.subr.bf16.mxu0 0
  %1590 = vmatpush1.bf16.msra.mxu0 0
  %1591 = vmatprep.subr.bf16.mxu0 0
  %1592 = vmatpush1.bf16.msra.mxu0 0
  %1593 = vmatprep.subr.bf16.mxu0 0
  %1594 = vmatpush1.bf16.msra.mxu0 0
  %1595 = vmatprep.subr.bf16.mxu0 0
  %1596 = vmatpush1.bf16.msra.mxu0 0
  %1597 = vmatprep.subr.bf16.mxu0 0
  %1598 = vmatpush1.bf16.msra.mxu0 0
  %1599 = vmatprep.subr.bf16.mxu0 0
  %1600 = vmatpush1.bf16.msra.mxu0 0
  %1601 = vmatprep.subr.bf16.mxu0 0
  %1602 = vmatpush1.bf16.msra.mxu0 0
  %1603 = vmatprep.subr.bf16.mxu0 0
  %1604 = vmatpush1.bf16.msra.mxu0 0
  %1605 = vmatprep.subr.bf16.mxu0 0
  %1606 = vmatpush1.bf16.msra.mxu0 0
  %1607 = vmatprep.subr.bf16.mxu0 0
  %1608 = vmatpush1.bf16.msra.mxu0 0
  %1609 = vmatprep.subr.bf16.mxu0 0
  %1610 = vmatpush1.bf16.msra.mxu0 0
  %1611 = vmatprep.mubr.bf16.mxu0 0
  %1612 = vmatmul.mubr.bf16.gmra.mrb[0].mxu0 %v1536
  %v1613 = vpop.f32.mrb[0].mxu0
  %v1614 = vadd.f32 %v1529, %v1613
  %v1615 = vpop.f32.mrb[0].mxu0
  %v1616 = vadd.f32 %v1531, %v1615
  %v1617 = vpop.f32.mrb[0].mxu0
  %v1618 = vpop.f32.mrb[0].mxu0
  %1619 = vdwg.mxu0
  %v1620 = vadd.f32 %v1573, %v409
  %v1621 = vadd.f32 %v1575, %v413
  %v1622 = vadd.f32 %v1614, %v417
  %v1623 = vadd.f32 %v1616, %v421
  %v1624 = vxor.u32 %v1620, 2147483648
  %v1625 = vmul.f32 %v1624, 1.442695
  %v1626 = vpow.pop %v1625
  %v1627 = vadd.f32 %v1626, 1.0
  %v1628 = vrcp.pop %v1627
  %v1629 = vmul.f32 1.0, %v1628
  %v1630 = vxor.u32 %v1621, 2147483648
  %v1631 = vmul.f32 %v1630, 1.442695
  %v1632 = vpow.pop %v1631
  %v1633 = vadd.f32 %v1632, 1.0
  %v1634 = vrcp.pop %v1633
  %v1635 = vmul.f32 1.0, %v1634
  %v1636 = vtanh.pop %v1622
  %v1637 = vxor.u32 %v1623, 2147483648
  %v1638 = vmul.f32 %v1637, 1.442695
  %v1639 = vpow.pop %v1638
  %v1640 = vadd.f32 %v1639, 1.0
  %v1641 = vrcp.pop %v1640
  %v1642 = vmul.f32 1.0, %v1641
  %v1643 = vmul.f32 %v1635, %v1446
  %v1644 = vmul.f32 %v1629, %v1636
  %v1645 = vadd.f32 %v1643, %v1644
  %v1646 = vtanh.pop %v1645
  %v1647 = vmul.f32 %v1642, %v1646
  %s1648 = scalar_lea.vmem %s0, 14
  %v1649 = vld [vmem:[%s1648] sm:$0x3]
  %v1650 = vpack.c.bf16 %v1649, %v1649
  %v1651 = vpack.c.bf16 %v1647, %v1647
  %1652 = vmatprep.subr.bf16.mxu0 %v153
  %1653 = vmatpush1.bf16.msra.mxu0 %v152
  %1654 = vmatprep.subr.bf16.mxu0 %v157
  %1655 = vmatpush1.bf16.msra.mxu0 %v156
  %1656 = vmatprep.subr.bf16.mxu0 %v161
  %1657 = vmatpush1.bf16.msra.mxu0 %v160
  %1658 = vmatprep.subr.bf16.mxu0 %v165
  %1659 = vmatpush1.bf16.msra.mxu0 %v164
  %1660 = vmatprep.subr.bf16.mxu0 %v169
  %1661 = vmatpush1.bf16.msra.mxu0 %v168
  %1662 = vmatprep.subr.bf16.mxu0 %v173
  %1663 = vmatpush1.bf16.msra.mxu0 %v172
  %1664 = vmatprep.subr.bf16.mxu0 %v177
  %1665 = vmatpush1.bf16.msra.mxu0 %v176
  %1666 = vmatprep.subr.bf16.mxu0 %v181
  %1667 = vmatpush1.bf16.msra.mxu0 %v180
  %1668 = vmatprep.subr.bf16.mxu0 0
  %1669 = vmatpush1.bf16.msra.mxu0 0
  %1670 = vmatprep.subr.bf16.mxu0 0
  %1671 = vmatpush1.bf16.msra.mxu0 0
  %1672 = vmatprep.subr.bf16.mxu0 0
  %1673 = vmatpush1.bf16.msra.mxu0 0
  %1674 = vmatprep.subr.bf16.mxu0 0
  %1675 = vmatpush1.bf16.msra.mxu0 0
  %1676 = vmatprep.subr.bf16.mxu0 0
  %1677 = vmatpush1.bf16.msra.mxu0 0
  %1678 = vmatprep.subr.bf16.mxu0 0
  %1679 = vmatpush1.bf16.msra.mxu0 0
  %1680 = vmatprep.subr.bf16.mxu0 0
  %1681 = vmatpush1.bf16.msra.mxu0 0
  %1682 = vmatprep.subr.bf16.mxu0 0
  %1683 = vmatpush1.bf16.msra.mxu0 0
  %1684 = vmatprep.mubr.bf16.mxu0 0
  %1685 = vmatmul.mubr.bf16.gmra.mrb[0].mxu0 %v1651
  %v1686 = vpop.f32.mrb[0].mxu0
  %v1687 = vadd.f32 0.0, %v1686
  %v1688 = vpop.f32.mrb[0].mxu0
  %v1689 = vadd.f32 0.0, %v1688
  %v1690 = vpop.f32.mrb[0].mxu0
  %v1691 = vpop.f32.mrb[0].mxu0
  %1692 = vdwg.mxu0
  %1693 = vmatprep.subr.bf16.mxu0 %v155
  %1694 = vmatpush1.bf16.msra.mxu0 %v154
  %1695 = vmatprep.subr.bf16.mxu0 %v159
  %1696 = vmatpush1.bf16.msra.mxu0 %v158
  %1697 = vmatprep.subr.bf16.mxu0 %v163
  %1698 = vmatpush1.bf16.msra.mxu0 %v162
  %1699 = vmatprep.subr.bf16.mxu0 %v167
  %1700 = vmatpush1.bf16.msra.mxu0 %v166
  %1701 = vmatprep.subr.bf16.mxu0 %v171
  %1702 = vmatpush1.bf16.msra.mxu0 %v170
  %1703 = vmatprep.subr.bf16.mxu0 %v175
  %1704 = vmatpush1.bf16.msra.mxu0 %v174
  %1705 = vmatprep.subr.bf16.mxu0 %v179
  %1706 = vmatpush1.bf16.msra.mxu0 %v178
  %1707 = vmatprep.subr.bf16.mxu0 %v183
  %1708 = vmatpush1.bf16.msra.mxu0 %v182
  %1709 = vmatprep.subr.bf16.mxu0 0
  %1710 = vmatpush1.bf16.msra.mxu0 0
  %1711 = vmatprep.subr.bf16.mxu0 0
  %1712 = vmatpush1.bf16.msra.mxu0 0
  %1713 = vmatprep.subr.bf16.mxu0 0
  %1714 = vmatpush1.bf16.msra.mxu0 0
  %1715 = vmatprep.subr.bf16.mxu0 0
  %1716 = vmatpush1.bf16.msra.mxu0 0
  %1717 = vmatprep.subr.bf16.mxu0 0
  %1718 = vmatpush1.bf16.msra.mxu0 0
  %1719 = vmatprep.subr.bf16.mxu0 0
  %1720 = vmatpush1.bf16.msra.mxu0 0
  %1721 = vmatprep.subr.bf16.mxu0 0
  %1722 = vmatpush1.bf16.msra.mxu0 0
  %1723 = vmatprep.subr.bf16.mxu0 0
  %1724 = vmatpush1.bf16.msra.mxu0 0
  %1725 = vmatprep.mubr.bf16.mxu0 0
  %1726 = vmatmul.mubr.bf16.gmra.mrb[0].mxu0 %v1651
  %v1727 = vpop.f32.mrb[0].mxu0
  %v1728 = vadd.f32 0.0, %v1727
  %v1729 = vpop.f32.mrb[0].mxu0
  %v1730 = vadd.f32 0.0, %v1729
  %v1731 = vpop.f32.mrb[0].mxu0
  %v1732 = vpop.f32.mrb[0].mxu0
  %1733 = vdwg.mxu0
  %v1735 = vsel %vm318, %v1650, 0
  %1737 = vmatprep.subr.bf16.mxu0 %v311
  %1738 = vmatpush1.bf16.msra.mxu0 %v310
  %1739 = vmatprep.subr.bf16.mxu0 0
  %1740 = vmatpush1.bf16.msra.mxu0 0
  %1741 = vmatprep.subr.bf16.mxu0 0
  %1742 = vmatpush1.bf16.msra.mxu0 0
  %1743 = vmatprep.subr.bf16.mxu0 0
  %1744 = vmatpush1.bf16.msra.mxu0 0
  %1745 = vmatprep.subr.bf16.mxu0 0
  %1746 = vmatpush1.bf16.msra.mxu0 0
  %1747 = vmatprep.subr.bf16.mxu0 0
  %1748 = vmatpush1.bf16.msra.mxu0 0
  %1749 = vmatprep.subr.bf16.mxu0 0
  %1750 = vmatpush1.bf16.msra.mxu0 0
  %1751 = vmatprep.subr.bf16.mxu0 0
  %1752 = vmatpush1.bf16.msra.mxu0 0
  %1753 = vmatprep.subr.bf16.mxu0 0
  %1754 = vmatpush1.bf16.msra.mxu0 0
  %1755 = vmatprep.subr.bf16.mxu0 0
  %1756 = vmatpush1.bf16.msra.mxu0 0
  %1757 = vmatprep.subr.bf16.mxu0 0
  %1758 = vmatpush1.bf16.msra.mxu0 0
  %1759 = vmatprep.subr.bf16.mxu0 0
  %1760 = vmatpush1.bf16.msra.mxu0 0
  %1761 = vmatprep.subr.bf16.mxu0 0
  %1762 = vmatpush1.bf16.msra.mxu0 0
  %1763 = vmatprep.subr.bf16.mxu0 0
  %1764 = vmatpush1.bf16.msra.mxu0 0
  %1765 = vmatprep.subr.bf16.mxu0 0
  %1766 = vmatpush1.bf16.msra.mxu0 0
  %1767 = vmatprep.subr.bf16.mxu0 0
  %1768 = vmatpush1.bf16.msra.mxu0 0
  %1769 = vmatprep.mubr.bf16.mxu0 0
  %1770 = vmatmul.mubr.bf16.gmra.mrb[0].mxu0 %v1735
  %v1771 = vpop.f32.mrb[0].mxu0
  %v1772 = vadd.f32 %v1687, %v1771
  %v1773 = vpop.f32.mrb[0].mxu0
  %v1774 = vadd.f32 %v1689, %v1773
  %v1775 = vpop.f32.mrb[0].mxu0
  %v1776 = vpop.f32.mrb[0].mxu0
  %1777 = vdwg.mxu0
  %1778 = vmatprep.subr.bf16.mxu0 %v313
  %1779 = vmatpush1.bf16.msra.mxu0 %v312
  %1780 = vmatprep.subr.bf16.mxu0 0
  %1781 = vmatpush1.bf16.msra.mxu0 0
  %1782 = vmatprep.subr.bf16.mxu0 0
  %1783 = vmatpush1.bf16.msra.mxu0 0
  %1784 = vmatprep.subr.bf16.mxu0 0
  %1785 = vmatpush1.bf16.msra.mxu0 0
  %1786 = vmatprep.subr.bf16.mxu0 0
  %1787 = vmatpush1.bf16.msra.mxu0 0
  %1788 = vmatprep.subr.bf16.mxu0 0
  %1789 = vmatpush1.bf16.msra.mxu0 0
  %1790 = vmatprep.subr.bf16.mxu0 0
  %1791 = vmatpush1.bf16.msra.mxu0 0
  %1792 = vmatprep.subr.bf16.mxu0 0
  %1793 = vmatpush1.bf16.msra.mxu0 0
  %1794 = vmatprep.subr.bf16.mxu0 0
  %1795 = vmatpush1.bf16.msra.mxu0 0
  %1796 = vmatprep.subr.bf16.mxu0 0
  %1797 = vmatpush1.bf16.msra.mxu0 0
  %1798 = vmatprep.subr.bf16.mxu0 0
  %1799 = vmatpush1.bf16.msra.mxu0 0
  %1800 = vmatprep.subr.bf16.mxu0 0
  %1801 = vmatpush1.bf16.msra.mxu0 0
  %1802 = vmatprep.subr.bf16.mxu0 0
  %1803 = vmatpush1.bf16.msra.mxu0 0
  %1804 = vmatprep.subr.bf16.mxu0 0
  %1805 = vmatpush1.bf16.msra.mxu0 0
  %1806 = vmatprep.subr.bf16.mxu0 0
  %1807 = vmatpush1.bf16.msra.mxu0 0
  %1808 = vmatprep.subr.bf16.mxu0 0
  %1809 = vmatpush1.bf16.msra.mxu0 0
  %1810 = vmatprep.mubr.bf16.mxu0 0
  %1811 = vmatmul.mubr.bf16.gmra.mrb[0].mxu0 %v1735
  %v1812 = vpop.f32.mrb[0].mxu0
  %v1813 = vadd.f32 %v1728, %v1812
  %v1814 = vpop.f32.mrb[0].mxu0
  %v1815 = vadd.f32 %v1730, %v1814
  %v1816 = vpop.f32.mrb[0].mxu0
  %v1817 = vpop.f32.mrb[0].mxu0
  %1818 = vdwg.mxu0
  %v1819 = vadd.f32 %v1772, %v409
  %v1820 = vadd.f32 %v1774, %v413
  %v1821 = vadd.f32 %v1813, %v417
  %v1822 = vadd.f32 %v1815, %v421
  %v1823 = vxor.u32 %v1819, 2147483648
  %v1824 = vmul.f32 %v1823, 1.442695
  %v1825 = vpow.pop %v1824
  %v1826 = vadd.f32 %v1825, 1.0
  %v1827 = vrcp.pop %v1826
  %v1828 = vmul.f32 1.0, %v1827
  %v1829 = vxor.u32 %v1820, 2147483648
  %v1830 = vmul.f32 %v1829, 1.442695
  %v1831 = vpow.pop %v1830
  %v1832 = vadd.f32 %v1831, 1.0
  %v1833 = vrcp.pop %v1832
  %v1834 = vmul.f32 1.0, %v1833
  %v1835 = vtanh.pop %v1821
  %v1836 = vxor.u32 %v1822, 2147483648
  %v1837 = vmul.f32 %v1836, 1.442695
  %v1838 = vpow.pop %v1837
  %v1839 = vadd.f32 %v1838, 1.0
  %v1840 = vrcp.pop %v1839
  %v1841 = vmul.f32 1.0, %v1840
  %v1842 = vmul.f32 %v1834, %v1645
  %v1843 = vmul.f32 %v1828, %v1835
  %v1844 = vadd.f32 %v1842, %v1843
  %v1845 = vtanh.pop %v1844
  %v1846 = vmul.f32 %v1841, %v1845
  %vm1847 = vcmask 254976
  %1848 = vst.msk [vmem:[%s4] sm:$0x3] %vm1847, %v1846
  // Predicated region
  $region18: #{net_forward.4} parent=0 // pred_check
    _
  $region19: #{net_forward.4} parent=0 // pred_check_branch
    %1850 = sbr.rel (0) target = $region21
  $region20: #{net_forward.4} parent=0 // pred_region
    _
  $region21: #{net_forward.4} parent=0 // pred_fallthru
    _
  // Predicated region
  $region22: #{net_forward.4} parent=0 // pred_check
    _
  $region23: #{net_forward.4} parent=0 // pred_check_branch
    %1852 = sbr.rel (0) target = $region25
  $region24: #{net_forward.4} parent=0 // pred_region
    _
  $region25: #{net_forward.4} parent=0 // pred_fallthru
    _

// kernel: net_forward.3
$region0: #{net_forward.3}
  #allocation0 [shape = 'u32[]', space=smem, size = 0x4, offset = 0x4, fixed_abs, tag = 'smem constant byte address 0x4 - core index']
  #allocation1 [shape = 'u32[144,128]{1,0:T(1,128)}', space=vmem, size = 0x12000, scoped, tag = 'internal scratch']
  #allocation2 [shape = 'f32[16,256]{1,0:T(8,128)}', space=vmem, size = 0x4000, scoped, tag = 'scratch operand']
  %s0 = inlined_call_operand.vmem [shape: f32[16,5], index: 0, kind: input, shape index: {}]
  %s1 = inlined_call_operand.vmem [shape: f32[5,128], index: 1, kind: input, shape index: {}]
  %s2 = inlined_call_operand.vmem [shape: f32[1,128], index: 2, kind: input, shape index: {}]
  %s3 = inlined_call_operand.vmem [shape: f32[128,256], index: 3, kind: input, shape index: {}]
  %s4 = inlined_call_operand.vmem [shape: f32[1,256], index: 4, kind: input, shape index: {}]
  %s5 = inlined_call_operand.vmem [shape: f32[16,256], index: 5, kind: input, shape index: {}]
  %s6 = inlined_call_operand.vmem [shape: f32[256,16], index: 6, kind: input, shape index: {}]
  %s7 = inlined_call_operand.vmem [shape: f32[8,8], index: 7, kind: input, shape index: {}]
  %s8 = inlined_call_operand.vmem [shape: f32[8,128], index: 8, kind: input, shape index: {}]
  %s9 = inlined_call_operand.vmem [shape: f32[1,128], index: 9, kind: input, shape index: {}]
  %s10 = inlined_call_operand.vmem [shape: bf16[16,8], index: 10, kind: input, shape index: {}]
  %s11 = inlined_call_operand.vmem [shape: bf16[8,16], index: 11, kind: input, shape index: {}]
  %s12 = inlined_call_operand.vmem [shape: f32[8,1], index: 12, kind: input, shape index: {}]
  %s13 = inlined_call_operand.vmem [shape: f32[1,16], index: 13, kind: input, shape index: {}]
  %s14 = inlined_call_operand.vmem [shape: bf16[16,384], index: 14, kind: input, shape index: {}]
  %s15 = inlined_call_operand.vmem [shape: bf16[128,384], index: 15, kind: input, shape index: {}]
  %s16 = inlined_call_operand.vmem [shape: f32[1,384], index: 16, kind: input, shape index: {}]
  %s17 = inlined_call_operand.vmem [shape: f32[1,384], index: 17, kind: input, shape index: {}]
  %s18 = inlined_call_operand.vmem [shape: bf16[2,8], index: 18, kind: input, shape index: {}]
  %s19 = inlined_call_operand.vmem [shape: bf16[8,2], index: 19, kind: input, shape index: {}]
  %s20 = inlined_call_operand.vmem [shape: bf16[128,512], index: 20, kind: input, shape index: {}]
  %s21 = inlined_call_operand.vmem [shape: bf16[128,512], index: 21, kind: input, shape index: {}]
  %s22 = inlined_call_operand.vmem [shape: f32[1,512], index: 22, kind: input, shape index: {}]
  %s23 = inlined_call_operand.vmem [shape: f32[2,32], index: 23, kind: output, shape index: {}]
  %s24 = sld [smem:[#allocation0]]
  $region102: #{net_forward.3} parent=0
    _
  %s26 = ssub.s32 1, %s24
  %s27 = scalar_select 0, %s26, %s24
  // Predicated region
  $region2: #{net_forward.3} parent=0 // pred_check
    _
  $region3: #{net_forward.3} parent=0 // pred_check_branch
    %29 = sbr.rel (0) target = $region5
  $region4: #{net_forward.3} parent=0 // pred_region
    _
  $region5: #{net_forward.3} parent=0 // pred_fallthru
    _
  // Predicated region
  $region6: #{net_forward.3} parent=0 // pred_check
    _
  $region7: #{net_forward.3} parent=0 // pred_check_branch
    %31 = sbr.rel (0) target = $region9
  $region8: #{net_forward.3} parent=0 // pred_region
    _
  $region9: #{net_forward.3} parent=0 // pred_fallthru
    _
  // Predicated region
  $region10: #{net_forward.3} parent=0 // pred_check
    _
  $region11: #{net_forward.3} parent=0 // pred_check_branch
    %33 = sbr.rel (0) target = $region13
  $region12: #{net_forward.3} parent=0 // pred_region
    _
  $region13: #{net_forward.3} parent=0 // pred_fallthru
    _
  // Predicated region
  $region14: #{net_forward.3} parent=0 // pred_check
    _
  $region15: #{net_forward.3} parent=0 // pred_check_branch
    %35 = sbr.rel (0) target = $region17
  $region16: #{net_forward.3} parent=0 // pred_region
    _
  $region17: #{net_forward.3} parent=0 // pred_fallthru
    _
  // Predicated region
  $region18: #{net_forward.3} parent=0 // pred_check
    _
  $region19: #{net_forward.3} parent=0 // pred_check_branch
    %37 = sbr.rel (0) target = $region21
  $region20: #{net_forward.3} parent=0 // pred_region
    _
  $region21: #{net_forward.3} parent=0 // pred_fallthru
    _
  // Predicated region
  $region22: #{net_forward.3} parent=0 // pred_check
    _
  $region23: #{net_forward.3} parent=0 // pred_check_branch
    %39 = sbr.rel (0) target = $region25
  $region24: #{net_forward.3} parent=0 // pred_region
    _
  $region25: #{net_forward.3} parent=0 // pred_fallthru
    _
  // Predicated region
  $region26: #{net_forward.3} parent=0 // pred_check
    _
  $region27: #{net_forward.3} parent=0 // pred_check_branch
    %41 = sbr.rel (0) target = $region29
  $region28: #{net_forward.3} parent=0 // pred_region
    _
  $region29: #{net_forward.3} parent=0 // pred_fallthru
    _
  // Predicated region
  $region30: #{net_forward.3} parent=0 // pred_check
    _
  $region31: #{net_forward.3} parent=0 // pred_check_branch
    %43 = sbr.rel (0) target = $region33
  $region32: #{net_forward.3} parent=0 // pred_region
    _
  $region33: #{net_forward.3} parent=0 // pred_fallthru
    _
  // Predicated region
  $region34: #{net_forward.3} parent=0 // pred_check
    _
  $region35: #{net_forward.3} parent=0 // pred_check_branch
    %45 = sbr.rel (0) target = $region37
  $region36: #{net_forward.3} parent=0 // pred_region
    _
  $region37: #{net_forward.3} parent=0 // pred_fallthru
    _
  // Predicated region
  $region38: #{net_forward.3} parent=0 // pred_check
    _
  $region39: #{net_forward.3} parent=0 // pred_check_branch
    %47 = sbr.rel (0) target = $region41
  $region40: #{net_forward.3} parent=0 // pred_region
    _
  $region41: #{net_forward.3} parent=0 // pred_fallthru
    _
  // Predicated region
  $region42: #{net_forward.3} parent=0 // pred_check
    _
  $region43: #{net_forward.3} parent=0 // pred_check_branch
    %49 = sbr.rel (0) target = $region45
  $region44: #{net_forward.3} parent=0 // pred_region
    _
  $region45: #{net_forward.3} parent=0 // pred_fallthru
    _
  // Predicated region
  $region46: #{net_forward.3} parent=0 // pred_check
    _
  $region47: #{net_forward.3} parent=0 // pred_check_branch
    %51 = sbr.rel (0) target = $region49
  $region48: #{net_forward.3} parent=0 // pred_region
    _
  $region49: #{net_forward.3} parent=0 // pred_fallthru
    _
  // Predicated region
  $region50: #{net_forward.3} parent=0 // pred_check
    _
  $region51: #{net_forward.3} parent=0 // pred_check_branch
    %53 = sbr.rel (0) target = $region53
  $region52: #{net_forward.3} parent=0 // pred_region
    _
  $region53: #{net_forward.3} parent=0 // pred_fallthru
    _
  // Predicated region
  $region54: #{net_forward.3} parent=0 // pred_check
    _
  $region55: #{net_forward.3} parent=0 // pred_check_branch
    %55 = sbr.rel (0) target = $region57
  $region56: #{net_forward.3} parent=0 // pred_region
    _
  $region57: #{net_forward.3} parent=0 // pred_fallthru
    _
  // Predicated region
  $region58: #{net_forward.3} parent=0 // pred_check
    _
  $region59: #{net_forward.3} parent=0 // pred_check_branch
    %57 = sbr.rel (0) target = $region61
  $region60: #{net_forward.3} parent=0 // pred_region
    _
  $region61: #{net_forward.3} parent=0 // pred_fallthru
    _
  // Predicated region
  $region62: #{net_forward.3} parent=0 // pred_check
    _
  $region63: #{net_forward.3} parent=0 // pred_check_branch
    %59 = sbr.rel (0) target = $region65
  $region64: #{net_forward.3} parent=0 // pred_region
    _
  $region65: #{net_forward.3} parent=0 // pred_fallthru
    _
  // Predicated region
  $region66: #{net_forward.3} parent=0 // pred_check
    _
  $region67: #{net_forward.3} parent=0 // pred_check_branch
    %61 = sbr.rel (0) target = $region69
  $region68: #{net_forward.3} parent=0 // pred_region
    _
  $region69: #{net_forward.3} parent=0 // pred_fallthru
    _
  // Predicated region
  $region70: #{net_forward.3} parent=0 // pred_check
    _
  $region71: #{net_forward.3} parent=0 // pred_check_branch
    %63 = sbr.rel (0) target = $region73
  $region72: #{net_forward.3} parent=0 // pred_region
    _
  $region73: #{net_forward.3} parent=0 // pred_fallthru
    _
  // Predicated region
  $region74: #{net_forward.3} parent=0 // pred_check
    _
  $region75: #{net_forward.3} parent=0 // pred_check_branch
    %65 = sbr.rel (0) target = $region77
  $region76: #{net_forward.3} parent=0 // pred_region
    _
  $region77: #{net_forward.3} parent=0 // pred_fallthru
    _
  // Predicated region
  $region78: #{net_forward.3} parent=0 // pred_check
    _
  $region79: #{net_forward.3} parent=0 // pred_check_branch
    %67 = sbr.rel (0) target = $region81
  $region80: #{net_forward.3} parent=0 // pred_region
    _
  $region81: #{net_forward.3} parent=0 // pred_fallthru
    _
  // Predicated region
  $region82: #{net_forward.3} parent=0 // pred_check
    _
  $region83: #{net_forward.3} parent=0 // pred_check_branch
    %69 = sbr.rel (0) target = $region85
  $region84: #{net_forward.3} parent=0 // pred_region
    _
  $region85: #{net_forward.3} parent=0 // pred_fallthru
    _
  // Predicated region
  $region86: #{net_forward.3} parent=0 // pred_check
    _
  $region87: #{net_forward.3} parent=0 // pred_check_branch
    %71 = sbr.rel (0) target = $region89
  $region88: #{net_forward.3} parent=0 // pred_region
    _
  $region89: #{net_forward.3} parent=0 // pred_fallthru
    _
  // Predicated region
  $region90: #{net_forward.3} parent=0 // pred_check
    _
  $region91: #{net_forward.3} parent=0 // pred_check_branch
    %73 = sbr.rel (0) target = $region93
  $region92: #{net_forward.3} parent=0 // pred_region
    _
  $region93: #{net_forward.3} parent=0 // pred_fallthru
    _
  %v75 = vld [vmem:[%s0] sm:$0xff]
  %v76 = vld [vmem:[%s0 + $0x8] sm:$0xff]
  %v77 = vld [vmem:[%s1] sm:$0x1f]
  %v78 = vld [vmem:[%s2] sm:$0x1]
  %v80 = vlaneseq
  %v81 = vshrl.u32 %v80, 7
  %v82 = vsub.s32 0, %v81
  %v83 = vrot.slane %v78, %v82
  %vm85 = vcmask 39936
  %v87 = vsel %vm85, %v75, 0
  %v90 = vsel %vm85, %v76, 0
  %vm92 = vcmask 1044480
  %v94 = vsel %vm92, %v77, 0
  %96 = vmatprep.subr.mxu0 0.0
  %97 = vmatpush1.msra.mxu0 %v94
  %98 = vmatprep.subr.mxu0 0.0
  %99 = vmatpush1.msra.mxu0 0.0
  %100 = vmatprep.subr.mxu0 0.0
  %101 = vmatpush1.msra.mxu0 0.0
  %102 = vmatprep.subr.mxu0 0.0
  %103 = vmatpush1.msra.mxu0 0.0
  %104 = vmatprep.subr.mxu0 0.0
  %105 = vmatpush1.msra.mxu0 0.0
  %106 = vmatprep.subr.mxu0 0.0
  %107 = vmatpush1.msra.mxu0 0.0
  %108 = vmatprep.subr.mxu0 0.0
  %109 = vmatpush1.msra.mxu0 0.0
  %110 = vmatprep.subr.mxu0 0.0
  %111 = vmatpush1.msra.mxu0 0.0
  %112 = vmatprep.subr.mxu0 0.0
  %113 = vmatpush1.msra.mxu0 0.0
  %114 = vmatprep.subr.mxu0 0.0
  %115 = vmatpush1.msra.mxu0 0.0
  %116 = vmatprep.subr.mxu0 0.0
  %117 = vmatpush1.msra.mxu0 0.0
  %118 = vmatprep.subr.mxu0 0.0
  %119 = vmatpush1.msra.mxu0 0.0
  %120 = vmatprep.subr.mxu0 0.0
  %121 = vmatpush1.msra.mxu0 0.0
  %122 = vmatprep.subr.mxu0 0.0
  %123 = vmatpush1.msra.mxu0 0.0
  %124 = vmatprep.subr.mxu0 0.0
  %125 = vmatpush1.msra.mxu0 0.0
  %126 = vmatprep.subr.mxu0 0.0
  %127 = vmatpush1.msra.mxu0 0.0
  %128 = vmatprep.subr.mxu0 0.0
  %129 = vmatpush1.msra.mxu0 0.0
  %130 = vmatprep.subr.mxu0 0.0
  %131 = vmatpush1.msra.mxu0 0.0
  %132 = vmatprep.subr.mxu0 0.0
  %133 = vmatpush1.msra.mxu0 0.0
  %134 = vmatprep.subr.mxu0 0.0
  %135 = vmatpush1.msra.mxu0 0.0
  %136 = vmatprep.subr.mxu0 0.0
  %137 = vmatpush1.msra.mxu0 0.0
  %138 = vmatprep.subr.mxu0 0.0
  %139 = vmatpush1.msra.mxu0 0.0
  %140 = vmatprep.subr.mxu0 0.0
  %141 = vmatpush1.msra.mxu0 0.0
  %142 = vmatprep.subr.mxu0 0.0
  %143 = vmatpush1.msra.mxu0 0.0
  %144 = vmatprep.subr.mxu0 0.0
  %145 = vmatpush1.msra.mxu0 0.0
  %146 = vmatprep.subr.mxu0 0.0
  %147 = vmatpush1.msra.mxu0 0.0
  %148 = vmatprep.subr.mxu0 0.0
  %149 = vmatpush1.msra.mxu0 0.0
  %150 = vmatprep.subr.mxu0 0.0
  %151 = vmatpush1.msra.mxu0 0.0
  %152 = vmatprep.subr.mxu0 0.0
  %153 = vmatpush1.msra.mxu0 0.0
  %154 = vmatprep.subr.mxu0 0.0
  %155 = vmatpush1.msra.mxu0 0.0
  %156 = vmatprep.subr.mxu0 0.0
  %157 = vmatpush1.msra.mxu0 0.0
  %158 = vmatprep.subr.mxu0 0.0
  %159 = vmatpush1.msra.mxu0 0.0
  %160 = vmatprep.mubr.f32.mxu0 0.0
  %161 = vmatmul.mubr.f32.gmra.mrb[0].mxu0 %v87
  %v162 = vpop.f32.mrb[0].mxu0
  %v163 = vadd.f32 %v83, %v162
  %v164 = vpop.f32.mrb[0].mxu0
  %165 = vmatprep.mubr.f32.mxu0 0.0
  %166 = vmatmul.mubr.f32.gmra.mrb[0].mxu0 %v90
  %v167 = vpop.f32.mrb[0].mxu0
  %v168 = vadd.f32 %v83, %v167
  %v169 = vpop.f32.mrb[0].mxu0
  %170 = vdwg.mxu0
  %v171 = vmax.f32 %v163, 0.0
  %v172 = vmax.f32 %v168, 0.0
  %v173 = vld [vmem:[%s3] sm:$0xff]
  %v174 = vld [vmem:[%s3 + $0x8] sm:$0xff]
  %v175 = vld [vmem:[%s3 + $0x10] sm:$0xff]
  %v176 = vld [vmem:[%s3 + $0x18] sm:$0xff]
  %v177 = vld [vmem:[%s3 + $0x20] sm:$0xff]
  %v178 = vld [vmem:[%s3 + $0x28] sm:$0xff]
  %v179 = vld [vmem:[%s3 + $0x30] sm:$0xff]
  %v180 = vld [vmem:[%s3 + $0x38] sm:$0xff]
  %v181 = vld [vmem:[%s3 + $0x40] sm:$0xff]
  %v182 = vld [vmem:[%s3 + $0x48] sm:$0xff]
  %v183 = vld [vmem:[%s3 + $0x50] sm:$0xff]
  %v184 = vld [vmem:[%s3 + $0x58] sm:$0xff]
  %v185 = vld [vmem:[%s3 + $0x60] sm:$0xff]
  %v186 = vld [vmem:[%s3 + $0x68] sm:$0xff]
  %v187 = vld [vmem:[%s3 + $0x70] sm:$0xff]
  %v188 = vld [vmem:[%s3 + $0x78] sm:$0xff]
  %v189 = vld [vmem:[%s3 + $0x80] sm:$0xff]
  %v190 = vld [vmem:[%s3 + $0x88] sm:$0xff]
  %v191 = vld [vmem:[%s3 + $0x90] sm:$0xff]
  %v192 = vld [vmem:[%s3 + $0x98] sm:$0xff]
  %v193 = vld [vmem:[%s3 + $0xa0] sm:$0xff]
  %v194 = vld [vmem:[%s3 + $0xa8] sm:$0xff]
  %v195 = vld [vmem:[%s3 + $0xb0] sm:$0xff]
  %v196 = vld [vmem:[%s3 + $0xb8] sm:$0xff]
  %v197 = vld [vmem:[%s3 + $0xc0] sm:$0xff]
  %v198 = vld [vmem:[%s3 + $0xc8] sm:$0xff]
  %v199 = vld [vmem:[%s3 + $0xd0] sm:$0xff]
  %v200 = vld [vmem:[%s3 + $0xd8] sm:$0xff]
  %v201 = vld [vmem:[%s3 + $0xe0] sm:$0xff]
  %v202 = vld [vmem:[%s3 + $0xe8] sm:$0xff]
  %v203 = vld [vmem:[%s3 + $0xf0] sm:$0xff]
  %v204 = vld [vmem:[%s3 + $0xf8] sm:$0xff]
  %v205 = vld [vmem:[%s4] sm:$0x3]
  %v207 = vlaneseq
  %v208 = vshrl.u32 %v207, 7
  %v209 = vsub.s32 0, %v208
  %v210 = vrot.slane %v205, %v209
  %v211 = vlaneseq
  %v212 = vshrl.u32 %v211, 7
  %v213 = vsub.s32 1, %v212
  %v214 = vrot.slane %v205, %v213
  %217 = vmatprep.subr.mxu0 %v174
  %218 = vmatpush1.msra.mxu0 %v173
  %219 = vmatprep.subr.mxu0 %v176
  %220 = vmatpush1.msra.mxu0 %v175
  %221 = vmatprep.subr.mxu0 %v178
  %222 = vmatpush1.msra.mxu0 %v177
  %223 = vmatprep.subr.mxu0 %v180
  %224 = vmatpush1.msra.mxu0 %v179
  %225 = vmatprep.subr.mxu0 %v182
  %226 = vmatpush1.msra.mxu0 %v181
  %227 = vmatprep.subr.mxu0 %v184
  %228 = vmatpush1.msra.mxu0 %v183
  %229 = vmatprep.subr.mxu0 %v186
  %230 = vmatpush1.msra.mxu0 %v185
  %231 = vmatprep.subr.mxu0 %v188
  %232 = vmatpush1.msra.mxu0 %v187
  %233 = vmatprep.subr.mxu0 %v190
  %234 = vmatpush1.msra.mxu0 %v189
  %235 = vmatprep.subr.mxu0 %v192
  %236 = vmatpush1.msra.mxu0 %v191
  %237 = vmatprep.subr.mxu0 %v194
  %238 = vmatpush1.msra.mxu0 %v193
  %239 = vmatprep.subr.mxu0 %v196
  %240 = vmatpush1.msra.mxu0 %v195
  %241 = vmatprep.subr.mxu0 %v198
  %242 = vmatpush1.msra.mxu0 %v197
  %243 = vmatprep.subr.mxu0 %v200
  %244 = vmatpush1.msra.mxu0 %v199
  %245 = vmatprep.subr.mxu0 %v202
  %246 = vmatpush1.msra.mxu0 %v201
  %247 = vmatprep.subr.mxu0 %v204
  %248 = vmatpush1.msra.mxu0 %v203
  %249 = vmatprep.subr.mxu0 0.0
  %250 = vmatpush1.msra.mxu0 0.0
  %251 = vmatprep.subr.mxu0 0.0
  %252 = vmatpush1.msra.mxu0 0.0
  %253 = vmatprep.subr.mxu0 0.0
  %254 = vmatpush1.msra.mxu0 0.0
  %255 = vmatprep.subr.mxu0 0.0
  %256 = vmatpush1.msra.mxu0 0.0
  %257 = vmatprep.subr.mxu0 0.0
  %258 = vmatpush1.msra.mxu0 0.0
  %259 = vmatprep.subr.mxu0 0.0
  %260 = vmatpush1.msra.mxu0 0.0
  %261 = vmatprep.subr.mxu0 0.0
  %262 = vmatpush1.msra.mxu0 0.0
  %263 = vmatprep.subr.mxu0 0.0
  %264 = vmatpush1.msra.mxu0 0.0
  %265 = vmatprep.subr.mxu0 0.0
  %266 = vmatpush1.msra.mxu0 0.0
  %267 = vmatprep.subr.mxu0 0.0
  %268 = vmatpush1.msra.mxu0 0.0
  %269 = vmatprep.subr.mxu0 0.0
  %270 = vmatpush1.msra.mxu0 0.0
  %271 = vmatprep.subr.mxu0 0.0
  %272 = vmatpush1.msra.mxu0 0.0
  %273 = vmatprep.subr.mxu0 0.0
  %274 = vmatpush1.msra.mxu0 0.0
  %275 = vmatprep.subr.mxu0 0.0
  %276 = vmatpush1.msra.mxu0 0.0
  %277 = vmatprep.subr.mxu0 0.0
  %278 = vmatpush1.msra.mxu0 0.0
  %279 = vmatprep.subr.mxu0 0.0
  %280 = vmatpush1.msra.mxu0 0.0
  %281 = vmatprep.mubr.f32.mxu0 0.0
  %282 = vmatmul.mubr.f32.gmra.mrb[0].mxu0 %v171
  %v283 = vpop.f32.mrb[0].mxu0
  %v284 = vadd.f32 %v210, %v283
  %v285 = vpop.f32.mrb[0].mxu0
  %v286 = vadd.f32 %v214, %v285
  %287 = vmatprep.mubr.f32.mxu0 0.0
  %288 = vmatmul.mubr.f32.gmra.mrb[0].mxu0 %v172
  %v289 = vpop.f32.mrb[0].mxu0
  %v290 = vadd.f32 %v210, %v289
  %v291 = vpop.f32.mrb[0].mxu0
  %v292 = vadd.f32 %v214, %v291
  %293 = vdwg.mxu0
  %294 = vst [vmem:[#allocation2] sm:$0xff] %v284
  %295 = vst [vmem:[#allocation2 + $0x8] sm:$0xff] %v286
  %296 = vst [vmem:[#allocation2 + $0x10] sm:$0xff] %v290
  %297 = vst [vmem:[#allocation2 + $0x18] sm:$0xff] %v292
  %v298 = vld [vmem:[%s7] sm:$0xff]
  %v299 = vld [vmem:[%s8] sm:$0xff]
  %v300 = vld [vmem:[%s9] sm:$0x1]
  %v302 = vlaneseq
  %v303 = vshrl.u32 %v302, 7
  %v304 = vsub.s32 0, %v303
  %v305 = vrot.slane %v300, %v304
  %vm307 = vcmask 64512
  %v309 = vsel %vm307, %v298, 0
  %311 = vmatprep.subr.mxu0 0.0
  %312 = vmatpush1.msra.mxu0 %v299
  %313 = vmatprep.subr.mxu0 0.0
  %314 = vmatpush1.msra.mxu0 0.0
  %315 = vmatprep.subr.mxu0 0.0
  %316 = vmatpush1.msra.mxu0 0.0
  %317 = vmatprep.subr.mxu0 0.0
  %318 = vmatpush1.msra.mxu0 0.0
  %319 = vmatprep.subr.mxu0 0.0
  %320 = vmatpush1.msra.mxu0 0.0
  %321 = vmatprep.subr.mxu0 0.0
  %322 = vmatpush1.msra.mxu0 0.0
  %323 = vmatprep.subr.mxu0 0.0
  %324 = vmatpush1.msra.mxu0 0.0
  %325 = vmatprep.subr.mxu0 0.0
  %326 = vmatpush1.msra.mxu0 0.0
  %327 = vmatprep.subr.mxu0 0.0
  %328 = vmatpush1.msra.mxu0 0.0
  %329 = vmatprep.subr.mxu0 0.0
  %330 = vmatpush1.msra.mxu0 0.0
  %331 = vmatprep.subr.mxu0 0.0
  %332 = vmatpush1.msra.mxu0 0.0
  %333 = vmatprep.subr.mxu0 0.0
  %334 = vmatpush1.msra.mxu0 0.0
  %335 = vmatprep.subr.mxu0 0.0
  %336 = vmatpush1.msra.mxu0 0.0
  %337 = vmatprep.subr.mxu0 0.0
  %338 = vmatpush1.msra.mxu0 0.0
  %339 = vmatprep.subr.mxu0 0.0
  %340 = vmatpush1.msra.mxu0 0.0
  %341 = vmatprep.subr.mxu0 0.0
  %342 = vmatpush1.msra.mxu0 0.0
  %343 = vmatprep.subr.mxu0 0.0
  %344 = vmatpush1.msra.mxu0 0.0
  %345 = vmatprep.subr.mxu0 0.0
  %346 = vmatpush1.msra.mxu0 0.0
  %347 = vmatprep.subr.mxu0 0.0
  %348 = vmatpush1.msra.mxu0 0.0
  %349 = vmatprep.subr.mxu0 0.0
  %350 = vmatpush1.msra.mxu0 0.0
  %351 = vmatprep.subr.mxu0 0.0
  %352 = vmatpush1.msra.mxu0 0.0
  %353 = vmatprep.subr.mxu0 0.0
  %354 = vmatpush1.msra.mxu0 0.0
  %355 = vmatprep.subr.mxu0 0.0
  %356 = vmatpush1.msra.mxu0 0.0
  %357 = vmatprep.subr.mxu0 0.0
  %358 = vmatpush1.msra.mxu0 0.0
  %359 = vmatprep.subr.mxu0 0.0
  %360 = vmatpush1.msra.mxu0 0.0
  %361 = vmatprep.subr.mxu0 0.0
  %362 = vmatpush1.msra.mxu0 0.0
  %363 = vmatprep.subr.mxu0 0.0
  %364 = vmatpush1.msra.mxu0 0.0
  %365 = vmatprep.subr.mxu0 0.0
  %366 = vmatpush1.msra.mxu0 0.0
  %367 = vmatprep.subr.mxu0 0.0
  %368 = vmatpush1.msra.mxu0 0.0
  %369 = vmatprep.subr.mxu0 0.0
  %370 = vmatpush1.msra.mxu0 0.0
  %371 = vmatprep.subr.mxu0 0.0
  %372 = vmatpush1.msra.mxu0 0.0
  %373 = vmatprep.subr.mxu0 0.0
  %374 = vmatpush1.msra.mxu0 0.0
  %375 = vmatprep.mubr.f32.mxu0 0.0
  %376 = vmatmul.mubr.f32.gmra.mrb[0].mxu0 %v309
  %v377 = vpop.f32.mrb[0].mxu0
  %v378 = vadd.f32 %v305, %v377
  %v379 = vpop.f32.mrb[0].mxu0
  %380 = vdwg.mxu0
  %v381 = vmax.f32 %v378, 0.0
  %v382 = vld [vmem:[%s10] sm:$0xf]
  %v383 = vld [vmem:[%s10 + $0x4] sm:$0xf]
  %v384 = vld [vmem:[%s11] sm:$0xf]
  %v385 = vld [vmem:[#allocation2] sm:$0xff]
  %v386 = vld [vmem:[#allocation2 + $0x8] sm:$0xff]
  %v387 = vld [vmem:[#allocation2 + $0x10] sm:$0xff]
  %v388 = vld [vmem:[#allocation2 + $0x18] sm:$0xff]
  %v389 = vpack.c.bf16 %v381, %v381
  %v392 = vunpack.c.l.b16 %v382
  %v393 = vunpack.c.l.b16 %v383
  %v394 = vpack.c.b16 %v393, %v392
  %v396 = vsel %vm307, %v394, 0
  %vm398 = vcmask 1043456
  %v400 = vsel %vm398, %v389, 0
  %402 = vmatprep.subr.bf16.mxu0 0
  %403 = vmatpush1.bf16.msra.mxu0 %v400
  %404 = vmatprep.subr.bf16.mxu0 0
  %405 = vmatpush1.bf16.msra.mxu0 0
  %406 = vmatprep.subr.bf16.mxu0 0
  %407 = vmatpush1.bf16.msra.mxu0 0
  %408 = vmatprep.subr.bf16.mxu0 0
  %409 = vmatpush1.bf16.msra.mxu0 0
  %410 = vmatprep.subr.bf16.mxu0 0
  %411 = vmatpush1.bf16.msra.mxu0 0
  %412 = vmatprep.subr.bf16.mxu0 0
  %413 = vmatpush1.bf16.msra.mxu0 0
  %414 = vmatprep.subr.bf16.mxu0 0
  %415 = vmatpush1.bf16.msra.mxu0 0
  %416 = vmatprep.subr.bf16.mxu0 0
  %417 = vmatpush1.bf16.msra.mxu0 0
  %418 = vmatprep.subr.bf16.mxu0 0
  %419 = vmatpush1.bf16.msra.mxu0 0
  %420 = vmatprep.subr.bf16.mxu0 0
  %421 = vmatpush1.bf16.msra.mxu0 0
  %422 = vmatprep.subr.bf16.mxu0 0
  %423 = vmatpush1.bf16.msra.mxu0 0
  %424 = vmatprep.subr.bf16.mxu0 0
  %425 = vmatpush1.bf16.msra.mxu0 0
  %426 = vmatprep.subr.bf16.mxu0 0
  %427 = vmatpush1.bf16.msra.mxu0 0
  %428 = vmatprep.subr.bf16.mxu0 0
  %429 = vmatpush1.bf16.msra.mxu0 0
  %430 = vmatprep.subr.bf16.mxu0 0
  %431 = vmatpush1.bf16.msra.mxu0 0
  %432 = vmatprep.subr.bf16.mxu0 0
  %433 = vmatpush1.bf16.msra.mxu0 0
  %434 = vmatprep.mubr.bf16.mxu0 0
  %435 = vmatmul.mubr.bf16.gmra.mrb[0].mxu0 %v396
  %v436 = vpop.f32.mrb[0].mxu0
  %v437 = vadd.f32 0.0, %v436
  %v438 = vpop.f32.mrb[0].mxu0
  %v439 = vpop.f32.mrb[0].mxu0
  %v440 = vadd.f32 0.0, %v439
  %v441 = vpop.f32.mrb[0].mxu0
  %442 = vdwg.mxu0
  %v443 = vld [vmem:[%s5] sm:$0xff]
  %v444 = vld [vmem:[%s5 + $0x8] sm:$0xff]
  %v445 = vld [vmem:[%s5 + $0x10] sm:$0xff]
  %v446 = vld [vmem:[%s5 + $0x18] sm:$0xff]
  %vm447 = vcmask 130048
  %v449 = vsel %vm447, %v437, 0
  %v452 = vsel %vm447, %v440, 0
  %454 = vmatprep.subr.mxu0 %v444
  %455 = vmatpush1.msra.mxu0 %v443
  %456 = vmatprep.subr.mxu0 %v446
  %457 = vmatpush1.msra.mxu0 %v445
  %458 = vmatprep.subr.mxu0 0.0
  %459 = vmatpush1.msra.mxu0 0.0
  %460 = vmatprep.subr.mxu0 0.0
  %461 = vmatpush1.msra.mxu0 0.0
  %462 = vmatprep.subr.mxu0 0.0
  %463 = vmatpush1.msra.mxu0 0.0
  %464 = vmatprep.subr.mxu0 0.0
  %465 = vmatpush1.msra.mxu0 0.0
  %466 = vmatprep.subr.mxu0 0.0
  %467 = vmatpush1.msra.mxu0 0.0
  %468 = vmatprep.subr.mxu0 0.0
  %469 = vmatpush1.msra.mxu0 0.0
  %470 = vmatprep.subr.mxu0 0.0
  %471 = vmatpush1.msra.mxu0 0.0
  %472 = vmatprep.subr.mxu0 0.0
  %473 = vmatpush1.msra.mxu0 0.0
  %474 = vmatprep.subr.mxu0 0.0
  %475 = vmatpush1.msra.mxu0 0.0
  %476 = vmatprep.subr.mxu0 0.0
  %477 = vmatpush1.msra.mxu0 0.0
  %478 = vmatprep.subr.mxu0 0.0
  %479 = vmatpush1.msra.mxu0 0.0
  %480 = vmatprep.subr.mxu0 0.0
  %481 = vmatpush1.msra.mxu0 0.0
  %482 = vmatprep.subr.mxu0 0.0
  %483 = vmatpush1.msra.mxu0 0.0
  %484 = vmatprep.subr.mxu0 0.0
  %485 = vmatpush1.msra.mxu0 0.0
  %486 = vmatprep.subr.mxu0 0.0
  %487 = vmatpush1.msra.mxu0 0.0
  %488 = vmatprep.subr.mxu0 0.0
  %489 = vmatpush1.msra.mxu0 0.0
  %490 = vmatprep.subr.mxu0 0.0
  %491 = vmatpush1.msra.mxu0 0.0
  %492 = vmatprep.subr.mxu0 0.0
  %493 = vmatpush1.msra.mxu0 0.0
  %494 = vmatprep.subr.mxu0 0.0
  %495 = vmatpush1.msra.mxu0 0.0
  %496 = vmatprep.subr.mxu0 0.0
  %497 = vmatpush1.msra.mxu0 0.0
  %498 = vmatprep.subr.mxu0 0.0
  %499 = vmatpush1.msra.mxu0 0.0
  %500 = vmatprep.subr.mxu0 0.0
  %501 = vmatpush1.msra.mxu0 0.0
  %502 = vmatprep.subr.mxu0 0.0
  %503 = vmatpush1.msra.mxu0 0.0
  %504 = vmatprep.subr.mxu0 0.0
  %505 = vmatpush1.msra.mxu0 0.0
  %506 = vmatprep.subr.mxu0 0.0
  %507 = vmatpush1.msra.mxu0 0.0
  %508 = vmatprep.subr.mxu0 0.0
  %509 = vmatpush1.msra.mxu0 0.0
  %510 = vmatprep.subr.mxu0 0.0
  %511 = vmatpush1.msra.mxu0 0.0
  %512 = vmatprep.subr.mxu0 0.0
  %513 = vmatpush1.msra.mxu0 0.0
  %514 = vmatprep.subr.mxu0 0.0
  %515 = vmatpush1.msra.mxu0 0.0
  %516 = vmatprep.subr.mxu0 0.0
  %517 = vmatpush1.msra.mxu0 0.0
  %518 = vmatprep.mubr.f32.mxu0 0.0
  %519 = vmatmul.mubr.f32.gmra.mrb[0].mxu0 %v449
  %v520 = vpop.f32.mrb[0].mxu0
  %v521 = vadd.f32 0.0, %v520
  %v522 = vpop.f32.mrb[0].mxu0
  %v523 = vadd.f32 0.0, %v522
  %524 = vmatprep.mubr.f32.mxu0 0.0
  %525 = vmatmul.mubr.f32.gmra.mrb[0].mxu0 %v452
  %v526 = vpop.f32.mrb[0].mxu0
  %v527 = vadd.f32 0.0, %v526
  %v528 = vpop.f32.mrb[0].mxu0
  %v529 = vadd.f32 0.0, %v528
  %530 = vdwg.mxu0
  %v531 = vmul.f32 %v521, %v385
  %v532 = vmul.f32 %v523, %v386
  %v533 = vmul.f32 %v527, %v387
  %v534 = vmul.f32 %v529, %v388
  %v535 = vld [vmem:[%s6] sm:$0xff]
  %v536 = vld [vmem:[%s6 + $0x8] sm:$0xff]
  %v537 = vld [vmem:[%s6 + $0x10] sm:$0xff]
  %v538 = vld [vmem:[%s6 + $0x18] sm:$0xff]
  %v539 = vld [vmem:[%s6 + $0x20] sm:$0xff]
  %v540 = vld [vmem:[%s6 + $0x28] sm:$0xff]
  %v541 = vld [vmem:[%s6 + $0x30] sm:$0xff]
  %v542 = vld [vmem:[%s6 + $0x38] sm:$0xff]
  %v543 = vld [vmem:[%s6 + $0x40] sm:$0xff]
  %v544 = vld [vmem:[%s6 + $0x48] sm:$0xff]
  %v545 = vld [vmem:[%s6 + $0x50] sm:$0xff]
  %v546 = vld [vmem:[%s6 + $0x58] sm:$0xff]
  %v547 = vld [vmem:[%s6 + $0x60] sm:$0xff]
  %v548 = vld [vmem:[%s6 + $0x68] sm:$0xff]
  %v549 = vld [vmem:[%s6 + $0x70] sm:$0xff]
  %v550 = vld [vmem:[%s6 + $0x78] sm:$0xff]
  %v551 = vld [vmem:[%s6 + $0x80] sm:$0xff]
  %v552 = vld [vmem:[%s6 + $0x88] sm:$0xff]
  %v553 = vld [vmem:[%s6 + $0x90] sm:$0xff]
  %v554 = vld [vmem:[%s6 + $0x98] sm:$0xff]
  %v555 = vld [vmem:[%s6 + $0xa0] sm:$0xff]
  %v556 = vld [vmem:[%s6 + $0xa8] sm:$0xff]
  %v557 = vld [vmem:[%s6 + $0xb0] sm:$0xff]
  %v558 = vld [vmem:[%s6 + $0xb8] sm:$0xff]
  %v559 = vld [vmem:[%s6 + $0xc0] sm:$0xff]
  %v560 = vld [vmem:[%s6 + $0xc8] sm:$0xff]
  %v561 = vld [vmem:[%s6 + $0xd0] sm:$0xff]
  %v562 = vld [vmem:[%s6 + $0xd8] sm:$0xff]
  %v563 = vld [vmem:[%s6 + $0xe0] sm:$0xff]
  %v564 = vld [vmem:[%s6 + $0xe8] sm:$0xff]
  %v565 = vld [vmem:[%s6 + $0xf0] sm:$0xff]
  %v566 = vld [vmem:[%s6 + $0xf8] sm:$0xff]
  %567 = vmatprep.subr.mxu0 0.0
  %568 = vmatpush1.msra.mxu0 %v535
  %569 = vmatprep.subr.mxu0 0.0
  %570 = vmatpush1.msra.mxu0 %v536
  %571 = vmatprep.subr.mxu0 0.0
  %572 = vmatpush1.msra.mxu0 %v537
  %573 = vmatprep.subr.mxu0 0.0
  %574 = vmatpush1.msra.mxu0 %v538
  %575 = vmatprep.subr.mxu0 0.0
  %576 = vmatpush1.msra.mxu0 %v539
  %577 = vmatprep.subr.mxu0 0.0
  %578 = vmatpush1.msra.mxu0 %v540
  %579 = vmatprep.subr.mxu0 0.0
  %580 = vmatpush1.msra.mxu0 %v541
  %581 = vmatprep.subr.mxu0 0.0
  %582 = vmatpush1.msra.mxu0 %v542
  %583 = vmatprep.subr.mxu0 0.0
  %584 = vmatpush1.msra.mxu0 %v543
  %585 = vmatprep.subr.mxu0 0.0
  %586 = vmatpush1.msra.mxu0 %v544
  %587 = vmatprep.subr.mxu0 0.0
  %588 = vmatpush1.msra.mxu0 %v545
  %589 = vmatprep.subr.mxu0 0.0
  %590 = vmatpush1.msra.mxu0 %v546
  %591 = vmatprep.subr.mxu0 0.0
  %592 = vmatpush1.msra.mxu0 %v547
  %593 = vmatprep.subr.mxu0 0.0
  %594 = vmatpush1.msra.mxu0 %v548
  %595 = vmatprep.subr.mxu0 0.0
  %596 = vmatpush1.msra.mxu0 %v549
  %597 = vmatprep.subr.mxu0 0.0
  %598 = vmatpush1.msra.mxu0 %v550
  %599 = vmatprep.subr.mxu0 0.0
  %600 = vmatpush1.msra.mxu0 %v551
  %601 = vmatprep.subr.mxu0 0.0
  %602 = vmatpush1.msra.mxu0 %v552
  %603 = vmatprep.subr.mxu0 0.0
  %604 = vmatpush1.msra.mxu0 %v553
  %605 = vmatprep.subr.mxu0 0.0
  %606 = vmatpush1.msra.mxu0 %v554
  %607 = vmatprep.subr.mxu0 0.0
  %608 = vmatpush1.msra.mxu0 %v555
  %609 = vmatprep.subr.mxu0 0.0
  %610 = vmatpush1.msra.mxu0 %v556
  %611 = vmatprep.subr.mxu0 0.0
  %612 = vmatpush1.msra.mxu0 %v557
  %613 = vmatprep.subr.mxu0 0.0
  %614 = vmatpush1.msra.mxu0 %v558
  %615 = vmatprep.subr.mxu0 0.0
  %616 = vmatpush1.msra.mxu0 %v559
  %617 = vmatprep.subr.mxu0 0.0
  %618 = vmatpush1.msra.mxu0 %v560
  %619 = vmatprep.subr.mxu0 0.0
  %620 = vmatpush1.msra.mxu0 %v561
  %621 = vmatprep.subr.mxu0 0.0
  %622 = vmatpush1.msra.mxu0 %v562
  %623 = vmatprep.subr.mxu0 0.0
  %624 = vmatpush1.msra.mxu0 %v563
  %625 = vmatprep.subr.mxu0 0.0
  %626 = vmatpush1.msra.mxu0 %v564
  %627 = vmatprep.subr.mxu0 0.0
  %628 = vmatpush1.msra.mxu0 %v565
  %629 = vmatprep.subr.mxu0 0.0
  %630 = vmatpush1.msra.mxu0 %v566
  %631 = vmatprep.mubr.f32.mxu0 %v532
  %632 = vmatmul.mubr.f32.gmra.mrb[0].mxu0 %v531
  %v633 = vpop.f32.mrb[0].mxu0
  %v634 = vadd.f32 0.0, %v633
  %v635 = vpop.f32.mrb[0].mxu0
  %636 = vmatprep.mubr.f32.mxu0 %v534
  %637 = vmatmul.mubr.f32.gmra.mrb[0].mxu0 %v533
  %v638 = vpop.f32.mrb[0].mxu0
  %v639 = vadd.f32 0.0, %v638
  %v640 = vpop.f32.mrb[0].mxu0
  %641 = vdwg.mxu0
  %v642 = vpack.c.bf16 %v639, %v634
  %v644 = vsel %vm447, %v384, 0
  %646 = vmatprep.subr.bf16.mxu0 0
  %647 = vmatpush1.bf16.msra.mxu0 %v642
  %648 = vmatprep.subr.bf16.mxu0 0
  %649 = vmatpush1.bf16.msra.mxu0 0
  %650 = vmatprep.subr.bf16.mxu0 0
  %651 = vmatpush1.bf16.msra.mxu0 0
  %652 = vmatprep.subr.bf16.mxu0 0
  %653 = vmatpush1.bf16.msra.mxu0 0
  %654 = vmatprep.subr.bf16.mxu0 0
  %655 = vmatpush1.bf16.msra.mxu0 0
  %656 = vmatprep.subr.bf16.mxu0 0
  %657 = vmatpush1.bf16.msra.mxu0 0
  %658 = vmatprep.subr.bf16.mxu0 0
  %659 = vmatpush1.bf16.msra.mxu0 0
  %660 = vmatprep.subr.bf16.mxu0 0
  %661 = vmatpush1.bf16.msra.mxu0 0
  %662 = vmatprep.subr.bf16.mxu0 0
  %663 = vmatpush1.bf16.msra.mxu0 0
  %664 = vmatprep.subr.bf16.mxu0 0
  %665 = vmatpush1.bf16.msra.mxu0 0
  %666 = vmatprep.subr.bf16.mxu0 0
  %667 = vmatpush1.bf16.msra.mxu0 0
  %668 = vmatprep.subr.bf16.mxu0 0
  %669 = vmatpush1.bf16.msra.mxu0 0
  %670 = vmatprep.subr.bf16.mxu0 0
  %671 = vmatpush1.bf16.msra.mxu0 0
  %672 = vmatprep.subr.bf16.mxu0 0
  %673 = vmatpush1.bf16.msra.mxu0 0
  %674 = vmatprep.subr.bf16.mxu0 0
  %675 = vmatpush1.bf16.msra.mxu0 0
  %676 = vmatprep.subr.bf16.mxu0 0
  %677 = vmatpush1.bf16.msra.mxu0 0
  %678 = vmatprep.mubr.bf16.mxu0 0
  %679 = vmatmul.mubr.bf16.gmra.mrb[0].mxu0 %v644
  %v680 = vpop.f32.mrb[0].mxu0
  %v681 = vadd.f32 0.0, %v680
  %v682 = vpop.f32.mrb[0].mxu0
  %v683 = vpop.f32.mrb[0].mxu0
  %v684 = vpop.f32.mrb[0].mxu0
  %685 = vdwg.mxu0
  %v686 = vld [vmem:[%s12] sm:$0xff]
  %688 = vset.pattern.permute.xlu0 0
  %689 = vperm.xlu0 %688, %v686
  %v690 = vpop.permute.xlu0 %689
  %v692 = vmul.f32 %v681, %v690
  %v693 = vld [vmem:[%s13] sm:$0x1]
  %v695 = vlaneseq
  %v696 = vshrl.u32 %v695, 7
  %v697 = vsub.s32 0, %v696
  %v698 = vrot.slane %v693, %v697
  %v700 = vadd.f32 %v692, %v698
  %v701 = vmax.f32 %v700, 0.0
  %v702 = vpack.c.bf16 %v701, %v701
  %v703 = vld [vmem:[%s14] sm:$0xff]
  %v704 = vld [vmem:[%s14 + $0x8] sm:$0xf]
  %v705 = vld [vmem:[%s14 + $0xc] sm:$0xff]
  %v706 = vld [vmem:[%s14 + $0x14] sm:$0xf]
  %v707 = vld [vmem:[%s16] sm:$0x7]
  %v709 = vlaneseq
  %v710 = vshrl.u32 %v709, 7
  %v711 = vsub.s32 0, %v710
  %v712 = vrot.slane %v707, %v711
  %v713 = vlaneseq
  %v714 = vshrl.u32 %v713, 7
  %v715 = vsub.s32 1, %v714
  %v716 = vrot.slane %v707, %v715
  %v717 = vlaneseq
  %v718 = vshrl.u32 %v717, 7
  %v719 = vsub.s32 2, %v718
  %v720 = vrot.slane %v707, %v719
  %v728 = vunpack.c.l.b16 %v703
  %v729 = vunpack.c.h.b16 %v703
  %v730 = vunpack.c.l.b16 %v704
  %v731 = vunpack.c.l.b16 %v705
  %v732 = vunpack.c.h.b16 %v705
  %v733 = vunpack.c.l.b16 %v706
  %v734 = vpack.c.b16 %v731, %v728
  %v735 = vpack.c.b16 %v732, %v729
  %v736 = vpack.c.b16 %v733, %v730
  %v741 = vsel %vm447, %v702, 0
  %743 = vmatprep.subr.bf16.mxu0 %v735
  %744 = vmatpush1.bf16.msra.mxu0 %v734
  %745 = vmatprep.subr.bf16.mxu0 0
  %746 = vmatpush1.bf16.msra.mxu0 0
  %747 = vmatprep.subr.bf16.mxu0 0
  %748 = vmatpush1.bf16.msra.mxu0 0
  %749 = vmatprep.subr.bf16.mxu0 0
  %750 = vmatpush1.bf16.msra.mxu0 0
  %751 = vmatprep.subr.bf16.mxu0 0
  %752 = vmatpush1.bf16.msra.mxu0 0
  %753 = vmatprep.subr.bf16.mxu0 0
  %754 = vmatpush1.bf16.msra.mxu0 0
  %755 = vmatprep.subr.bf16.mxu0 0
  %756 = vmatpush1.bf16.msra.mxu0 0
  %757 = vmatprep.subr.bf16.mxu0 0
  %758 = vmatpush1.bf16.msra.mxu0 0
  %759 = vmatprep.subr.bf16.mxu0 0
  %760 = vmatpush1.bf16.msra.mxu0 0
  %761 = vmatprep.subr.bf16.mxu0 0
  %762 = vmatpush1.bf16.msra.mxu0 0
  %763 = vmatprep.subr.bf16.mxu0 0
  %764 = vmatpush1.bf16.msra.mxu0 0
  %765 = vmatprep.subr.bf16.mxu0 0
  %766 = vmatpush1.bf16.msra.mxu0 0
  %767 = vmatprep.subr.bf16.mxu0 0
  %768 = vmatpush1.bf16.msra.mxu0 0
  %769 = vmatprep.subr.bf16.mxu0 0
  %770 = vmatpush1.bf16.msra.mxu0 0
  %771 = vmatprep.subr.bf16.mxu0 0
  %772 = vmatpush1.bf16.msra.mxu0 0
  %773 = vmatprep.subr.bf16.mxu0 0
  %774 = vmatpush1.bf16.msra.mxu0 0
  %775 = vmatprep.mubr.bf16.mxu0 0
  %776 = vmatmul.mubr.bf16.gmra.mrb[0].mxu0 %v741
  %v777 = vpop.f32.mrb[0].mxu0
  %v778 = vadd.f32 %v712, %v777
  %v779 = vpop.f32.mrb[0].mxu0
  %v780 = vadd.f32 %v716, %v779
  %v781 = vpop.f32.mrb[0].mxu0
  %v782 = vpop.f32.mrb[0].mxu0
  %783 = vdwg.mxu0
  %784 = vmatprep.subr.bf16.mxu0 0
  %785 = vmatpush1.bf16.msra.mxu0 %v736
  %786 = vmatprep.subr.bf16.mxu0 0
  %787 = vmatpush1.bf16.msra.mxu0 0
  %788 = vmatprep.subr.bf16.mxu0 0
  %789 = vmatpush1.bf16.msra.mxu0 0
  %790 = vmatprep.subr.bf16.mxu0 0
  %791 = vmatpush1.bf16.msra.mxu0 0
  %792 = vmatprep.subr.bf16.mxu0 0
  %793 = vmatpush1.bf16.msra.mxu0 0
  %794 = vmatprep.subr.bf16.mxu0 0
  %795 = vmatpush1.bf16.msra.mxu0 0
  %796 = vmatprep.subr.bf16.mxu0 0
  %797 = vmatpush1.bf16.msra.mxu0 0
  %798 = vmatprep.subr.bf16.mxu0 0
  %799 = vmatpush1.bf16.msra.mxu0 0
  %800 = vmatprep.subr.bf16.mxu0 0
  %801 = vmatpush1.bf16.msra.mxu0 0
  %802 = vmatprep.subr.bf16.mxu0 0
  %803 = vmatpush1.bf16.msra.mxu0 0
  %804 = vmatprep.subr.bf16.mxu0 0
  %805 = vmatpush1.bf16.msra.mxu0 0
  %806 = vmatprep.subr.bf16.mxu0 0
  %807 = vmatpush1.bf16.msra.mxu0 0
  %808 = vmatprep.subr.bf16.mxu0 0
  %809 = vmatpush1.bf16.msra.mxu0 0
  %810 = vmatprep.subr.bf16.mxu0 0
  %811 = vmatpush1.bf16.msra.mxu0 0
  %812 = vmatprep.subr.bf16.mxu0 0
  %813 = vmatpush1.bf16.msra.mxu0 0
  %814 = vmatprep.subr.bf16.mxu0 0
  %815 = vmatpush1.bf16.msra.mxu0 0
  %816 = vmatprep.mubr.bf16.mxu0 0
  %817 = vmatmul.mubr.bf16.gmra.mrb[0].mxu0 %v741
  %v818 = vpop.f32.mrb[0].mxu0
  %v819 = vadd.f32 %v720, %v818
  %v820 = vpop.f32.mrb[0].mxu0
  %v821 = vpop.f32.mrb[0].mxu0
  %v822 = vpop.f32.mrb[0].mxu0
  %823 = vdwg.mxu0
  %v824 = vld [vmem:[%s15] sm:$0xff]
  %v825 = vld [vmem:[%s15 + $0x8] sm:$0xf]
  %v826 = vld [vmem:[%s15 + $0xc] sm:$0xff]
  %v827 = vld [vmem:[%s15 + $0x14] sm:$0xf]
  %v828 = vld [vmem:[%s15 + $0x18] sm:$0xff]
  %v829 = vld [vmem:[%s15 + $0x20] sm:$0xf]
  %v830 = vld [vmem:[%s15 + $0x24] sm:$0xff]
  %v831 = vld [vmem:[%s15 + $0x2c] sm:$0xf]
  %v832 = vld [vmem:[%s15 + $0x30] sm:$0xff]
  %v833 = vld [vmem:[%s15 + $0x38] sm:$0xf]
  %v834 = vld [vmem:[%s15 + $0x3c] sm:$0xff]
  %v835 = vld [vmem:[%s15 + $0x44] sm:$0xf]
  %v836 = vld [vmem:[%s15 + $0x48] sm:$0xff]
  %v837 = vld [vmem:[%s15 + $0x50] sm:$0xf]
  %v838 = vld [vmem:[%s15 + $0x54] sm:$0xff]
  %v839 = vld [vmem:[%s15 + $0x5c] sm:$0xf]
  %v840 = vld [vmem:[%s15 + $0x60] sm:$0xff]
  %v841 = vld [vmem:[%s15 + $0x68] sm:$0xf]
  %v842 = vld [vmem:[%s15 + $0x6c] sm:$0xff]
  %v843 = vld [vmem:[%s15 + $0x74] sm:$0xf]
  %v844 = vld [vmem:[%s15 + $0x78] sm:$0xff]
  %v845 = vld [vmem:[%s15 + $0x80] sm:$0xf]
  %v846 = vld [vmem:[%s15 + $0x84] sm:$0xff]
  %v847 = vld [vmem:[%s15 + $0x8c] sm:$0xf]
  %v848 = vld [vmem:[%s15 + $0x90] sm:$0xff]
  %v849 = vld [vmem:[%s15 + $0x98] sm:$0xf]
  %v850 = vld [vmem:[%s15 + $0x9c] sm:$0xff]
  %v851 = vld [vmem:[%s15 + $0xa4] sm:$0xf]
  %v852 = vld [vmem:[%s15 + $0xa8] sm:$0xff]
  %v853 = vld [vmem:[%s15 + $0xb0] sm:$0xf]
  %v854 = vld [vmem:[%s15 + $0xb4] sm:$0xff]
  %v855 = vld [vmem:[%s15 + $0xbc] sm:$0xf]
  %v856 = vld [vmem:[%s17] sm:$0x7]
  %v858 = vlaneseq
  %v859 = vshrl.u32 %v858, 7
  %v860 = vsub.s32 0, %v859
  %v861 = vrot.slane %v856, %v860
  %v862 = vlaneseq
  %v863 = vshrl.u32 %v862, 7
  %v864 = vsub.s32 1, %v863
  %v865 = vrot.slane %v856, %v864
  %v866 = vlaneseq
  %v867 = vshrl.u32 %v866, 7
  %v868 = vsub.s32 2, %v867
  %v869 = vrot.slane %v856, %v868
  %v905 = vunpack.c.l.b16 %v824
  %v906 = vunpack.c.h.b16 %v824
  %v907 = vunpack.c.l.b16 %v825
  %v908 = vunpack.c.l.b16 %v826
  %v909 = vunpack.c.h.b16 %v826
  %v910 = vunpack.c.l.b16 %v827
  %v911 = vunpack.c.l.b16 %v828
  %v912 = vunpack.c.h.b16 %v828
  %v913 = vunpack.c.l.b16 %v829
  %v914 = vunpack.c.l.b16 %v830
  %v915 = vunpack.c.h.b16 %v830
  %v916 = vunpack.c.l.b16 %v831
  %v917 = vunpack.c.l.b16 %v832
  %v918 = vunpack.c.h.b16 %v832
  %v919 = vunpack.c.l.b16 %v833
  %v920 = vunpack.c.l.b16 %v834
  %v921 = vunpack.c.h.b16 %v834
  %v922 = vunpack.c.l.b16 %v835
  %v923 = vunpack.c.l.b16 %v836
  %v924 = vunpack.c.h.b16 %v836
  %v925 = vunpack.c.l.b16 %v837
  %v926 = vunpack.c.l.b16 %v838
  %v927 = vunpack.c.h.b16 %v838
  %v928 = vunpack.c.l.b16 %v839
  %v929 = vunpack.c.l.b16 %v840
  %v930 = vunpack.c.h.b16 %v840
  %v931 = vunpack.c.l.b16 %v841
  %v932 = vunpack.c.l.b16 %v842
  %v933 = vunpack.c.h.b16 %v842
  %v934 = vunpack.c.l.b16 %v843
  %v935 = vunpack.c.l.b16 %v844
  %v936 = vunpack.c.h.b16 %v844
  %v937 = vunpack.c.l.b16 %v845
  %v938 = vunpack.c.l.b16 %v846
  %v939 = vunpack.c.h.b16 %v846
  %v940 = vunpack.c.l.b16 %v847
  %v941 = vunpack.c.l.b16 %v848
  %v942 = vunpack.c.h.b16 %v848
  %v943 = vunpack.c.l.b16 %v849
  %v944 = vunpack.c.l.b16 %v850
  %v945 = vunpack.c.h.b16 %v850
  %v946 = vunpack.c.l.b16 %v851
  %v947 = vunpack.c.l.b16 %v852
  %v948 = vunpack.c.h.b16 %v852
  %v949 = vunpack.c.l.b16 %v853
  %v950 = vunpack.c.l.b16 %v854
  %v951 = vunpack.c.h.b16 %v854
  %v952 = vunpack.c.l.b16 %v855
  %v953 = vpack.c.b16 %v908, %v905
  %v954 = vpack.c.b16 %v909, %v906
  %v955 = vpack.c.b16 %v910, %v907
  %v956 = vpack.c.b16 %v914, %v911
  %v957 = vpack.c.b16 %v915, %v912
  %v958 = vpack.c.b16 %v916, %v913
  %v959 = vpack.c.b16 %v920, %v917
  %v960 = vpack.c.b16 %v921, %v918
  %v961 = vpack.c.b16 %v922, %v919
  %v962 = vpack.c.b16 %v926, %v923
  %v963 = vpack.c.b16 %v927, %v924
  %v964 = vpack.c.b16 %v928, %v925
  %v965 = vpack.c.b16 %v932, %v929
  %v966 = vpack.c.b16 %v933, %v930
  %v967 = vpack.c.b16 %v934, %v931
  %v968 = vpack.c.b16 %v938, %v935
  %v969 = vpack.c.b16 %v939, %v936
  %v970 = vpack.c.b16 %v940, %v937
  %v971 = vpack.c.b16 %v944, %v941
  %v972 = vpack.c.b16 %v945, %v942
  %v973 = vpack.c.b16 %v946, %v943
  %v974 = vpack.c.b16 %v950, %v947
  %v975 = vpack.c.b16 %v951, %v948
  %v976 = vpack.c.b16 %v952, %v949
  %1001 = vmatprep.subr.bf16.mxu0 %v954
  %1002 = vmatpush1.bf16.msra.mxu0 %v953
  %1003 = vmatprep.subr.bf16.mxu0 %v957
  %1004 = vmatpush1.bf16.msra.mxu0 %v956
  %1005 = vmatprep.subr.bf16.mxu0 %v960
  %1006 = vmatpush1.bf16.msra.mxu0 %v959
  %1007 = vmatprep.subr.bf16.mxu0 %v963
  %1008 = vmatpush1.bf16.msra.mxu0 %v962
  %1009 = vmatprep.subr.bf16.mxu0 %v966
  %1010 = vmatpush1.bf16.msra.mxu0 %v965
  %1011 = vmatprep.subr.bf16.mxu0 %v969
  %1012 = vmatpush1.bf16.msra.mxu0 %v968
  %1013 = vmatprep.subr.bf16.mxu0 %v972
  %1014 = vmatpush1.bf16.msra.mxu0 %v971
  %1015 = vmatprep.subr.bf16.mxu0 %v975
  %1016 = vmatpush1.bf16.msra.mxu0 %v974
  %1017 = vmatprep.subr.bf16.mxu0 0
  %1018 = vmatpush1.bf16.msra.mxu0 0
  %1019 = vmatprep.subr.bf16.mxu0 0
  %1020 = vmatpush1.bf16.msra.mxu0 0
  %1021 = vmatprep.subr.bf16.mxu0 0
  %1022 = vmatpush1.bf16.msra.mxu0 0
  %1023 = vmatprep.subr.bf16.mxu0 0
  %1024 = vmatpush1.bf16.msra.mxu0 0
  %1025 = vmatprep.subr.bf16.mxu0 0
  %1026 = vmatpush1.bf16.msra.mxu0 0
  %1027 = vmatprep.subr.bf16.mxu0 0
  %1028 = vmatpush1.bf16.msra.mxu0 0
  %1029 = vmatprep.subr.bf16.mxu0 0
  %1030 = vmatpush1.bf16.msra.mxu0 0
  %1031 = vmatprep.subr.bf16.mxu0 0
  %1032 = vmatpush1.bf16.msra.mxu0 0
  %1033 = vmatprep.mubr.bf16.mxu0 0
  %1034 = vmatmul.mubr.bf16.gmra.mrb[0].mxu0 %v389
  %v1035 = vpop.f32.mrb[0].mxu0
  %v1036 = vadd.f32 %v861, %v1035
  %v1037 = vpop.f32.mrb[0].mxu0
  %v1038 = vadd.f32 %v865, %v1037
  %v1039 = vpop.f32.mrb[0].mxu0
  %v1040 = vpop.f32.mrb[0].mxu0
  %1041 = vdwg.mxu0
  %1042 = vmatprep.subr.bf16.mxu0 0
  %1043 = vmatpush1.bf16.msra.mxu0 %v955
  %1044 = vmatprep.subr.bf16.mxu0 0
  %1045 = vmatpush1.bf16.msra.mxu0 %v958
  %1046 = vmatprep.subr.bf16.mxu0 0
  %1047 = vmatpush1.bf16.msra.mxu0 %v961
  %1048 = vmatprep.subr.bf16.mxu0 0
  %1049 = vmatpush1.bf16.msra.mxu0 %v964
  %1050 = vmatprep.subr.bf16.mxu0 0
  %1051 = vmatpush1.bf16.msra.mxu0 %v967
  %1052 = vmatprep.subr.bf16.mxu0 0
  %1053 = vmatpush1.bf16.msra.mxu0 %v970
  %1054 = vmatprep.subr.bf16.mxu0 0
  %1055 = vmatpush1.bf16.msra.mxu0 %v973
  %1056 = vmatprep.subr.bf16.mxu0 0
  %1057 = vmatpush1.bf16.msra.mxu0 %v976
  %1058 = vmatprep.subr.bf16.mxu0 0
  %1059 = vmatpush1.bf16.msra.mxu0 0
  %1060 = vmatprep.subr.bf16.mxu0 0
  %1061 = vmatpush1.bf16.msra.mxu0 0
  %1062 = vmatprep.subr.bf16.mxu0 0
  %1063 = vmatpush1.bf16.msra.mxu0 0
  %1064 = vmatprep.subr.bf16.mxu0 0
  %1065 = vmatpush1.bf16.msra.mxu0 0
  %1066 = vmatprep.subr.bf16.mxu0 0
  %1067 = vmatpush1.bf16.msra.mxu0 0
  %1068 = vmatprep.subr.bf16.mxu0 0
  %1069 = vmatpush1.bf16.msra.mxu0 0
  %1070 = vmatprep.subr.bf16.mxu0 0
  %1071 = vmatpush1.bf16.msra.mxu0 0
  %1072 = vmatprep.subr.bf16.mxu0 0
  %1073 = vmatpush1.bf16.msra.mxu0 0
  %1074 = vmatprep.mubr.bf16.mxu0 0
  %1075 = vmatmul.mubr.bf16.gmra.mrb[0].mxu0 %v389
  %v1076 = vpop.f32.mrb[0].mxu0
  %v1077 = vadd.f32 %v869, %v1076
  %v1078 = vpop.f32.mrb[0].mxu0
  %v1079 = vpop.f32.mrb[0].mxu0
  %v1080 = vpop.f32.mrb[0].mxu0
  %1081 = vdwg.mxu0
  %v1082 = vadd.f32 %v778, %v1036
  %v1083 = vxor.u32 %v1082, 2147483648
  %v1084 = vmul.f32 %v1083, 1.442695
  %v1085 = vpow.pop %v1084
  %v1086 = vadd.f32 %v1085, 1.0
  %v1087 = vrcp.pop %v1086
  %v1088 = vmul.f32 1.0, %v1087
  %v1089 = vadd.f32 %v780, %v1038
  %v1090 = vxor.u32 %v1089, 2147483648
  %v1091 = vmul.f32 %v1090, 1.442695
  %v1092 = vpow.pop %v1091
  %v1093 = vadd.f32 %v1092, 1.0
  %v1094 = vrcp.pop %v1093
  %v1095 = vmul.f32 1.0, %v1094
  %v1096 = vmul.f32 %v1088, %v1077
  %v1097 = vadd.f32 %v819, %v1096
  %v1098 = vtanh.pop %v1097
  %v1099 = vsub.f32 1.0, %v1095
  %v1100 = vmul.f32 %v1099, %v1098
  %v1101 = vmul.f32 %v1095, %v381
  %v1102 = vadd.f32 %v1100, %v1101
  %v1103 = vpack.c.bf16 %v1102, %v1102
  %v1105 = vsel %vm398, %v1103, 0
  %1107 = vmatprep.subr.bf16.mxu0 0
  %1108 = vmatpush1.bf16.msra.mxu0 %v1105
  %1109 = vmatprep.subr.bf16.mxu0 0
  %1110 = vmatpush1.bf16.msra.mxu0 0
  %1111 = vmatprep.subr.bf16.mxu0 0
  %1112 = vmatpush1.bf16.msra.mxu0 0
  %1113 = vmatprep.subr.bf16.mxu0 0
  %1114 = vmatpush1.bf16.msra.mxu0 0
  %1115 = vmatprep.subr.bf16.mxu0 0
  %1116 = vmatpush1.bf16.msra.mxu0 0
  %1117 = vmatprep.subr.bf16.mxu0 0
  %1118 = vmatpush1.bf16.msra.mxu0 0
  %1119 = vmatprep.subr.bf16.mxu0 0
  %1120 = vmatpush1.bf16.msra.mxu0 0
  %1121 = vmatprep.subr.bf16.mxu0 0
  %1122 = vmatpush1.bf16.msra.mxu0 0
  %1123 = vmatprep.subr.bf16.mxu0 0
  %1124 = vmatpush1.bf16.msra.mxu0 0
  %1125 = vmatprep.subr.bf16.mxu0 0
  %1126 = vmatpush1.bf16.msra.mxu0 0
  %1127 = vmatprep.subr.bf16.mxu0 0
  %1128 = vmatpush1.bf16.msra.mxu0 0
  %1129 = vmatprep.subr.bf16.mxu0 0
  %1130 = vmatpush1.bf16.msra.mxu0 0
  %1131 = vmatprep.subr.bf16.mxu0 0
  %1132 = vmatpush1.bf16.msra.mxu0 0
  %1133 = vmatprep.subr.bf16.mxu0 0
  %1134 = vmatpush1.bf16.msra.mxu0 0
  %1135 = vmatprep.subr.bf16.mxu0 0
  %1136 = vmatpush1.bf16.msra.mxu0 0
  %1137 = vmatprep.subr.bf16.mxu0 0
  %1138 = vmatpush1.bf16.msra.mxu0 0
  %1139 = vmatprep.mubr.bf16.mxu0 0
  %1140 = vmatmul.mubr.bf16.gmra.mrb[0].mxu0 %v396
  %v1141 = vpop.f32.mrb[0].mxu0
  %v1142 = vadd.f32 0.0, %v1141
  %v1143 = vpop.f32.mrb[0].mxu0
  %v1144 = vpop.f32.mrb[0].mxu0
  %v1145 = vadd.f32 0.0, %v1144
  %v1146 = vpop.f32.mrb[0].mxu0
  %1147 = vdwg.mxu0
  %v1149 = vsel %vm447, %v1142, 0
  %v1152 = vsel %vm447, %v1145, 0
  %1154 = vmatprep.subr.mxu0 %v444
  %1155 = vmatpush1.msra.mxu0 %v443
  %1156 = vmatprep.subr.mxu0 %v446
  %1157 = vmatpush1.msra.mxu0 %v445
  %1158 = vmatprep.subr.mxu0 0.0
  %1159 = vmatpush1.msra.mxu0 0.0
  %1160 = vmatprep.subr.mxu0 0.0
  %1161 = vmatpush1.msra.mxu0 0.0
  %1162 = vmatprep.subr.mxu0 0.0
  %1163 = vmatpush1.msra.mxu0 0.0
  %1164 = vmatprep.subr.mxu0 0.0
  %1165 = vmatpush1.msra.mxu0 0.0
  %1166 = vmatprep.subr.mxu0 0.0
  %1167 = vmatpush1.msra.mxu0 0.0
  %1168 = vmatprep.subr.mxu0 0.0
  %1169 = vmatpush1.msra.mxu0 0.0
  %1170 = vmatprep.subr.mxu0 0.0
  %1171 = vmatpush1.msra.mxu0 0.0
  %1172 = vmatprep.subr.mxu0 0.0
  %1173 = vmatpush1.msra.mxu0 0.0
  %1174 = vmatprep.subr.mxu0 0.0
  %1175 = vmatpush1.msra.mxu0 0.0
  %1176 = vmatprep.subr.mxu0 0.0
  %1177 = vmatpush1.msra.mxu0 0.0
  %1178 = vmatprep.subr.mxu0 0.0
  %1179 = vmatpush1.msra.mxu0 0.0
  %1180 = vmatprep.subr.mxu0 0.0
  %1181 = vmatpush1.msra.mxu0 0.0
  %1182 = vmatprep.subr.mxu0 0.0
  %1183 = vmatpush1.msra.mxu0 0.0
  %1184 = vmatprep.subr.mxu0 0.0
  %1185 = vmatpush1.msra.mxu0 0.0
  %1186 = vmatprep.subr.mxu0 0.0
  %1187 = vmatpush1.msra.mxu0 0.0
  %1188 = vmatprep.subr.mxu0 0.0
  %1189 = vmatpush1.msra.mxu0 0.0
  %1190 = vmatprep.subr.mxu0 0.0
  %1191 = vmatpush1.msra.mxu0 0.0
  %1192 = vmatprep.subr.mxu0 0.0
  %1193 = vmatpush1.msra.mxu0 0.0
  %1194 = vmatprep.subr.mxu0 0.0
  %1195 = vmatpush1.msra.mxu0 0.0
  %1196 = vmatprep.subr.mxu0 0.0
  %1197 = vmatpush1.msra.mxu0 0.0
  %1198 = vmatprep.subr.mxu0 0.0
  %1199 = vmatpush1.msra.mxu0 0.0
  %1200 = vmatprep.subr.mxu0 0.0
  %1201 = vmatpush1.msra.mxu0 0.0
  %1202 = vmatprep.subr.mxu0 0.0
  %1203 = vmatpush1.msra.mxu0 0.0
  %1204 = vmatprep.subr.mxu0 0.0
  %1205 = vmatpush1.msra.mxu0 0.0
  %1206 = vmatprep.subr.mxu0 0.0
  %1207 = vmatpush1.msra.mxu0 0.0
  %1208 = vmatprep.subr.mxu0 0.0
  %1209 = vmatpush1.msra.mxu0 0.0
  %1210 = vmatprep.subr.mxu0 0.0
  %1211 = vmatpush1.msra.mxu0 0.0
  %1212 = vmatprep.subr.mxu0 0.0
  %1213 = vmatpush1.msra.mxu0 0.0
  %1214 = vmatprep.subr.mxu0 0.0
  %1215 = vmatpush1.msra.mxu0 0.0
  %1216 = vmatprep.subr.mxu0 0.0
  %1217 = vmatpush1.msra.mxu0 0.0
  %1218 = vmatprep.mubr.f32.mxu0 0.0
  %1219 = vmatmul.mubr.f32.gmra.mrb[0].mxu0 %v1149
  %v1220 = vpop.f32.mrb[0].mxu0
  %v1221 = vadd.f32 0.0, %v1220
  %v1222 = vpop.f32.mrb[0].mxu0
  %v1223 = vadd.f32 0.0, %v1222
  %1224 = vmatprep.mubr.f32.mxu0 0.0
  %1225 = vmatmul.mubr.f32.gmra.mrb[0].mxu0 %v1152
  %v1226 = vpop.f32.mrb[0].mxu0
  %v1227 = vadd.f32 0.0, %v1226
  %v1228 = vpop.f32.mrb[0].mxu0
  %v1229 = vadd.f32 0.0, %v1228
  %1230 = vdwg.mxu0
  %v1231 = vmul.f32 %v1221, %v385
  %v1232 = vmul.f32 %v1223, %v386
  %v1233 = vmul.f32 %v1227, %v387
  %v1234 = vmul.f32 %v1229, %v388
  %1235 = vmatprep.subr.mxu0 0.0
  %1236 = vmatpush1.msra.mxu0 %v535
  %1237 = vmatprep.subr.mxu0 0.0
  %1238 = vmatpush1.msra.mxu0 %v536
  %1239 = vmatprep.subr.mxu0 0.0
  %1240 = vmatpush1.msra.mxu0 %v537
  %1241 = vmatprep.subr.mxu0 0.0
  %1242 = vmatpush1.msra.mxu0 %v538
  %1243 = vmatprep.subr.mxu0 0.0
  %1244 = vmatpush1.msra.mxu0 %v539
  %1245 = vmatprep.subr.mxu0 0.0
  %1246 = vmatpush1.msra.mxu0 %v540
  %1247 = vmatprep.subr.mxu0 0.0
  %1248 = vmatpush1.msra.mxu0 %v541
  %1249 = vmatprep.subr.mxu0 0.0
  %1250 = vmatpush1.msra.mxu0 %v542
  %1251 = vmatprep.subr.mxu0 0.0
  %1252 = vmatpush1.msra.mxu0 %v543
  %1253 = vmatprep.subr.mxu0 0.0
  %1254 = vmatpush1.msra.mxu0 %v544
  %1255 = vmatprep.subr.mxu0 0.0
  %1256 = vmatpush1.msra.mxu0 %v545
  %1257 = vmatprep.subr.mxu0 0.0
  %1258 = vmatpush1.msra.mxu0 %v546
  %1259 = vmatprep.subr.mxu0 0.0
  %1260 = vmatpush1.msra.mxu0 %v547
  %1261 = vmatprep.subr.mxu0 0.0
  %1262 = vmatpush1.msra.mxu0 %v548
  %1263 = vmatprep.subr.mxu0 0.0
  %1264 = vmatpush1.msra.mxu0 %v549
  %1265 = vmatprep.subr.mxu0 0.0
  %1266 = vmatpush1.msra.mxu0 %v550
  %1267 = vmatprep.subr.mxu0 0.0
  %1268 = vmatpush1.msra.mxu0 %v551
  %1269 = vmatprep.subr.mxu0 0.0
  %1270 = vmatpush1.msra.mxu0 %v552
  %1271 = vmatprep.subr.mxu0 0.0
  %1272 = vmatpush1.msra.mxu0 %v553
  %1273 = vmatprep.subr.mxu0 0.0
  %1274 = vmatpush1.msra.mxu0 %v554
  %1275 = vmatprep.subr.mxu0 0.0
  %1276 = vmatpush1.msra.mxu0 %v555
  %1277 = vmatprep.subr.mxu0 0.0
  %1278 = vmatpush1.msra.mxu0 %v556
  %1279 = vmatprep.subr.mxu0 0.0
  %1280 = vmatpush1.msra.mxu0 %v557
  %1281 = vmatprep.subr.mxu0 0.0
  %1282 = vmatpush1.msra.mxu0 %v558
  %1283 = vmatprep.subr.mxu0 0.0
  %1284 = vmatpush1.msra.mxu0 %v559
  %1285 = vmatprep.subr.mxu0 0.0
  %1286 = vmatpush1.msra.mxu0 %v560
  %1287 = vmatprep.subr.mxu0 0.0
  %1288 = vmatpush1.msra.mxu0 %v561
  %1289 = vmatprep.subr.mxu0 0.0
  %1290 = vmatpush1.msra.mxu0 %v562
  %1291 = vmatprep.subr.mxu0 0.0
  %1292 = vmatpush1.msra.mxu0 %v563
  %1293 = vmatprep.subr.mxu0 0.0
  %1294 = vmatpush1.msra.mxu0 %v564
  %1295 = vmatprep.subr.mxu0 0.0
  %1296 = vmatpush1.msra.mxu0 %v565
  %1297 = vmatprep.subr.mxu0 0.0
  %1298 = vmatpush1.msra.mxu0 %v566
  %1299 = vmatprep.mubr.f32.mxu0 %v1232
  %1300 = vmatmul.mubr.f32.gmra.mrb[0].mxu0 %v1231
  %v1301 = vpop.f32.mrb[0].mxu0
  %v1302 = vadd.f32 0.0, %v1301
  %v1303 = vpop.f32.mrb[0].mxu0
  %1304 = vmatprep.mubr.f32.mxu0 %v1234
  %1305 = vmatmul.mubr.f32.gmra.mrb[0].mxu0 %v1233
  %v1306 = vpop.f32.mrb[0].mxu0
  %v1307 = vadd.f32 0.0, %v1306
  %v1308 = vpop.f32.mrb[0].mxu0
  %1309 = vdwg.mxu0
  %v1310 = vpack.c.bf16 %v1307, %v1302
  %1311 = vmatprep.subr.bf16.mxu0 0
  %1312 = vmatpush1.bf16.msra.mxu0 %v1310
  %1313 = vmatprep.subr.bf16.mxu0 0
  %1314 = vmatpush1.bf16.msra.mxu0 0
  %1315 = vmatprep.subr.bf16.mxu0 0
  %1316 = vmatpush1.bf16.msra.mxu0 0
  %1317 = vmatprep.subr.bf16.mxu0 0
  %1318 = vmatpush1.bf16.msra.mxu0 0
  %1319 = vmatprep.subr.bf16.mxu0 0
  %1320 = vmatpush1.bf16.msra.mxu0 0
  %1321 = vmatprep.subr.bf16.mxu0 0
  %1322 = vmatpush1.bf16.msra.mxu0 0
  %1323 = vmatprep.subr.bf16.mxu0 0
  %1324 = vmatpush1.bf16.msra.mxu0 0
  %1325 = vmatprep.subr.bf16.mxu0 0
  %1326 = vmatpush1.bf16.msra.mxu0 0
  %1327 = vmatprep.subr.bf16.mxu0 0
  %1328 = vmatpush1.bf16.msra.mxu0 0
  %1329 = vmatprep.subr.bf16.mxu0 0
  %1330 = vmatpush1.bf16.msra.mxu0 0
  %1331 = vmatprep.subr.bf16.mxu0 0
  %1332 = vmatpush1.bf16.msra.mxu0 0
  %1333 = vmatprep.subr.bf16.mxu0 0
  %1334 = vmatpush1.bf16.msra.mxu0 0
  %1335 = vmatprep.subr.bf16.mxu0 0
  %1336 = vmatpush1.bf16.msra.mxu0 0
  %1337 = vmatprep.subr.bf16.mxu0 0
  %1338 = vmatpush1.bf16.msra.mxu0 0
  %1339 = vmatprep.subr.bf16.mxu0 0
  %1340 = vmatpush1.bf16.msra.mxu0 0
  %1341 = vmatprep.subr.bf16.mxu0 0
  %1342 = vmatpush1.bf16.msra.mxu0 0
  %1343 = vmatprep.mubr.bf16.mxu0 0
  %1344 = vmatmul.mubr.bf16.gmra.mrb[0].mxu0 %v644
  %v1345 = vpop.f32.mrb[0].mxu0
  %v1346 = vadd.f32 0.0, %v1345
  %v1347 = vpop.f32.mrb[0].mxu0
  %v1348 = vpop.f32.mrb[0].mxu0
  %v1349 = vpop.f32.mrb[0].mxu0
  %1350 = vdwg.mxu0
  %v1351 = vmul.f32 %v1346, %v690
  %v1352 = vadd.f32 %v1351, %v698
  %v1353 = vmax.f32 %v1352, 0.0
  %v1354 = vpack.c.bf16 %v1353, %v1353
  %v1356 = vsel %vm447, %v1354, 0
  %1358 = vmatprep.subr.bf16.mxu0 %v735
  %1359 = vmatpush1.bf16.msra.mxu0 %v734
  %1360 = vmatprep.subr.bf16.mxu0 0
  %1361 = vmatpush1.bf16.msra.mxu0 0
  %1362 = vmatprep.subr.bf16.mxu0 0
  %1363 = vmatpush1.bf16.msra.mxu0 0
  %1364 = vmatprep.subr.bf16.mxu0 0
  %1365 = vmatpush1.bf16.msra.mxu0 0
  %1366 = vmatprep.subr.bf16.mxu0 0
  %1367 = vmatpush1.bf16.msra.mxu0 0
  %1368 = vmatprep.subr.bf16.mxu0 0
  %1369 = vmatpush1.bf16.msra.mxu0 0
  %1370 = vmatprep.subr.bf16.mxu0 0
  %1371 = vmatpush1.bf16.msra.mxu0 0
  %1372 = vmatprep.subr.bf16.mxu0 0
  %1373 = vmatpush1.bf16.msra.mxu0 0
  %1374 = vmatprep.subr.bf16.mxu0 0
  %1375 = vmatpush1.bf16.msra.mxu0 0
  %1376 = vmatprep.subr.bf16.mxu0 0
  %1377 = vmatpush1.bf16.msra.mxu0 0
  %1378 = vmatprep.subr.bf16.mxu0 0
  %1379 = vmatpush1.bf16.msra.mxu0 0
  %1380 = vmatprep.subr.bf16.mxu0 0
  %1381 = vmatpush1.bf16.msra.mxu0 0
  %1382 = vmatprep.subr.bf16.mxu0 0
  %1383 = vmatpush1.bf16.msra.mxu0 0
  %1384 = vmatprep.subr.bf16.mxu0 0
  %1385 = vmatpush1.bf16.msra.mxu0 0
  %1386 = vmatprep.subr.bf16.mxu0 0
  %1387 = vmatpush1.bf16.msra.mxu0 0
  %1388 = vmatprep.subr.bf16.mxu0 0
  %1389 = vmatpush1.bf16.msra.mxu0 0
  %1390 = vmatprep.mubr.bf16.mxu0 0
  %1391 = vmatmul.mubr.bf16.gmra.mrb[0].mxu0 %v1356
  %v1392 = vpop.f32.mrb[0].mxu0
  %v1393 = vadd.f32 %v712, %v1392
  %v1394 = vpop.f32.mrb[0].mxu0
  %v1395 = vadd.f32 %v716, %v1394
  %v1396 = vpop.f32.mrb[0].mxu0
  %v1397 = vpop.f32.mrb[0].mxu0
  %1398 = vdwg.mxu0
  %1399 = vmatprep.subr.bf16.mxu0 0
  %1400 = vmatpush1.bf16.msra.mxu0 %v736
  %1401 = vmatprep.subr.bf16.mxu0 0
  %1402 = vmatpush1.bf16.msra.mxu0 0
  %1403 = vmatprep.subr.bf16.mxu0 0
  %1404 = vmatpush1.bf16.msra.mxu0 0
  %1405 = vmatprep.subr.bf16.mxu0 0
  %1406 = vmatpush1.bf16.msra.mxu0 0
  %1407 = vmatprep.subr.bf16.mxu0 0
  %1408 = vmatpush1.bf16.msra.mxu0 0
  %1409 = vmatprep.subr.bf16.mxu0 0
  %1410 = vmatpush1.bf16.msra.mxu0 0
  %1411 = vmatprep.subr.bf16.mxu0 0
  %1412 = vmatpush1.bf16.msra.mxu0 0
  %1413 = vmatprep.subr.bf16.mxu0 0
  %1414 = vmatpush1.bf16.msra.mxu0 0
  %1415 = vmatprep.subr.bf16.mxu0 0
  %1416 = vmatpush1.bf16.msra.mxu0 0
  %1417 = vmatprep.subr.bf16.mxu0 0
  %1418 = vmatpush1.bf16.msra.mxu0 0
  %1419 = vmatprep.subr.bf16.mxu0 0
  %1420 = vmatpush1.bf16.msra.mxu0 0
  %1421 = vmatprep.subr.bf16.mxu0 0
  %1422 = vmatpush1.bf16.msra.mxu0 0
  %1423 = vmatprep.subr.bf16.mxu0 0
  %1424 = vmatpush1.bf16.msra.mxu0 0
  %1425 = vmatprep.subr.bf16.mxu0 0
  %1426 = vmatpush1.bf16.msra.mxu0 0
  %1427 = vmatprep.subr.bf16.mxu0 0
  %1428 = vmatpush1.bf16.msra.mxu0 0
  %1429 = vmatprep.subr.bf16.mxu0 0
  %1430 = vmatpush1.bf16.msra.mxu0 0
  %1431 = vmatprep.mubr.bf16.mxu0 0
  %1432 = vmatmul.mubr.bf16.gmra.mrb[0].mxu0 %v1356
  %v1433 = vpop.f32.mrb[0].mxu0
  %v1434 = vadd.f32 %v720, %v1433
  %v1435 = vpop.f32.mrb[0].mxu0
  %v1436 = vpop.f32.mrb[0].mxu0
  %v1437 = vpop.f32.mrb[0].mxu0
  %1438 = vdwg.mxu0
  %1439 = vmatprep.subr.bf16.mxu0 %v954
  %1440 = vmatpush1.bf16.msra.mxu0 %v953
  %1441 = vmatprep.subr.bf16.mxu0 %v957
  %1442 = vmatpush1.bf16.msra.mxu0 %v956
  %1443 = vmatprep.subr.bf16.mxu0 %v960
  %1444 = vmatpush1.bf16.msra.mxu0 %v959
  %1445 = vmatprep.subr.bf16.mxu0 %v963
  %1446 = vmatpush1.bf16.msra.mxu0 %v962
  %1447 = vmatprep.subr.bf16.mxu0 %v966
  %1448 = vmatpush1.bf16.msra.mxu0 %v965
  %1449 = vmatprep.subr.bf16.mxu0 %v969
  %1450 = vmatpush1.bf16.msra.mxu0 %v968
  %1451 = vmatprep.subr.bf16.mxu0 %v972
  %1452 = vmatpush1.bf16.msra.mxu0 %v971
  %1453 = vmatprep.subr.bf16.mxu0 %v975
  %1454 = vmatpush1.bf16.msra.mxu0 %v974
  %1455 = vmatprep.subr.bf16.mxu0 0
  %1456 = vmatpush1.bf16.msra.mxu0 0
  %1457 = vmatprep.subr.bf16.mxu0 0
  %1458 = vmatpush1.bf16.msra.mxu0 0
  %1459 = vmatprep.subr.bf16.mxu0 0
  %1460 = vmatpush1.bf16.msra.mxu0 0
  %1461 = vmatprep.subr.bf16.mxu0 0
  %1462 = vmatpush1.bf16.msra.mxu0 0
  %1463 = vmatprep.subr.bf16.mxu0 0
  %1464 = vmatpush1.bf16.msra.mxu0 0
  %1465 = vmatprep.subr.bf16.mxu0 0
  %1466 = vmatpush1.bf16.msra.mxu0 0
  %1467 = vmatprep.subr.bf16.mxu0 0
  %1468 = vmatpush1.bf16.msra.mxu0 0
  %1469 = vmatprep.subr.bf16.mxu0 0
  %1470 = vmatpush1.bf16.msra.mxu0 0
  %1471 = vmatprep.mubr.bf16.mxu0 0
  %1472 = vmatmul.mubr.bf16.gmra.mrb[0].mxu0 %v1103
  %v1473 = vpop.f32.mrb[0].mxu0
  %v1474 = vadd.f32 %v861, %v1473
  %v1475 = vpop.f32.mrb[0].mxu0
  %v1476 = vadd.f32 %v865, %v1475
  %v1477 = vpop.f32.mrb[0].mxu0
  %v1478 = vpop.f32.mrb[0].mxu0
  %1479 = vdwg.mxu0
  %1480 = vmatprep.subr.bf16.mxu0 0
  %1481 = vmatpush1.bf16.msra.mxu0 %v955
  %1482 = vmatprep.subr.bf16.mxu0 0
  %1483 = vmatpush1.bf16.msra.mxu0 %v958
  %1484 = vmatprep.subr.bf16.mxu0 0
  %1485 = vmatpush1.bf16.msra.mxu0 %v961
  %1486 = vmatprep.subr.bf16.mxu0 0
  %1487 = vmatpush1.bf16.msra.mxu0 %v964
  %1488 = vmatprep.subr.bf16.mxu0 0
  %1489 = vmatpush1.bf16.msra.mxu0 %v967
  %1490 = vmatprep.subr.bf16.mxu0 0
  %1491 = vmatpush1.bf16.msra.mxu0 %v970
  %1492 = vmatprep.subr.bf16.mxu0 0
  %1493 = vmatpush1.bf16.msra.mxu0 %v973
  %1494 = vmatprep.subr.bf16.mxu0 0
  %1495 = vmatpush1.bf16.msra.mxu0 %v976
  %1496 = vmatprep.subr.bf16.mxu0 0
  %1497 = vmatpush1.bf16.msra.mxu0 0
  %1498 = vmatprep.subr.bf16.mxu0 0
  %1499 = vmatpush1.bf16.msra.mxu0 0
  %1500 = vmatprep.subr.bf16.mxu0 0
  %1501 = vmatpush1.bf16.msra.mxu0 0
  %1502 = vmatprep.subr.bf16.mxu0 0
  %1503 = vmatpush1.bf16.msra.mxu0 0
  %1504 = vmatprep.subr.bf16.mxu0 0
  %1505 = vmatpush1.bf16.msra.mxu0 0
  %1506 = vmatprep.subr.bf16.mxu0 0
  %1507 = vmatpush1.bf16.msra.mxu0 0
  %1508 = vmatprep.subr.bf16.mxu0 0
  %1509 = vmatpush1.bf16.msra.mxu0 0
  %1510 = vmatprep.subr.bf16.mxu0 0
  %1511 = vmatpush1.bf16.msra.mxu0 0
  %1512 = vmatprep.mubr.bf16.mxu0 0
  %1513 = vmatmul.mubr.bf16.gmra.mrb[0].mxu0 %v1103
  %v1514 = vpop.f32.mrb[0].mxu0
  %v1515 = vadd.f32 %v869, %v1514
  %v1516 = vpop.f32.mrb[0].mxu0
  %v1517 = vpop.f32.mrb[0].mxu0
  %v1518 = vpop.f32.mrb[0].mxu0
  %1519 = vdwg.mxu0
  %v1520 = vadd.f32 %v1393, %v1474
  %v1521 = vxor.u32 %v1520, 2147483648
  %v1522 = vmul.f32 %v1521, 1.442695
  %v1523 = vpow.pop %v1522
  %v1524 = vadd.f32 %v1523, 1.0
  %v1525 = vrcp.pop %v1524
  %v1526 = vmul.f32 1.0, %v1525
  %v1527 = vadd.f32 %v1395, %v1476
  %v1528 = vxor.u32 %v1527, 2147483648
  %v1529 = vmul.f32 %v1528, 1.442695
  %v1530 = vpow.pop %v1529
  %v1531 = vadd.f32 %v1530, 1.0
  %v1532 = vrcp.pop %v1531
  %v1533 = vmul.f32 1.0, %v1532
  %v1534 = vmul.f32 %v1526, %v1515
  %v1535 = vadd.f32 %v1434, %v1534
  %v1536 = vtanh.pop %v1535
  %v1537 = vsub.f32 1.0, %v1533
  %v1538 = vmul.f32 %v1537, %v1536
  %v1539 = vmul.f32 %v1533, %v1102
  %v1540 = vadd.f32 %v1538, %v1539
  %v1541 = vpack.c.bf16 %v1540, %v1540
  %v1543 = vsel %vm398, %v1541, 0
  %1545 = vmatprep.subr.bf16.mxu0 0
  %1546 = vmatpush1.bf16.msra.mxu0 %v1543
  %1547 = vmatprep.subr.bf16.mxu0 0
  %1548 = vmatpush1.bf16.msra.mxu0 0
  %1549 = vmatprep.subr.bf16.mxu0 0
  %1550 = vmatpush1.bf16.msra.mxu0 0
  %1551 = vmatprep.subr.bf16.mxu0 0
  %1552 = vmatpush1.bf16.msra.mxu0 0
  %1553 = vmatprep.subr.bf16.mxu0 0
  %1554 = vmatpush1.bf16.msra.mxu0 0
  %1555 = vmatprep.subr.bf16.mxu0 0
  %1556 = vmatpush1.bf16.msra.mxu0 0
  %1557 = vmatprep.subr.bf16.mxu0 0
  %1558 = vmatpush1.bf16.msra.mxu0 0
  %1559 = vmatprep.subr.bf16.mxu0 0
  %1560 = vmatpush1.bf16.msra.mxu0 0
  %1561 = vmatprep.subr.bf16.mxu0 0
  %1562 = vmatpush1.bf16.msra.mxu0 0
  %1563 = vmatprep.subr.bf16.mxu0 0
  %1564 = vmatpush1.bf16.msra.mxu0 0
  %1565 = vmatprep.subr.bf16.mxu0 0
  %1566 = vmatpush1.bf16.msra.mxu0 0
  %1567 = vmatprep.subr.bf16.mxu0 0
  %1568 = vmatpush1.bf16.msra.mxu0 0
  %1569 = vmatprep.subr.bf16.mxu0 0
  %1570 = vmatpush1.bf16.msra.mxu0 0
  %1571 = vmatprep.subr.bf16.mxu0 0
  %1572 = vmatpush1.bf16.msra.mxu0 0
  %1573 = vmatprep.subr.bf16.mxu0 0
  %1574 = vmatpush1.bf16.msra.mxu0 0
  %1575 = vmatprep.subr.bf16.mxu0 0
  %1576 = vmatpush1.bf16.msra.mxu0 0
  %1577 = vmatprep.mubr.bf16.mxu0 0
  %1578 = vmatmul.mubr.bf16.gmra.mrb[0].mxu0 %v396
  %v1579 = vpop.f32.mrb[0].mxu0
  %v1580 = vadd.f32 0.0, %v1579
  %v1581 = vpop.f32.mrb[0].mxu0
  %v1582 = vpop.f32.mrb[0].mxu0
  %v1583 = vadd.f32 0.0, %v1582
  %v1584 = vpop.f32.mrb[0].mxu0
  %1585 = vdwg.mxu0
  %v1587 = vsel %vm447, %v1580, 0
  %v1590 = vsel %vm447, %v1583, 0
  %1592 = vmatprep.subr.mxu0 %v444
  %1593 = vmatpush1.msra.mxu0 %v443
  %1594 = vmatprep.subr.mxu0 %v446
  %1595 = vmatpush1.msra.mxu0 %v445
  %1596 = vmatprep.subr.mxu0 0.0
  %1597 = vmatpush1.msra.mxu0 0.0
  %1598 = vmatprep.subr.mxu0 0.0
  %1599 = vmatpush1.msra.mxu0 0.0
  %1600 = vmatprep.subr.mxu0 0.0
  %1601 = vmatpush1.msra.mxu0 0.0
  %1602 = vmatprep.subr.mxu0 0.0
  %1603 = vmatpush1.msra.mxu0 0.0
  %1604 = vmatprep.subr.mxu0 0.0
  %1605 = vmatpush1.msra.mxu0 0.0
  %1606 = vmatprep.subr.mxu0 0.0
  %1607 = vmatpush1.msra.mxu0 0.0
  %1608 = vmatprep.subr.mxu0 0.0
  %1609 = vmatpush1.msra.mxu0 0.0
  %1610 = vmatprep.subr.mxu0 0.0
  %1611 = vmatpush1.msra.mxu0 0.0
  %1612 = vmatprep.subr.mxu0 0.0
  %1613 = vmatpush1.msra.mxu0 0.0
  %1614 = vmatprep.subr.mxu0 0.0
  %1615 = vmatpush1.msra.mxu0 0.0
  %1616 = vmatprep.subr.mxu0 0.0
  %1617 = vmatpush1.msra.mxu0 0.0
  %1618 = vmatprep.subr.mxu0 0.0
  %1619 = vmatpush1.msra.mxu0 0.0
  %1620 = vmatprep.subr.mxu0 0.0
  %1621 = vmatpush1.msra.mxu0 0.0
  %1622 = vmatprep.subr.mxu0 0.0
  %1623 = vmatpush1.msra.mxu0 0.0
  %1624 = vmatprep.subr.mxu0 0.0
  %1625 = vmatpush1.msra.mxu0 0.0
  %1626 = vmatprep.subr.mxu0 0.0
  %1627 = vmatpush1.msra.mxu0 0.0
  %1628 = vmatprep.subr.mxu0 0.0
  %1629 = vmatpush1.msra.mxu0 0.0
  %1630 = vmatprep.subr.mxu0 0.0
  %1631 = vmatpush1.msra.mxu0 0.0
  %1632 = vmatprep.subr.mxu0 0.0
  %1633 = vmatpush1.msra.mxu0 0.0
  %1634 = vmatprep.subr.mxu0 0.0
  %1635 = vmatpush1.msra.mxu0 0.0
  %1636 = vmatprep.subr.mxu0 0.0
  %1637 = vmatpush1.msra.mxu0 0.0
  %1638 = vmatprep.subr.mxu0 0.0
  %1639 = vmatpush1.msra.mxu0 0.0
  %1640 = vmatprep.subr.mxu0 0.0
  %1641 = vmatpush1.msra.mxu0 0.0
  %1642 = vmatprep.subr.mxu0 0.0
  %1643 = vmatpush1.msra.mxu0 0.0
  %1644 = vmatprep.subr.mxu0 0.0
  %1645 = vmatpush1.msra.mxu0 0.0
  %1646 = vmatprep.subr.mxu0 0.0
  %1647 = vmatpush1.msra.mxu0 0.0
  %1648 = vmatprep.subr.mxu0 0.0
  %1649 = vmatpush1.msra.mxu0 0.0
  %1650 = vmatprep.subr.mxu0 0.0
  %1651 = vmatpush1.msra.mxu0 0.0
  %1652 = vmatprep.subr.mxu0 0.0
  %1653 = vmatpush1.msra.mxu0 0.0
  %1654 = vmatprep.subr.mxu0 0.0
  %1655 = vmatpush1.msra.mxu0 0.0
  %1656 = vmatprep.mubr.f32.mxu0 0.0
  %1657 = vmatmul.mubr.f32.gmra.mrb[0].mxu0 %v1587
  %v1658 = vpop.f32.mrb[0].mxu0
  %v1659 = vadd.f32 0.0, %v1658
  %v1660 = vpop.f32.mrb[0].mxu0
  %v1661 = vadd.f32 0.0, %v1660
  %1662 = vmatprep.mubr.f32.mxu0 0.0
  %1663 = vmatmul.mubr.f32.gmra.mrb[0].mxu0 %v1590
  %v1664 = vpop.f32.mrb[0].mxu0
  %v1665 = vadd.f32 0.0, %v1664
  %v1666 = vpop.f32.mrb[0].mxu0
  %v1667 = vadd.f32 0.0, %v1666
  %1668 = vdwg.mxu0
  %v1669 = vmul.f32 %v1659, %v385
  %v1670 = vmul.f32 %v1661, %v386
  %v1671 = vmul.f32 %v1665, %v387
  %v1672 = vmul.f32 %v1667, %v388
  %1673 = vmatprep.subr.mxu0 0.0
  %1674 = vmatpush1.msra.mxu0 %v535
  %1675 = vmatprep.subr.mxu0 0.0
  %1676 = vmatpush1.msra.mxu0 %v536
  %1677 = vmatprep.subr.mxu0 0.0
  %1678 = vmatpush1.msra.mxu0 %v537
  %1679 = vmatprep.subr.mxu0 0.0
  %1680 = vmatpush1.msra.mxu0 %v538
  %1681 = vmatprep.subr.mxu0 0.0
  %1682 = vmatpush1.msra.mxu0 %v539
  %1683 = vmatprep.subr.mxu0 0.0
  %1684 = vmatpush1.msra.mxu0 %v540
  %1685 = vmatprep.subr.mxu0 0.0
  %1686 = vmatpush1.msra.mxu0 %v541
  %1687 = vmatprep.subr.mxu0 0.0
  %1688 = vmatpush1.msra.mxu0 %v542
  %1689 = vmatprep.subr.mxu0 0.0
  %1690 = vmatpush1.msra.mxu0 %v543
  %1691 = vmatprep.subr.mxu0 0.0
  %1692 = vmatpush1.msra.mxu0 %v544
  %1693 = vmatprep.subr.mxu0 0.0
  %1694 = vmatpush1.msra.mxu0 %v545
  %1695 = vmatprep.subr.mxu0 0.0
  %1696 = vmatpush1.msra.mxu0 %v546
  %1697 = vmatprep.subr.mxu0 0.0
  %1698 = vmatpush1.msra.mxu0 %v547
  %1699 = vmatprep.subr.mxu0 0.0
  %1700 = vmatpush1.msra.mxu0 %v548
  %1701 = vmatprep.subr.mxu0 0.0
  %1702 = vmatpush1.msra.mxu0 %v549
  %1703 = vmatprep.subr.mxu0 0.0
  %1704 = vmatpush1.msra.mxu0 %v550
  %1705 = vmatprep.subr.mxu0 0.0
  %1706 = vmatpush1.msra.mxu0 %v551
  %1707 = vmatprep.subr.mxu0 0.0
  %1708 = vmatpush1.msra.mxu0 %v552
  %1709 = vmatprep.subr.mxu0 0.0
  %1710 = vmatpush1.msra.mxu0 %v553
  %1711 = vmatprep.subr.mxu0 0.0
  %1712 = vmatpush1.msra.mxu0 %v554
  %1713 = vmatprep.subr.mxu0 0.0
  %1714 = vmatpush1.msra.mxu0 %v555
  %1715 = vmatprep.subr.mxu0 0.0
  %1716 = vmatpush1.msra.mxu0 %v556
  %1717 = vmatprep.subr.mxu0 0.0
  %1718 = vmatpush1.msra.mxu0 %v557
  %1719 = vmatprep.subr.mxu0 0.0
  %1720 = vmatpush1.msra.mxu0 %v558
  %1721 = vmatprep.subr.mxu0 0.0
  %1722 = vmatpush1.msra.mxu0 %v559
  %1723 = vmatprep.subr.mxu0 0.0
  %1724 = vmatpush1.msra.mxu0 %v560
  %1725 = vmatprep.subr.mxu0 0.0
  %1726 = vmatpush1.msra.mxu0 %v561
  %1727 = vmatprep.subr.mxu0 0.0
  %1728 = vmatpush1.msra.mxu0 %v562
  %1729 = vmatprep.subr.mxu0 0.0
  %1730 = vmatpush1.msra.mxu0 %v563
  %1731 = vmatprep.subr.mxu0 0.0
  %1732 = vmatpush1.msra.mxu0 %v564
  %1733 = vmatprep.subr.mxu0 0.0
  %1734 = vmatpush1.msra.mxu0 %v565
  %1735 = vmatprep.subr.mxu0 0.0
  %1736 = vmatpush1.msra.mxu0 %v566
  %1737 = vmatprep.mubr.f32.mxu0 %v1670
  %1738 = vmatmul.mubr.f32.gmra.mrb[0].mxu0 %v1669
  %v1739 = vpop.f32.mrb[0].mxu0
  %v1740 = vadd.f32 0.0, %v1739
  %v1741 = vpop.f32.mrb[0].mxu0
  %1742 = vmatprep.mubr.f32.mxu0 %v1672
  %1743 = vmatmul.mubr.f32.gmra.mrb[0].mxu0 %v1671
  %v1744 = vpop.f32.mrb[0].mxu0
  %v1745 = vadd.f32 0.0, %v1744
  %v1746 = vpop.f32.mrb[0].mxu0
  %1747 = vdwg.mxu0
  %v1748 = vpack.c.bf16 %v1745, %v1740
  %1749 = vmatprep.subr.bf16.mxu0 0
  %1750 = vmatpush1.bf16.msra.mxu0 %v1748
  %1751 = vmatprep.subr.bf16.mxu0 0
  %1752 = vmatpush1.bf16.msra.mxu0 0
  %1753 = vmatprep.subr.bf16.mxu0 0
  %1754 = vmatpush1.bf16.msra.mxu0 0
  %1755 = vmatprep.subr.bf16.mxu0 0
  %1756 = vmatpush1.bf16.msra.mxu0 0
  %1757 = vmatprep.subr.bf16.mxu0 0
  %1758 = vmatpush1.bf16.msra.mxu0 0
  %1759 = vmatprep.subr.bf16.mxu0 0
  %1760 = vmatpush1.bf16.msra.mxu0 0
  %1761 = vmatprep.subr.bf16.mxu0 0
  %1762 = vmatpush1.bf16.msra.mxu0 0
  %1763 = vmatprep.subr.bf16.mxu0 0
  %1764 = vmatpush1.bf16.msra.mxu0 0
  %1765 = vmatprep.subr.bf16.mxu0 0
  %1766 = vmatpush1.bf16.msra.mxu0 0
  %1767 = vmatprep.subr.bf16.mxu0 0
  %1768 = vmatpush1.bf16.msra.mxu0 0
  %1769 = vmatprep.subr.bf16.mxu0 0
  %1770 = vmatpush1.bf16.msra.mxu0 0
  %1771 = vmatprep.subr.bf16.mxu0 0
  %1772 = vmatpush1.bf16.msra.mxu0 0
  %1773 = vmatprep.subr.bf16.mxu0 0
  %1774 = vmatpush1.bf16.msra.mxu0 0
  %1775 = vmatprep.subr.bf16.mxu0 0
  %1776 = vmatpush1.bf16.msra.mxu0 0
  %1777 = vmatprep.subr.bf16.mxu0 0
  %1778 = vmatpush1.bf16.msra.mxu0 0
  %1779 = vmatprep.subr.bf16.mxu0 0
  %1780 = vmatpush1.bf16.msra.mxu0 0
  %1781 = vmatprep.mubr.bf16.mxu0 0
  %1782 = vmatmul.mubr.bf16.gmra.mrb[0].mxu0 %v644
  %v1783 = vpop.f32.mrb[0].mxu0
  %v1784 = vadd.f32 0.0, %v1783
  %v1785 = vpop.f32.mrb[0].mxu0
  %v1786 = vpop.f32.mrb[0].mxu0
  %v1787 = vpop.f32.mrb[0].mxu0
  %1788 = vdwg.mxu0
  %v1789 = vmul.f32 %v1784, %v690
  %v1790 = vadd.f32 %v1789, %v698
  %v1791 = vmax.f32 %v1790, 0.0
  %v1792 = vpack.c.bf16 %v1791, %v1791
  %v1794 = vsel %vm447, %v1792, 0
  %1796 = vmatprep.subr.bf16.mxu0 %v735
  %1797 = vmatpush1.bf16.msra.mxu0 %v734
  %1798 = vmatprep.subr.bf16.mxu0 0
  %1799 = vmatpush1.bf16.msra.mxu0 0
  %1800 = vmatprep.subr.bf16.mxu0 0
  %1801 = vmatpush1.bf16.msra.mxu0 0
  %1802 = vmatprep.subr.bf16.mxu0 0
  %1803 = vmatpush1.bf16.msra.mxu0 0
  %1804 = vmatprep.subr.bf16.mxu0 0
  %1805 = vmatpush1.bf16.msra.mxu0 0
  %1806 = vmatprep.subr.bf16.mxu0 0
  %1807 = vmatpush1.bf16.msra.mxu0 0
  %1808 = vmatprep.subr.bf16.mxu0 0
  %1809 = vmatpush1.bf16.msra.mxu0 0
  %1810 = vmatprep.subr.bf16.mxu0 0
  %1811 = vmatpush1.bf16.msra.mxu0 0
  %1812 = vmatprep.subr.bf16.mxu0 0
  %1813 = vmatpush1.bf16.msra.mxu0 0
  %1814 = vmatprep.subr.bf16.mxu0 0
  %1815 = vmatpush1.bf16.msra.mxu0 0
  %1816 = vmatprep.subr.bf16.mxu0 0
  %1817 = vmatpush1.bf16.msra.mxu0 0
  %1818 = vmatprep.subr.bf16.mxu0 0
  %1819 = vmatpush1.bf16.msra.mxu0 0
  %1820 = vmatprep.subr.bf16.mxu0 0
  %1821 = vmatpush1.bf16.msra.mxu0 0
  %1822 = vmatprep.subr.bf16.mxu0 0
  %1823 = vmatpush1.bf16.msra.mxu0 0
  %1824 = vmatprep.subr.bf16.mxu0 0
  %1825 = vmatpush1.bf16.msra.mxu0 0
  %1826 = vmatprep.subr.bf16.mxu0 0
  %1827 = vmatpush1.bf16.msra.mxu0 0
  %1828 = vmatprep.mubr.bf16.mxu0 0
  %1829 = vmatmul.mubr.bf16.gmra.mrb[0].mxu0 %v1794
  %v1830 = vpop.f32.mrb[0].mxu0
  %v1831 = vadd.f32 %v712, %v1830
  %v1832 = vpop.f32.mrb[0].mxu0
  %v1833 = vadd.f32 %v716, %v1832
  %v1834 = vpop.f32.mrb[0].mxu0
  %v1835 = vpop.f32.mrb[0].mxu0
  %1836 = vdwg.mxu0
  %1837 = vmatprep.subr.bf16.mxu0 0
  %1838 = vmatpush1.bf16.msra.mxu0 %v736
  %1839 = vmatprep.subr.bf16.mxu0 0
  %1840 = vmatpush1.bf16.msra.mxu0 0
  %1841 = vmatprep.subr.bf16.mxu0 0
  %1842 = vmatpush1.bf16.msra.mxu0 0
  %1843 = vmatprep.subr.bf16.mxu0 0
  %1844 = vmatpush1.bf16.msra.mxu0 0
  %1845 = vmatprep.subr.bf16.mxu0 0
  %1846 = vmatpush1.bf16.msra.mxu0 0
  %1847 = vmatprep.subr.bf16.mxu0 0
  %1848 = vmatpush1.bf16.msra.mxu0 0
  %1849 = vmatprep.subr.bf16.mxu0 0
  %1850 = vmatpush1.bf16.msra.mxu0 0
  %1851 = vmatprep.subr.bf16.mxu0 0
  %1852 = vmatpush1.bf16.msra.mxu0 0
  %1853 = vmatprep.subr.bf16.mxu0 0
  %1854 = vmatpush1.bf16.msra.mxu0 0
  %1855 = vmatprep.subr.bf16.mxu0 0
  %1856 = vmatpush1.bf16.msra.mxu0 0
  %1857 = vmatprep.subr.bf16.mxu0 0
  %1858 = vmatpush1.bf16.msra.mxu0 0
  %1859 = vmatprep.subr.bf16.mxu0 0
  %1860 = vmatpush1.bf16.msra.mxu0 0
  %1861 = vmatprep.subr.bf16.mxu0 0
  %1862 = vmatpush1.bf16.msra.mxu0 0
  %1863 = vmatprep.subr.bf16.mxu0 0
  %1864 = vmatpush1.bf16.msra.mxu0 0
  %1865 = vmatprep.subr.bf16.mxu0 0
  %1866 = vmatpush1.bf16.msra.mxu0 0
  %1867 = vmatprep.subr.bf16.mxu0 0
  %1868 = vmatpush1.bf16.msra.mxu0 0
  %1869 = vmatprep.mubr.bf16.mxu0 0
  %1870 = vmatmul.mubr.bf16.gmra.mrb[0].mxu0 %v1794
  %v1871 = vpop.f32.mrb[0].mxu0
  %v1872 = vadd.f32 %v720, %v1871
  %v1873 = vpop.f32.mrb[0].mxu0
  %v1874 = vpop.f32.mrb[0].mxu0
  %v1875 = vpop.f32.mrb[0].mxu0
  %1876 = vdwg.mxu0
  %1877 = vmatprep.subr.bf16.mxu0 %v954
  %1878 = vmatpush1.bf16.msra.mxu0 %v953
  %1879 = vmatprep.subr.bf16.mxu0 %v957
  %1880 = vmatpush1.bf16.msra.mxu0 %v956
  %1881 = vmatprep.subr.bf16.mxu0 %v960
  %1882 = vmatpush1.bf16.msra.mxu0 %v959
  %1883 = vmatprep.subr.bf16.mxu0 %v963
  %1884 = vmatpush1.bf16.msra.mxu0 %v962
  %1885 = vmatprep.subr.bf16.mxu0 %v966
  %1886 = vmatpush1.bf16.msra.mxu0 %v965
  %1887 = vmatprep.subr.bf16.mxu0 %v969
  %1888 = vmatpush1.bf16.msra.mxu0 %v968
  %1889 = vmatprep.subr.bf16.mxu0 %v972
  %1890 = vmatpush1.bf16.msra.mxu0 %v971
  %1891 = vmatprep.subr.bf16.mxu0 %v975
  %1892 = vmatpush1.bf16.msra.mxu0 %v974
  %1893 = vmatprep.subr.bf16.mxu0 0
  %1894 = vmatpush1.bf16.msra.mxu0 0
  %1895 = vmatprep.subr.bf16.mxu0 0
  %1896 = vmatpush1.bf16.msra.mxu0 0
  %1897 = vmatprep.subr.bf16.mxu0 0
  %1898 = vmatpush1.bf16.msra.mxu0 0
  %1899 = vmatprep.subr.bf16.mxu0 0
  %1900 = vmatpush1.bf16.msra.mxu0 0
  %1901 = vmatprep.subr.bf16.mxu0 0
  %1902 = vmatpush1.bf16.msra.mxu0 0
  %1903 = vmatprep.subr.bf16.mxu0 0
  %1904 = vmatpush1.bf16.msra.mxu0 0
  %1905 = vmatprep.subr.bf16.mxu0 0
  %1906 = vmatpush1.bf16.msra.mxu0 0
  %1907 = vmatprep.subr.bf16.mxu0 0
  %1908 = vmatpush1.bf16.msra.mxu0 0
  %1909 = vmatprep.mubr.bf16.mxu0 0
  %1910 = vmatmul.mubr.bf16.gmra.mrb[0].mxu0 %v1541
  %v1911 = vpop.f32.mrb[0].mxu0
  %v1912 = vadd.f32 %v861, %v1911
  %v1913 = vpop.f32.mrb[0].mxu0
  %v1914 = vadd.f32 %v865, %v1913
  %v1915 = vpop.f32.mrb[0].mxu0
  %v1916 = vpop.f32.mrb[0].mxu0
  %1917 = vdwg.mxu0
  %1918 = vmatprep.subr.bf16.mxu0 0
  %1919 = vmatpush1.bf16.msra.mxu0 %v955
  %1920 = vmatprep.subr.bf16.mxu0 0
  %1921 = vmatpush1.bf16.msra.mxu0 %v958
  %1922 = vmatprep.subr.bf16.mxu0 0
  %1923 = vmatpush1.bf16.msra.mxu0 %v961
  %1924 = vmatprep.subr.bf16.mxu0 0
  %1925 = vmatpush1.bf16.msra.mxu0 %v964
  %1926 = vmatprep.subr.bf16.mxu0 0
  %1927 = vmatpush1.bf16.msra.mxu0 %v967
  %1928 = vmatprep.subr.bf16.mxu0 0
  %1929 = vmatpush1.bf16.msra.mxu0 %v970
  %1930 = vmatprep.subr.bf16.mxu0 0
  %1931 = vmatpush1.bf16.msra.mxu0 %v973
  %1932 = vmatprep.subr.bf16.mxu0 0
  %1933 = vmatpush1.bf16.msra.mxu0 %v976
  %1934 = vmatprep.subr.bf16.mxu0 0
  %1935 = vmatpush1.bf16.msra.mxu0 0
  %1936 = vmatprep.subr.bf16.mxu0 0
  %1937 = vmatpush1.bf16.msra.mxu0 0
  %1938 = vmatprep.subr.bf16.mxu0 0
  %1939 = vmatpush1.bf16.msra.mxu0 0
  %1940 = vmatprep.subr.bf16.mxu0 0
  %1941 = vmatpush1.bf16.msra.mxu0 0
  %1942 = vmatprep.subr.bf16.mxu0 0
  %1943 = vmatpush1.bf16.msra.mxu0 0
  %1944 = vmatprep.subr.bf16.mxu0 0
  %1945 = vmatpush1.bf16.msra.mxu0 0
  %1946 = vmatprep.subr.bf16.mxu0 0
  %1947 = vmatpush1.bf16.msra.mxu0 0
  %1948 = vmatprep.subr.bf16.mxu0 0
  %1949 = vmatpush1.bf16.msra.mxu0 0
  %1950 = vmatprep.mubr.bf16.mxu0 0
  %1951 = vmatmul.mubr.bf16.gmra.mrb[0].mxu0 %v1541
  %v1952 = vpop.f32.mrb[0].mxu0
  %v1953 = vadd.f32 %v869, %v1952
  %v1954 = vpop.f32.mrb[0].mxu0
  %v1955 = vpop.f32.mrb[0].mxu0
  %v1956 = vpop.f32.mrb[0].mxu0
  %1957 = vdwg.mxu0
  %v1958 = vadd.f32 %v1831, %v1912
  %v1959 = vxor.u32 %v1958, 2147483648
  %v1960 = vmul.f32 %v1959, 1.442695
  %v1961 = vpow.pop %v1960
  %v1962 = vadd.f32 %v1961, 1.0
  %v1963 = vrcp.pop %v1962
  %v1964 = vmul.f32 1.0, %v1963
  %v1965 = vadd.f32 %v1833, %v1914
  %v1966 = vxor.u32 %v1965, 2147483648
  %v1967 = vmul.f32 %v1966, 1.442695
  %v1968 = vpow.pop %v1967
  %v1969 = vadd.f32 %v1968, 1.0
  %v1970 = vrcp.pop %v1969
  %v1971 = vmul.f32 1.0, %v1970
  %v1972 = vmul.f32 %v1964, %v1953
  %v1973 = vadd.f32 %v1872, %v1972
  %v1974 = vtanh.pop %v1973
  %v1975 = vsub.f32 1.0, %v1971
  %v1976 = vmul.f32 %v1975, %v1974
  %v1977 = vmul.f32 %v1971, %v1540
  %v1978 = vadd.f32 %v1976, %v1977
  %v1979 = vld [vmem:[%s20] sm:$0xff]
  %v1980 = vld [vmem:[%s20 + $0x8] sm:$0xff]
  %v1981 = vld [vmem:[%s20 + $0x10] sm:$0xff]
  %v1982 = vld [vmem:[%s20 + $0x18] sm:$0xff]
  %v1983 = vld [vmem:[%s20 + $0x20] sm:$0xff]
  %v1984 = vld [vmem:[%s20 + $0x28] sm:$0xff]
  %v1985 = vld [vmem:[%s20 + $0x30] sm:$0xff]
  %v1986 = vld [vmem:[%s20 + $0x38] sm:$0xff]
  %v1987 = vld [vmem:[%s20 + $0x40] sm:$0xff]
  %v1988 = vld [vmem:[%s20 + $0x48] sm:$0xff]
  %v1989 = vld [vmem:[%s20 + $0x50] sm:$0xff]
  %v1990 = vld [vmem:[%s20 + $0x58] sm:$0xff]
  %v1991 = vld [vmem:[%s20 + $0x60] sm:$0xff]
  %v1992 = vld [vmem:[%s20 + $0x68] sm:$0xff]
  %v1993 = vld [vmem:[%s20 + $0x70] sm:$0xff]
  %v1994 = vld [vmem:[%s20 + $0x78] sm:$0xff]
  %v1995 = vld [vmem:[%s20 + $0x80] sm:$0xff]
  %v1996 = vld [vmem:[%s20 + $0x88] sm:$0xff]
  %v1997 = vld [vmem:[%s20 + $0x90] sm:$0xff]
  %v1998 = vld [vmem:[%s20 + $0x98] sm:$0xff]
  %v1999 = vld [vmem:[%s20 + $0xa0] sm:$0xff]
  %v2000 = vld [vmem:[%s20 + $0xa8] sm:$0xff]
  %v2001 = vld [vmem:[%s20 + $0xb0] sm:$0xff]
  %v2002 = vld [vmem:[%s20 + $0xb8] sm:$0xff]
  %v2003 = vld [vmem:[%s20 + $0xc0] sm:$0xff]
  %v2004 = vld [vmem:[%s20 + $0xc8] sm:$0xff]
  %v2005 = vld [vmem:[%s20 + $0xd0] sm:$0xff]
  %v2006 = vld [vmem:[%s20 + $0xd8] sm:$0xff]
  %v2007 = vld [vmem:[%s20 + $0xe0] sm:$0xff]
  %v2008 = vld [vmem:[%s20 + $0xe8] sm:$0xff]
  %v2009 = vld [vmem:[%s20 + $0xf0] sm:$0xff]
  %v2010 = vld [vmem:[%s20 + $0xf8] sm:$0xff]
  %v2011 = vld [vmem:[%s21] sm:$0xff]
  %v2012 = vld [vmem:[%s21 + $0x8] sm:$0xff]
  %v2013 = vld [vmem:[%s21 + $0x10] sm:$0xff]
  %v2014 = vld [vmem:[%s21 + $0x18] sm:$0xff]
  %v2015 = vld [vmem:[%s21 + $0x20] sm:$0xff]
  %v2016 = vld [vmem:[%s21 + $0x28] sm:$0xff]
  %v2017 = vld [vmem:[%s21 + $0x30] sm:$0xff]
  %v2018 = vld [vmem:[%s21 + $0x38] sm:$0xff]
  %v2019 = vld [vmem:[%s21 + $0x40] sm:$0xff]
  %v2020 = vld [vmem:[%s21 + $0x48] sm:$0xff]
  %v2021 = vld [vmem:[%s21 + $0x50] sm:$0xff]
  %v2022 = vld [vmem:[%s21 + $0x58] sm:$0xff]
  %v2023 = vld [vmem:[%s21 + $0x60] sm:$0xff]
  %v2024 = vld [vmem:[%s21 + $0x68] sm:$0xff]
  %v2025 = vld [vmem:[%s21 + $0x70] sm:$0xff]
  %v2026 = vld [vmem:[%s21 + $0x78] sm:$0xff]
  %v2027 = vld [vmem:[%s21 + $0x80] sm:$0xff]
  %v2028 = vld [vmem:[%s21 + $0x88] sm:$0xff]
  %v2029 = vld [vmem:[%s21 + $0x90] sm:$0xff]
  %v2030 = vld [vmem:[%s21 + $0x98] sm:$0xff]
  %v2031 = vld [vmem:[%s21 + $0xa0] sm:$0xff]
  %v2032 = vld [vmem:[%s21 + $0xa8] sm:$0xff]
  %v2033 = vld [vmem:[%s21 + $0xb0] sm:$0xff]
  %v2034 = vld [vmem:[%s21 + $0xb8] sm:$0xff]
  %v2035 = vld [vmem:[%s21 + $0xc0] sm:$0xff]
  %v2036 = vld [vmem:[%s21 + $0xc8] sm:$0xff]
  %v2037 = vld [vmem:[%s21 + $0xd0] sm:$0xff]
  %v2038 = vld [vmem:[%s21 + $0xd8] sm:$0xff]
  %v2039 = vld [vmem:[%s21 + $0xe0] sm:$0xff]
  %v2040 = vld [vmem:[%s21 + $0xe8] sm:$0xff]
  %v2041 = vld [vmem:[%s21 + $0xf0] sm:$0xff]
  %v2042 = vld [vmem:[%s21 + $0xf8] sm:$0xff]
  %v2075 = vunpack.c.l.b16 %v2011
  %v2076 = vunpack.c.h.b16 %v2011
  %v2077 = vunpack.c.l.b16 %v2012
  %v2078 = vunpack.c.h.b16 %v2012
  %v2079 = vunpack.c.l.b16 %v2013
  %v2080 = vunpack.c.h.b16 %v2013
  %v2081 = vunpack.c.l.b16 %v2014
  %v2082 = vunpack.c.h.b16 %v2014
  %v2083 = vunpack.c.l.b16 %v2015
  %v2084 = vunpack.c.h.b16 %v2015
  %v2085 = vunpack.c.l.b16 %v2016
  %v2086 = vunpack.c.h.b16 %v2016
  %v2087 = vunpack.c.l.b16 %v2017
  %v2088 = vunpack.c.h.b16 %v2017
  %v2089 = vunpack.c.l.b16 %v2018
  %v2090 = vunpack.c.h.b16 %v2018
  %v2091 = vunpack.c.l.b16 %v2019
  %v2092 = vunpack.c.h.b16 %v2019
  %v2093 = vunpack.c.l.b16 %v2020
  %v2094 = vunpack.c.h.b16 %v2020
  %v2095 = vunpack.c.l.b16 %v2021
  %v2096 = vunpack.c.h.b16 %v2021
  %v2097 = vunpack.c.l.b16 %v2022
  %v2098 = vunpack.c.h.b16 %v2022
  %v2099 = vunpack.c.l.b16 %v2023
  %v2100 = vunpack.c.h.b16 %v2023
  %v2101 = vunpack.c.l.b16 %v2024
  %v2102 = vunpack.c.h.b16 %v2024
  %v2103 = vunpack.c.l.b16 %v2025
  %v2104 = vunpack.c.h.b16 %v2025
  %v2105 = vunpack.c.l.b16 %v2026
  %v2106 = vunpack.c.h.b16 %v2026
  %v2107 = vunpack.c.l.b16 %v2027
  %v2108 = vunpack.c.h.b16 %v2027
  %v2109 = vunpack.c.l.b16 %v2028
  %v2110 = vunpack.c.h.b16 %v2028
  %v2111 = vunpack.c.l.b16 %v2029
  %v2112 = vunpack.c.h.b16 %v2029
  %v2113 = vunpack.c.l.b16 %v2030
  %v2114 = vunpack.c.h.b16 %v2030
  %v2115 = vunpack.c.l.b16 %v2031
  %v2116 = vunpack.c.h.b16 %v2031
  %v2117 = vunpack.c.l.b16 %v2032
  %v2118 = vunpack.c.h.b16 %v2032
  %v2119 = vunpack.c.l.b16 %v2033
  %v2120 = vunpack.c.h.b16 %v2033
  %v2121 = vunpack.c.l.b16 %v2034
  %v2122 = vunpack.c.h.b16 %v2034
  %v2123 = vunpack.c.l.b16 %v2035
  %v2124 = vunpack.c.h.b16 %v2035
  %v2125 = vunpack.c.l.b16 %v2036
  %v2126 = vunpack.c.h.b16 %v2036
  %v2127 = vunpack.c.l.b16 %v2037
  %v2128 = vunpack.c.h.b16 %v2037
  %v2129 = vunpack.c.l.b16 %v2038
  %v2130 = vunpack.c.h.b16 %v2038
  %v2131 = vunpack.c.l.b16 %v2039
  %v2132 = vunpack.c.h.b16 %v2039
  %v2133 = vunpack.c.l.b16 %v2040
  %v2134 = vunpack.c.h.b16 %v2040
  %v2135 = vunpack.c.l.b16 %v2041
  %v2136 = vunpack.c.h.b16 %v2041
  %v2137 = vunpack.c.l.b16 %v2042
  %v2138 = vunpack.c.h.b16 %v2042
  %v2139 = vpack.c.b16 %v2079, %v2075
  %v2140 = vpack.c.b16 %v2080, %v2076
  %v2141 = vpack.c.b16 %v2081, %v2077
  %v2142 = vpack.c.b16 %v2082, %v2078
  %v2143 = vpack.c.b16 %v2087, %v2083
  %v2144 = vpack.c.b16 %v2088, %v2084
  %v2145 = vpack.c.b16 %v2089, %v2085
  %v2146 = vpack.c.b16 %v2090, %v2086
  %v2147 = vpack.c.b16 %v2095, %v2091
  %v2148 = vpack.c.b16 %v2096, %v2092
  %v2149 = vpack.c.b16 %v2097, %v2093
  %v2150 = vpack.c.b16 %v2098, %v2094
  %v2151 = vpack.c.b16 %v2103, %v2099
  %v2152 = vpack.c.b16 %v2104, %v2100
  %v2153 = vpack.c.b16 %v2105, %v2101
  %v2154 = vpack.c.b16 %v2106, %v2102
  %v2155 = vpack.c.b16 %v2111, %v2107
  %v2156 = vpack.c.b16 %v2112, %v2108
  %v2157 = vpack.c.b16 %v2113, %v2109
  %v2158 = vpack.c.b16 %v2114, %v2110
  %v2159 = vpack.c.b16 %v2119, %v2115
  %v2160 = vpack.c.b16 %v2120, %v2116
  %v2161 = vpack.c.b16 %v2121, %v2117
  %v2162 = vpack.c.b16 %v2122, %v2118
  %v2163 = vpack.c.b16 %v2127, %v2123
  %v2164 = vpack.c.b16 %v2128, %v2124
  %v2165 = vpack.c.b16 %v2129, %v2125
  %v2166 = vpack.c.b16 %v2130, %v2126
  %v2167 = vpack.c.b16 %v2135, %v2131
  %v2168 = vpack.c.b16 %v2136, %v2132
  %v2169 = vpack.c.b16 %v2137, %v2133
  %v2170 = vpack.c.b16 %v2138, %v2134
  %2203 = vmatprep.subr.bf16.mxu0 %v2140
  %2204 = vmatpush1.bf16.msra.mxu0 %v2139
  %2205 = vmatprep.subr.bf16.mxu0 %v2144
  %2206 = vmatpush1.bf16.msra.mxu0 %v2143
  %2207 = vmatprep.subr.bf16.mxu0 %v2148
  %2208 = vmatpush1.bf16.msra.mxu0 %v2147
  %2209 = vmatprep.subr.bf16.mxu0 %v2152
  %2210 = vmatpush1.bf16.msra.mxu0 %v2151
  %2211 = vmatprep.subr.bf16.mxu0 %v2156
  %2212 = vmatpush1.bf16.msra.mxu0 %v2155
  %2213 = vmatprep.subr.bf16.mxu0 %v2160
  %2214 = vmatpush1.bf16.msra.mxu0 %v2159
  %2215 = vmatprep.subr.bf16.mxu0 %v2164
  %2216 = vmatpush1.bf16.msra.mxu0 %v2163
  %2217 = vmatprep.subr.bf16.mxu0 %v2168
  %2218 = vmatpush1.bf16.msra.mxu0 %v2167
  %2219 = vmatprep.subr.bf16.mxu0 0
  %2220 = vmatpush1.bf16.msra.mxu0 0
  %2221 = vmatprep.subr.bf16.mxu0 0
  %2222 = vmatpush1.bf16.msra.mxu0 0
  %2223 = vmatprep.subr.bf16.mxu0 0
  %2224 = vmatpush1.bf16.msra.mxu0 0
  %2225 = vmatprep.subr.bf16.mxu0 0
  %2226 = vmatpush1.bf16.msra.mxu0 0
  %2227 = vmatprep.subr.bf16.mxu0 0
  %2228 = vmatpush1.bf16.msra.mxu0 0
  %2229 = vmatprep.subr.bf16.mxu0 0
  %2230 = vmatpush1.bf16.msra.mxu0 0
  %2231 = vmatprep.subr.bf16.mxu0 0
  %2232 = vmatpush1.bf16.msra.mxu0 0
  %2233 = vmatprep.subr.bf16.mxu0 0
  %2234 = vmatpush1.bf16.msra.mxu0 0
  %2235 = vmatprep.mubr.bf16.mxu0 0
  %2236 = vmatmul.mubr.bf16.gmra.mrb[0].mxu0 0
  %v2237 = vpop.f32.mrb[0].mxu0
  %v2238 = vadd.f32 0.0, %v2237
  %v2239 = vpop.f32.mrb[0].mxu0
  %v2240 = vadd.f32 0.0, %v2239
  %v2241 = vpop.f32.mrb[0].mxu0
  %v2242 = vpop.f32.mrb[0].mxu0
  %2243 = vdwg.mxu0
  %2244 = vmatprep.subr.bf16.mxu0 %v2142
  %2245 = vmatpush1.bf16.msra.mxu0 %v2141
  %2246 = vmatprep.subr.bf16.mxu0 %v2146
  %2247 = vmatpush1.bf16.msra.mxu0 %v2145
  %2248 = vmatprep.subr.bf16.mxu0 %v2150
  %2249 = vmatpush1.bf16.msra.mxu0 %v2149
  %2250 = vmatprep.subr.bf16.mxu0 %v2154
  %2251 = vmatpush1.bf16.msra.mxu0 %v2153
  %2252 = vmatprep.subr.bf16.mxu0 %v2158
  %2253 = vmatpush1.bf16.msra.mxu0 %v2157
  %2254 = vmatprep.subr.bf16.mxu0 %v2162
  %2255 = vmatpush1.bf16.msra.mxu0 %v2161
  %2256 = vmatprep.subr.bf16.mxu0 %v2166
  %2257 = vmatpush1.bf16.msra.mxu0 %v2165
  %2258 = vmatprep.subr.bf16.mxu0 %v2170
  %2259 = vmatpush1.bf16.msra.mxu0 %v2169
  %2260 = vmatprep.subr.bf16.mxu0 0
  %2261 = vmatpush1.bf16.msra.mxu0 0
  %2262 = vmatprep.subr.bf16.mxu0 0
  %2263 = vmatpush1.bf16.msra.mxu0 0
  %2264 = vmatprep.subr.bf16.mxu0 0
  %2265 = vmatpush1.bf16.msra.mxu0 0
  %2266 = vmatprep.subr.bf16.mxu0 0
  %2267 = vmatpush1.bf16.msra.mxu0 0
  %2268 = vmatprep.subr.bf16.mxu0 0
  %2269 = vmatpush1.bf16.msra.mxu0 0
  %2270 = vmatprep.subr.bf16.mxu0 0
  %2271 = vmatpush1.bf16.msra.mxu0 0
  %2272 = vmatprep.subr.bf16.mxu0 0
  %2273 = vmatpush1.bf16.msra.mxu0 0
  %2274 = vmatprep.subr.bf16.mxu0 0
  %2275 = vmatpush1.bf16.msra.mxu0 0
  %2276 = vmatprep.mubr.bf16.mxu0 0
  %2277 = vmatmul.mubr.bf16.gmra.mrb[0].mxu0 0
  %v2278 = vpop.f32.mrb[0].mxu0
  %v2279 = vadd.f32 0.0, %v2278
  %v2280 = vpop.f32.mrb[0].mxu0
  %v2281 = vadd.f32 0.0, %v2280
  %v2282 = vpop.f32.mrb[0].mxu0
  %v2283 = vpop.f32.mrb[0].mxu0
  %2284 = vdwg.mxu0
  %v2317 = vunpack.c.l.b16 %v1979
  %v2318 = vunpack.c.h.b16 %v1979
  %v2319 = vunpack.c.l.b16 %v1980
  %v2320 = vunpack.c.h.b16 %v1980
  %v2321 = vunpack.c.l.b16 %v1981
  %v2322 = vunpack.c.h.b16 %v1981
  %v2323 = vunpack.c.l.b16 %v1982
  %v2324 = vunpack.c.h.b16 %v1982
  %v2325 = vunpack.c.l.b16 %v1983
  %v2326 = vunpack.c.h.b16 %v1983
  %v2327 = vunpack.c.l.b16 %v1984
  %v2328 = vunpack.c.h.b16 %v1984
  %v2329 = vunpack.c.l.b16 %v1985
  %v2330 = vunpack.c.h.b16 %v1985
  %v2331 = vunpack.c.l.b16 %v1986
  %v2332 = vunpack.c.h.b16 %v1986
  %v2333 = vunpack.c.l.b16 %v1987
  %v2334 = vunpack.c.h.b16 %v1987
  %v2335 = vunpack.c.l.b16 %v1988
  %v2336 = vunpack.c.h.b16 %v1988
  %v2337 = vunpack.c.l.b16 %v1989
  %v2338 = vunpack.c.h.b16 %v1989
  %v2339 = vunpack.c.l.b16 %v1990
  %v2340 = vunpack.c.h.b16 %v1990
  %v2341 = vunpack.c.l.b16 %v1991
  %v2342 = vunpack.c.h.b16 %v1991
  %v2343 = vunpack.c.l.b16 %v1992
  %v2344 = vunpack.c.h.b16 %v1992
  %v2345 = vunpack.c.l.b16 %v1993
  %v2346 = vunpack.c.h.b16 %v1993
  %v2347 = vunpack.c.l.b16 %v1994
  %v2348 = vunpack.c.h.b16 %v1994
  %v2349 = vunpack.c.l.b16 %v1995
  %v2350 = vunpack.c.h.b16 %v1995
  %v2351 = vunpack.c.l.b16 %v1996
  %v2352 = vunpack.c.h.b16 %v1996
  %v2353 = vunpack.c.l.b16 %v1997
  %v2354 = vunpack.c.h.b16 %v1997
  %v2355 = vunpack.c.l.b16 %v1998
  %v2356 = vunpack.c.h.b16 %v1998
  %v2357 = vunpack.c.l.b16 %v1999
  %v2358 = vunpack.c.h.b16 %v1999
  %v2359 = vunpack.c.l.b16 %v2000
  %v2360 = vunpack.c.h.b16 %v2000
  %v2361 = vunpack.c.l.b16 %v2001
  %v2362 = vunpack.c.h.b16 %v2001
  %v2363 = vunpack.c.l.b16 %v2002
  %v2364 = vunpack.c.h.b16 %v2002
  %v2365 = vunpack.c.l.b16 %v2003
  %v2366 = vunpack.c.h.b16 %v2003
  %v2367 = vunpack.c.l.b16 %v2004
  %v2368 = vunpack.c.h.b16 %v2004
  %v2369 = vunpack.c.l.b16 %v2005
  %v2370 = vunpack.c.h.b16 %v2005
  %v2371 = vunpack.c.l.b16 %v2006
  %v2372 = vunpack.c.h.b16 %v2006
  %v2373 = vunpack.c.l.b16 %v2007
  %v2374 = vunpack.c.h.b16 %v2007
  %v2375 = vunpack.c.l.b16 %v2008
  %v2376 = vunpack.c.h.b16 %v2008
  %v2377 = vunpack.c.l.b16 %v2009
  %v2378 = vunpack.c.h.b16 %v2009
  %v2379 = vunpack.c.l.b16 %v2010
  %v2380 = vunpack.c.h.b16 %v2010
  %v2381 = vpack.c.b16 %v2321, %v2317
  %v2382 = vpack.c.b16 %v2322, %v2318
  %v2383 = vpack.c.b16 %v2323, %v2319
  %v2384 = vpack.c.b16 %v2324, %v2320
  %v2385 = vpack.c.b16 %v2329, %v2325
  %v2386 = vpack.c.b16 %v2330, %v2326
  %v2387 = vpack.c.b16 %v2331, %v2327
  %v2388 = vpack.c.b16 %v2332, %v2328
  %v2389 = vpack.c.b16 %v2337, %v2333
  %v2390 = vpack.c.b16 %v2338, %v2334
  %v2391 = vpack.c.b16 %v2339, %v2335
  %v2392 = vpack.c.b16 %v2340, %v2336
  %v2393 = vpack.c.b16 %v2345, %v2341
  %v2394 = vpack.c.b16 %v2346, %v2342
  %v2395 = vpack.c.b16 %v2347, %v2343
  %v2396 = vpack.c.b16 %v2348, %v2344
  %v2397 = vpack.c.b16 %v2353, %v2349
  %v2398 = vpack.c.b16 %v2354, %v2350
  %v2399 = vpack.c.b16 %v2355, %v2351
  %v2400 = vpack.c.b16 %v2356, %v2352
  %v2401 = vpack.c.b16 %v2361, %v2357
  %v2402 = vpack.c.b16 %v2362, %v2358
  %v2403 = vpack.c.b16 %v2363, %v2359
  %v2404 = vpack.c.b16 %v2364, %v2360
  %v2405 = vpack.c.b16 %v2369, %v2365
  %v2406 = vpack.c.b16 %v2370, %v2366
  %v2407 = vpack.c.b16 %v2371, %v2367
  %v2408 = vpack.c.b16 %v2372, %v2368
  %v2409 = vpack.c.b16 %v2377, %v2373
  %v2410 = vpack.c.b16 %v2378, %v2374
  %v2411 = vpack.c.b16 %v2379, %v2375
  %v2412 = vpack.c.b16 %v2380, %v2376
  %2445 = vmatprep.subr.bf16.mxu0 %v2382
  %2446 = vmatpush1.bf16.msra.mxu0 %v2381
  %2447 = vmatprep.subr.bf16.mxu0 %v2386
  %2448 = vmatpush1.bf16.msra.mxu0 %v2385
  %2449 = vmatprep.subr.bf16.mxu0 %v2390
  %2450 = vmatpush1.bf16.msra.mxu0 %v2389
  %2451 = vmatprep.subr.bf16.mxu0 %v2394
  %2452 = vmatpush1.bf16.msra.mxu0 %v2393
  %2453 = vmatprep.subr.bf16.mxu0 %v2398
  %2454 = vmatpush1.bf16.msra.mxu0 %v2397
  %2455 = vmatprep.subr.bf16.mxu0 %v2402
  %2456 = vmatpush1.bf16.msra.mxu0 %v2401
  %2457 = vmatprep.subr.bf16.mxu0 %v2406
  %2458 = vmatpush1.bf16.msra.mxu0 %v2405
  %2459 = vmatprep.subr.bf16.mxu0 %v2410
  %2460 = vmatpush1.bf16.msra.mxu0 %v2409
  %2461 = vmatprep.subr.bf16.mxu0 0
  %2462 = vmatpush1.bf16.msra.mxu0 0
  %2463 = vmatprep.subr.bf16.mxu0 0
  %2464 = vmatpush1.bf16.msra.mxu0 0
  %2465 = vmatprep.subr.bf16.mxu0 0
  %2466 = vmatpush1.bf16.msra.mxu0 0
  %2467 = vmatprep.subr.bf16.mxu0 0
  %2468 = vmatpush1.bf16.msra.mxu0 0
  %2469 = vmatprep.subr.bf16.mxu0 0
  %2470 = vmatpush1.bf16.msra.mxu0 0
  %2471 = vmatprep.subr.bf16.mxu0 0
  %2472 = vmatpush1.bf16.msra.mxu0 0
  %2473 = vmatprep.subr.bf16.mxu0 0
  %2474 = vmatpush1.bf16.msra.mxu0 0
  %2475 = vmatprep.subr.bf16.mxu0 0
  %2476 = vmatpush1.bf16.msra.mxu0 0
  %2477 = vmatprep.mubr.bf16.mxu0 0
  %2478 = vmatmul.mubr.bf16.gmra.mrb[0].mxu0 0
  %v2479 = vpop.f32.mrb[0].mxu0
  %v2480 = vadd.f32 %v2238, %v2479
  %v2481 = vpop.f32.mrb[0].mxu0
  %v2482 = vadd.f32 %v2240, %v2481
  %v2483 = vpop.f32.mrb[0].mxu0
  %v2484 = vpop.f32.mrb[0].mxu0
  %2485 = vdwg.mxu0
  %2486 = vmatprep.subr.bf16.mxu0 %v2384
  %2487 = vmatpush1.bf16.msra.mxu0 %v2383
  %2488 = vmatprep.subr.bf16.mxu0 %v2388
  %2489 = vmatpush1.bf16.msra.mxu0 %v2387
  %2490 = vmatprep.subr.bf16.mxu0 %v2392
  %2491 = vmatpush1.bf16.msra.mxu0 %v2391
  %2492 = vmatprep.subr.bf16.mxu0 %v2396
  %2493 = vmatpush1.bf16.msra.mxu0 %v2395
  %2494 = vmatprep.subr.bf16.mxu0 %v2400
  %2495 = vmatpush1.bf16.msra.mxu0 %v2399
  %2496 = vmatprep.subr.bf16.mxu0 %v2404
  %2497 = vmatpush1.bf16.msra.mxu0 %v2403
  %2498 = vmatprep.subr.bf16.mxu0 %v2408
  %2499 = vmatpush1.bf16.msra.mxu0 %v2407
  %2500 = vmatprep.subr.bf16.mxu0 %v2412
  %2501 = vmatpush1.bf16.msra.mxu0 %v2411
  %2502 = vmatprep.subr.bf16.mxu0 0
  %2503 = vmatpush1.bf16.msra.mxu0 0
  %2504 = vmatprep.subr.bf16.mxu0 0
  %2505 = vmatpush1.bf16.msra.mxu0 0
  %2506 = vmatprep.subr.bf16.mxu0 0
  %2507 = vmatpush1.bf16.msra.mxu0 0
  %2508 = vmatprep.subr.bf16.mxu0 0
  %2509 = vmatpush1.bf16.msra.mxu0 0
  %2510 = vmatprep.subr.bf16.mxu0 0
  %2511 = vmatpush1.bf16.msra.mxu0 0
  %2512 = vmatprep.subr.bf16.mxu0 0
  %2513 = vmatpush1.bf16.msra.mxu0 0
  %2514 = vmatprep.subr.bf16.mxu0 0
  %2515 = vmatpush1.bf16.msra.mxu0 0
  %2516 = vmatprep.subr.bf16.mxu0 0
  %2517 = vmatpush1.bf16.msra.mxu0 0
  %2518 = vmatprep.mubr.bf16.mxu0 0
  %2519 = vmatmul.mubr.bf16.gmra.mrb[0].mxu0 0
  %v2520 = vpop.f32.mrb[0].mxu0
  %v2521 = vadd.f32 %v2279, %v2520
  %v2522 = vpop.f32.mrb[0].mxu0
  %v2523 = vadd.f32 %v2281, %v2522
  %v2524 = vpop.f32.mrb[0].mxu0
  %v2525 = vpop.f32.mrb[0].mxu0
  %2526 = vdwg.mxu0
  %v2527 = vld [vmem:[%s22] sm:$0xf]
  %v2529 = vlaneseq
  %v2530 = vshrl.u32 %v2529, 7
  %v2531 = vsub.s32 0, %v2530
  %v2532 = vrot.slane %v2527, %v2531
  %v2533 = vlaneseq
  %v2534 = vshrl.u32 %v2533, 7
  %v2535 = vsub.s32 1, %v2534
  %v2536 = vrot.slane %v2527, %v2535
  %v2537 = vlaneseq
  %v2538 = vshrl.u32 %v2537, 7
  %v2539 = vsub.s32 2, %v2538
  %v2540 = vrot.slane %v2527, %v2539
  %v2541 = vlaneseq
  %v2542 = vshrl.u32 %v2541, 7
  %v2543 = vsub.s32 3, %v2542
  %v2544 = vrot.slane %v2527, %v2543
  %v2549 = vadd.f32 %v2480, %v2532
  %v2550 = vadd.f32 %v2482, %v2536
  %v2551 = vadd.f32 %v2521, %v2540
  %v2552 = vadd.f32 %v2523, %v2544
  %v2553 = vxor.u32 %v2549, 2147483648
  %v2554 = vmul.f32 %v2553, 1.442695
  %v2555 = vpow.pop %v2554
  %v2556 = vadd.f32 %v2555, 1.0
  %v2557 = vrcp.pop %v2556
  %v2558 = vmul.f32 1.0, %v2557
  %v2559 = vxor.u32 %v2550, 2147483648
  %v2560 = vmul.f32 %v2559, 1.442695
  %v2561 = vpow.pop %v2560
  %v2562 = vadd.f32 %v2561, 1.0
  %v2563 = vrcp.pop %v2562
  %v2564 = vmul.f32 1.0, %v2563
  %v2565 = vtanh.pop %v2551
  %v2566 = vxor.u32 %v2552, 2147483648
  %v2567 = vmul.f32 %v2566, 1.442695
  %v2568 = vpow.pop %v2567
  %v2569 = vadd.f32 %v2568, 1.0
  %v2570 = vrcp.pop %v2569
  %v2571 = vmul.f32 1.0, %v2570
  %v2572 = vmul.f32 %v2564, 0.0
  %v2573 = vmul.f32 %v2558, %v2565
  %v2574 = vadd.f32 %v2572, %v2573
  %v2575 = vtanh.pop %v2574
  %v2576 = vmul.f32 %v2571, %v2575
  %v2577 = vld [vmem:[%s18] sm:$0x1]
  %v2578 = vld [vmem:[%s19] sm:$0xf]
  %v2579 = vunpack.c.l.bf16 %v2578
  %v2580 = vpack.c.bf16 %v2576, %v2576
  %vm2581 = vcmask 15360
  %v2583 = vsel %vm2581, %v2578, 0
  %vm2585 = vcmask 1040384
  %v2587 = vsel %vm2585, %v2580, 0
  %2589 = vmatprep.subr.bf16.mxu0 0
  %2590 = vmatpush1.bf16.msra.mxu0 %v2587
  %2591 = vmatprep.subr.bf16.mxu0 0
  %2592 = vmatpush1.bf16.msra.mxu0 0
  %2593 = vmatprep.subr.bf16.mxu0 0
  %2594 = vmatpush1.bf16.msra.mxu0 0
  %2595 = vmatprep.subr.bf16.mxu0 0
  %2596 = vmatpush1.bf16.msra.mxu0 0
  %2597 = vmatprep.subr.bf16.mxu0 0
  %2598 = vmatpush1.bf16.msra.mxu0 0
  %2599 = vmatprep.subr.bf16.mxu0 0
  %2600 = vmatpush1.bf16.msra.mxu0 0
  %2601 = vmatprep.subr.bf16.mxu0 0
  %2602 = vmatpush1.bf16.msra.mxu0 0
  %2603 = vmatprep.subr.bf16.mxu0 0
  %2604 = vmatpush1.bf16.msra.mxu0 0
  %2605 = vmatprep.subr.bf16.mxu0 0
  %2606 = vmatpush1.bf16.msra.mxu0 0
  %2607 = vmatprep.subr.bf16.mxu0 0
  %2608 = vmatpush1.bf16.msra.mxu0 0
  %2609 = vmatprep.subr.bf16.mxu0 0
  %2610 = vmatpush1.bf16.msra.mxu0 0
  %2611 = vmatprep.subr.bf16.mxu0 0
  %2612 = vmatpush1.bf16.msra.mxu0 0
  %2613 = vmatprep.subr.bf16.mxu0 0
  %2614 = vmatpush1.bf16.msra.mxu0 0
  %2615 = vmatprep.subr.bf16.mxu0 0
  %2616 = vmatpush1.bf16.msra.mxu0 0
  %2617 = vmatprep.subr.bf16.mxu0 0
  %2618 = vmatpush1.bf16.msra.mxu0 0
  %2619 = vmatprep.subr.bf16.mxu0 0
  %2620 = vmatpush1.bf16.msra.mxu0 0
  %2621 = vmatprep.mubr.bf16.mxu0 0
  %2622 = vmatmul.mubr.bf16.gmra.mrb[0].mxu0 %v2583
  %v2623 = vpop.f32.mrb[0].mxu0
  %v2624 = vadd.f32 0.0, %v2623
  %v2625 = vpop.f32.mrb[0].mxu0
  %v2626 = vpop.f32.mrb[0].mxu0
  %v2627 = vpop.f32.mrb[0].mxu0
  %2628 = vdwg.mxu0
  %v2629 = vmul.f32 %v1978, %v2624
  %2630 = vadd.xlane.f32.xlu0 %v2629
  %v2631 = vpop.xlane.xlu0 %2630
  %vm2632 = vcmp.gt.f32.partialorder %v2579, 0.5
  %v2633 = vsel %vm2632, %v2631, -1e+30
  %v2634 = vsel %vm2581, %v2633, -inf
  %v2635 = vrot.slane %v2634, 4
  %v2636 = vmax.f32 %v2634, %v2635
  %v2637 = vrot.slane %v2636, 2
  %v2638 = vmax.f32 %v2636, %v2637
  %v2639 = vrot.slane %v2638, 1
  %v2640 = vmax.f32 %v2638, %v2639
  %v2641 = vmul.f32 %v2579, %v2640
  %v2642 = vsel %vm2581, %v2641, 0.0
  %2643 = vadd.xlane.f32.xlu0 %v2642
  %v2644 = vpop.xlane.xlu0 %2643
  %v2645 = vsub.f32 %v2631, %v2644
  %v2646 = vmul.f32 %v2645, 1.442695
  %v2647 = vpow.pop %v2646
  %v2648 = vmul.f32 %v2579, %v2647
  %v2649 = vsel %vm2581, %v2648, 0.0
  %v2650 = vrot.slane %v2649, 4
  %v2651 = vadd.f32 %v2649, %v2650
  %v2652 = vrot.slane %v2651, 2
  %v2653 = vadd.f32 %v2651, %v2652
  %v2654 = vrot.slane %v2653, 1
  %v2655 = vadd.f32 %v2653, %v2654
  %v2656 = vadd.f32 %v2655, 1e-16
  %v2657 = vmul.f32 %v2579, %v2656
  %v2658 = vsel %vm2581, %v2657, 0.0
  %2659 = vadd.xlane.f32.xlu0 %v2658
  %v2660 = vpop.xlane.xlu0 %2659
  %v2661 = vrcp.pop %v2660
  %v2662 = vmul.f32 %v2647, %v2661
  %v2663 = vmul.f32 %v2662, %v1978
  %v2664 = vpack.c.bf16 %v2663, %v2663
  %v2666 = vsel %vm307, %v2577, 0
  %v2669 = vsel %vm398, %v2664, 0
  %2671 = vmatprep.subr.bf16.mxu0 0
  %2672 = vmatpush1.bf16.msra.mxu0 %v2669
  %2673 = vmatprep.subr.bf16.mxu0 0
  %2674 = vmatpush1.bf16.msra.mxu0 0
  %2675 = vmatprep.subr.bf16.mxu0 0
  %2676 = vmatpush1.bf16.msra.mxu0 0
  %2677 = vmatprep.subr.bf16.mxu0 0
  %2678 = vmatpush1.bf16.msra.mxu0 0
  %2679 = vmatprep.subr.bf16.mxu0 0
  %2680 = vmatpush1.bf16.msra.mxu0 0
  %2681 = vmatprep.subr.bf16.mxu0 0
  %2682 = vmatpush1.bf16.msra.mxu0 0
  %2683 = vmatprep.subr.bf16.mxu0 0
  %2684 = vmatpush1.bf16.msra.mxu0 0
  %2685 = vmatprep.subr.bf16.mxu0 0
  %2686 = vmatpush1.bf16.msra.mxu0 0
  %2687 = vmatprep.subr.bf16.mxu0 0
  %2688 = vmatpush1.bf16.msra.mxu0 0
  %2689 = vmatprep.subr.bf16.mxu0 0
  %2690 = vmatpush1.bf16.msra.mxu0 0
  %2691 = vmatprep.subr.bf16.mxu0 0
  %2692 = vmatpush1.bf16.msra.mxu0 0
  %2693 = vmatprep.subr.bf16.mxu0 0
  %2694 = vmatpush1.bf16.msra.mxu0 0
  %2695 = vmatprep.subr.bf16.mxu0 0
  %2696 = vmatpush1.bf16.msra.mxu0 0
  %2697 = vmatprep.subr.bf16.mxu0 0
  %2698 = vmatpush1.bf16.msra.mxu0 0
  %2699 = vmatprep.subr.bf16.mxu0 0
  %2700 = vmatpush1.bf16.msra.mxu0 0
  %2701 = vmatprep.subr.bf16.mxu0 0
  %2702 = vmatpush1.bf16.msra.mxu0 0
  %2703 = vmatprep.mubr.bf16.mxu0 0
  %2704 = vmatmul.mubr.bf16.gmra.mrb[0].mxu0 %v2666
  %v2705 = vpop.f32.mrb[0].mxu0
  %v2706 = vadd.f32 0.0, %v2705
  %v2707 = vpop.f32.mrb[0].mxu0
  %v2708 = vpop.f32.mrb[0].mxu0
  %v2709 = vpop.f32.mrb[0].mxu0
  %2710 = vdwg.mxu0
  %v2711 = vpack.c.bf16 %v2706, %v2706
  %2712 = vmatprep.subr.bf16.mxu0 %v2140
  %2713 = vmatpush1.bf16.msra.mxu0 %v2139
  %2714 = vmatprep.subr.bf16.mxu0 %v2144
  %2715 = vmatpush1.bf16.msra.mxu0 %v2143
  %2716 = vmatprep.subr.bf16.mxu0 %v2148
  %2717 = vmatpush1.bf16.msra.mxu0 %v2147
  %2718 = vmatprep.subr.bf16.mxu0 %v2152
  %2719 = vmatpush1.bf16.msra.mxu0 %v2151
  %2720 = vmatprep.subr.bf16.mxu0 %v2156
  %2721 = vmatpush1.bf16.msra.mxu0 %v2155
  %2722 = vmatprep.subr.bf16.mxu0 %v2160
  %2723 = vmatpush1.bf16.msra.mxu0 %v2159
  %2724 = vmatprep.subr.bf16.mxu0 %v2164
  %2725 = vmatpush1.bf16.msra.mxu0 %v2163
  %2726 = vmatprep.subr.bf16.mxu0 %v2168
  %2727 = vmatpush1.bf16.msra.mxu0 %v2167
  %2728 = vmatprep.subr.bf16.mxu0 0
  %2729 = vmatpush1.bf16.msra.mxu0 0
  %2730 = vmatprep.subr.bf16.mxu0 0
  %2731 = vmatpush1.bf16.msra.mxu0 0
  %2732 = vmatprep.subr.bf16.mxu0 0
  %2733 = vmatpush1.bf16.msra.mxu0 0
  %2734 = vmatprep.subr.bf16.mxu0 0
  %2735 = vmatpush1.bf16.msra.mxu0 0
  %2736 = vmatprep.subr.bf16.mxu0 0
  %2737 = vmatpush1.bf16.msra.mxu0 0
  %2738 = vmatprep.subr.bf16.mxu0 0
  %2739 = vmatpush1.bf16.msra.mxu0 0
  %2740 = vmatprep.subr.bf16.mxu0 0
  %2741 = vmatpush1.bf16.msra.mxu0 0
  %2742 = vmatprep.subr.bf16.mxu0 0
  %2743 = vmatpush1.bf16.msra.mxu0 0
  %2744 = vmatprep.mubr.bf16.mxu0 0
  %2745 = vmatmul.mubr.bf16.gmra.mrb[0].mxu0 %v2711
  %v2746 = vpop.f32.mrb[0].mxu0
  %v2747 = vadd.f32 0.0, %v2746
  %v2748 = vpop.f32.mrb[0].mxu0
  %v2749 = vadd.f32 0.0, %v2748
  %v2750 = vpop.f32.mrb[0].mxu0
  %v2751 = vpop.f32.mrb[0].mxu0
  %2752 = vdwg.mxu0
  %2753 = vmatprep.subr.bf16.mxu0 %v2142
  %2754 = vmatpush1.bf16.msra.mxu0 %v2141
  %2755 = vmatprep.subr.bf16.mxu0 %v2146
  %2756 = vmatpush1.bf16.msra.mxu0 %v2145
  %2757 = vmatprep.subr.bf16.mxu0 %v2150
  %2758 = vmatpush1.bf16.msra.mxu0 %v2149
  %2759 = vmatprep.subr.bf16.mxu0 %v2154
  %2760 = vmatpush1.bf16.msra.mxu0 %v2153
  %2761 = vmatprep.subr.bf16.mxu0 %v2158
  %2762 = vmatpush1.bf16.msra.mxu0 %v2157
  %2763 = vmatprep.subr.bf16.mxu0 %v2162
  %2764 = vmatpush1.bf16.msra.mxu0 %v2161
  %2765 = vmatprep.subr.bf16.mxu0 %v2166
  %2766 = vmatpush1.bf16.msra.mxu0 %v2165
  %2767 = vmatprep.subr.bf16.mxu0 %v2170
  %2768 = vmatpush1.bf16.msra.mxu0 %v2169
  %2769 = vmatprep.subr.bf16.mxu0 0
  %2770 = vmatpush1.bf16.msra.mxu0 0
  %2771 = vmatprep.subr.bf16.mxu0 0
  %2772 = vmatpush1.bf16.msra.mxu0 0
  %2773 = vmatprep.subr.bf16.mxu0 0
  %2774 = vmatpush1.bf16.msra.mxu0 0
  %2775 = vmatprep.subr.bf16.mxu0 0
  %2776 = vmatpush1.bf16.msra.mxu0 0
  %2777 = vmatprep.subr.bf16.mxu0 0
  %2778 = vmatpush1.bf16.msra.mxu0 0
  %2779 = vmatprep.subr.bf16.mxu0 0
  %2780 = vmatpush1.bf16.msra.mxu0 0
  %2781 = vmatprep.subr.bf16.mxu0 0
  %2782 = vmatpush1.bf16.msra.mxu0 0
  %2783 = vmatprep.subr.bf16.mxu0 0
  %2784 = vmatpush1.bf16.msra.mxu0 0
  %2785 = vmatprep.mubr.bf16.mxu0 0
  %2786 = vmatmul.mubr.bf16.gmra.mrb[0].mxu0 %v2711
  %v2787 = vpop.f32.mrb[0].mxu0
  %v2788 = vadd.f32 0.0, %v2787
  %v2789 = vpop.f32.mrb[0].mxu0
  %v2790 = vadd.f32 0.0, %v2789
  %v2791 = vpop.f32.mrb[0].mxu0
  %v2792 = vpop.f32.mrb[0].mxu0
  %2793 = vdwg.mxu0
  %2794 = vmatprep.subr.bf16.mxu0 %v2382
  %2795 = vmatpush1.bf16.msra.mxu0 %v2381
  %2796 = vmatprep.subr.bf16.mxu0 %v2386
  %2797 = vmatpush1.bf16.msra.mxu0 %v2385
  %2798 = vmatprep.subr.bf16.mxu0 %v2390
  %2799 = vmatpush1.bf16.msra.mxu0 %v2389
  %2800 = vmatprep.subr.bf16.mxu0 %v2394
  %2801 = vmatpush1.bf16.msra.mxu0 %v2393
  %2802 = vmatprep.subr.bf16.mxu0 %v2398
  %2803 = vmatpush1.bf16.msra.mxu0 %v2397
  %2804 = vmatprep.subr.bf16.mxu0 %v2402
  %2805 = vmatpush1.bf16.msra.mxu0 %v2401
  %2806 = vmatprep.subr.bf16.mxu0 %v2406
  %2807 = vmatpush1.bf16.msra.mxu0 %v2405
  %2808 = vmatprep.subr.bf16.mxu0 %v2410
  %2809 = vmatpush1.bf16.msra.mxu0 %v2409
  %2810 = vmatprep.subr.bf16.mxu0 0
  %2811 = vmatpush1.bf16.msra.mxu0 0
  %2812 = vmatprep.subr.bf16.mxu0 0
  %2813 = vmatpush1.bf16.msra.mxu0 0
  %2814 = vmatprep.subr.bf16.mxu0 0
  %2815 = vmatpush1.bf16.msra.mxu0 0
  %2816 = vmatprep.subr.bf16.mxu0 0
  %2817 = vmatpush1.bf16.msra.mxu0 0
  %2818 = vmatprep.subr.bf16.mxu0 0
  %2819 = vmatpush1.bf16.msra.mxu0 0
  %2820 = vmatprep.subr.bf16.mxu0 0
  %2821 = vmatpush1.bf16.msra.mxu0 0
  %2822 = vmatprep.subr.bf16.mxu0 0
  %2823 = vmatpush1.bf16.msra.mxu0 0
  %2824 = vmatprep.subr.bf16.mxu0 0
  %2825 = vmatpush1.bf16.msra.mxu0 0
  %2826 = vmatprep.mubr.bf16.mxu0 0
  %2827 = vmatmul.mubr.bf16.gmra.mrb[0].mxu0 %v2580
  %v2828 = vpop.f32.mrb[0].mxu0
  %v2829 = vadd.f32 %v2747, %v2828
  %v2830 = vpop.f32.mrb[0].mxu0
  %v2831 = vadd.f32 %v2749, %v2830
  %v2832 = vpop.f32.mrb[0].mxu0
  %v2833 = vpop.f32.mrb[0].mxu0
  %2834 = vdwg.mxu0
  %2835 = vmatprep.subr.bf16.mxu0 %v2384
  %2836 = vmatpush1.bf16.msra.mxu0 %v2383
  %2837 = vmatprep.subr.bf16.mxu0 %v2388
  %2838 = vmatpush1.bf16.msra.mxu0 %v2387
  %2839 = vmatprep.subr.bf16.mxu0 %v2392
  %2840 = vmatpush1.bf16.msra.mxu0 %v2391
  %2841 = vmatprep.subr.bf16.mxu0 %v2396
  %2842 = vmatpush1.bf16.msra.mxu0 %v2395
  %2843 = vmatprep.subr.bf16.mxu0 %v2400
  %2844 = vmatpush1.bf16.msra.mxu0 %v2399
  %2845 = vmatprep.subr.bf16.mxu0 %v2404
  %2846 = vmatpush1.bf16.msra.mxu0 %v2403
  %2847 = vmatprep.subr.bf16.mxu0 %v2408
  %2848 = vmatpush1.bf16.msra.mxu0 %v2407
  %2849 = vmatprep.subr.bf16.mxu0 %v2412
  %2850 = vmatpush1.bf16.msra.mxu0 %v2411
  %2851 = vmatprep.subr.bf16.mxu0 0
  %2852 = vmatpush1.bf16.msra.mxu0 0
  %2853 = vmatprep.subr.bf16.mxu0 0
  %2854 = vmatpush1.bf16.msra.mxu0 0
  %2855 = vmatprep.subr.bf16.mxu0 0
  %2856 = vmatpush1.bf16.msra.mxu0 0
  %2857 = vmatprep.subr.bf16.mxu0 0
  %2858 = vmatpush1.bf16.msra.mxu0 0
  %2859 = vmatprep.subr.bf16.mxu0 0
  %2860 = vmatpush1.bf16.msra.mxu0 0
  %2861 = vmatprep.subr.bf16.mxu0 0
  %2862 = vmatpush1.bf16.msra.mxu0 0
  %2863 = vmatprep.subr.bf16.mxu0 0
  %2864 = vmatpush1.bf16.msra.mxu0 0
  %2865 = vmatprep.subr.bf16.mxu0 0
  %2866 = vmatpush1.bf16.msra.mxu0 0
  %2867 = vmatprep.mubr.bf16.mxu0 0
  %2868 = vmatmul.mubr.bf16.gmra.mrb[0].mxu0 %v2580
  %v2869 = vpop.f32.mrb[0].mxu0
  %v2870 = vadd.f32 %v2788, %v2869
  %v2871 = vpop.f32.mrb[0].mxu0
  %v2872 = vadd.f32 %v2790, %v2871
  %v2873 = vpop.f32.mrb[0].mxu0
  %v2874 = vpop.f32.mrb[0].mxu0
  %2875 = vdwg.mxu0
  %v2876 = vadd.f32 %v2829, %v2532
  %v2877 = vadd.f32 %v2831, %v2536
  %v2878 = vadd.f32 %v2870, %v2540
  %v2879 = vadd.f32 %v2872, %v2544
  %v2880 = vxor.u32 %v2876, 2147483648
  %v2881 = vmul.f32 %v2880, 1.442695
  %v2882 = vpow.pop %v2881
  %v2883 = vadd.f32 %v2882, 1.0
  %v2884 = vrcp.pop %v2883
  %v2885 = vmul.f32 1.0, %v2884
  %v2886 = vxor.u32 %v2877, 2147483648
  %v2887 = vmul.f32 %v2886, 1.442695
  %v2888 = vpow.pop %v2887
  %v2889 = vadd.f32 %v2888, 1.0
  %v2890 = vrcp.pop %v2889
  %v2891 = vmul.f32 1.0, %v2890
  %v2892 = vtanh.pop %v2878
  %v2893 = vxor.u32 %v2879, 2147483648
  %v2894 = vmul.f32 %v2893, 1.442695
  %v2895 = vpow.pop %v2894
  %v2896 = vadd.f32 %v2895, 1.0
  %v2897 = vrcp.pop %v2896
  %v2898 = vmul.f32 1.0, %v2897
  %v2899 = vmul.f32 %v2891, %v2574
  %v2900 = vmul.f32 %v2885, %v2892
  %v2901 = vadd.f32 %v2899, %v2900
  %v2902 = vtanh.pop %v2901
  %v2903 = vmul.f32 %v2898, %v2902
  %v2904 = vpack.c.bf16 %v2903, %v2903
  %v2906 = vsel %vm2585, %v2904, 0
  %2908 = vmatprep.subr.bf16.mxu0 0
  %2909 = vmatpush1.bf16.msra.mxu0 %v2906
  %2910 = vmatprep.subr.bf16.mxu0 0
  %2911 = vmatpush1.bf16.msra.mxu0 0
  %2912 = vmatprep.subr.bf16.mxu0 0
  %2913 = vmatpush1.bf16.msra.mxu0 0
  %2914 = vmatprep.subr.bf16.mxu0 0
  %2915 = vmatpush1.bf16.msra.mxu0 0
  %2916 = vmatprep.subr.bf16.mxu0 0
  %2917 = vmatpush1.bf16.msra.mxu0 0
  %2918 = vmatprep.subr.bf16.mxu0 0
  %2919 = vmatpush1.bf16.msra.mxu0 0
  %2920 = vmatprep.subr.bf16.mxu0 0
  %2921 = vmatpush1.bf16.msra.mxu0 0
  %2922 = vmatprep.subr.bf16.mxu0 0
  %2923 = vmatpush1.bf16.msra.mxu0 0
  %2924 = vmatprep.subr.bf16.mxu0 0
  %2925 = vmatpush1.bf16.msra.mxu0 0
  %2926 = vmatprep.subr.bf16.mxu0 0
  %2927 = vmatpush1.bf16.msra.mxu0 0
  %2928 = vmatprep.subr.bf16.mxu0 0
  %2929 = vmatpush1.bf16.msra.mxu0 0
  %2930 = vmatprep.subr.bf16.mxu0 0
  %2931 = vmatpush1.bf16.msra.mxu0 0
  %2932 = vmatprep.subr.bf16.mxu0 0
  %2933 = vmatpush1.bf16.msra.mxu0 0
  %2934 = vmatprep.subr.bf16.mxu0 0
  %2935 = vmatpush1.bf16.msra.mxu0 0
  %2936 = vmatprep.subr.bf16.mxu0 0
  %2937 = vmatpush1.bf16.msra.mxu0 0
  %2938 = vmatprep.subr.bf16.mxu0 0
  %2939 = vmatpush1.bf16.msra.mxu0 0
  %2940 = vmatprep.mubr.bf16.mxu0 0
  %2941 = vmatmul.mubr.bf16.gmra.mrb[0].mxu0 %v2583
  %v2942 = vpop.f32.mrb[0].mxu0
  %v2943 = vadd.f32 0.0, %v2942
  %v2944 = vpop.f32.mrb[0].mxu0
  %v2945 = vpop.f32.mrb[0].mxu0
  %v2946 = vpop.f32.mrb[0].mxu0
  %2947 = vdwg.mxu0
  %v2948 = vmul.f32 %v1978, %v2943
  %2949 = vadd.xlane.f32.xlu0 %v2948
  %v2950 = vpop.xlane.xlu0 %2949
  %v2951 = vsel %vm2632, %v2950, -1e+30
  %v2952 = vsel %vm2581, %v2951, -inf
  %v2953 = vrot.slane %v2952, 4
  %v2954 = vmax.f32 %v2952, %v2953
  %v2955 = vrot.slane %v2954, 2
  %v2956 = vmax.f32 %v2954, %v2955
  %v2957 = vrot.slane %v2956, 1
  %v2958 = vmax.f32 %v2956, %v2957
  %v2959 = vmul.f32 %v2579, %v2958
  %v2960 = vsel %vm2581, %v2959, 0.0
  %2961 = vadd.xlane.f32.xlu0 %v2960
  %v2962 = vpop.xlane.xlu0 %2961
  %v2963 = vsub.f32 %v2950, %v2962
  %v2964 = vmul.f32 %v2963, 1.442695
  %v2965 = vpow.pop %v2964
  %v2966 = vmul.f32 %v2579, %v2965
  %v2967 = vsel %vm2581, %v2966, 0.0
  %v2968 = vrot.slane %v2967, 4
  %v2969 = vadd.f32 %v2967, %v2968
  %v2970 = vrot.slane %v2969, 2
  %v2971 = vadd.f32 %v2969, %v2970
  %v2972 = vrot.slane %v2971, 1
  %v2973 = vadd.f32 %v2971, %v2972
  %v2974 = vadd.f32 %v2973, 1e-16
  %v2975 = vmul.f32 %v2579, %v2974
  %v2976 = vsel %vm2581, %v2975, 0.0
  %2977 = vadd.xlane.f32.xlu0 %v2976
  %v2978 = vpop.xlane.xlu0 %2977
  %v2979 = vrcp.pop %v2978
  %v2980 = vmul.f32 %v2965, %v2979
  %v2981 = vmul.f32 %v2980, %v1978
  %v2982 = vpack.c.bf16 %v2981, %v2981
  %v2984 = vsel %vm398, %v2982, 0
  %2986 = vmatprep.subr.bf16.mxu0 0
  %2987 = vmatpush1.bf16.msra.mxu0 %v2984
  %2988 = vmatprep.subr.bf16.mxu0 0
  %2989 = vmatpush1.bf16.msra.mxu0 0
  %2990 = vmatprep.subr.bf16.mxu0 0
  %2991 = vmatpush1.bf16.msra.mxu0 0
  %2992 = vmatprep.subr.bf16.mxu0 0
  %2993 = vmatpush1.bf16.msra.mxu0 0
  %2994 = vmatprep.subr.bf16.mxu0 0
  %2995 = vmatpush1.bf16.msra.mxu0 0
  %2996 = vmatprep.subr.bf16.mxu0 0
  %2997 = vmatpush1.bf16.msra.mxu0 0
  %2998 = vmatprep.subr.bf16.mxu0 0
  %2999 = vmatpush1.bf16.msra.mxu0 0
  %3000 = vmatprep.subr.bf16.mxu0 0
  %3001 = vmatpush1.bf16.msra.mxu0 0
  %3002 = vmatprep.subr.bf16.mxu0 0
  %3003 = vmatpush1.bf16.msra.mxu0 0
  %3004 = vmatprep.subr.bf16.mxu0 0
  %3005 = vmatpush1.bf16.msra.mxu0 0
  %3006 = vmatprep.subr.bf16.mxu0 0
  %3007 = vmatpush1.bf16.msra.mxu0 0
  %3008 = vmatprep.subr.bf16.mxu0 0
  %3009 = vmatpush1.bf16.msra.mxu0 0
  %3010 = vmatprep.subr.bf16.mxu0 0
  %3011 = vmatpush1.bf16.msra.mxu0 0
  %3012 = vmatprep.subr.bf16.mxu0 0
  %3013 = vmatpush1.bf16.msra.mxu0 0
  %3014 = vmatprep.subr.bf16.mxu0 0
  %3015 = vmatpush1.bf16.msra.mxu0 0
  %3016 = vmatprep.subr.bf16.mxu0 0
  %3017 = vmatpush1.bf16.msra.mxu0 0
  %3018 = vmatprep.mubr.bf16.mxu0 0
  %3019 = vmatmul.mubr.bf16.gmra.mrb[0].mxu0 %v2666
  %v3020 = vpop.f32.mrb[0].mxu0
  %v3021 = vadd.f32 0.0, %v3020
  %v3022 = vpop.f32.mrb[0].mxu0
  %v3023 = vpop.f32.mrb[0].mxu0
  %v3024 = vpop.f32.mrb[0].mxu0
  %3025 = vdwg.mxu0
  %v3026 = vpack.c.bf16 %v3021, %v3021
  %3027 = vmatprep.subr.bf16.mxu0 %v2140
  %3028 = vmatpush1.bf16.msra.mxu0 %v2139
  %3029 = vmatprep.subr.bf16.mxu0 %v2144
  %3030 = vmatpush1.bf16.msra.mxu0 %v2143
  %3031 = vmatprep.subr.bf16.mxu0 %v2148
  %3032 = vmatpush1.bf16.msra.mxu0 %v2147
  %3033 = vmatprep.subr.bf16.mxu0 %v2152
  %3034 = vmatpush1.bf16.msra.mxu0 %v2151
  %3035 = vmatprep.subr.bf16.mxu0 %v2156
  %3036 = vmatpush1.bf16.msra.mxu0 %v2155
  %3037 = vmatprep.subr.bf16.mxu0 %v2160
  %3038 = vmatpush1.bf16.msra.mxu0 %v2159
  %3039 = vmatprep.subr.bf16.mxu0 %v2164
  %3040 = vmatpush1.bf16.msra.mxu0 %v2163
  %3041 = vmatprep.subr.bf16.mxu0 %v2168
  %3042 = vmatpush1.bf16.msra.mxu0 %v2167
  %3043 = vmatprep.subr.bf16.mxu0 0
  %3044 = vmatpush1.bf16.msra.mxu0 0
  %3045 = vmatprep.subr.bf16.mxu0 0
  %3046 = vmatpush1.bf16.msra.mxu0 0
  %3047 = vmatprep.subr.bf16.mxu0 0
  %3048 = vmatpush1.bf16.msra.mxu0 0
  %3049 = vmatprep.subr.bf16.mxu0 0
  %3050 = vmatpush1.bf16.msra.mxu0 0
  %3051 = vmatprep.subr.bf16.mxu0 0
  %3052 = vmatpush1.bf16.msra.mxu0 0
  %3053 = vmatprep.subr.bf16.mxu0 0
  %3054 = vmatpush1.bf16.msra.mxu0 0
  %3055 = vmatprep.subr.bf16.mxu0 0
  %3056 = vmatpush1.bf16.msra.mxu0 0
  %3057 = vmatprep.subr.bf16.mxu0 0
  %3058 = vmatpush1.bf16.msra.mxu0 0
  %3059 = vmatprep.mubr.bf16.mxu0 0
  %3060 = vmatmul.mubr.bf16.gmra.mrb[0].mxu0 %v3026
  %v3061 = vpop.f32.mrb[0].mxu0
  %v3062 = vadd.f32 0.0, %v3061
  %v3063 = vpop.f32.mrb[0].mxu0
  %v3064 = vadd.f32 0.0, %v3063
  %v3065 = vpop.f32.mrb[0].mxu0
  %v3066 = vpop.f32.mrb[0].mxu0
  %3067 = vdwg.mxu0
  %3068 = vmatprep.subr.bf16.mxu0 %v2142
  %3069 = vmatpush1.bf16.msra.mxu0 %v2141
  %3070 = vmatprep.subr.bf16.mxu0 %v2146
  %3071 = vmatpush1.bf16.msra.mxu0 %v2145
  %3072 = vmatprep.subr.bf16.mxu0 %v2150
  %3073 = vmatpush1.bf16.msra.mxu0 %v2149
  %3074 = vmatprep.subr.bf16.mxu0 %v2154
  %3075 = vmatpush1.bf16.msra.mxu0 %v2153
  %3076 = vmatprep.subr.bf16.mxu0 %v2158
  %3077 = vmatpush1.bf16.msra.mxu0 %v2157
  %3078 = vmatprep.subr.bf16.mxu0 %v2162
  %3079 = vmatpush1.bf16.msra.mxu0 %v2161
  %3080 = vmatprep.subr.bf16.mxu0 %v2166
  %3081 = vmatpush1.bf16.msra.mxu0 %v2165
  %3082 = vmatprep.subr.bf16.mxu0 %v2170
  %3083 = vmatpush1.bf16.msra.mxu0 %v2169
  %3084 = vmatprep.subr.bf16.mxu0 0
  %3085 = vmatpush1.bf16.msra.mxu0 0
  %3086 = vmatprep.subr.bf16.mxu0 0
  %3087 = vmatpush1.bf16.msra.mxu0 0
  %3088 = vmatprep.subr.bf16.mxu0 0
  %3089 = vmatpush1.bf16.msra.mxu0 0
  %3090 = vmatprep.subr.bf16.mxu0 0
  %3091 = vmatpush1.bf16.msra.mxu0 0
  %3092 = vmatprep.subr.bf16.mxu0 0
  %3093 = vmatpush1.bf16.msra.mxu0 0
  %3094 = vmatprep.subr.bf16.mxu0 0
  %3095 = vmatpush1.bf16.msra.mxu0 0
  %3096 = vmatprep.subr.bf16.mxu0 0
  %3097 = vmatpush1.bf16.msra.mxu0 0
  %3098 = vmatprep.subr.bf16.mxu0 0
  %3099 = vmatpush1.bf16.msra.mxu0 0
  %3100 = vmatprep.mubr.bf16.mxu0 0
  %3101 = vmatmul.mubr.bf16.gmra.mrb[0].mxu0 %v3026
  %v3102 = vpop.f32.mrb[0].mxu0
  %v3103 = vadd.f32 0.0, %v3102
  %v3104 = vpop.f32.mrb[0].mxu0
  %v3105 = vadd.f32 0.0, %v3104
  %v3106 = vpop.f32.mrb[0].mxu0
  %v3107 = vpop.f32.mrb[0].mxu0
  %3108 = vdwg.mxu0
  %3109 = vmatprep.subr.bf16.mxu0 %v2382
  %3110 = vmatpush1.bf16.msra.mxu0 %v2381
  %3111 = vmatprep.subr.bf16.mxu0 %v2386
  %3112 = vmatpush1.bf16.msra.mxu0 %v2385
  %3113 = vmatprep.subr.bf16.mxu0 %v2390
  %3114 = vmatpush1.bf16.msra.mxu0 %v2389
  %3115 = vmatprep.subr.bf16.mxu0 %v2394
  %3116 = vmatpush1.bf16.msra.mxu0 %v2393
  %3117 = vmatprep.subr.bf16.mxu0 %v2398
  %3118 = vmatpush1.bf16.msra.mxu0 %v2397
  %3119 = vmatprep.subr.bf16.mxu0 %v2402
  %3120 = vmatpush1.bf16.msra.mxu0 %v2401
  %3121 = vmatprep.subr.bf16.mxu0 %v2406
  %3122 = vmatpush1.bf16.msra.mxu0 %v2405
  %3123 = vmatprep.subr.bf16.mxu0 %v2410
  %3124 = vmatpush1.bf16.msra.mxu0 %v2409
  %3125 = vmatprep.subr.bf16.mxu0 0
  %3126 = vmatpush1.bf16.msra.mxu0 0
  %3127 = vmatprep.subr.bf16.mxu0 0
  %3128 = vmatpush1.bf16.msra.mxu0 0
  %3129 = vmatprep.subr.bf16.mxu0 0
  %3130 = vmatpush1.bf16.msra.mxu0 0
  %3131 = vmatprep.subr.bf16.mxu0 0
  %3132 = vmatpush1.bf16.msra.mxu0 0
  %3133 = vmatprep.subr.bf16.mxu0 0
  %3134 = vmatpush1.bf16.msra.mxu0 0
  %3135 = vmatprep.subr.bf16.mxu0 0
  %3136 = vmatpush1.bf16.msra.mxu0 0
  %3137 = vmatprep.subr.bf16.mxu0 0
  %3138 = vmatpush1.bf16.msra.mxu0 0
  %3139 = vmatprep.subr.bf16.mxu0 0
  %3140 = vmatpush1.bf16.msra.mxu0 0
  %3141 = vmatprep.mubr.bf16.mxu0 0
  %3142 = vmatmul.mubr.bf16.gmra.mrb[0].mxu0 %v2904
  %v3143 = vpop.f32.mrb[0].mxu0
  %v3144 = vadd.f32 %v3062, %v3143
  %v3145 = vpop.f32.mrb[0].mxu0
  %v3146 = vadd.f32 %v3064, %v3145
  %v3147 = vpop.f32.mrb[0].mxu0
  %v3148 = vpop.f32.mrb[0].mxu0
  %3149 = vdwg.mxu0
  %3150 = vmatprep.subr.bf16.mxu0 %v2384
  %3151 = vmatpush1.bf16.msra.mxu0 %v2383
  %3152 = vmatprep.subr.bf16.mxu0 %v2388
  %3153 = vmatpush1.bf16.msra.mxu0 %v2387
  %3154 = vmatprep.subr.bf16.mxu0 %v2392
  %3155 = vmatpush1.bf16.msra.mxu0 %v2391
  %3156 = vmatprep.subr.bf16.mxu0 %v2396
  %3157 = vmatpush1.bf16.msra.mxu0 %v2395
  %3158 = vmatprep.subr.bf16.mxu0 %v2400
  %3159 = vmatpush1.bf16.msra.mxu0 %v2399
  %3160 = vmatprep.subr.bf16.mxu0 %v2404
  %3161 = vmatpush1.bf16.msra.mxu0 %v2403
  %3162 = vmatprep.subr.bf16.mxu0 %v2408
  %3163 = vmatpush1.bf16.msra.mxu0 %v2407
  %3164 = vmatprep.subr.bf16.mxu0 %v2412
  %3165 = vmatpush1.bf16.msra.mxu0 %v2411
  %3166 = vmatprep.subr.bf16.mxu0 0
  %3167 = vmatpush1.bf16.msra.mxu0 0
  %3168 = vmatprep.subr.bf16.mxu0 0
  %3169 = vmatpush1.bf16.msra.mxu0 0
  %3170 = vmatprep.subr.bf16.mxu0 0
  %3171 = vmatpush1.bf16.msra.mxu0 0
  %3172 = vmatprep.subr.bf16.mxu0 0
  %3173 = vmatpush1.bf16.msra.mxu0 0
  %3174 = vmatprep.subr.bf16.mxu0 0
  %3175 = vmatpush1.bf16.msra.mxu0 0
  %3176 = vmatprep.subr.bf16.mxu0 0
  %3177 = vmatpush1.bf16.msra.mxu0 0
  %3178 = vmatprep.subr.bf16.mxu0 0
  %3179 = vmatpush1.bf16.msra.mxu0 0
  %3180 = vmatprep.subr.bf16.mxu0 0
  %3181 = vmatpush1.bf16.msra.mxu0 0
  %3182 = vmatprep.mubr.bf16.mxu0 0
  %3183 = vmatmul.mubr.bf16.gmra.mrb[0].mxu0 %v2904
  %v3184 = vpop.f32.mrb[0].mxu0
  %v3185 = vadd.f32 %v3103, %v3184
  %v3186 = vpop.f32.mrb[0].mxu0
  %v3187 = vadd.f32 %v3105, %v3186
  %v3188 = vpop.f32.mrb[0].mxu0
  %v3189 = vpop.f32.mrb[0].mxu0
  %3190 = vdwg.mxu0
  %v3191 = vadd.f32 %v3144, %v2532
  %v3192 = vadd.f32 %v3146, %v2536
  %v3193 = vadd.f32 %v3185, %v2540
  %v3194 = vadd.f32 %v3187, %v2544
  %v3195 = vxor.u32 %v3191, 2147483648
  %v3196 = vmul.f32 %v3195, 1.442695
  %v3197 = vpow.pop %v3196
  %v3198 = vadd.f32 %v3197, 1.0
  %v3199 = vrcp.pop %v3198
  %v3200 = vmul.f32 1.0, %v3199
  %v3201 = vxor.u32 %v3192, 2147483648
  %v3202 = vmul.f32 %v3201, 1.442695
  %v3203 = vpow.pop %v3202
  %v3204 = vadd.f32 %v3203, 1.0
  %v3205 = vrcp.pop %v3204
  %v3206 = vmul.f32 1.0, %v3205
  %v3207 = vtanh.pop %v3193
  %v3208 = vxor.u32 %v3194, 2147483648
  %v3209 = vmul.f32 %v3208, 1.442695
  %v3210 = vpow.pop %v3209
  %v3211 = vadd.f32 %v3210, 1.0
  %v3212 = vrcp.pop %v3211
  %v3213 = vmul.f32 1.0, %v3212
  %v3214 = vmul.f32 %v3206, %v2901
  %v3215 = vmul.f32 %v3200, %v3207
  %v3216 = vadd.f32 %v3214, %v3215
  %v3217 = vtanh.pop %v3216
  %v3218 = vmul.f32 %v3213, %v3217
  %v3219 = vpack.c.bf16 %v3218, %v3218
  %v3221 = vsel %vm2585, %v3219, 0
  %3223 = vmatprep.subr.bf16.mxu0 0
  %3224 = vmatpush1.bf16.msra.mxu0 %v3221
  %3225 = vmatprep.subr.bf16.mxu0 0
  %3226 = vmatpush1.bf16.msra.mxu0 0
  %3227 = vmatprep.subr.bf16.mxu0 0
  %3228 = vmatpush1.bf16.msra.mxu0 0
  %3229 = vmatprep.subr.bf16.mxu0 0
  %3230 = vmatpush1.bf16.msra.mxu0 0
  %3231 = vmatprep.subr.bf16.mxu0 0
  %3232 = vmatpush1.bf16.msra.mxu0 0
  %3233 = vmatprep.subr.bf16.mxu0 0
  %3234 = vmatpush1.bf16.msra.mxu0 0
  %3235 = vmatprep.subr.bf16.mxu0 0
  %3236 = vmatpush1.bf16.msra.mxu0 0
  %3237 = vmatprep.subr.bf16.mxu0 0
  %3238 = vmatpush1.bf16.msra.mxu0 0
  %3239 = vmatprep.subr.bf16.mxu0 0
  %3240 = vmatpush1.bf16.msra.mxu0 0
  %3241 = vmatprep.subr.bf16.mxu0 0
  %3242 = vmatpush1.bf16.msra.mxu0 0
  %3243 = vmatprep.subr.bf16.mxu0 0
  %3244 = vmatpush1.bf16.msra.mxu0 0
  %3245 = vmatprep.subr.bf16.mxu0 0
  %3246 = vmatpush1.bf16.msra.mxu0 0
  %3247 = vmatprep.subr.bf16.mxu0 0
  %3248 = vmatpush1.bf16.msra.mxu0 0
  %3249 = vmatprep.subr.bf16.mxu0 0
  %3250 = vmatpush1.bf16.msra.mxu0 0
  %3251 = vmatprep.subr.bf16.mxu0 0
  %3252 = vmatpush1.bf16.msra.mxu0 0
  %3253 = vmatprep.subr.bf16.mxu0 0
  %3254 = vmatpush1.bf16.msra.mxu0 0
  %3255 = vmatprep.mubr.bf16.mxu0 0
  %3256 = vmatmul.mubr.bf16.gmra.mrb[0].mxu0 %v2583
  %v3257 = vpop.f32.mrb[0].mxu0
  %v3258 = vadd.f32 0.0, %v3257
  %v3259 = vpop.f32.mrb[0].mxu0
  %v3260 = vpop.f32.mrb[0].mxu0
  %v3261 = vpop.f32.mrb[0].mxu0
  %3262 = vdwg.mxu0
  %v3263 = vmul.f32 %v1978, %v3258
  %3264 = vadd.xlane.f32.xlu0 %v3263
  %v3265 = vpop.xlane.xlu0 %3264
  %v3266 = vsel %vm2632, %v3265, -1e+30
  %v3267 = vsel %vm2581, %v3266, -inf
  %v3268 = vrot.slane %v3267, 4
  %v3269 = vmax.f32 %v3267, %v3268
  %v3270 = vrot.slane %v3269, 2
  %v3271 = vmax.f32 %v3269, %v3270
  %v3272 = vrot.slane %v3271, 1
  %v3273 = vmax.f32 %v3271, %v3272
  %v3274 = vmul.f32 %v2579, %v3273
  %v3275 = vsel %vm2581, %v3274, 0.0
  %3276 = vadd.xlane.f32.xlu0 %v3275
  %v3277 = vpop.xlane.xlu0 %3276
  %v3278 = vsub.f32 %v3265, %v3277
  %v3279 = vmul.f32 %v3278, 1.442695
  %v3280 = vpow.pop %v3279
  %v3281 = vmul.f32 %v2579, %v3280
  %v3282 = vsel %vm2581, %v3281, 0.0
  %v3283 = vrot.slane %v3282, 4
  %v3284 = vadd.f32 %v3282, %v3283
  %v3285 = vrot.slane %v3284, 2
  %v3286 = vadd.f32 %v3284, %v3285
  %v3287 = vrot.slane %v3286, 1
  %v3288 = vadd.f32 %v3286, %v3287
  %v3289 = vadd.f32 %v3288, 1e-16
  %v3290 = vmul.f32 %v2579, %v3289
  %v3291 = vsel %vm2581, %v3290, 0.0
  %3292 = vadd.xlane.f32.xlu0 %v3291
  %v3293 = vpop.xlane.xlu0 %3292
  %v3294 = vrcp.pop %v3293
  %v3295 = vmul.f32 %v3280, %v3294
  %v3296 = vmul.f32 %v3295, %v1978
  %v3297 = vpack.c.bf16 %v3296, %v3296
  %v3299 = vsel %vm398, %v3297, 0
  %3301 = vmatprep.subr.bf16.mxu0 0
  %3302 = vmatpush1.bf16.msra.mxu0 %v3299
  %3303 = vmatprep.subr.bf16.mxu0 0
  %3304 = vmatpush1.bf16.msra.mxu0 0
  %3305 = vmatprep.subr.bf16.mxu0 0
  %3306 = vmatpush1.bf16.msra.mxu0 0
  %3307 = vmatprep.subr.bf16.mxu0 0
  %3308 = vmatpush1.bf16.msra.mxu0 0
  %3309 = vmatprep.subr.bf16.mxu0 0
  %3310 = vmatpush1.bf16.msra.mxu0 0
  %3311 = vmatprep.subr.bf16.mxu0 0
  %3312 = vmatpush1.bf16.msra.mxu0 0
  %3313 = vmatprep.subr.bf16.mxu0 0
  %3314 = vmatpush1.bf16.msra.mxu0 0
  %3315 = vmatprep.subr.bf16.mxu0 0
  %3316 = vmatpush1.bf16.msra.mxu0 0
  %3317 = vmatprep.subr.bf16.mxu0 0
  %3318 = vmatpush1.bf16.msra.mxu0 0
  %3319 = vmatprep.subr.bf16.mxu0 0
  %3320 = vmatpush1.bf16.msra.mxu0 0
  %3321 = vmatprep.subr.bf16.mxu0 0
  %3322 = vmatpush1.bf16.msra.mxu0 0
  %3323 = vmatprep.subr.bf16.mxu0 0
  %3324 = vmatpush1.bf16.msra.mxu0 0
  %3325 = vmatprep.subr.bf16.mxu0 0
  %3326 = vmatpush1.bf16.msra.mxu0 0
  %3327 = vmatprep.subr.bf16.mxu0 0
  %3328 = vmatpush1.bf16.msra.mxu0 0
  %3329 = vmatprep.subr.bf16.mxu0 0
  %3330 = vmatpush1.bf16.msra.mxu0 0
  %3331 = vmatprep.subr.bf16.mxu0 0
  %3332 = vmatpush1.bf16.msra.mxu0 0
  %3333 = vmatprep.mubr.bf16.mxu0 0
  %3334 = vmatmul.mubr.bf16.gmra.mrb[0].mxu0 %v2666
  %v3335 = vpop.f32.mrb[0].mxu0
  %v3336 = vadd.f32 0.0, %v3335
  %v3337 = vpop.f32.mrb[0].mxu0
  %v3338 = vpop.f32.mrb[0].mxu0
  %v3339 = vpop.f32.mrb[0].mxu0
  %3340 = vdwg.mxu0
  %3342 = vrot.lane.b32.xlu0 %v3336, 16
  %v3343 = vpop.permute.xlu0 %3342
  %v3345 = vsel %vm447, %v3218, %v3343
  %vm3346 = vcmask 254976
  %3347 = vst.msk [vmem:[%s23] sm:$0x3] %vm3346, %v3345
  // Predicated region
  $region94: #{net_forward.3} parent=0 // pred_check
    _
  $region95: #{net_forward.3} parent=0 // pred_check_branch
    %3349 = sbr.rel (0) target = $region97
  $region96: #{net_forward.3} parent=0 // pred_region
    _
  $region97: #{net_forward.3} parent=0 // pred_fallthru
    _
  // Predicated region
  $region98: #{net_forward.3} parent=0 // pred_check
    _
  $region99: #{net_forward.3} parent=0 // pred_check_branch
    %3351 = sbr.rel (0) target = $region101
  $region100: #{net_forward.3} parent=0 // pred_region
    _
  $region101: #{net_forward.3} parent=0 // pred_fallthru
    _

</llo_original>
